<compile_context>
chip_gen: v7x
topology: tpu7x:2x2x1
jax: 0.10.0
libtpu: 0.0.40
codegen_flags: <defaults>
</compile_context>

<pallas_src>
import functools

import jax
import jax.numpy as jnp
from jax import lax
from jax.experimental import pallas as pl
from jax.experimental.pallas import tpu as pltpu


def _elu(x):
    # min() keeps the unselected exp branch finite (no inf even for large positives).
    return jnp.where(x > 0, x, jnp.exp(jnp.minimum(x, 0.0)) - 1.0)


def _sigmoid(x):
    return 1.0 / (1.0 + jnp.exp(-x))


# ----------------------------------------------------------------------------
# Pallas kernel: one grid step == one batch element (fused conv net + coupling).
# Flat "padded row" coordinate system:  a zero-padded (H+2, W+2) image is stored
# flattened as (Hp*Wp + 2, C) rows (2 extra zero rows so every tap slab has the
# same length).  For tap (di, dj) the contiguous slab starting at di*Wp+dj of
# length H*Wp contains, at row m = r*Wp + c (c < W), exactly the input element
# needed by output pixel (r, c); rows with c >= W are junk and are masked /
# discarded.
#
#   xp_ref    : (NPAD, cin1)   fully zero-padded conv1 input (z1 [+ s]), matmul dtype
#   z2_ref    : (z2c, LW)      z2, channel-major, W-padded with zeros (lane-dense), f32
#   mrow_ref  : (LW, 1)        1.0 on valid rows (c < W), 0.0 on junk rows
#   mcol_ref  : (1, LW)        same mask, lane orientation (for the logdet sum)
#   w1_ref    : (9, cin1, chid) conv1 per-tap weights
#   w2_ref    : (chid, chid)    1x1 conv weight
#   w3_ref    : (9, chid, cnet) conv3 per-tap weights
#   b*_ref    : (1, .)          biases, f32
#   z2o_ref   : (z2c, LW)       z2' output, channel-major W-padded (lane-dense store)
#   logdet_ref: (1, 1)          per-batch logdet
#   hpad_ref  : VMEM (NPAD, chid) scratch, matmul dtype (padded hidden for conv3)
# ----------------------------------------------------------------------------
def _nice_kernel(xp_ref, z2_ref, mrow_ref, mcol_ref, w1_ref, b1_ref, w2_ref, b2_ref,
                 w3_ref, b3_ref, z2o_ref, logdet_ref, hpad_ref, *, H, W, z2c):
    Wp = W + 2
    LW = H * Wp
    chid = w2_ref.shape[1]
    cnet = w3_ref.shape[2]
    mdt = w1_ref.dtype                       # matmul input dtype (bf16 or f32)

    # Loads hoisted: each bias / mask is read exactly once per grid step.
    b1 = b1_ref[...]
    b2 = b2_ref[...]
    b3 = b3_ref[...]
    mrow = mrow_ref[...]                     # (LW, 1)
    mcol = mcol_ref[...]                     # (1, LW)

    # conv1: 3x3 conv as 9 per-tap matmuls over contiguous slabs of the padded
    # input (in-kernel im2col, no 9x data inflation), f32 accumulation, ELU.
    acc1 = jnp.zeros((LW, chid), jnp.float32)
    for tap in range(9):
        off = (tap // 3) * Wp + (tap % 3)
        acc1 = acc1 + jnp.dot(xp_ref[pl.ds(off, LW), :], w1_ref[tap],
                              preferred_element_type=jnp.float32)
    h = _elu(acc1 + b1)

    # conv2: 1x1 conv == single matmul, then ELU.
    h = _elu(jnp.dot(h.astype(mdt), w2_ref[...],
                     preferred_element_type=jnp.float32) + b2)

    # conv3 prep: one contiguous masked store of the hidden into the padded
    # scratch; only the two small uncovered border regions are re-zeroed.
    hpad_ref[pl.ds(0, Wp + 1), :] = jnp.zeros((Wp + 1, chid), mdt)
    hpad_ref[pl.ds((H + 1) * Wp + 1, Wp + 1), :] = jnp.zeros((Wp + 1, chid), mdt)
    hpad_ref[pl.ds(Wp + 1, LW), :] = (h * mrow).astype(mdt)

    # conv3: 9 per-tap slab matmuls, f32 accumulation.
    acc3 = jnp.zeros((LW, cnet), jnp.float32)
    for tap in range(9):
        off = (tap // 3) * Wp + (tap % 3)
        acc3 = acc3 + jnp.dot(hpad_ref[pl.ds(off, LW), :], w3_ref[tap],
                              preferred_element_type=jnp.float32)
    net_t = (acc3 + b3).T                    # (cnet, LW), channel-major

    # Coupling (channel-major, lane-dense) + logdet with the log-sigmoid identity.
    mu = net_t[:z2c, :]
    ls = net_t[z2c:, :] + 2.0
    log_sc = jnp.minimum(ls, 0.0) - jnp.log(1.0 + jnp.exp(-jnp.abs(ls)))   # log sigmoid(ls)
    sc = jnp.exp(log_sc)
    z2o_ref[...] = (z2_ref[...] * sc + mu).astype(z2o_ref.dtype)
    logdet_ref[...] = jnp.sum(log_sc * mcol, keepdims=True)   # junk columns masked out


# ----------------------------------------------------------------------------
# Wrapper: layout / parameter glue + pallas_call.
# ----------------------------------------------------------------------------
def nice_forward(x_nchw, params, s_nchw=None, *, matmul_dtype=jnp.bfloat16):
    """NICE forward (reverse=False, scale=True). Returns (out_nchw, logdet)."""
    w1, b1 = params['w1'], params['b1']     # (Chid, z1c + s_ch, 3, 3)
    w2, b2 = params['w2'], params['b2']     # (Chid, Chid, 1, 1)
    w3, b3 = params['w3'], params['b3']     # (Cnet, Chid, 3, 3)
    z1c = params['z1_channels']

    x = x_nchw.astype(jnp.float32)
    B, C, H, W = x.shape
    Hp, Wp = H + 2, W + 2
    LW = H * Wp
    NPAD = Hp * Wp + 2                      # +2 so every tap slab of length LW fits
    z2c = C - z1c
    chid = w1.shape[0]
    cnet = w3.shape[0]
    assert cnet == 2 * z2c, "only the scale=True path is implemented"

    z1 = x[:, :z1c]
    z2 = x[:, z1c:]

    # Net input: channel-concat of z1 and s.  When s is None we simply skip the
    # concat -- no zeros tensor is built or DMA'd.
    net_in = z1 if s_nchw is None else jnp.concatenate(
        [z1, s_nchw.astype(jnp.float32)], axis=1)
    cin1 = net_in.shape[1]
    assert w1.shape[1] == cin1, (w1.shape, cin1)
    net_in_nhwc = jnp.transpose(net_in, (0, 2, 3, 1))

    # Fully zero-padded conv1 input, flattened to (NPAD, cin1) rows (tiny ~27%
    # inflation at 16x16, ->0 for large images; vs 9x for wrapper-side im2col).
    xp = jnp.pad(net_in_nhwc, ((0, 0), (1, 1), (1, 1), (0, 0))).reshape(B, Hp * Wp, cin1)
    xp = jnp.pad(xp, ((0, 0), (0, NPAD - Hp * Wp), (0, 0))).astype(matmul_dtype)

    # z2 channel-major, W-padded to the same flat row layout as the conv output.
    z2_pad = jnp.pad(z2, ((0, 0), (0, 0), (0, 0), (0, 2))).reshape(B, z2c, LW)

    # Valid-row mask (c < W), in both orientations.
    valid = (jnp.arange(LW, dtype=jnp.int32) % Wp) < W
    mask_row = valid.astype(jnp.float32).reshape(LW, 1)
    mask_col = valid.astype(jnp.float32).reshape(1, LW)

    # torch OIHW -> per-tap matmul-layout weights (glue, runs in XLA once).
    w1_k = jnp.transpose(w1, (2, 3, 1, 0)).reshape(9, cin1, chid).astype(matmul_dtype)
    w2_k = jnp.transpose(w2[:, :, 0, 0], (1, 0)).astype(matmul_dtype)
    w3_k = jnp.transpose(w3, (2, 3, 1, 0)).reshape(9, chid, cnet).astype(matmul_dtype)
    b1_k = b1.reshape(1, chid).astype(jnp.float32)
    b2_k = b2.reshape(1, chid).astype(jnp.float32)
    b3_k = b3.reshape(1, cnet).astype(jnp.float32)

    # Explicit VMEM budget from the actual block sizes (double-buffered inputs/
    # outputs + scratch + temporaries + slack).
    isz = jnp.dtype(matmul_dtype).itemsize
    blk_in = (NPAD * cin1 * isz + z2c * LW * 4 + 2 * LW * 4
              + (9 * cin1 * chid + chid * chid + 9 * chid * cnet) * isz
              + (2 * chid + cnet) * 4)
    blk_out = z2c * LW * 4 + 4
    temps = (4 * LW * chid + 4 * LW * cnet + 6 * z2c * LW) * 4
    est = 2 * (blk_in + blk_out) + NPAD * chid * isz + temps + (2 << 20)
    # TODO(synk): when est approaches v7x's 64 MiB, switch to the row-tiled grid
    # axis instead of raising this limit further.
    vmem_limit = int(min(max(est, 32 << 20), 64 << 20))

    kernel = functools.partial(_nice_kernel, H=H, W=W, z2c=z2c)

    z2o, logdet = pl.pallas_call(
        kernel,
        out_shape=(jax.ShapeDtypeStruct((B, z2c, LW), jnp.float32),
                   jax.ShapeDtypeStruct((B, 1, 1), jnp.float32)),
        grid_spec=pltpu.PrefetchScalarGridSpec(
            num_scalar_prefetch=0,
            grid=(B,),
            in_specs=[
                pl.BlockSpec((None, NPAD, cin1), lambda b: (b, 0, 0)),
                pl.BlockSpec((None, z2c, LW), lambda b: (b, 0, 0)),
                pl.BlockSpec((LW, 1), lambda b: (0, 0)),
                pl.BlockSpec((1, LW), lambda b: (0, 0)),
                pl.BlockSpec((9, cin1, chid), lambda b: (0, 0, 0)),
                pl.BlockSpec((1, chid), lambda b: (0, 0)),
                pl.BlockSpec((chid, chid), lambda b: (0, 0)),
                pl.BlockSpec((1, chid), lambda b: (0, 0)),
                pl.BlockSpec((9, chid, cnet), lambda b: (0, 0, 0)),
                pl.BlockSpec((1, cnet), lambda b: (0, 0)),
            ],
            out_specs=(
                pl.BlockSpec((None, z2c, LW), lambda b: (b, 0, 0)),
                pl.BlockSpec((None, 1, 1), lambda b: (b, 0, 0)),
            ),
            scratch_shapes=[pltpu.VMEM((NPAD, chid), matmul_dtype)],
        ),
        compiler_params=pltpu.CompilerParams(
            dimension_semantics=("parallel",),
            vmem_limit_bytes=vmem_limit),
    )(xp, z2_pad, mask_row, mask_col, w1_k, b1_k, w2_k, b2_k, w3_k, b3_k)

    # Drop the W-pad columns (cheap XLA slice); output is already channel-major NCHW.
    z2o = z2o.reshape(B, z2c, H, Wp)[:, :, :, :W]
    out = jnp.concatenate([z1, z2o], axis=1)
    return out, logdet.reshape(B)


# ----------------------------------------------------------------------------
# Deterministic parameter init (module's reset_parameters: N(0, 0.05) weights,
# zero bias, weight_norm with g initialized to ||v||).
# ----------------------------------------------------------------------------
def init_nice_params(key, in_channels, hidden_channels=None, s_channels=0,
                     factor=2, scale=True):
    if hidden_channels is None:
        hidden_channels = min(8 * in_channels, 512)
    z2c = in_channels // factor
    z1c = in_channels - z2c
    cnet = 2 * z2c if scale else z2c
    k1, k2, k3 = jax.random.split(key, 3)

    def wn(v):  # torch weight_norm with g = ||v|| at init (effective weight == v)
        nrm = jnp.sqrt(jnp.sum(v * v, axis=(1, 2, 3), keepdims=True))
        return nrm * v / nrm

    w1 = wn(0.05 * jax.random.normal(k1, (hidden_channels, z1c + s_channels, 3, 3), jnp.float32))
    w2 = wn(0.05 * jax.random.normal(k2, (hidden_channels, hidden_channels, 1, 1), jnp.float32))
    w3 = wn(0.05 * jax.random.normal(k3, (cnet, hidden_channels, 3, 3), jnp.float32))
    return dict(
        w1=w1, b1=jnp.zeros((hidden_channels,), jnp.float32),
        w2=w2, b2=jnp.zeros((hidden_channels,), jnp.float32),
        w3=w3, b3=jnp.zeros((cnet,), jnp.float32),
        z1_channels=z1c,
    )


# ----------------------------------------------------------------------------
# Pure-JAX reference (XLA convs) for correctness checking.
# ----------------------------------------------------------------------------
def nice_reference(x_nchw, params, s_nchw=None):
    w1, b1 = params['w1'], params['b1']
    w2, b2 = params['w2'], params['b2']
    w3, b3 = params['w3'], params['b3']
    z1c = params['z1_channels']
    x = x_nchw.astype(jnp.float32)
    B = x.shape[0]
    z2c = x.shape[1] - z1c
    z1, z2 = x[:, :z1c], x[:, z1c:]
    h = z1 if s_nchw is None else jnp.concatenate([z1, s_nchw.astype(jnp.float32)], axis=1)

    dn = ('NCHW', 'OIHW', 'NCHW')
    h = lax.conv_general_dilated(h, w1, (1, 1), [(1, 1), (1, 1)], dimension_numbers=dn)
    h = _elu(h + b1[None, :, None, None])
    h = lax.conv_general_dilated(h, w2, (1, 1), [(0, 0), (0, 0)], dimension_numbers=dn)
    h = _elu(h + b2[None, :, None, None])
    net = lax.conv_general_dilated(h, w3, (1, 1), [(1, 1), (1, 1)], dimension_numbers=dn)
    net = net + b3[None, :, None, None]
    mu, log_s = net[:, :z2c], net[:, z2c:]
    sc = _sigmoid(log_s + 2.0)
    z2n = z2 * sc + mu
    logdet = jnp.sum(jnp.log(sc).reshape(B, -1), axis=1)
    return jnp.concatenate([z1, z2n], axis=1), logdet


if __name__ == "__main__":
    key = jax.random.PRNGKey(0)
    kp, kb1, kb2, kb3, kx, ks = jax.random.split(key, 6)

    B, Cin, H, W = 2, 4, 16, 16
    s_ch, hidden = 3, 32          # hidden default would be min(8*4, 512) = 32

    params = init_nice_params(kp, Cin, hidden_channels=hidden, s_channels=s_ch)
    # The module initializes biases to zero; randomize them here so the bias
    # path is actually exercised by the numerical check.
    params['b1'] = 0.1 * jax.random.normal(kb1, params['b1'].shape, jnp.float32)
    params['b2'] = 0.1 * jax.random.normal(kb2, params['b2'].shape, jnp.float32)
    params['b3'] = 0.1 * jax.random.normal(kb3, params['b3'].shape, jnp.float32)

    x = jax.random.normal(kx, (B, Cin, H, W), jnp.float32)
    s = jax.random.normal(ks, (B, s_ch, H, W), jnp.float32)

    ref_out, ref_logdet = nice_reference(x, params, s_nchw=s)

    # Default path: bf16 matmul inputs (MXU), f32 accumulation -- loose tolerance.
    out_bf, logdet_bf = jax.block_until_ready(nice_forward(x, params, s_nchw=s))
    assert out_bf.shape == (B, Cin, H, W) and logdet_bf.shape == (B,)
    assert jnp.allclose(out_bf, ref_out, atol=1e-1, rtol=1e-1), \
        float(jnp.max(jnp.abs(out_bf - ref_out)))
    assert jnp.allclose(logdet_bf, ref_logdet, atol=2.0, rtol=1e-1), (logdet_bf, ref_logdet)

    # f32 matmul path, tight tolerance, with conditioning s.
    out, logdet = jax.block_until_ready(
        nice_forward(x, params, s_nchw=s, matmul_dtype=jnp.float32))
    assert jnp.allclose(out, ref_out, atol=1e-4, rtol=1e-4), \
        float(jnp.max(jnp.abs(out - ref_out)))
    assert jnp.allclose(logdet, ref_logdet, atol=1e-3, rtol=1e-4), (logdet, ref_logdet)

    # s=None path: no zeros conditioning tensor is built or DMA'd.
    p2 = init_nice_params(kp, Cin, hidden_channels=hidden, s_channels=0)
    out2, logdet2 = jax.block_until_ready(
        nice_forward(x, p2, s_nchw=None, matmul_dtype=jnp.float32))
    ref2_out, ref2_logdet = nice_reference(x, p2, s_nchw=None)
    assert jnp.allclose(out2, ref2_out, atol=1e-4, rtol=1e-4)
    assert jnp.allclose(logdet2, ref2_logdet, atol=1e-3, rtol=1e-4)

    print("KERNEL_OK")
</pallas_src>

<mosaic_0001>
module attributes {stable_mosaic.version = 11 : i64} {
  func.func @_nice_kernel(%arg0: i32, %arg1: memref<1x326x5xbf16, #tpu.memory_space<vmem>>, %arg2: memref<1x2x288xf32, #tpu.memory_space<vmem>>, %arg3: memref<288x1xf32, #tpu.memory_space<vmem>>, %arg4: memref<1x288xf32, #tpu.memory_space<vmem>>, %arg5: memref<9x5x32xbf16, #tpu.memory_space<vmem>>, %arg6: memref<1x32xf32, #tpu.memory_space<vmem>>, %arg7: memref<32x32xbf16, #tpu.memory_space<vmem>>, %arg8: memref<1x32xf32, #tpu.memory_space<vmem>>, %arg9: memref<9x32x4xbf16, #tpu.memory_space<vmem>>, %arg10: memref<1x4xf32, #tpu.memory_space<vmem>>, %arg11: memref<1x2x288xf32, #tpu.memory_space<vmem>>, %arg12: memref<1x1x1xf32, #tpu.memory_space<vmem>>, %arg13: memref<326x32xbf16, #tpu.memory_space<vmem>>) attributes {dimension_semantics = [#tpu.dimension_semantics<parallel>], iteration_bounds = array<i64: 2>, scalar_prefetch = 0 : i64, scratch_operands = 1 : i64, tpu.core_type = #tpu.core_type<tc>, window_params = [{transform_indices = @transform_0, window_bounds = array<i64: 1, 326, 5>}, {transform_indices = @transform_1, window_bounds = array<i64: 1, 2, 288>}, {pipeline_mode = #tpu.pipeline_mode<synchronous>, transform_indices = @transform_2, window_bounds = array<i64: 288, 1>}, {pipeline_mode = #tpu.pipeline_mode<synchronous>, transform_indices = @transform_3, window_bounds = array<i64: 1, 288>}, {pipeline_mode = #tpu.pipeline_mode<synchronous>, transform_indices = @transform_4, window_bounds = array<i64: 9, 5, 32>}, {pipeline_mode = #tpu.pipeline_mode<synchronous>, transform_indices = @transform_5, window_bounds = array<i64: 1, 32>}, {pipeline_mode = #tpu.pipeline_mode<synchronous>, transform_indices = @transform_6, window_bounds = array<i64: 32, 32>}, {pipeline_mode = #tpu.pipeline_mode<synchronous>, transform_indices = @transform_7, window_bounds = array<i64: 1, 32>}, {pipeline_mode = #tpu.pipeline_mode<synchronous>, transform_indices = @transform_8, window_bounds = array<i64: 9, 32, 4>}, {pipeline_mode = #tpu.pipeline_mode<synchronous>, transform_indices = @transform_9, window_bounds = array<i64: 1, 4>}, {transform_indices = @transform_10, window_bounds = array<i64: 1, 2, 288>}, {transform_indices = @transform_11, window_bounds = array<i64: 1, 1, 1>}]} {
    %c0 = arith.constant 0 : index
    %c0_0 = arith.constant 0 : index
    %0 = vector.load %arg6[%c0, %c0_0] : memref<1x32xf32, #tpu.memory_space<vmem>>, vector<1x32xf32>
    %c0_1 = arith.constant 0 : index
    %c0_2 = arith.constant 0 : index
    %1 = vector.load %arg8[%c0_1, %c0_2] : memref<1x32xf32, #tpu.memory_space<vmem>>, vector<1x32xf32>
    %c0_3 = arith.constant 0 : index
    %c0_4 = arith.constant 0 : index
    %2 = vector.load %arg10[%c0_3, %c0_4] : memref<1x4xf32, #tpu.memory_space<vmem>>, vector<1x4xf32>
    %c0_5 = arith.constant 0 : index
    %c0_6 = arith.constant 0 : index
    %3 = vector.load %arg3[%c0_5, %c0_6] : memref<288x1xf32, #tpu.memory_space<vmem>>, vector<288x1xf32>
    %c0_7 = arith.constant 0 : index
    %c0_8 = arith.constant 0 : index
    %4 = vector.load %arg4[%c0_7, %c0_8] : memref<1x288xf32, #tpu.memory_space<vmem>>, vector<1x288xf32>
    %cst = arith.constant 0.000000e+00 : f32
    %5 = vector.broadcast %cst : f32 to vector<288x32xf32>
    %c0_9 = arith.constant 0 : index
    %c0_10 = arith.constant 0 : index
    %c0_11 = arith.constant 0 : index
    %6 = vector.load %arg1[%c0_9, %c0_10, %c0_11] : memref<1x326x5xbf16, #tpu.memory_space<vmem>>, vector<1x288x5xbf16>
    %7 = vector.shape_cast %6 : vector<1x288x5xbf16> to vector<288x5xbf16>
    %c0_12 = arith.constant 0 : index
    %c0_13 = arith.constant 0 : index
    %c0_14 = arith.constant 0 : index
    %8 = vector.load %arg5[%c0_12, %c0_13, %c0_14] : memref<9x5x32xbf16, #tpu.memory_space<vmem>>, vector<1x5x32xbf16>
    %9 = vector.shape_cast %8 : vector<1x5x32xbf16> to vector<5x32xbf16>
    %cst_15 = arith.constant dense<0.000000e+00> : vector<288x32xf32>
    %10 = tpu.matmul %7, %9, %cst_15 {dimension_numbers = #tpu.dot_dimension_numbers<[1], [0], [0], [1], [0, 0, 1, 1], [], []>} : vector<288x5xbf16>, vector<5x32xbf16>, vector<288x32xf32> -> vector<288x32xf32>
    %11 = arith.addf %5, %10 : vector<288x32xf32>
    %c0_16 = arith.constant 0 : index
    %c1 = arith.constant 1 : index
    %c0_17 = arith.constant 0 : index
    %12 = vector.load %arg1[%c0_16, %c1, %c0_17] : memref<1x326x5xbf16, #tpu.memory_space<vmem>>, vector<1x288x5xbf16>
    %13 = vector.shape_cast %12 : vector<1x288x5xbf16> to vector<288x5xbf16>
    %c1_18 = arith.constant 1 : index
    %c0_19 = arith.constant 0 : index
    %c0_20 = arith.constant 0 : index
    %14 = vector.load %arg5[%c1_18, %c0_19, %c0_20] : memref<9x5x32xbf16, #tpu.memory_space<vmem>>, vector<1x5x32xbf16>
    %15 = vector.shape_cast %14 : vector<1x5x32xbf16> to vector<5x32xbf16>
    %cst_21 = arith.constant dense<0.000000e+00> : vector<288x32xf32>
    %16 = tpu.matmul %13, %15, %cst_21 {dimension_numbers = #tpu.dot_dimension_numbers<[1], [0], [0], [1], [0, 0, 1, 1], [], []>} : vector<288x5xbf16>, vector<5x32xbf16>, vector<288x32xf32> -> vector<288x32xf32>
    %17 = arith.addf %11, %16 : vector<288x32xf32>
    %c0_22 = arith.constant 0 : index
    %c2 = arith.constant 2 : index
    %c0_23 = arith.constant 0 : index
    %18 = vector.load %arg1[%c0_22, %c2, %c0_23] : memref<1x326x5xbf16, #tpu.memory_space<vmem>>, vector<1x288x5xbf16>
    %19 = vector.shape_cast %18 : vector<1x288x5xbf16> to vector<288x5xbf16>
    %c2_24 = arith.constant 2 : index
    %c0_25 = arith.constant 0 : index
    %c0_26 = arith.constant 0 : index
    %20 = vector.load %arg5[%c2_24, %c0_25, %c0_26] : memref<9x5x32xbf16, #tpu.memory_space<vmem>>, vector<1x5x32xbf16>
    %21 = vector.shape_cast %20 : vector<1x5x32xbf16> to vector<5x32xbf16>
    %cst_27 = arith.constant dense<0.000000e+00> : vector<288x32xf32>
    %22 = tpu.matmul %19, %21, %cst_27 {dimension_numbers = #tpu.dot_dimension_numbers<[1], [0], [0], [1], [0, 0, 1, 1], [], []>} : vector<288x5xbf16>, vector<5x32xbf16>, vector<288x32xf32> -> vector<288x32xf32>
    %23 = arith.addf %17, %22 : vector<288x32xf32>
    %c0_28 = arith.constant 0 : index
    %c18 = arith.constant 18 : index
    %c0_29 = arith.constant 0 : index
    %24 = vector.load %arg1[%c0_28, %c18, %c0_29] : memref<1x326x5xbf16, #tpu.memory_space<vmem>>, vector<1x288x5xbf16>
    %25 = vector.shape_cast %24 : vector<1x288x5xbf16> to vector<288x5xbf16>
    %c3 = arith.constant 3 : index
    %c0_30 = arith.constant 0 : index
    %c0_31 = arith.constant 0 : index
    %26 = vector.load %arg5[%c3, %c0_30, %c0_31] : memref<9x5x32xbf16, #tpu.memory_space<vmem>>, vector<1x5x32xbf16>
    %27 = vector.shape_cast %26 : vector<1x5x32xbf16> to vector<5x32xbf16>
    %cst_32 = arith.constant dense<0.000000e+00> : vector<288x32xf32>
    %28 = tpu.matmul %25, %27, %cst_32 {dimension_numbers = #tpu.dot_dimension_numbers<[1], [0], [0], [1], [0, 0, 1, 1], [], []>} : vector<288x5xbf16>, vector<5x32xbf16>, vector<288x32xf32> -> vector<288x32xf32>
    %29 = arith.addf %23, %28 : vector<288x32xf32>
    %c0_33 = arith.constant 0 : index
    %c19 = arith.constant 19 : index
    %c0_34 = arith.constant 0 : index
    %30 = vector.load %arg1[%c0_33, %c19, %c0_34] : memref<1x326x5xbf16, #tpu.memory_space<vmem>>, vector<1x288x5xbf16>
    %31 = vector.shape_cast %30 : vector<1x288x5xbf16> to vector<288x5xbf16>
    %c4 = arith.constant 4 : index
    %c0_35 = arith.constant 0 : index
    %c0_36 = arith.constant 0 : index
    %32 = vector.load %arg5[%c4, %c0_35, %c0_36] : memref<9x5x32xbf16, #tpu.memory_space<vmem>>, vector<1x5x32xbf16>
    %33 = vector.shape_cast %32 : vector<1x5x32xbf16> to vector<5x32xbf16>
    %cst_37 = arith.constant dense<0.000000e+00> : vector<288x32xf32>
    %34 = tpu.matmul %31, %33, %cst_37 {dimension_numbers = #tpu.dot_dimension_numbers<[1], [0], [0], [1], [0, 0, 1, 1], [], []>} : vector<288x5xbf16>, vector<5x32xbf16>, vector<288x32xf32> -> vector<288x32xf32>
    %35 = arith.addf %29, %34 : vector<288x32xf32>
    %c0_38 = arith.constant 0 : index
    %c20 = arith.constant 20 : index
    %c0_39 = arith.constant 0 : index
    %36 = vector.load %arg1[%c0_38, %c20, %c0_39] : memref<1x326x5xbf16, #tpu.memory_space<vmem>>, vector<1x288x5xbf16>
    %37 = vector.shape_cast %36 : vector<1x288x5xbf16> to vector<288x5xbf16>
    %c5 = arith.constant 5 : index
    %c0_40 = arith.constant 0 : index
    %c0_41 = arith.constant 0 : index
    %38 = vector.load %arg5[%c5, %c0_40, %c0_41] : memref<9x5x32xbf16, #tpu.memory_space<vmem>>, vector<1x5x32xbf16>
    %39 = vector.shape_cast %38 : vector<1x5x32xbf16> to vector<5x32xbf16>
    %cst_42 = arith.constant dense<0.000000e+00> : vector<288x32xf32>
    %40 = tpu.matmul %37, %39, %cst_42 {dimension_numbers = #tpu.dot_dimension_numbers<[1], [0], [0], [1], [0, 0, 1, 1], [], []>} : vector<288x5xbf16>, vector<5x32xbf16>, vector<288x32xf32> -> vector<288x32xf32>
    %41 = arith.addf %35, %40 : vector<288x32xf32>
    %c0_43 = arith.constant 0 : index
    %c36 = arith.constant 36 : index
    %c0_44 = arith.constant 0 : index
    %42 = vector.load %arg1[%c0_43, %c36, %c0_44] : memref<1x326x5xbf16, #tpu.memory_space<vmem>>, vector<1x288x5xbf16>
    %43 = vector.shape_cast %42 : vector<1x288x5xbf16> to vector<288x5xbf16>
    %c6 = arith.constant 6 : index
    %c0_45 = arith.constant 0 : index
    %c0_46 = arith.constant 0 : index
    %44 = vector.load %arg5[%c6, %c0_45, %c0_46] : memref<9x5x32xbf16, #tpu.memory_space<vmem>>, vector<1x5x32xbf16>
    %45 = vector.shape_cast %44 : vector<1x5x32xbf16> to vector<5x32xbf16>
    %cst_47 = arith.constant dense<0.000000e+00> : vector<288x32xf32>
    %46 = tpu.matmul %43, %45, %cst_47 {dimension_numbers = #tpu.dot_dimension_numbers<[1], [0], [0], [1], [0, 0, 1, 1], [], []>} : vector<288x5xbf16>, vector<5x32xbf16>, vector<288x32xf32> -> vector<288x32xf32>
    %47 = arith.addf %41, %46 : vector<288x32xf32>
    %c0_48 = arith.constant 0 : index
    %c37 = arith.constant 37 : index
    %c0_49 = arith.constant 0 : index
    %48 = vector.load %arg1[%c0_48, %c37, %c0_49] : memref<1x326x5xbf16, #tpu.memory_space<vmem>>, vector<1x288x5xbf16>
    %49 = vector.shape_cast %48 : vector<1x288x5xbf16> to vector<288x5xbf16>
    %c7 = arith.constant 7 : index
    %c0_50 = arith.constant 0 : index
    %c0_51 = arith.constant 0 : index
    %50 = vector.load %arg5[%c7, %c0_50, %c0_51] : memref<9x5x32xbf16, #tpu.memory_space<vmem>>, vector<1x5x32xbf16>
    %51 = vector.shape_cast %50 : vector<1x5x32xbf16> to vector<5x32xbf16>
    %cst_52 = arith.constant dense<0.000000e+00> : vector<288x32xf32>
    %52 = tpu.matmul %49, %51, %cst_52 {dimension_numbers = #tpu.dot_dimension_numbers<[1], [0], [0], [1], [0, 0, 1, 1], [], []>} : vector<288x5xbf16>, vector<5x32xbf16>, vector<288x32xf32> -> vector<288x32xf32>
    %53 = arith.addf %47, %52 : vector<288x32xf32>
    %c0_53 = arith.constant 0 : index
    %c38 = arith.constant 38 : index
    %c0_54 = arith.constant 0 : index
    %54 = vector.load %arg1[%c0_53, %c38, %c0_54] : memref<1x326x5xbf16, #tpu.memory_space<vmem>>, vector<1x288x5xbf16>
    %55 = vector.shape_cast %54 : vector<1x288x5xbf16> to vector<288x5xbf16>
    %c8 = arith.constant 8 : index
    %c0_55 = arith.constant 0 : index
    %c0_56 = arith.constant 0 : index
    %56 = vector.load %arg5[%c8, %c0_55, %c0_56] : memref<9x5x32xbf16, #tpu.memory_space<vmem>>, vector<1x5x32xbf16>
    %57 = vector.shape_cast %56 : vector<1x5x32xbf16> to vector<5x32xbf16>
    %cst_57 = arith.constant dense<0.000000e+00> : vector<288x32xf32>
    %58 = tpu.matmul %55, %57, %cst_57 {dimension_numbers = #tpu.dot_dimension_numbers<[1], [0], [0], [1], [0, 0, 1, 1], [], []>} : vector<288x5xbf16>, vector<5x32xbf16>, vector<288x32xf32> -> vector<288x32xf32>
    %59 = arith.addf %53, %58 : vector<288x32xf32>
    %60 = vector.broadcast %0 : vector<1x32xf32> to vector<288x32xf32>
    %61 = arith.addf %59, %60 : vector<288x32xf32>
    %cst_58 = arith.constant 0.000000e+00 : f32
    %62 = vector.broadcast %cst_58 : f32 to vector<288x32xf32>
    %63 = arith.cmpf ogt, %61, %62 : vector<288x32xf32>
    %cst_59 = arith.constant 0.000000e+00 : f32
    %64 = vector.broadcast %cst_59 : f32 to vector<288x32xf32>
    %65 = arith.minimumf %61, %64 : vector<288x32xf32>
    %66 = math.exp %65 : vector<288x32xf32>
    %cst_60 = arith.constant 1.000000e+00 : f32
    %67 = vector.broadcast %cst_60 : f32 to vector<288x32xf32>
    %68 = arith.subf %66, %67 : vector<288x32xf32>
    %69 = arith.select %63, %61, %68 : vector<288x32xi1>, vector<288x32xf32>
    %70 = arith.truncf %69 : vector<288x32xf32> to vector<288x32xbf16>
    %c0_61 = arith.constant 0 : index
    %c0_62 = arith.constant 0 : index
    %71 = vector.load %arg7[%c0_61, %c0_62] : memref<32x32xbf16, #tpu.memory_space<vmem>>, vector<32x32xbf16>
    %cst_63 = arith.constant dense<0.000000e+00> : vector<288x32xf32>
    %72 = tpu.matmul %70, %71, %cst_63 {dimension_numbers = #tpu.dot_dimension_numbers<[1], [0], [0], [1], [0, 0, 1, 1], [], []>} : vector<288x32xbf16>, vector<32x32xbf16>, vector<288x32xf32> -> vector<288x32xf32>
    %73 = vector.broadcast %1 : vector<1x32xf32> to vector<288x32xf32>
    %74 = arith.addf %72, %73 : vector<288x32xf32>
    %cst_64 = arith.constant 0.000000e+00 : f32
    %75 = vector.broadcast %cst_64 : f32 to vector<288x32xf32>
    %76 = arith.cmpf ogt, %74, %75 : vector<288x32xf32>
    %cst_65 = arith.constant 0.000000e+00 : f32
    %77 = vector.broadcast %cst_65 : f32 to vector<288x32xf32>
    %78 = arith.minimumf %74, %77 : vector<288x32xf32>
    %79 = math.exp %78 : vector<288x32xf32>
    %cst_66 = arith.constant 1.000000e+00 : f32
    %80 = vector.broadcast %cst_66 : f32 to vector<288x32xf32>
    %81 = arith.subf %79, %80 : vector<288x32xf32>
    %82 = arith.select %76, %74, %81 : vector<288x32xi1>, vector<288x32xf32>
    %cst_67 = arith.constant 0.000000e+00 : bf16
    %83 = vector.broadcast %cst_67 : bf16 to vector<19x32xbf16>
    %c0_68 = arith.constant 0 : index
    %c0_69 = arith.constant 0 : index
    %84 = vector.load %arg13[%c0_68, %c0_69] : memref<326x32xbf16, #tpu.memory_space<vmem>>, vector<19x32xbf16>
    tpu.vector_store %arg13[%c0_68, %c0_69], %83 {strides = array<i32>} : memref<326x32xbf16, #tpu.memory_space<vmem>>, vector<19x32xbf16>,
    %cst_70 = arith.constant 0.000000e+00 : bf16
    %85 = vector.broadcast %cst_70 : bf16 to vector<19x32xbf16>
    %c307 = arith.constant 307 : index
    %c0_71 = arith.constant 0 : index
    %86 = vector.load %arg13[%c307, %c0_71] : memref<326x32xbf16, #tpu.memory_space<vmem>>, vector<19x32xbf16>
    tpu.vector_store %arg13[%c307, %c0_71], %85 {strides = array<i32>} : memref<326x32xbf16, #tpu.memory_space<vmem>>, vector<19x32xbf16>,
    %87 = vector.broadcast %3 : vector<288x1xf32> to vector<288x32xf32>
    %88 = arith.mulf %82, %87 : vector<288x32xf32>
    %89 = arith.truncf %88 : vector<288x32xf32> to vector<288x32xbf16>
    %c19_72 = arith.constant 19 : index
    %c0_73 = arith.constant 0 : index
    %90 = vector.load %arg13[%c19_72, %c0_73] : memref<326x32xbf16, #tpu.memory_space<vmem>>, vector<288x32xbf16>
    tpu.vector_store %arg13[%c19_72, %c0_73], %89 {strides = array<i32>} : memref<326x32xbf16, #tpu.memory_space<vmem>>, vector<288x32xbf16>,
    %cst_74 = arith.constant 0.000000e+00 : f32
    %91 = vector.broadcast %cst_74 : f32 to vector<288x4xf32>
    %c0_75 = arith.constant 0 : index
    %c0_76 = arith.constant 0 : index
    %92 = vector.load %arg13[%c0_75, %c0_76] : memref<326x32xbf16, #tpu.memory_space<vmem>>, vector<288x32xbf16>
    %c0_77 = arith.constant 0 : index
    %c0_78 = arith.constant 0 : index
    %c0_79 = arith.constant 0 : index
    %93 = vector.load %arg9[%c0_77, %c0_78, %c0_79] : memref<9x32x4xbf16, #tpu.memory_space<vmem>>, vector<1x32x4xbf16>
    %94 = vector.shape_cast %93 : vector<1x32x4xbf16> to vector<32x4xbf16>
    %cst_80 = arith.constant dense<0.000000e+00> : vector<288x4xf32>
    %95 = tpu.matmul %92, %94, %cst_80 {dimension_numbers = #tpu.dot_dimension_numbers<[1], [0], [0], [1], [0, 0, 1, 1], [], []>} : vector<288x32xbf16>, vector<32x4xbf16>, vector<288x4xf32> -> vector<288x4xf32>
    %96 = arith.addf %91, %95 : vector<288x4xf32>
    %c1_81 = arith.constant 1 : index
    %c0_82 = arith.constant 0 : index
    %97 = vector.load %arg13[%c1_81, %c0_82] : memref<326x32xbf16, #tpu.memory_space<vmem>>, vector<288x32xbf16>
    %c1_83 = arith.constant 1 : index
    %c0_84 = arith.constant 0 : index
    %c0_85 = arith.constant 0 : index
    %98 = vector.load %arg9[%c1_83, %c0_84, %c0_85] : memref<9x32x4xbf16, #tpu.memory_space<vmem>>, vector<1x32x4xbf16>
    %99 = vector.shape_cast %98 : vector<1x32x4xbf16> to vector<32x4xbf16>
    %cst_86 = arith.constant dense<0.000000e+00> : vector<288x4xf32>
    %100 = tpu.matmul %97, %99, %cst_86 {dimension_numbers = #tpu.dot_dimension_numbers<[1], [0], [0], [1], [0, 0, 1, 1], [], []>} : vector<288x32xbf16>, vector<32x4xbf16>, vector<288x4xf32> -> vector<288x4xf32>
    %101 = arith.addf %96, %100 : vector<288x4xf32>
    %c2_87 = arith.constant 2 : index
    %c0_88 = arith.constant 0 : index
    %102 = vector.load %arg13[%c2_87, %c0_88] : memref<326x32xbf16, #tpu.memory_space<vmem>>, vector<288x32xbf16>
    %c2_89 = arith.constant 2 : index
    %c0_90 = arith.constant 0 : index
    %c0_91 = arith.constant 0 : index
    %103 = vector.load %arg9[%c2_89, %c0_90, %c0_91] : memref<9x32x4xbf16, #tpu.memory_space<vmem>>, vector<1x32x4xbf16>
    %104 = vector.shape_cast %103 : vector<1x32x4xbf16> to vector<32x4xbf16>
    %cst_92 = arith.constant dense<0.000000e+00> : vector<288x4xf32>
    %105 = tpu.matmul %102, %104, %cst_92 {dimension_numbers = #tpu.dot_dimension_numbers<[1], [0], [0], [1], [0, 0, 1, 1], [], []>} : vector<288x32xbf16>, vector<32x4xbf16>, vector<288x4xf32> -> vector<288x4xf32>
    %106 = arith.addf %101, %105 : vector<288x4xf32>
    %c18_93 = arith.constant 18 : index
    %c0_94 = arith.constant 0 : index
    %107 = vector.load %arg13[%c18_93, %c0_94] : memref<326x32xbf16, #tpu.memory_space<vmem>>, vector<288x32xbf16>
    %c3_95 = arith.constant 3 : index
    %c0_96 = arith.constant 0 : index
    %c0_97 = arith.constant 0 : index
    %108 = vector.load %arg9[%c3_95, %c0_96, %c0_97] : memref<9x32x4xbf16, #tpu.memory_space<vmem>>, vector<1x32x4xbf16>
    %109 = vector.shape_cast %108 : vector<1x32x4xbf16> to vector<32x4xbf16>
    %cst_98 = arith.constant dense<0.000000e+00> : vector<288x4xf32>
    %110 = tpu.matmul %107, %109, %cst_98 {dimension_numbers = #tpu.dot_dimension_numbers<[1], [0], [0], [1], [0, 0, 1, 1], [], []>} : vector<288x32xbf16>, vector<32x4xbf16>, vector<288x4xf32> -> vector<288x4xf32>
    %111 = arith.addf %106, %110 : vector<288x4xf32>
    %c19_99 = arith.constant 19 : index
    %c0_100 = arith.constant 0 : index
    %112 = vector.load %arg13[%c19_99, %c0_100] : memref<326x32xbf16, #tpu.memory_space<vmem>>, vector<288x32xbf16>
    %c4_101 = arith.constant 4 : index
    %c0_102 = arith.constant 0 : index
    %c0_103 = arith.constant 0 : index
    %113 = vector.load %arg9[%c4_101, %c0_102, %c0_103] : memref<9x32x4xbf16, #tpu.memory_space<vmem>>, vector<1x32x4xbf16>
    %114 = vector.shape_cast %113 : vector<1x32x4xbf16> to vector<32x4xbf16>
    %cst_104 = arith.constant dense<0.000000e+00> : vector<288x4xf32>
    %115 = tpu.matmul %112, %114, %cst_104 {dimension_numbers = #tpu.dot_dimension_numbers<[1], [0], [0], [1], [0, 0, 1, 1], [], []>} : vector<288x32xbf16>, vector<32x4xbf16>, vector<288x4xf32> -> vector<288x4xf32>
    %116 = arith.addf %111, %115 : vector<288x4xf32>
    %c20_105 = arith.constant 20 : index
    %c0_106 = arith.constant 0 : index
    %117 = vector.load %arg13[%c20_105, %c0_106] : memref<326x32xbf16, #tpu.memory_space<vmem>>, vector<288x32xbf16>
    %c5_107 = arith.constant 5 : index
    %c0_108 = arith.constant 0 : index
    %c0_109 = arith.constant 0 : index
    %118 = vector.load %arg9[%c5_107, %c0_108, %c0_109] : memref<9x32x4xbf16, #tpu.memory_space<vmem>>, vector<1x32x4xbf16>
    %119 = vector.shape_cast %118 : vector<1x32x4xbf16> to vector<32x4xbf16>
    %cst_110 = arith.constant dense<0.000000e+00> : vector<288x4xf32>
    %120 = tpu.matmul %117, %119, %cst_110 {dimension_numbers = #tpu.dot_dimension_numbers<[1], [0], [0], [1], [0, 0, 1, 1], [], []>} : vector<288x32xbf16>, vector<32x4xbf16>, vector<288x4xf32> -> vector<288x4xf32>
    %121 = arith.addf %116, %120 : vector<288x4xf32>
    %c36_111 = arith.constant 36 : index
    %c0_112 = arith.constant 0 : index
    %122 = vector.load %arg13[%c36_111, %c0_112] : memref<326x32xbf16, #tpu.memory_space<vmem>>, vector<288x32xbf16>
    %c6_113 = arith.constant 6 : index
    %c0_114 = arith.constant 0 : index
    %c0_115 = arith.constant 0 : index
    %123 = vector.load %arg9[%c6_113, %c0_114, %c0_115] : memref<9x32x4xbf16, #tpu.memory_space<vmem>>, vector<1x32x4xbf16>
    %124 = vector.shape_cast %123 : vector<1x32x4xbf16> to vector<32x4xbf16>
    %cst_116 = arith.constant dense<0.000000e+00> : vector<288x4xf32>
    %125 = tpu.matmul %122, %124, %cst_116 {dimension_numbers = #tpu.dot_dimension_numbers<[1], [0], [0], [1], [0, 0, 1, 1], [], []>} : vector<288x32xbf16>, vector<32x4xbf16>, vector<288x4xf32> -> vector<288x4xf32>
    %126 = arith.addf %121, %125 : vector<288x4xf32>
    %c37_117 = arith.constant 37 : index
    %c0_118 = arith.constant 0 : index
    %127 = vector.load %arg13[%c37_117, %c0_118] : memref<326x32xbf16, #tpu.memory_space<vmem>>, vector<288x32xbf16>
    %c7_119 = arith.constant 7 : index
    %c0_120 = arith.constant 0 : index
    %c0_121 = arith.constant 0 : index
    %128 = vector.load %arg9[%c7_119, %c0_120, %c0_121] : memref<9x32x4xbf16, #tpu.memory_space<vmem>>, vector<1x32x4xbf16>
    %129 = vector.shape_cast %128 : vector<1x32x4xbf16> to vector<32x4xbf16>
    %cst_122 = arith.constant dense<0.000000e+00> : vector<288x4xf32>
    %130 = tpu.matmul %127, %129, %cst_122 {dimension_numbers = #tpu.dot_dimension_numbers<[1], [0], [0], [1], [0, 0, 1, 1], [], []>} : vector<288x32xbf16>, vector<32x4xbf16>, vector<288x4xf32> -> vector<288x4xf32>
    %131 = arith.addf %126, %130 : vector<288x4xf32>
    %c38_123 = arith.constant 38 : index
    %c0_124 = arith.constant 0 : index
    %132 = vector.load %arg13[%c38_123, %c0_124] : memref<326x32xbf16, #tpu.memory_space<vmem>>, vector<288x32xbf16>
    %c8_125 = arith.constant 8 : index
    %c0_126 = arith.constant 0 : index
    %c0_127 = arith.constant 0 : index
    %133 = vector.load %arg9[%c8_125, %c0_126, %c0_127] : memref<9x32x4xbf16, #tpu.memory_space<vmem>>, vector<1x32x4xbf16>
    %134 = vector.shape_cast %133 : vector<1x32x4xbf16> to vector<32x4xbf16>
    %cst_128 = arith.constant dense<0.000000e+00> : vector<288x4xf32>
    %135 = tpu.matmul %132, %134, %cst_128 {dimension_numbers = #tpu.dot_dimension_numbers<[1], [0], [0], [1], [0, 0, 1, 1], [], []>} : vector<288x32xbf16>, vector<32x4xbf16>, vector<288x4xf32> -> vector<288x4xf32>
    %136 = arith.addf %131, %135 : vector<288x4xf32>
    %137 = vector.broadcast %2 : vector<1x4xf32> to vector<288x4xf32>
    %138 = arith.addf %136, %137 : vector<288x4xf32>
    %139 = tpu.transpose %138, [1, 0] : vector<288x4xf32> -> vector<4x288xf32>
    %140 = vector.extract_strided_slice %139 {offsets = [0, 0], sizes = [2, 288], strides = [1, 1]} : vector<4x288xf32> to vector<2x288xf32>
    %141 = vector.extract_strided_slice %139 {offsets = [2, 0], sizes = [2, 288], strides = [1, 1]} : vector<4x288xf32> to vector<2x288xf32>
    %cst_129 = arith.constant 2.000000e+00 : f32
    %142 = vector.broadcast %cst_129 : f32 to vector<2x288xf32>
    %143 = arith.addf %141, %142 : vector<2x288xf32>
    %cst_130 = arith.constant 0.000000e+00 : f32
    %144 = vector.broadcast %cst_130 : f32 to vector<2x288xf32>
    %145 = arith.minimumf %143, %144 : vector<2x288xf32>
    %146 = math.absf %143 : vector<2x288xf32>
    %cst_131 = arith.constant 0.000000e+00 : f32
    %147 = vector.broadcast %cst_131 : f32 to vector<2x288xf32>
    %148 = arith.subf %147, %146 : vector<2x288xf32>
    %149 = math.exp %148 : vector<2x288xf32>
    %cst_132 = arith.constant 1.000000e+00 : f32
    %150 = vector.broadcast %cst_132 : f32 to vector<2x288xf32>
    %151 = arith.addf %150, %149 : vector<2x288xf32>
    %152 = math.log %151 : vector<2x288xf32>
    %153 = arith.subf %145, %152 : vector<2x288xf32>
    %154 = math.exp %153 : vector<2x288xf32>
    %c0_133 = arith.constant 0 : index
    %c0_134 = arith.constant 0 : index
    %c0_135 = arith.constant 0 : index
    %155 = vector.load %arg2[%c0_133, %c0_134, %c0_135] : memref<1x2x288xf32, #tpu.memory_space<vmem>>, vector<1x2x288xf32>
    %156 = vector.shape_cast %155 : vector<1x2x288xf32> to vector<2x288xf32>
    %157 = arith.mulf %156, %154 : vector<2x288xf32>
    %158 = arith.addf %157, %140 : vector<2x288xf32>
    %c0_136 = arith.constant 0 : index
    %c0_137 = arith.constant 0 : index
    %c0_138 = arith.constant 0 : index
    %159 = vector.load %arg11[%c0_136, %c0_137, %c0_138] : memref<1x2x288xf32, #tpu.memory_space<vmem>>, vector<1x2x288xf32>
    %160 = vector.shape_cast %159 : vector<1x2x288xf32> to vector<2x288xf32>
    %161 = vector.shape_cast %158 : vector<2x288xf32> to vector<1x2x288xf32>
    tpu.vector_store %arg11[%c0_136, %c0_137, %c0_138], %161 {strides = array<i32>} : memref<1x2x288xf32, #tpu.memory_space<vmem>>, vector<1x2x288xf32>,
    %162 = vector.broadcast %4 : vector<1x288xf32> to vector<2x288xf32>
    %163 = arith.mulf %153, %162 : vector<2x288xf32>
    %164 = vector.shape_cast %163 : vector<2x288xf32> to vector<1x2x288xf32>
    %cst_139 = arith.constant dense<0.000000e+00> : vector<1xf32>
    %165 = vector.multi_reduction <add>, %164, %cst_139 [1, 2] : vector<1x2x288xf32> to vector<1xf32>
    %166 = vector.shape_cast %165 : vector<1xf32> to vector<1x1x1xf32>
    %167 = vector.extract %166[0, 0, 0] : f32 from vector<1x1x1xf32>
    %168 = vector.broadcast %167 : f32 to vector<1x1xf32>
    %c0_140 = arith.constant 0 : index
    %c0_141 = arith.constant 0 : index
    %c0_142 = arith.constant 0 : index
    %169 = vector.load %arg12[%c0_140, %c0_141, %c0_142] : memref<1x1x1xf32, #tpu.memory_space<vmem>>, vector<1x1x1xf32>
    %170 = vector.shape_cast %169 : vector<1x1x1xf32> to vector<1x1xf32>
    %171 = vector.shape_cast %168 : vector<1x1xf32> to vector<1x1x1xf32>
    tpu.vector_store %arg12[%c0_140, %c0_141, %c0_142], %171 {strides = array<i32>} : memref<1x1x1xf32, #tpu.memory_space<vmem>>, vector<1x1x1xf32>,
    return
  }
  func.func @transform_0(%arg0: i32) -> (i32, i32, i32) {
    %c0_i32 = arith.constant 0 : i32
    %c0_i32_0 = arith.constant 0 : i32
    %c0_i32_1 = arith.constant 0 : i32
    return %arg0, %c0_i32, %c0_i32_0 : i32, i32, i32
  }
  func.func @transform_1(%arg0: i32) -> (i32, i32, i32) {
    %c0_i32 = arith.constant 0 : i32
    %c0_i32_0 = arith.constant 0 : i32
    %c0_i32_1 = arith.constant 0 : i32
    return %arg0, %c0_i32, %c0_i32_0 : i32, i32, i32
  }
  func.func @transform_2(%arg0: i32) -> (i32, i32) {
    %c0_i32 = arith.constant 0 : i32
    %c0_i32_0 = arith.constant 0 : i32
    %c0_i32_1 = arith.constant 0 : i32
    return %c0_i32, %c0_i32_0 : i32, i32
  }
  func.func @transform_3(%arg0: i32) -> (i32, i32) {
    %c0_i32 = arith.constant 0 : i32
    %c0_i32_0 = arith.constant 0 : i32
    %c0_i32_1 = arith.constant 0 : i32
    return %c0_i32, %c0_i32_0 : i32, i32
  }
  func.func @transform_4(%arg0: i32) -> (i32, i32, i32) {
    %c0_i32 = arith.constant 0 : i32
    %c0_i32_0 = arith.constant 0 : i32
    %c0_i32_1 = arith.constant 0 : i32
    %c0_i32_2 = arith.constant 0 : i32
    return %c0_i32, %c0_i32_0, %c0_i32_1 : i32, i32, i32
  }
  func.func @transform_5(%arg0: i32) -> (i32, i32) {
    %c0_i32 = arith.constant 0 : i32
    %c0_i32_0 = arith.constant 0 : i32
    %c0_i32_1 = arith.constant 0 : i32
    return %c0_i32, %c0_i32_0 : i32, i32
  }
  func.func @transform_6(%arg0: i32) -> (i32, i32) {
    %c0_i32 = arith.constant 0 : i32
    %c0_i32_0 = arith.constant 0 : i32
    %c0_i32_1 = arith.constant 0 : i32
    return %c0_i32, %c0_i32_0 : i32, i32
  }
  func.func @transform_7(%arg0: i32) -> (i32, i32) {
    %c0_i32 = arith.constant 0 : i32
    %c0_i32_0 = arith.constant 0 : i32
    %c0_i32_1 = arith.constant 0 : i32
    return %c0_i32, %c0_i32_0 : i32, i32
  }
  func.func @transform_8(%arg0: i32) -> (i32, i32, i32) {
    %c0_i32 = arith.constant 0 : i32
    %c0_i32_0 = arith.constant 0 : i32
    %c0_i32_1 = arith.constant 0 : i32
    %c0_i32_2 = arith.constant 0 : i32
    return %c0_i32, %c0_i32_0, %c0_i32_1 : i32, i32, i32
  }
  func.func @transform_9(%arg0: i32) -> (i32, i32) {
    %c0_i32 = arith.constant 0 : i32
    %c0_i32_0 = arith.constant 0 : i32
    %c0_i32_1 = arith.constant 0 : i32
    return %c0_i32, %c0_i32_0 : i32, i32
  }
  func.func @transform_10(%arg0: i32) -> (i32, i32, i32) {
    %c0_i32 = arith.constant 0 : i32
    %c0_i32_0 = arith.constant 0 : i32
    %c0_i32_1 = arith.constant 0 : i32
    return %arg0, %c0_i32, %c0_i32_0 : i32, i32, i32
  }
  func.func @transform_11(%arg0: i32) -> (i32, i32, i32) {
    %c0_i32 = arith.constant 0 : i32
    %c0_i32_0 = arith.constant 0 : i32
    %c0_i32_1 = arith.constant 0 : i32
    return %arg0, %c0_i32, %c0_i32_0 : i32, i32, i32
  }
}

</mosaic_0001>

<llo_original>
// kernel: tpu_custom_call.1
$region0: #{tpu_custom_call.1}
  #allocation0 [shape = 'u32[]', space=smem, size = 0x4, offset = 0x4, fixed_abs, tag = 'smem constant byte address 0x4 - core index']
  #allocation1 [shape = 'u32[144,128]{1,0:T(1,128)}', space=vmem, size = 0x12000, scoped, tag = 'internal scratch']
  #allocation2 [shape = 'bf16[326,32]{1,0:T(8,128)(2,1)}', space=vmem, size = 0x14800, scoped, tag = 'scratch operand']
  %s0 = inlined_call_operand.vmem [shape: bf16[2,326,5], index: 0, kind: input, shape index: {}]
  %s1 = inlined_call_operand.vmem [shape: f32[2,2,288], index: 1, kind: input, shape index: {}]
  %s2 = inlined_call_operand.vmem [shape: f32[288,1], index: 2, kind: input, shape index: {}]
  %s3 = inlined_call_operand.vmem [shape: f32[1,288], index: 3, kind: input, shape index: {}]
  %s4 = inlined_call_operand.vmem [shape: bf16[9,5,32], index: 4, kind: input, shape index: {}]
  %s5 = inlined_call_operand.vmem [shape: f32[1,32], index: 5, kind: input, shape index: {}]
  %s6 = inlined_call_operand.vmem [shape: bf16[32,32], index: 6, kind: input, shape index: {}]
  %s7 = inlined_call_operand.vmem [shape: f32[1,32], index: 7, kind: input, shape index: {}]
  %s8 = inlined_call_operand.vmem [shape: bf16[9,32,4], index: 8, kind: input, shape index: {}]
  %s9 = inlined_call_operand.vmem [shape: f32[1,4], index: 9, kind: input, shape index: {}]
  %s10 = inlined_call_operand.hbm [shape: f32[2,2,288], index: 10, kind: output, shape index: {0}]
  %s11 = inlined_call_operand.vmem [shape: f32[2,1,1], index: 11, kind: output, shape index: {1}]
  %12 = xla_tuple %s10, %s11
  %s13 = sld [smem:[#allocation0]]
  $region81: #{tpu_custom_call.1} parent=0
    _
  %s15 = ssub.s32 1, %s13
  %s16 = scalar_select 0, %s15, %s13
  $region1: #{tpu_custom_call.1} parent=0
    #allocation3 [shape = 'u8[6144]{0}', space=vmem, size = 0x1800, scoped, tag = 'output window, operand 0']
    #allocation4 [shape = 's32[2]{0}', space=sflag, size = 0x8, scoped, tag = 'scoped memory for tpu_custom_call.1']
    %17 = vsyncpa [#allocation4], 0
    %s18 = scalar_lea.sflag [#allocation4], 1
    %19 = vsyncpa %s18, 0
    loop: start=0, step=1, limit=4
    $region2: #{tpu_custom_call.1} parent=1 // loop_pre_header
      _
    $region3: #{tpu_custom_call.1} parent=1 // loop_header
      %s21 = sphi 0, %s25
      %p22 = scmp.ge.s32.totalorder %s21, 4
      %s31 = sphi 0, %s33
      %s34 = sphi 0, %s31
      %s35 = sphi 0, %s34
      %s51 = sphi 0, %s35
      %s57 = sphi 0, %s59
      %s60 = sphi 0, %s57
      %s61 = sphi 0, %s60
      %s77 = sphi 0, %s61
      %s81 = sphi 0, %s81
      %s83 = sphi 0, %s81
      %s84 = sphi 0, %s83
      %s98 = sphi 0, %s84
      %s102 = sphi 0, %s102
      %s104 = sphi 0, %s102
      %s105 = sphi 0, %s104
      %s119 = sphi 0, %s105
      %s123 = sphi 0, %s123
      %s125 = sphi 0, %s123
      %s126 = sphi 0, %s125
      %s140 = sphi 0, %s126
      %s144 = sphi 0, %s144
      %s146 = sphi 0, %s144
      %s147 = sphi 0, %s146
      %s161 = sphi 0, %s147
      %s165 = sphi 0, %s165
      %s167 = sphi 0, %s165
      %s168 = sphi 0, %s167
      %s182 = sphi 0, %s168
      %s186 = sphi 0, %s186
      %s188 = sphi 0, %s186
      %s189 = sphi 0, %s188
      %s203 = sphi 0, %s189
      %s207 = sphi 0, %s207
      %s209 = sphi 0, %s207
      %s210 = sphi 0, %s209
      %s224 = sphi 0, %s210
      %s228 = sphi 0, %s228
      %s230 = sphi 0, %s228
      %s231 = sphi 0, %s230
      %s245 = sphi 0, %s231
      %s251 = sphi 0, %s253
      %s254 = sphi 0, %s251
      %s255 = sphi 0, %s254
      %s271 = sphi 0, %s255
      %s277 = sphi 0, %s279
      %s280 = sphi 0, %s277
      %s281 = sphi 0, %s280
      %s297 = sphi 0, %s281
    $region4: #{tpu_custom_call.1} parent=1 // loop_header_branch
      %24 = sbr.rel (%p22) target = $region8
    $region5: #{tpu_custom_call.1} parent=1 // loop_body
      %s26 = ssub.s32 %s21, 1
      %s27 = ssub.s32 %s21, 2
      %s28 = sadd.s32 %s21, 1
      %s29 = ssub.s32 %s21, %s28
      %p30 = scmp.eq.s32.totalorder %s29, 0
      %s32 = sadd.s32 %s31, 1
      %s33 = scalar_select %p30, %s31, %s32
      %p36 = pneg %p30
      %p37 = scmp.eq.s32.totalorder %s21, 1
      %p38 = por %p36, %p37
      %p39 = scmp.ne.s32.totalorder %s31, %s34
      %p40 = scmp.eq.s32.totalorder %s21, 0
      %p41 = por %p39, %p40
      %p42 = scmp.ne.s32.totalorder %s31, %s34
      %p43 = scmp.eq.s32.totalorder %s26, 1
      %p44 = por %p42, %p43
      %p45 = scmp.ne.s32.totalorder %s34, %s35
      %p46 = scmp.eq.s32.totalorder %s26, 0
      %p47 = por %p45, %p46
      %p48 = scmp.ne.s32.totalorder %s34, %s35
      %p49 = scmp.eq.s32.totalorder %s27, 1
      %p50 = por %p48, %p49
      %p52 = scmp.ne.s32.totalorder %s35, %s51
      %p53 = scmp.eq.s32.totalorder %s27, 0
      %p54 = por %p52, %p53
      %s55 = ssub.s32 %s21, %s28
      %p56 = scmp.eq.s32.totalorder %s55, 0
      %s58 = sadd.s32 %s57, 1
      %s59 = scalar_select %p56, %s57, %s58
      %p62 = pneg %p56
      %p63 = scmp.eq.s32.totalorder %s21, 1
      %p64 = por %p62, %p63
      %p65 = scmp.ne.s32.totalorder %s57, %s60
      %p66 = scmp.eq.s32.totalorder %s21, 0
      %p67 = por %p65, %p66
      %p68 = scmp.ne.s32.totalorder %s57, %s60
      %p69 = scmp.eq.s32.totalorder %s26, 1
      %p70 = por %p68, %p69
      %p71 = scmp.ne.s32.totalorder %s60, %s61
      %p72 = scmp.eq.s32.totalorder %s26, 0
      %p73 = por %p71, %p72
      %p74 = scmp.ne.s32.totalorder %s60, %s61
      %p75 = scmp.eq.s32.totalorder %s27, 1
      %p76 = por %p74, %p75
      %p78 = scmp.ne.s32.totalorder %s61, %s77
      %p79 = scmp.eq.s32.totalorder %s27, 0
      %p80 = por %p78, %p79
      %s82 = sadd.s32 %s81, 1
      %p85 = scmp.eq.s32.totalorder %s21, 1
      %p86 = scmp.ne.s32.totalorder %s81, %s83
      %p87 = scmp.eq.s32.totalorder %s21, 0
      %p88 = por %p86, %p87
      %p89 = scmp.ne.s32.totalorder %s81, %s83
      %p90 = scmp.eq.s32.totalorder %s26, 1
      %p91 = por %p89, %p90
      %p92 = scmp.ne.s32.totalorder %s83, %s84
      %p93 = scmp.eq.s32.totalorder %s26, 0
      %p94 = por %p92, %p93
      %p95 = scmp.ne.s32.totalorder %s83, %s84
      %p96 = scmp.eq.s32.totalorder %s27, 1
      %p97 = por %p95, %p96
      %p99 = scmp.ne.s32.totalorder %s84, %s98
      %p100 = scmp.eq.s32.totalorder %s27, 0
      %p101 = por %p99, %p100
      %s103 = sadd.s32 %s102, 1
      %p106 = scmp.eq.s32.totalorder %s21, 1
      %p107 = scmp.ne.s32.totalorder %s102, %s104
      %p108 = scmp.eq.s32.totalorder %s21, 0
      %p109 = por %p107, %p108
      %p110 = scmp.ne.s32.totalorder %s102, %s104
      %p111 = scmp.eq.s32.totalorder %s26, 1
      %p112 = por %p110, %p111
      %p113 = scmp.ne.s32.totalorder %s104, %s105
      %p114 = scmp.eq.s32.totalorder %s26, 0
      %p115 = por %p113, %p114
      %p116 = scmp.ne.s32.totalorder %s104, %s105
      %p117 = scmp.eq.s32.totalorder %s27, 1
      %p118 = por %p116, %p117
      %p120 = scmp.ne.s32.totalorder %s105, %s119
      %p121 = scmp.eq.s32.totalorder %s27, 0
      %p122 = por %p120, %p121
      %s124 = sadd.s32 %s123, 1
      %p127 = scmp.eq.s32.totalorder %s21, 1
      %p128 = scmp.ne.s32.totalorder %s123, %s125
      %p129 = scmp.eq.s32.totalorder %s21, 0
      %p130 = por %p128, %p129
      %p131 = scmp.ne.s32.totalorder %s123, %s125
      %p132 = scmp.eq.s32.totalorder %s26, 1
      %p133 = por %p131, %p132
      %p134 = scmp.ne.s32.totalorder %s125, %s126
      %p135 = scmp.eq.s32.totalorder %s26, 0
      %p136 = por %p134, %p135
      %p137 = scmp.ne.s32.totalorder %s125, %s126
      %p138 = scmp.eq.s32.totalorder %s27, 1
      %p139 = por %p137, %p138
      %p141 = scmp.ne.s32.totalorder %s126, %s140
      %p142 = scmp.eq.s32.totalorder %s27, 0
      %p143 = por %p141, %p142
      %s145 = sadd.s32 %s144, 1
      %p148 = scmp.eq.s32.totalorder %s21, 1
      %p149 = scmp.ne.s32.totalorder %s144, %s146
      %p150 = scmp.eq.s32.totalorder %s21, 0
      %p151 = por %p149, %p150
      %p152 = scmp.ne.s32.totalorder %s144, %s146
      %p153 = scmp.eq.s32.totalorder %s26, 1
      %p154 = por %p152, %p153
      %p155 = scmp.ne.s32.totalorder %s146, %s147
      %p156 = scmp.eq.s32.totalorder %s26, 0
      %p157 = por %p155, %p156
      %p158 = scmp.ne.s32.totalorder %s146, %s147
      %p159 = scmp.eq.s32.totalorder %s27, 1
      %p160 = por %p158, %p159
      %p162 = scmp.ne.s32.totalorder %s147, %s161
      %p163 = scmp.eq.s32.totalorder %s27, 0
      %p164 = por %p162, %p163
      %s166 = sadd.s32 %s165, 1
      %p169 = scmp.eq.s32.totalorder %s21, 1
      %p170 = scmp.ne.s32.totalorder %s165, %s167
      %p171 = scmp.eq.s32.totalorder %s21, 0
      %p172 = por %p170, %p171
      %p173 = scmp.ne.s32.totalorder %s165, %s167
      %p174 = scmp.eq.s32.totalorder %s26, 1
      %p175 = por %p173, %p174
      %p176 = scmp.ne.s32.totalorder %s167, %s168
      %p177 = scmp.eq.s32.totalorder %s26, 0
      %p178 = por %p176, %p177
      %p179 = scmp.ne.s32.totalorder %s167, %s168
      %p180 = scmp.eq.s32.totalorder %s27, 1
      %p181 = por %p179, %p180
      %p183 = scmp.ne.s32.totalorder %s168, %s182
      %p184 = scmp.eq.s32.totalorder %s27, 0
      %p185 = por %p183, %p184
      %s187 = sadd.s32 %s186, 1
      %p190 = scmp.eq.s32.totalorder %s21, 1
      %p191 = scmp.ne.s32.totalorder %s186, %s188
      %p192 = scmp.eq.s32.totalorder %s21, 0
      %p193 = por %p191, %p192
      %p194 = scmp.ne.s32.totalorder %s186, %s188
      %p195 = scmp.eq.s32.totalorder %s26, 1
      %p196 = por %p194, %p195
      %p197 = scmp.ne.s32.totalorder %s188, %s189
      %p198 = scmp.eq.s32.totalorder %s26, 0
      %p199 = por %p197, %p198
      %p200 = scmp.ne.s32.totalorder %s188, %s189
      %p201 = scmp.eq.s32.totalorder %s27, 1
      %p202 = por %p200, %p201
      %p204 = scmp.ne.s32.totalorder %s189, %s203
      %p205 = scmp.eq.s32.totalorder %s27, 0
      %p206 = por %p204, %p205
      %s208 = sadd.s32 %s207, 1
      %p211 = scmp.eq.s32.totalorder %s21, 1
      %p212 = scmp.ne.s32.totalorder %s207, %s209
      %p213 = scmp.eq.s32.totalorder %s21, 0
      %p214 = por %p212, %p213
      %p215 = scmp.ne.s32.totalorder %s207, %s209
      %p216 = scmp.eq.s32.totalorder %s26, 1
      %p217 = por %p215, %p216
      %p218 = scmp.ne.s32.totalorder %s209, %s210
      %p219 = scmp.eq.s32.totalorder %s26, 0
      %p220 = por %p218, %p219
      %p221 = scmp.ne.s32.totalorder %s209, %s210
      %p222 = scmp.eq.s32.totalorder %s27, 1
      %p223 = por %p221, %p222
      %p225 = scmp.ne.s32.totalorder %s210, %s224
      %p226 = scmp.eq.s32.totalorder %s27, 0
      %p227 = por %p225, %p226
      %s229 = sadd.s32 %s228, 1
      %p232 = scmp.eq.s32.totalorder %s21, 1
      %p233 = scmp.ne.s32.totalorder %s228, %s230
      %p234 = scmp.eq.s32.totalorder %s21, 0
      %p235 = por %p233, %p234
      %p236 = scmp.ne.s32.totalorder %s228, %s230
      %p237 = scmp.eq.s32.totalorder %s26, 1
      %p238 = por %p236, %p237
      %p239 = scmp.ne.s32.totalorder %s230, %s231
      %p240 = scmp.eq.s32.totalorder %s26, 0
      %p241 = por %p239, %p240
      %p242 = scmp.ne.s32.totalorder %s230, %s231
      %p243 = scmp.eq.s32.totalorder %s27, 1
      %p244 = por %p242, %p243
      %p246 = scmp.ne.s32.totalorder %s231, %s245
      %p247 = scmp.eq.s32.totalorder %s27, 0
      %p248 = por %p246, %p247
      %s249 = ssub.s32 %s21, %s28
      %p250 = scmp.eq.s32.totalorder %s249, 0
      %s252 = sadd.s32 %s251, 1
      %s253 = scalar_select %p250, %s251, %s252
      %p256 = pneg %p250
      %p257 = scmp.eq.s32.totalorder %s21, 1
      %p258 = por %p256, %p257
      %p259 = scmp.ne.s32.totalorder %s251, %s254
      %p260 = scmp.eq.s32.totalorder %s21, 0
      %p261 = por %p259, %p260
      %p262 = scmp.ne.s32.totalorder %s251, %s254
      %p263 = scmp.eq.s32.totalorder %s26, 1
      %p264 = por %p262, %p263
      %p265 = scmp.ne.s32.totalorder %s254, %s255
      %p266 = scmp.eq.s32.totalorder %s26, 0
      %p267 = por %p265, %p266
      %p268 = scmp.ne.s32.totalorder %s254, %s255
      %p269 = scmp.eq.s32.totalorder %s27, 1
      %p270 = por %p268, %p269
      %p272 = scmp.ne.s32.totalorder %s255, %s271
      %p273 = scmp.eq.s32.totalorder %s27, 0
      %p274 = por %p272, %p273
      %s275 = ssub.s32 %s21, %s28
      %p276 = scmp.eq.s32.totalorder %s275, 0
      %s278 = sadd.s32 %s277, 1
      %s279 = scalar_select %p276, %s277, %s278
      %p282 = pneg %p276
      %p283 = scmp.eq.s32.totalorder %s21, 1
      %p284 = por %p282, %p283
      %p285 = scmp.ne.s32.totalorder %s277, %s280
      %p286 = scmp.eq.s32.totalorder %s21, 0
      %p287 = por %p285, %p286
      %p288 = scmp.ne.s32.totalorder %s277, %s280
      %p289 = scmp.eq.s32.totalorder %s26, 1
      %p290 = por %p288, %p289
      %p291 = scmp.ne.s32.totalorder %s280, %s281
      %p292 = scmp.eq.s32.totalorder %s26, 0
      %p293 = por %p291, %p292
      %p294 = scmp.ne.s32.totalorder %s280, %s281
      %p295 = scmp.eq.s32.totalorder %s27, 1
      %p296 = por %p294, %p295
      %p298 = scmp.ne.s32.totalorder %s281, %s297
      %p299 = scmp.eq.s32.totalorder %s27, 0
      %p300 = por %p298, %p299
      %p301 = scmp.le.s32.totalorder 1, %s21
      %p302 = scmp.lt.s32.totalorder %s21, 3
      %p303 = pnand %p301, %p302
      %p304 = pneg %p303
      // Predicated region
      $region9: #{tpu_custom_call.1} parent=5 // pred_check
        _
      $region10: #{tpu_custom_call.1} parent=5 // pred_check_branch
        %306 = sbr.rel (%p303) target = $region12
      $region11: #{tpu_custom_call.1} parent=5 // pred_region
        %s307 = ssub.s32 %s21, 1
        // Predicated region
        $region13: #{tpu_custom_call.1} parent=11 // pred_check
          %p308 = pneg %p94
        $region14: #{tpu_custom_call.1} parent=11 // pred_check_branch
          %310 = sbr.rel (%p308) target = $region16
        $region15: #{tpu_custom_call.1} parent=11 // pred_region
          _
        $region16: #{tpu_custom_call.1} parent=11 // pred_fallthru
          _
        // Predicated region
        $region17: #{tpu_custom_call.1} parent=11 // pred_check
          %p311 = pneg %p115
        $region18: #{tpu_custom_call.1} parent=11 // pred_check_branch
          %313 = sbr.rel (%p311) target = $region20
        $region19: #{tpu_custom_call.1} parent=11 // pred_region
          _
        $region20: #{tpu_custom_call.1} parent=11 // pred_fallthru
          _
        // Predicated region
        $region21: #{tpu_custom_call.1} parent=11 // pred_check
          %p314 = pneg %p136
        $region22: #{tpu_custom_call.1} parent=11 // pred_check_branch
          %316 = sbr.rel (%p314) target = $region24
        $region23: #{tpu_custom_call.1} parent=11 // pred_region
          _
        $region24: #{tpu_custom_call.1} parent=11 // pred_fallthru
          _
        // Predicated region
        $region25: #{tpu_custom_call.1} parent=11 // pred_check
          %p317 = pneg %p157
        $region26: #{tpu_custom_call.1} parent=11 // pred_check_branch
          %319 = sbr.rel (%p317) target = $region28
        $region27: #{tpu_custom_call.1} parent=11 // pred_region
          _
        $region28: #{tpu_custom_call.1} parent=11 // pred_fallthru
          _
        // Predicated region
        $region29: #{tpu_custom_call.1} parent=11 // pred_check
          %p320 = pneg %p178
        $region30: #{tpu_custom_call.1} parent=11 // pred_check_branch
          %322 = sbr.rel (%p320) target = $region32
        $region31: #{tpu_custom_call.1} parent=11 // pred_region
          _
        $region32: #{tpu_custom_call.1} parent=11 // pred_fallthru
          _
        // Predicated region
        $region33: #{tpu_custom_call.1} parent=11 // pred_check
          %p323 = pneg %p199
        $region34: #{tpu_custom_call.1} parent=11 // pred_check_branch
          %325 = sbr.rel (%p323) target = $region36
        $region35: #{tpu_custom_call.1} parent=11 // pred_region
          _
        $region36: #{tpu_custom_call.1} parent=11 // pred_fallthru
          _
        // Predicated region
        $region37: #{tpu_custom_call.1} parent=11 // pred_check
          %p326 = pneg %p220
        $region38: #{tpu_custom_call.1} parent=11 // pred_check_branch
          %328 = sbr.rel (%p326) target = $region40
        $region39: #{tpu_custom_call.1} parent=11 // pred_region
          _
        $region40: #{tpu_custom_call.1} parent=11 // pred_fallthru
          _
        // Predicated region
        $region41: #{tpu_custom_call.1} parent=11 // pred_check
          %p329 = pneg %p241
        $region42: #{tpu_custom_call.1} parent=11 // pred_check_branch
          %331 = sbr.rel (%p329) target = $region44
        $region43: #{tpu_custom_call.1} parent=11 // pred_region
          _
        $region44: #{tpu_custom_call.1} parent=11 // pred_fallthru
          _
      $region12: #{tpu_custom_call.1} parent=5 // pred_fallthru
        _
      %p332 = scmp.lt.s32.totalorder %s21, 2
      // Predicated region
      $region45: #{tpu_custom_call.1} parent=5 // pred_check
        %p333 = pneg %p332
      $region46: #{tpu_custom_call.1} parent=5 // pred_check_branch
        %335 = sbr.rel (%p333) target = $region48
      $region47: #{tpu_custom_call.1} parent=5 // pred_region
        // Predicated region
        $region49: #{tpu_custom_call.1} parent=47 // pred_check
          %p336 = pneg %p41
        $region50: #{tpu_custom_call.1} parent=47 // pred_check_branch
          %338 = sbr.rel (%p336) target = $region52
        $region51: #{tpu_custom_call.1} parent=47 // pred_region
          %p339 = scmp.lt.s32.totalorder %s21, 1
          %s340 = scalar_select %p339, %s21, 1
          %s341 = smul.addr %s340, 41
          %s342 = smul.addr %s341, 4
          %s343 = scalar_lea.vmem %s0, %s342
        $region52: #{tpu_custom_call.1} parent=47 // pred_fallthru
          _
        // Predicated region
        $region53: #{tpu_custom_call.1} parent=47 // pred_check
          %p344 = pneg %p67
        $region54: #{tpu_custom_call.1} parent=47 // pred_check_branch
          %346 = sbr.rel (%p344) target = $region56
        $region55: #{tpu_custom_call.1} parent=47 // pred_region
          %p347 = scmp.lt.s32.totalorder %s21, 1
          %s348 = scalar_select %p347, %s21, 1
          %s349 = smul.addr %s348, 3
          %s350 = smul.addr %s349, 2
          %s351 = scalar_lea.vmem %s1, %s350
        $region56: #{tpu_custom_call.1} parent=47 // pred_fallthru
          _
      $region48: #{tpu_custom_call.1} parent=5 // pred_fallthru
        _
      %p352 = scmp.le.s32.totalorder 1, %s21
      %p353 = scmp.lt.s32.totalorder %s21, 3
      %p354 = pnand %p352, %p353
      %p355 = pneg %p354
      // Predicated region
      $region57: #{tpu_custom_call.1} parent=5 // pred_check
        _
      $region58: #{tpu_custom_call.1} parent=5 // pred_check_branch
        %357 = sbr.rel (%p354) target = $region60
      $region59: #{tpu_custom_call.1} parent=5 // pred_region
        %s358 = ssub.s32 %s21, 1
        %p359 = scmp.lt.s32.totalorder %s26, 1
        %s360 = scalar_select %p359, %s26, 1
        %s361 = smul.addr %s360, 41
        %s362 = smul.addr %s361, 4
        %s363 = scalar_lea.vmem %s0, %s362
        %p364 = pneg %p47
        %p365 = pneg %p44
        %p366 = scmp.lt.s32.totalorder %s26, 1
        %s367 = scalar_select %p366, %s26, 1
        %s368 = smul.addr %s367, 3
        %s369 = smul.addr %s368, 2
        %s370 = scalar_lea.vmem %s1, %s369
        %p371 = pneg %p73
        %p372 = pneg %p70
        %p373 = pneg %p94
        %p374 = pneg %p91
        %p375 = pneg %p115
        %p376 = pneg %p112
        %p377 = pneg %p136
        %p378 = pneg %p133
        %p379 = pneg %p157
        %p380 = pneg %p154
        %p381 = pneg %p178
        %p382 = pneg %p175
        %p383 = pneg %p199
        %p384 = pneg %p196
        %p385 = pneg %p220
        %p386 = pneg %p217
        %p387 = pneg %p241
        %p388 = pneg %p238
        %p389 = pneg %p267
        %p390 = pneg %p264
        %s391 = sand.u32 %s254, 1
        %s392 = scalar_lea.sflag [#allocation4], %s391
        %s393 = sand.u32 %s254, 1
        %s394 = smul.addr %s393, 6
        %s395 = scalar_lea.vmem [#allocation3], %s394
        %p396 = pneg %p293
        %p397 = pneg %p290
        %p398 = scmp.lt.s32.totalorder %s26, 1
        %s399 = scalar_select %p398, %s26, 1
        %s400 = scalar_lea.vmem %s11, %s399
        %p401 = scmp.lt.s32.totalorder %s26, 1
        %s402 = scalar_select %p401, %s26, 1
        %s403 = smul.addr %s402, 41
        %s404 = smul.addr %s403, 4
        %s405 = scalar_lea.vmem %s0, %s404
        %p406 = scmp.lt.s32.totalorder %s26, 1
        %s407 = scalar_select %p406, %s26, 1
        %s408 = smul.addr %s407, 3
        %s409 = smul.addr %s408, 2
        %s410 = scalar_lea.vmem %s1, %s409
        %p411 = scmp.lt.s32.totalorder %s26, 1
        %s412 = scalar_select %p411, %s26, 1
        %s413 = scalar_lea.vmem %s11, %s412
        %v415 = vld [vmem:[%s5] sm:$0x1]
        %v416 = vld [vmem:[%s7] sm:$0x1]
        %v417 = vld [vmem:[%s9] sm:$0x1]
        %v418 = vld [vmem:[%s2] sm:$0xff]
        %v419 = vld [vmem:[%s2 + $0x8] sm:$0xff]
        %v420 = vld [vmem:[%s2 + $0x10] sm:$0xff]
        %v421 = vld [vmem:[%s2 + $0x18] sm:$0xff]
        %v422 = vld [vmem:[%s2 + $0x20] sm:$0xff]
        %v423 = vld [vmem:[%s2 + $0x28] sm:$0xff]
        %v424 = vld [vmem:[%s2 + $0x30] sm:$0xff]
        %v425 = vld [vmem:[%s2 + $0x38] sm:$0xff]
        %v426 = vld [vmem:[%s2 + $0x40] sm:$0xff]
        %v427 = vld [vmem:[%s2 + $0x48] sm:$0xff]
        %v428 = vld [vmem:[%s2 + $0x50] sm:$0xff]
        %v429 = vld [vmem:[%s2 + $0x58] sm:$0xff]
        %v430 = vld [vmem:[%s2 + $0x60] sm:$0xff]
        %v431 = vld [vmem:[%s2 + $0x68] sm:$0xff]
        %v432 = vld [vmem:[%s2 + $0x70] sm:$0xff]
        %v433 = vld [vmem:[%s2 + $0x78] sm:$0xff]
        %v434 = vld [vmem:[%s2 + $0x80] sm:$0xff]
        %v435 = vld [vmem:[%s2 + $0x88] sm:$0xff]
        %v436 = vld [vmem:[%s2 + $0x90] sm:$0xff]
        %v437 = vld [vmem:[%s2 + $0x98] sm:$0xff]
        %v438 = vld [vmem:[%s2 + $0xa0] sm:$0xff]
        %v439 = vld [vmem:[%s2 + $0xa8] sm:$0xff]
        %v440 = vld [vmem:[%s2 + $0xb0] sm:$0xff]
        %v441 = vld [vmem:[%s2 + $0xb8] sm:$0xff]
        %v442 = vld [vmem:[%s2 + $0xc0] sm:$0xff]
        %v443 = vld [vmem:[%s2 + $0xc8] sm:$0xff]
        %v444 = vld [vmem:[%s2 + $0xd0] sm:$0xff]
        %v445 = vld [vmem:[%s2 + $0xd8] sm:$0xff]
        %v446 = vld [vmem:[%s2 + $0xe0] sm:$0xff]
        %v447 = vld [vmem:[%s2 + $0xe8] sm:$0xff]
        %v448 = vld [vmem:[%s2 + $0xf0] sm:$0xff]
        %v449 = vld [vmem:[%s2 + $0xf8] sm:$0xff]
        %v450 = vld [vmem:[%s2 + $0x100] sm:$0xff]
        %v451 = vld [vmem:[%s2 + $0x108] sm:$0xff]
        %v452 = vld [vmem:[%s2 + $0x110] sm:$0xff]
        %v453 = vld [vmem:[%s2 + $0x118] sm:$0xff]
        %v454 = vld [vmem:[%s3] sm:$0x7]
        %v455 = vld [vmem:[%s405] sm:$0xf]
        %v456 = vld [vmem:[%s405 + $0x4] sm:$0xf]
        %v457 = vld [vmem:[%s405 + $0x8] sm:$0xf]
        %v458 = vld [vmem:[%s405 + $0xc] sm:$0xf]
        %v459 = vld [vmem:[%s405 + $0x10] sm:$0xf]
        %v460 = vld [vmem:[%s405 + $0x14] sm:$0xf]
        %v461 = vld [vmem:[%s405 + $0x18] sm:$0xf]
        %v462 = vld [vmem:[%s405 + $0x1c] sm:$0xf]
        %v463 = vld [vmem:[%s405 + $0x20] sm:$0xf]
        %v464 = vld [vmem:[%s405 + $0x24] sm:$0xf]
        %v465 = vld [vmem:[%s405 + $0x28] sm:$0xf]
        %v466 = vld [vmem:[%s405 + $0x2c] sm:$0xf]
        %v467 = vld [vmem:[%s405 + $0x30] sm:$0xf]
        %v468 = vld [vmem:[%s405 + $0x34] sm:$0xf]
        %v469 = vld [vmem:[%s405 + $0x38] sm:$0xf]
        %v470 = vld [vmem:[%s405 + $0x3c] sm:$0xf]
        %v471 = vld [vmem:[%s405 + $0x40] sm:$0xf]
        %v472 = vld [vmem:[%s405 + $0x44] sm:$0xf]
        %v473 = vld [vmem:[%s405 + $0x48] sm:$0xf]
        %v474 = vld [vmem:[%s405 + $0x4c] sm:$0xf]
        %v475 = vld [vmem:[%s405 + $0x50] sm:$0xf]
        %v476 = vld [vmem:[%s405 + $0x54] sm:$0xf]
        %v477 = vld [vmem:[%s405 + $0x58] sm:$0xf]
        %v478 = vld [vmem:[%s405 + $0x5c] sm:$0xf]
        %v479 = vld [vmem:[%s405 + $0x60] sm:$0xf]
        %v480 = vld [vmem:[%s405 + $0x64] sm:$0xf]
        %v481 = vld [vmem:[%s405 + $0x68] sm:$0xf]
        %v482 = vld [vmem:[%s405 + $0x6c] sm:$0xf]
        %v483 = vld [vmem:[%s405 + $0x70] sm:$0xf]
        %v484 = vld [vmem:[%s405 + $0x74] sm:$0xf]
        %v485 = vld [vmem:[%s405 + $0x78] sm:$0xf]
        %v486 = vld [vmem:[%s405 + $0x7c] sm:$0xf]
        %v487 = vld [vmem:[%s405 + $0x80] sm:$0xf]
        %v488 = vld [vmem:[%s405 + $0x84] sm:$0xf]
        %v489 = vld [vmem:[%s405 + $0x88] sm:$0xf]
        %v490 = vld [vmem:[%s405 + $0x8c] sm:$0xf]
        %v491 = vld [vmem:[%s4] sm:$0x7]
        %v492 = vld [vmem:[%s405 + $0x90] sm:$0x1]
        %s493 = scalar_lea.vmem %s4, 4
        %v494 = vld [vmem:[%s493] sm:$0x7]
        %v532 = vunpack.c.l.b16 %v455
        %v533 = vunpack.c.l.b16 %v456
        %v534 = vunpack.c.l.b16 %v457
        %v535 = vunpack.c.l.b16 %v458
        %v536 = vunpack.c.l.b16 %v459
        %v537 = vunpack.c.l.b16 %v460
        %v538 = vunpack.c.l.b16 %v461
        %v539 = vunpack.c.l.b16 %v462
        %v540 = vunpack.c.l.b16 %v463
        %v541 = vunpack.c.l.b16 %v464
        %v542 = vunpack.c.l.b16 %v465
        %v543 = vunpack.c.l.b16 %v466
        %v544 = vunpack.c.l.b16 %v467
        %v545 = vunpack.c.l.b16 %v468
        %v546 = vunpack.c.l.b16 %v469
        %v547 = vunpack.c.l.b16 %v470
        %v548 = vunpack.c.l.b16 %v471
        %v549 = vunpack.c.l.b16 %v472
        %v550 = vunpack.c.l.b16 %v473
        %v551 = vunpack.c.l.b16 %v474
        %v552 = vunpack.c.l.b16 %v475
        %v553 = vunpack.c.l.b16 %v476
        %v554 = vunpack.c.l.b16 %v477
        %v555 = vunpack.c.l.b16 %v478
        %v556 = vunpack.c.l.b16 %v479
        %v557 = vunpack.c.l.b16 %v480
        %v558 = vunpack.c.l.b16 %v481
        %v559 = vunpack.c.l.b16 %v482
        %v560 = vunpack.c.l.b16 %v483
        %v561 = vunpack.c.l.b16 %v484
        %v562 = vunpack.c.l.b16 %v485
        %v563 = vunpack.c.l.b16 %v486
        %v564 = vunpack.c.l.b16 %v487
        %v565 = vunpack.c.l.b16 %v488
        %v566 = vunpack.c.l.b16 %v489
        %v567 = vunpack.c.l.b16 %v490
        %v568 = vunpack.c.l.b16 %v492
        %v569 = vpack.c.b16 %v533, %v532
        %v570 = vpack.c.b16 %v535, %v534
        %v571 = vpack.c.b16 %v537, %v536
        %v572 = vpack.c.b16 %v539, %v538
        %v573 = vpack.c.b16 %v541, %v540
        %v574 = vpack.c.b16 %v543, %v542
        %v575 = vpack.c.b16 %v545, %v544
        %v576 = vpack.c.b16 %v547, %v546
        %v577 = vpack.c.b16 %v549, %v548
        %v578 = vpack.c.b16 %v551, %v550
        %v579 = vpack.c.b16 %v553, %v552
        %v580 = vpack.c.b16 %v555, %v554
        %v581 = vpack.c.b16 %v557, %v556
        %v582 = vpack.c.b16 %v559, %v558
        %v583 = vpack.c.b16 %v561, %v560
        %v584 = vpack.c.b16 %v563, %v562
        %v585 = vpack.c.b16 %v565, %v564
        %v586 = vpack.c.b16 %v567, %v566
        %v587 = vpack.c.b16 %v568, %v568
        %vm588 = vsmask.f32 7424
        %v590 = vshrl.u32 %v569, 16
        %v592 = vshll.u32 %v569, 16
        %v594 = vrot.slane %v592, 1
        %v595 = vor.u32 %v590, %v594
        %v597 = vshll.u32 %v570, 16
        %v599 = vrot.slane %v597, 1
        %v600 = vsel %vm588, %v595, %v599
        %v601 = vshrl.u32 %v570, 16
        %v603 = vor.u32 %v601, %v599
        %v605 = vshll.u32 %v571, 16
        %v607 = vrot.slane %v605, 1
        %v608 = vsel %vm588, %v603, %v607
        %v609 = vshrl.u32 %v571, 16
        %v611 = vor.u32 %v609, %v607
        %v613 = vshll.u32 %v572, 16
        %v615 = vrot.slane %v613, 1
        %v616 = vsel %vm588, %v611, %v615
        %v617 = vshrl.u32 %v572, 16
        %v619 = vor.u32 %v617, %v615
        %v621 = vshll.u32 %v573, 16
        %v623 = vrot.slane %v621, 1
        %v624 = vsel %vm588, %v619, %v623
        %v625 = vshrl.u32 %v573, 16
        %v627 = vor.u32 %v625, %v623
        %v629 = vshll.u32 %v574, 16
        %v631 = vrot.slane %v629, 1
        %v632 = vsel %vm588, %v627, %v631
        %v633 = vshrl.u32 %v574, 16
        %v635 = vor.u32 %v633, %v631
        %v637 = vshll.u32 %v575, 16
        %v639 = vrot.slane %v637, 1
        %v640 = vsel %vm588, %v635, %v639
        %v641 = vshrl.u32 %v575, 16
        %v643 = vor.u32 %v641, %v639
        %v645 = vshll.u32 %v576, 16
        %v647 = vrot.slane %v645, 1
        %v648 = vsel %vm588, %v643, %v647
        %v649 = vshrl.u32 %v576, 16
        %v651 = vor.u32 %v649, %v647
        %v653 = vshll.u32 %v577, 16
        %v655 = vrot.slane %v653, 1
        %v656 = vsel %vm588, %v651, %v655
        %v657 = vshrl.u32 %v577, 16
        %v659 = vor.u32 %v657, %v655
        %v661 = vshll.u32 %v578, 16
        %v663 = vrot.slane %v661, 1
        %v664 = vsel %vm588, %v659, %v663
        %v665 = vshrl.u32 %v578, 16
        %v667 = vor.u32 %v665, %v663
        %v669 = vshll.u32 %v579, 16
        %v671 = vrot.slane %v669, 1
        %v672 = vsel %vm588, %v667, %v671
        %v673 = vshrl.u32 %v579, 16
        %v675 = vor.u32 %v673, %v671
        %v677 = vshll.u32 %v580, 16
        %v679 = vrot.slane %v677, 1
        %v680 = vsel %vm588, %v675, %v679
        %v681 = vshrl.u32 %v580, 16
        %v683 = vor.u32 %v681, %v679
        %v685 = vshll.u32 %v581, 16
        %v687 = vrot.slane %v685, 1
        %v688 = vsel %vm588, %v683, %v687
        %v689 = vshrl.u32 %v581, 16
        %v691 = vor.u32 %v689, %v687
        %v693 = vshll.u32 %v582, 16
        %v695 = vrot.slane %v693, 1
        %v696 = vsel %vm588, %v691, %v695
        %v697 = vshrl.u32 %v582, 16
        %v699 = vor.u32 %v697, %v695
        %v701 = vshll.u32 %v583, 16
        %v703 = vrot.slane %v701, 1
        %v704 = vsel %vm588, %v699, %v703
        %v705 = vshrl.u32 %v583, 16
        %v707 = vor.u32 %v705, %v703
        %v709 = vshll.u32 %v584, 16
        %v711 = vrot.slane %v709, 1
        %v712 = vsel %vm588, %v707, %v711
        %v713 = vshrl.u32 %v584, 16
        %v715 = vor.u32 %v713, %v711
        %v717 = vshll.u32 %v585, 16
        %v719 = vrot.slane %v717, 1
        %v720 = vsel %vm588, %v715, %v719
        %v721 = vshrl.u32 %v585, 16
        %v723 = vor.u32 %v721, %v719
        %v725 = vshll.u32 %v586, 16
        %v727 = vrot.slane %v725, 1
        %v728 = vsel %vm588, %v723, %v727
        %v729 = vshrl.u32 %v586, 16
        %v731 = vor.u32 %v729, %v727
        %v733 = vshll.u32 %v587, 16
        %v735 = vrot.slane %v733, 1
        %v736 = vsel %vm588, %v731, %v735
        %vm737 = vcmask 39936
        %v739 = vsel %vm737, %v600, 0
        %v742 = vsel %vm737, %v608, 0
        %v745 = vsel %vm737, %v616, 0
        %v748 = vsel %vm737, %v624, 0
        %v751 = vsel %vm737, %v632, 0
        %v754 = vsel %vm737, %v640, 0
        %v757 = vsel %vm737, %v648, 0
        %v760 = vsel %vm737, %v656, 0
        %v763 = vsel %vm737, %v664, 0
        %v766 = vsel %vm737, %v672, 0
        %v769 = vsel %vm737, %v680, 0
        %v772 = vsel %vm737, %v688, 0
        %v775 = vsel %vm737, %v696, 0
        %v778 = vsel %vm737, %v704, 0
        %v781 = vsel %vm737, %v712, 0
        %v784 = vsel %vm737, %v720, 0
        %v787 = vsel %vm737, %v728, 0
        %v790 = vsel %vm737, %v736, 0
        %vm792 = vcmask 1041408
        %vm793 = vcmask 1042432
        %v794 = vsel %vm792, 4294967295, 65535
        %v795 = vsel %vm793, %v794, 0
        %v797 = vand.u32 %v494, %v795
        %799 = vmatprep.subr.bf16.mxu0 0
        %800 = vmatpush1.bf16.msra.mxu0 %v797
        %801 = vmatprep.subr.bf16.mxu0 0
        %802 = vmatpush1.bf16.msra.mxu0 0
        %803 = vmatprep.subr.bf16.mxu0 0
        %804 = vmatpush1.bf16.msra.mxu0 0
        %805 = vmatprep.subr.bf16.mxu0 0
        %806 = vmatpush1.bf16.msra.mxu0 0
        %807 = vmatprep.subr.bf16.mxu0 0
        %808 = vmatpush1.bf16.msra.mxu0 0
        %809 = vmatprep.subr.bf16.mxu0 0
        %810 = vmatpush1.bf16.msra.mxu0 0
        %811 = vmatprep.subr.bf16.mxu0 0
        %812 = vmatpush1.bf16.msra.mxu0 0
        %813 = vmatprep.subr.bf16.mxu0 0
        %814 = vmatpush1.bf16.msra.mxu0 0
        %815 = vmatprep.subr.bf16.mxu0 0
        %816 = vmatpush1.bf16.msra.mxu0 0
        %817 = vmatprep.subr.bf16.mxu0 0
        %818 = vmatpush1.bf16.msra.mxu0 0
        %819 = vmatprep.subr.bf16.mxu0 0
        %820 = vmatpush1.bf16.msra.mxu0 0
        %821 = vmatprep.subr.bf16.mxu0 0
        %822 = vmatpush1.bf16.msra.mxu0 0
        %823 = vmatprep.subr.bf16.mxu0 0
        %824 = vmatpush1.bf16.msra.mxu0 0
        %825 = vmatprep.subr.bf16.mxu0 0
        %826 = vmatpush1.bf16.msra.mxu0 0
        %827 = vmatprep.subr.bf16.mxu0 0
        %828 = vmatpush1.bf16.msra.mxu0 0
        %829 = vmatprep.subr.bf16.mxu0 0
        %830 = vmatpush1.bf16.msra.mxu0 0
        %831 = vmatprep.mubr.bf16.mxu0 0
        %832 = vmatmul.mubr.bf16.gmra.mrb[0].mxu0 %v739
        %v833 = vpop.f32.mrb[0].mxu0
        %v834 = vadd.f32 0.0, %v833
        %v835 = vpop.f32.mrb[0].mxu0
        %v836 = vpop.f32.mrb[0].mxu0
        %v837 = vadd.f32 0.0, %v836
        %v838 = vpop.f32.mrb[0].mxu0
        %839 = vmatprep.mubr.bf16.mxu0 0
        %840 = vmatmul.mubr.bf16.gmra.mrb[0].mxu0 %v742
        %v841 = vpop.f32.mrb[0].mxu0
        %v842 = vadd.f32 0.0, %v841
        %v843 = vpop.f32.mrb[0].mxu0
        %v844 = vpop.f32.mrb[0].mxu0
        %v845 = vadd.f32 0.0, %v844
        %v846 = vpop.f32.mrb[0].mxu0
        %847 = vmatprep.mubr.bf16.mxu0 0
        %848 = vmatmul.mubr.bf16.gmra.mrb[0].mxu0 %v745
        %v849 = vpop.f32.mrb[0].mxu0
        %v850 = vadd.f32 0.0, %v849
        %v851 = vpop.f32.mrb[0].mxu0
        %v852 = vpop.f32.mrb[0].mxu0
        %v853 = vadd.f32 0.0, %v852
        %v854 = vpop.f32.mrb[0].mxu0
        %855 = vmatprep.mubr.bf16.mxu0 0
        %856 = vmatmul.mubr.bf16.gmra.mrb[0].mxu0 %v748
        %v857 = vpop.f32.mrb[0].mxu0
        %v858 = vadd.f32 0.0, %v857
        %v859 = vpop.f32.mrb[0].mxu0
        %v860 = vpop.f32.mrb[0].mxu0
        %v861 = vadd.f32 0.0, %v860
        %v862 = vpop.f32.mrb[0].mxu0
        %863 = vmatprep.mubr.bf16.mxu0 0
        %864 = vmatmul.mubr.bf16.gmra.mrb[0].mxu0 %v751
        %v865 = vpop.f32.mrb[0].mxu0
        %v866 = vadd.f32 0.0, %v865
        %v867 = vpop.f32.mrb[0].mxu0
        %v868 = vpop.f32.mrb[0].mxu0
        %v869 = vadd.f32 0.0, %v868
        %v870 = vpop.f32.mrb[0].mxu0
        %871 = vmatprep.mubr.bf16.mxu0 0
        %872 = vmatmul.mubr.bf16.gmra.mrb[0].mxu0 %v754
        %v873 = vpop.f32.mrb[0].mxu0
        %v874 = vadd.f32 0.0, %v873
        %v875 = vpop.f32.mrb[0].mxu0
        %v876 = vpop.f32.mrb[0].mxu0
        %v877 = vadd.f32 0.0, %v876
        %v878 = vpop.f32.mrb[0].mxu0
        %879 = vmatprep.mubr.bf16.mxu0 0
        %880 = vmatmul.mubr.bf16.gmra.mrb[0].mxu0 %v757
        %v881 = vpop.f32.mrb[0].mxu0
        %v882 = vadd.f32 0.0, %v881
        %v883 = vpop.f32.mrb[0].mxu0
        %v884 = vpop.f32.mrb[0].mxu0
        %v885 = vadd.f32 0.0, %v884
        %v886 = vpop.f32.mrb[0].mxu0
        %887 = vmatprep.mubr.bf16.mxu0 0
        %888 = vmatmul.mubr.bf16.gmra.mrb[0].mxu0 %v760
        %v889 = vpop.f32.mrb[0].mxu0
        %v890 = vadd.f32 0.0, %v889
        %v891 = vpop.f32.mrb[0].mxu0
        %v892 = vpop.f32.mrb[0].mxu0
        %v893 = vadd.f32 0.0, %v892
        %v894 = vpop.f32.mrb[0].mxu0
        %895 = vmatprep.mubr.bf16.mxu0 0
        %896 = vmatmul.mubr.bf16.gmra.mrb[0].mxu0 %v763
        %v897 = vpop.f32.mrb[0].mxu0
        %v898 = vadd.f32 0.0, %v897
        %v899 = vpop.f32.mrb[0].mxu0
        %v900 = vpop.f32.mrb[0].mxu0
        %v901 = vadd.f32 0.0, %v900
        %v902 = vpop.f32.mrb[0].mxu0
        %903 = vmatprep.mubr.bf16.mxu0 0
        %904 = vmatmul.mubr.bf16.gmra.mrb[0].mxu0 %v766
        %v905 = vpop.f32.mrb[0].mxu0
        %v906 = vadd.f32 0.0, %v905
        %v907 = vpop.f32.mrb[0].mxu0
        %v908 = vpop.f32.mrb[0].mxu0
        %v909 = vadd.f32 0.0, %v908
        %v910 = vpop.f32.mrb[0].mxu0
        %911 = vmatprep.mubr.bf16.mxu0 0
        %912 = vmatmul.mubr.bf16.gmra.mrb[0].mxu0 %v769
        %v913 = vpop.f32.mrb[0].mxu0
        %v914 = vadd.f32 0.0, %v913
        %v915 = vpop.f32.mrb[0].mxu0
        %v916 = vpop.f32.mrb[0].mxu0
        %v917 = vadd.f32 0.0, %v916
        %v918 = vpop.f32.mrb[0].mxu0
        %919 = vmatprep.mubr.bf16.mxu0 0
        %920 = vmatmul.mubr.bf16.gmra.mrb[0].mxu0 %v772
        %v921 = vpop.f32.mrb[0].mxu0
        %v922 = vadd.f32 0.0, %v921
        %v923 = vpop.f32.mrb[0].mxu0
        %v924 = vpop.f32.mrb[0].mxu0
        %v925 = vadd.f32 0.0, %v924
        %v926 = vpop.f32.mrb[0].mxu0
        %927 = vmatprep.mubr.bf16.mxu0 0
        %928 = vmatmul.mubr.bf16.gmra.mrb[0].mxu0 %v775
        %v929 = vpop.f32.mrb[0].mxu0
        %v930 = vadd.f32 0.0, %v929
        %v931 = vpop.f32.mrb[0].mxu0
        %v932 = vpop.f32.mrb[0].mxu0
        %v933 = vadd.f32 0.0, %v932
        %v934 = vpop.f32.mrb[0].mxu0
        %935 = vmatprep.mubr.bf16.mxu0 0
        %936 = vmatmul.mubr.bf16.gmra.mrb[0].mxu0 %v778
        %v937 = vpop.f32.mrb[0].mxu0
        %v938 = vadd.f32 0.0, %v937
        %v939 = vpop.f32.mrb[0].mxu0
        %v940 = vpop.f32.mrb[0].mxu0
        %v941 = vadd.f32 0.0, %v940
        %v942 = vpop.f32.mrb[0].mxu0
        %943 = vmatprep.mubr.bf16.mxu0 0
        %944 = vmatmul.mubr.bf16.gmra.mrb[0].mxu0 %v781
        %v945 = vpop.f32.mrb[0].mxu0
        %v946 = vadd.f32 0.0, %v945
        %v947 = vpop.f32.mrb[0].mxu0
        %v948 = vpop.f32.mrb[0].mxu0
        %v949 = vadd.f32 0.0, %v948
        %v950 = vpop.f32.mrb[0].mxu0
        %951 = vmatprep.mubr.bf16.mxu0 0
        %952 = vmatmul.mubr.bf16.gmra.mrb[0].mxu0 %v784
        %v953 = vpop.f32.mrb[0].mxu0
        %v954 = vadd.f32 0.0, %v953
        %v955 = vpop.f32.mrb[0].mxu0
        %v956 = vpop.f32.mrb[0].mxu0
        %v957 = vadd.f32 0.0, %v956
        %v958 = vpop.f32.mrb[0].mxu0
        %959 = vmatprep.mubr.bf16.mxu0 0
        %960 = vmatmul.mubr.bf16.gmra.mrb[0].mxu0 %v787
        %v961 = vpop.f32.mrb[0].mxu0
        %v962 = vadd.f32 0.0, %v961
        %v963 = vpop.f32.mrb[0].mxu0
        %v964 = vpop.f32.mrb[0].mxu0
        %v965 = vadd.f32 0.0, %v964
        %v966 = vpop.f32.mrb[0].mxu0
        %967 = vmatprep.mubr.bf16.mxu0 0
        %968 = vmatmul.mubr.bf16.gmra.mrb[0].mxu0 %v790
        %v969 = vpop.f32.mrb[0].mxu0
        %v970 = vadd.f32 0.0, %v969
        %v971 = vpop.f32.mrb[0].mxu0
        %v972 = vpop.f32.mrb[0].mxu0
        %v973 = vadd.f32 0.0, %v972
        %v974 = vpop.f32.mrb[0].mxu0
        %975 = vdwg.mxu0
        %v976 = vsel %vm737, %v569, 0
        %v978 = vsel %vm737, %v570, 0
        %v980 = vsel %vm737, %v571, 0
        %v982 = vsel %vm737, %v572, 0
        %v984 = vsel %vm737, %v573, 0
        %v986 = vsel %vm737, %v574, 0
        %v988 = vsel %vm737, %v575, 0
        %v990 = vsel %vm737, %v576, 0
        %v992 = vsel %vm737, %v577, 0
        %v994 = vsel %vm737, %v578, 0
        %v996 = vsel %vm737, %v579, 0
        %v998 = vsel %vm737, %v580, 0
        %v1000 = vsel %vm737, %v581, 0
        %v1002 = vsel %vm737, %v582, 0
        %v1004 = vsel %vm737, %v583, 0
        %v1006 = vsel %vm737, %v584, 0
        %v1008 = vsel %vm737, %v585, 0
        %v1010 = vsel %vm737, %v586, 0
        %v1013 = vand.u32 %v491, %v795
        %1015 = vmatprep.subr.bf16.mxu0 0
        %1016 = vmatpush1.bf16.msra.mxu0 %v1013
        %1017 = vmatprep.subr.bf16.mxu0 0
        %1018 = vmatpush1.bf16.msra.mxu0 0
        %1019 = vmatprep.subr.bf16.mxu0 0
        %1020 = vmatpush1.bf16.msra.mxu0 0
        %1021 = vmatprep.subr.bf16.mxu0 0
        %1022 = vmatpush1.bf16.msra.mxu0 0
        %1023 = vmatprep.subr.bf16.mxu0 0
        %1024 = vmatpush1.bf16.msra.mxu0 0
        %1025 = vmatprep.subr.bf16.mxu0 0
        %1026 = vmatpush1.bf16.msra.mxu0 0
        %1027 = vmatprep.subr.bf16.mxu0 0
        %1028 = vmatpush1.bf16.msra.mxu0 0
        %1029 = vmatprep.subr.bf16.mxu0 0
        %1030 = vmatpush1.bf16.msra.mxu0 0
        %1031 = vmatprep.subr.bf16.mxu0 0
        %1032 = vmatpush1.bf16.msra.mxu0 0
        %1033 = vmatprep.subr.bf16.mxu0 0
        %1034 = vmatpush1.bf16.msra.mxu0 0
        %1035 = vmatprep.subr.bf16.mxu0 0
        %1036 = vmatpush1.bf16.msra.mxu0 0
        %1037 = vmatprep.subr.bf16.mxu0 0
        %1038 = vmatpush1.bf16.msra.mxu0 0
        %1039 = vmatprep.subr.bf16.mxu0 0
        %1040 = vmatpush1.bf16.msra.mxu0 0
        %1041 = vmatprep.subr.bf16.mxu0 0
        %1042 = vmatpush1.bf16.msra.mxu0 0
        %1043 = vmatprep.subr.bf16.mxu0 0
        %1044 = vmatpush1.bf16.msra.mxu0 0
        %1045 = vmatprep.subr.bf16.mxu0 0
        %1046 = vmatpush1.bf16.msra.mxu0 0
        %1047 = vmatprep.mubr.bf16.mxu0 0
        %1048 = vmatmul.mubr.bf16.gmra.mrb[0].mxu0 %v976
        %v1049 = vpop.f32.mrb[0].mxu0
        %v1050 = vadd.f32 %v834, %v1049
        %v1051 = vpop.f32.mrb[0].mxu0
        %v1052 = vpop.f32.mrb[0].mxu0
        %v1053 = vadd.f32 %v837, %v1052
        %v1054 = vpop.f32.mrb[0].mxu0
        %1055 = vmatprep.mubr.bf16.mxu0 0
        %1056 = vmatmul.mubr.bf16.gmra.mrb[0].mxu0 %v978
        %v1057 = vpop.f32.mrb[0].mxu0
        %v1058 = vadd.f32 %v842, %v1057
        %v1059 = vpop.f32.mrb[0].mxu0
        %v1060 = vpop.f32.mrb[0].mxu0
        %v1061 = vadd.f32 %v845, %v1060
        %v1062 = vpop.f32.mrb[0].mxu0
        %1063 = vmatprep.mubr.bf16.mxu0 0
        %1064 = vmatmul.mubr.bf16.gmra.mrb[0].mxu0 %v980
        %v1065 = vpop.f32.mrb[0].mxu0
        %v1066 = vadd.f32 %v850, %v1065
        %v1067 = vpop.f32.mrb[0].mxu0
        %v1068 = vpop.f32.mrb[0].mxu0
        %v1069 = vadd.f32 %v853, %v1068
        %v1070 = vpop.f32.mrb[0].mxu0
        %1071 = vmatprep.mubr.bf16.mxu0 0
        %1072 = vmatmul.mubr.bf16.gmra.mrb[0].mxu0 %v982
        %v1073 = vpop.f32.mrb[0].mxu0
        %v1074 = vadd.f32 %v858, %v1073
        %v1075 = vpop.f32.mrb[0].mxu0
        %v1076 = vpop.f32.mrb[0].mxu0
        %v1077 = vadd.f32 %v861, %v1076
        %v1078 = vpop.f32.mrb[0].mxu0
        %1079 = vmatprep.mubr.bf16.mxu0 0
        %1080 = vmatmul.mubr.bf16.gmra.mrb[0].mxu0 %v984
        %v1081 = vpop.f32.mrb[0].mxu0
        %v1082 = vadd.f32 %v866, %v1081
        %v1083 = vpop.f32.mrb[0].mxu0
        %v1084 = vpop.f32.mrb[0].mxu0
        %v1085 = vadd.f32 %v869, %v1084
        %v1086 = vpop.f32.mrb[0].mxu0
        %1087 = vmatprep.mubr.bf16.mxu0 0
        %1088 = vmatmul.mubr.bf16.gmra.mrb[0].mxu0 %v986
        %v1089 = vpop.f32.mrb[0].mxu0
        %v1090 = vadd.f32 %v874, %v1089
        %v1091 = vpop.f32.mrb[0].mxu0
        %v1092 = vpop.f32.mrb[0].mxu0
        %v1093 = vadd.f32 %v877, %v1092
        %v1094 = vpop.f32.mrb[0].mxu0
        %1095 = vmatprep.mubr.bf16.mxu0 0
        %1096 = vmatmul.mubr.bf16.gmra.mrb[0].mxu0 %v988
        %v1097 = vpop.f32.mrb[0].mxu0
        %v1098 = vadd.f32 %v882, %v1097
        %v1099 = vpop.f32.mrb[0].mxu0
        %v1100 = vpop.f32.mrb[0].mxu0
        %v1101 = vadd.f32 %v885, %v1100
        %v1102 = vpop.f32.mrb[0].mxu0
        %1103 = vmatprep.mubr.bf16.mxu0 0
        %1104 = vmatmul.mubr.bf16.gmra.mrb[0].mxu0 %v990
        %v1105 = vpop.f32.mrb[0].mxu0
        %v1106 = vadd.f32 %v890, %v1105
        %v1107 = vpop.f32.mrb[0].mxu0
        %v1108 = vpop.f32.mrb[0].mxu0
        %v1109 = vadd.f32 %v893, %v1108
        %v1110 = vpop.f32.mrb[0].mxu0
        %1111 = vmatprep.mubr.bf16.mxu0 0
        %1112 = vmatmul.mubr.bf16.gmra.mrb[0].mxu0 %v992
        %v1113 = vpop.f32.mrb[0].mxu0
        %v1114 = vadd.f32 %v898, %v1113
        %v1115 = vpop.f32.mrb[0].mxu0
        %v1116 = vpop.f32.mrb[0].mxu0
        %v1117 = vadd.f32 %v901, %v1116
        %v1118 = vpop.f32.mrb[0].mxu0
        %1119 = vmatprep.mubr.bf16.mxu0 0
        %1120 = vmatmul.mubr.bf16.gmra.mrb[0].mxu0 %v994
        %v1121 = vpop.f32.mrb[0].mxu0
        %v1122 = vadd.f32 %v906, %v1121
        %v1123 = vpop.f32.mrb[0].mxu0
        %v1124 = vpop.f32.mrb[0].mxu0
        %v1125 = vadd.f32 %v909, %v1124
        %v1126 = vpop.f32.mrb[0].mxu0
        %1127 = vmatprep.mubr.bf16.mxu0 0
        %1128 = vmatmul.mubr.bf16.gmra.mrb[0].mxu0 %v996
        %v1129 = vpop.f32.mrb[0].mxu0
        %v1130 = vadd.f32 %v914, %v1129
        %v1131 = vpop.f32.mrb[0].mxu0
        %v1132 = vpop.f32.mrb[0].mxu0
        %v1133 = vadd.f32 %v917, %v1132
        %v1134 = vpop.f32.mrb[0].mxu0
        %1135 = vmatprep.mubr.bf16.mxu0 0
        %1136 = vmatmul.mubr.bf16.gmra.mrb[0].mxu0 %v998
        %v1137 = vpop.f32.mrb[0].mxu0
        %v1138 = vadd.f32 %v922, %v1137
        %v1139 = vpop.f32.mrb[0].mxu0
        %v1140 = vpop.f32.mrb[0].mxu0
        %v1141 = vadd.f32 %v925, %v1140
        %v1142 = vpop.f32.mrb[0].mxu0
        %1143 = vmatprep.mubr.bf16.mxu0 0
        %1144 = vmatmul.mubr.bf16.gmra.mrb[0].mxu0 %v1000
        %v1145 = vpop.f32.mrb[0].mxu0
        %v1146 = vadd.f32 %v930, %v1145
        %v1147 = vpop.f32.mrb[0].mxu0
        %v1148 = vpop.f32.mrb[0].mxu0
        %v1149 = vadd.f32 %v933, %v1148
        %v1150 = vpop.f32.mrb[0].mxu0
        %1151 = vmatprep.mubr.bf16.mxu0 0
        %1152 = vmatmul.mubr.bf16.gmra.mrb[0].mxu0 %v1002
        %v1153 = vpop.f32.mrb[0].mxu0
        %v1154 = vadd.f32 %v938, %v1153
        %v1155 = vpop.f32.mrb[0].mxu0
        %v1156 = vpop.f32.mrb[0].mxu0
        %v1157 = vadd.f32 %v941, %v1156
        %v1158 = vpop.f32.mrb[0].mxu0
        %1159 = vmatprep.mubr.bf16.mxu0 0
        %1160 = vmatmul.mubr.bf16.gmra.mrb[0].mxu0 %v1004
        %v1161 = vpop.f32.mrb[0].mxu0
        %v1162 = vadd.f32 %v946, %v1161
        %v1163 = vpop.f32.mrb[0].mxu0
        %v1164 = vpop.f32.mrb[0].mxu0
        %v1165 = vadd.f32 %v949, %v1164
        %v1166 = vpop.f32.mrb[0].mxu0
        %1167 = vmatprep.mubr.bf16.mxu0 0
        %1168 = vmatmul.mubr.bf16.gmra.mrb[0].mxu0 %v1006
        %v1169 = vpop.f32.mrb[0].mxu0
        %v1170 = vadd.f32 %v954, %v1169
        %v1171 = vpop.f32.mrb[0].mxu0
        %v1172 = vpop.f32.mrb[0].mxu0
        %v1173 = vadd.f32 %v957, %v1172
        %v1174 = vpop.f32.mrb[0].mxu0
        %1175 = vmatprep.mubr.bf16.mxu0 0
        %1176 = vmatmul.mubr.bf16.gmra.mrb[0].mxu0 %v1008
        %v1177 = vpop.f32.mrb[0].mxu0
        %v1178 = vadd.f32 %v962, %v1177
        %v1179 = vpop.f32.mrb[0].mxu0
        %v1180 = vpop.f32.mrb[0].mxu0
        %v1181 = vadd.f32 %v965, %v1180
        %v1182 = vpop.f32.mrb[0].mxu0
        %1183 = vmatprep.mubr.bf16.mxu0 0
        %1184 = vmatmul.mubr.bf16.gmra.mrb[0].mxu0 %v1010
        %v1185 = vpop.f32.mrb[0].mxu0
        %v1186 = vadd.f32 %v970, %v1185
        %v1187 = vpop.f32.mrb[0].mxu0
        %v1188 = vpop.f32.mrb[0].mxu0
        %v1189 = vadd.f32 %v973, %v1188
        %v1190 = vpop.f32.mrb[0].mxu0
        %1191 = vdwg.mxu0
        %v1192 = vld [vmem:[%s405] sm:$0xe]
        %s1193 = scalar_lea.vmem %s4, 8
        %v1194 = vld [vmem:[%s1193] sm:$0x7]
        %v1196 = vunpack.c.l.b16 %v1192
        %v1197 = vpack.c.b16 %v533, %v1196
        %vm1198 = vcmask 1046528
        %v1199 = vrot.slane %v1197, 1
        %v1200 = vrot.slane %v570, 1
        %v1201 = vsel %vm1198, %v1199, %v1200
        %v1202 = vrot.slane %v571, 1
        %v1203 = vsel %vm1198, %v1200, %v1202
        %v1204 = vrot.slane %v572, 1
        %v1205 = vsel %vm1198, %v1202, %v1204
        %v1206 = vrot.slane %v573, 1
        %v1207 = vsel %vm1198, %v1204, %v1206
        %v1208 = vrot.slane %v574, 1
        %v1209 = vsel %vm1198, %v1206, %v1208
        %v1210 = vrot.slane %v575, 1
        %v1211 = vsel %vm1198, %v1208, %v1210
        %v1212 = vrot.slane %v576, 1
        %v1213 = vsel %vm1198, %v1210, %v1212
        %v1214 = vrot.slane %v577, 1
        %v1215 = vsel %vm1198, %v1212, %v1214
        %v1216 = vrot.slane %v578, 1
        %v1217 = vsel %vm1198, %v1214, %v1216
        %v1218 = vrot.slane %v579, 1
        %v1219 = vsel %vm1198, %v1216, %v1218
        %v1220 = vrot.slane %v580, 1
        %v1221 = vsel %vm1198, %v1218, %v1220
        %v1222 = vrot.slane %v581, 1
        %v1223 = vsel %vm1198, %v1220, %v1222
        %v1224 = vrot.slane %v582, 1
        %v1225 = vsel %vm1198, %v1222, %v1224
        %v1226 = vrot.slane %v583, 1
        %v1227 = vsel %vm1198, %v1224, %v1226
        %v1228 = vrot.slane %v584, 1
        %v1229 = vsel %vm1198, %v1226, %v1228
        %v1230 = vrot.slane %v585, 1
        %v1231 = vsel %vm1198, %v1228, %v1230
        %v1232 = vrot.slane %v586, 1
        %v1233 = vsel %vm1198, %v1230, %v1232
        %v1234 = vrot.slane %v587, 1
        %v1235 = vsel %vm1198, %v1232, %v1234
        %v1237 = vsel %vm737, %v1201, 0
        %v1240 = vsel %vm737, %v1203, 0
        %v1243 = vsel %vm737, %v1205, 0
        %v1246 = vsel %vm737, %v1207, 0
        %v1249 = vsel %vm737, %v1209, 0
        %v1252 = vsel %vm737, %v1211, 0
        %v1255 = vsel %vm737, %v1213, 0
        %v1258 = vsel %vm737, %v1215, 0
        %v1261 = vsel %vm737, %v1217, 0
        %v1264 = vsel %vm737, %v1219, 0
        %v1267 = vsel %vm737, %v1221, 0
        %v1270 = vsel %vm737, %v1223, 0
        %v1273 = vsel %vm737, %v1225, 0
        %v1276 = vsel %vm737, %v1227, 0
        %v1279 = vsel %vm737, %v1229, 0
        %v1282 = vsel %vm737, %v1231, 0
        %v1285 = vsel %vm737, %v1233, 0
        %v1288 = vsel %vm737, %v1235, 0
        %v1291 = vand.u32 %v1194, %v795
        %1293 = vmatprep.subr.bf16.mxu0 0
        %1294 = vmatpush1.bf16.msra.mxu0 %v1291
        %1295 = vmatprep.subr.bf16.mxu0 0
        %1296 = vmatpush1.bf16.msra.mxu0 0
        %1297 = vmatprep.subr.bf16.mxu0 0
        %1298 = vmatpush1.bf16.msra.mxu0 0
        %1299 = vmatprep.subr.bf16.mxu0 0
        %1300 = vmatpush1.bf16.msra.mxu0 0
        %1301 = vmatprep.subr.bf16.mxu0 0
        %1302 = vmatpush1.bf16.msra.mxu0 0
        %1303 = vmatprep.subr.bf16.mxu0 0
        %1304 = vmatpush1.bf16.msra.mxu0 0
        %1305 = vmatprep.subr.bf16.mxu0 0
        %1306 = vmatpush1.bf16.msra.mxu0 0
        %1307 = vmatprep.subr.bf16.mxu0 0
        %1308 = vmatpush1.bf16.msra.mxu0 0
        %1309 = vmatprep.subr.bf16.mxu0 0
        %1310 = vmatpush1.bf16.msra.mxu0 0
        %1311 = vmatprep.subr.bf16.mxu0 0
        %1312 = vmatpush1.bf16.msra.mxu0 0
        %1313 = vmatprep.subr.bf16.mxu0 0
        %1314 = vmatpush1.bf16.msra.mxu0 0
        %1315 = vmatprep.subr.bf16.mxu0 0
        %1316 = vmatpush1.bf16.msra.mxu0 0
        %1317 = vmatprep.subr.bf16.mxu0 0
        %1318 = vmatpush1.bf16.msra.mxu0 0
        %1319 = vmatprep.subr.bf16.mxu0 0
        %1320 = vmatpush1.bf16.msra.mxu0 0
        %1321 = vmatprep.subr.bf16.mxu0 0
        %1322 = vmatpush1.bf16.msra.mxu0 0
        %1323 = vmatprep.subr.bf16.mxu0 0
        %1324 = vmatpush1.bf16.msra.mxu0 0
        %1325 = vmatprep.mubr.bf16.mxu0 0
        %1326 = vmatmul.mubr.bf16.gmra.mrb[0].mxu0 %v1237
        %v1327 = vpop.f32.mrb[0].mxu0
        %v1328 = vadd.f32 0.0, %v1327
        %v1329 = vpop.f32.mrb[0].mxu0
        %v1330 = vpop.f32.mrb[0].mxu0
        %v1331 = vadd.f32 0.0, %v1330
        %v1332 = vpop.f32.mrb[0].mxu0
        %1333 = vmatprep.mubr.bf16.mxu0 0
        %1334 = vmatmul.mubr.bf16.gmra.mrb[0].mxu0 %v1240
        %v1335 = vpop.f32.mrb[0].mxu0
        %v1336 = vadd.f32 0.0, %v1335
        %v1337 = vpop.f32.mrb[0].mxu0
        %v1338 = vpop.f32.mrb[0].mxu0
        %v1339 = vadd.f32 0.0, %v1338
        %v1340 = vpop.f32.mrb[0].mxu0
        %1341 = vmatprep.mubr.bf16.mxu0 0
        %1342 = vmatmul.mubr.bf16.gmra.mrb[0].mxu0 %v1243
        %v1343 = vpop.f32.mrb[0].mxu0
        %v1344 = vadd.f32 0.0, %v1343
        %v1345 = vpop.f32.mrb[0].mxu0
        %v1346 = vpop.f32.mrb[0].mxu0
        %v1347 = vadd.f32 0.0, %v1346
        %v1348 = vpop.f32.mrb[0].mxu0
        %1349 = vmatprep.mubr.bf16.mxu0 0
        %1350 = vmatmul.mubr.bf16.gmra.mrb[0].mxu0 %v1246
        %v1351 = vpop.f32.mrb[0].mxu0
        %v1352 = vadd.f32 0.0, %v1351
        %v1353 = vpop.f32.mrb[0].mxu0
        %v1354 = vpop.f32.mrb[0].mxu0
        %v1355 = vadd.f32 0.0, %v1354
        %v1356 = vpop.f32.mrb[0].mxu0
        %1357 = vmatprep.mubr.bf16.mxu0 0
        %1358 = vmatmul.mubr.bf16.gmra.mrb[0].mxu0 %v1249
        %v1359 = vpop.f32.mrb[0].mxu0
        %v1360 = vadd.f32 0.0, %v1359
        %v1361 = vpop.f32.mrb[0].mxu0
        %v1362 = vpop.f32.mrb[0].mxu0
        %v1363 = vadd.f32 0.0, %v1362
        %v1364 = vpop.f32.mrb[0].mxu0
        %1365 = vmatprep.mubr.bf16.mxu0 0
        %1366 = vmatmul.mubr.bf16.gmra.mrb[0].mxu0 %v1252
        %v1367 = vpop.f32.mrb[0].mxu0
        %v1368 = vadd.f32 0.0, %v1367
        %v1369 = vpop.f32.mrb[0].mxu0
        %v1370 = vpop.f32.mrb[0].mxu0
        %v1371 = vadd.f32 0.0, %v1370
        %v1372 = vpop.f32.mrb[0].mxu0
        %1373 = vmatprep.mubr.bf16.mxu0 0
        %1374 = vmatmul.mubr.bf16.gmra.mrb[0].mxu0 %v1255
        %v1375 = vpop.f32.mrb[0].mxu0
        %v1376 = vadd.f32 0.0, %v1375
        %v1377 = vpop.f32.mrb[0].mxu0
        %v1378 = vpop.f32.mrb[0].mxu0
        %v1379 = vadd.f32 0.0, %v1378
        %v1380 = vpop.f32.mrb[0].mxu0
        %1381 = vmatprep.mubr.bf16.mxu0 0
        %1382 = vmatmul.mubr.bf16.gmra.mrb[0].mxu0 %v1258
        %v1383 = vpop.f32.mrb[0].mxu0
        %v1384 = vadd.f32 0.0, %v1383
        %v1385 = vpop.f32.mrb[0].mxu0
        %v1386 = vpop.f32.mrb[0].mxu0
        %v1387 = vadd.f32 0.0, %v1386
        %v1388 = vpop.f32.mrb[0].mxu0
        %1389 = vmatprep.mubr.bf16.mxu0 0
        %1390 = vmatmul.mubr.bf16.gmra.mrb[0].mxu0 %v1261
        %v1391 = vpop.f32.mrb[0].mxu0
        %v1392 = vadd.f32 0.0, %v1391
        %v1393 = vpop.f32.mrb[0].mxu0
        %v1394 = vpop.f32.mrb[0].mxu0
        %v1395 = vadd.f32 0.0, %v1394
        %v1396 = vpop.f32.mrb[0].mxu0
        %1397 = vmatprep.mubr.bf16.mxu0 0
        %1398 = vmatmul.mubr.bf16.gmra.mrb[0].mxu0 %v1264
        %v1399 = vpop.f32.mrb[0].mxu0
        %v1400 = vadd.f32 0.0, %v1399
        %v1401 = vpop.f32.mrb[0].mxu0
        %v1402 = vpop.f32.mrb[0].mxu0
        %v1403 = vadd.f32 0.0, %v1402
        %v1404 = vpop.f32.mrb[0].mxu0
        %1405 = vmatprep.mubr.bf16.mxu0 0
        %1406 = vmatmul.mubr.bf16.gmra.mrb[0].mxu0 %v1267
        %v1407 = vpop.f32.mrb[0].mxu0
        %v1408 = vadd.f32 0.0, %v1407
        %v1409 = vpop.f32.mrb[0].mxu0
        %v1410 = vpop.f32.mrb[0].mxu0
        %v1411 = vadd.f32 0.0, %v1410
        %v1412 = vpop.f32.mrb[0].mxu0
        %1413 = vmatprep.mubr.bf16.mxu0 0
        %1414 = vmatmul.mubr.bf16.gmra.mrb[0].mxu0 %v1270
        %v1415 = vpop.f32.mrb[0].mxu0
        %v1416 = vadd.f32 0.0, %v1415
        %v1417 = vpop.f32.mrb[0].mxu0
        %v1418 = vpop.f32.mrb[0].mxu0
        %v1419 = vadd.f32 0.0, %v1418
        %v1420 = vpop.f32.mrb[0].mxu0
        %1421 = vmatprep.mubr.bf16.mxu0 0
        %1422 = vmatmul.mubr.bf16.gmra.mrb[0].mxu0 %v1273
        %v1423 = vpop.f32.mrb[0].mxu0
        %v1424 = vadd.f32 0.0, %v1423
        %v1425 = vpop.f32.mrb[0].mxu0
        %v1426 = vpop.f32.mrb[0].mxu0
        %v1427 = vadd.f32 0.0, %v1426
        %v1428 = vpop.f32.mrb[0].mxu0
        %1429 = vmatprep.mubr.bf16.mxu0 0
        %1430 = vmatmul.mubr.bf16.gmra.mrb[0].mxu0 %v1276
        %v1431 = vpop.f32.mrb[0].mxu0
        %v1432 = vadd.f32 0.0, %v1431
        %v1433 = vpop.f32.mrb[0].mxu0
        %v1434 = vpop.f32.mrb[0].mxu0
        %v1435 = vadd.f32 0.0, %v1434
        %v1436 = vpop.f32.mrb[0].mxu0
        %1437 = vmatprep.mubr.bf16.mxu0 0
        %1438 = vmatmul.mubr.bf16.gmra.mrb[0].mxu0 %v1279
        %v1439 = vpop.f32.mrb[0].mxu0
        %v1440 = vadd.f32 0.0, %v1439
        %v1441 = vpop.f32.mrb[0].mxu0
        %v1442 = vpop.f32.mrb[0].mxu0
        %v1443 = vadd.f32 0.0, %v1442
        %v1444 = vpop.f32.mrb[0].mxu0
        %1445 = vmatprep.mubr.bf16.mxu0 0
        %1446 = vmatmul.mubr.bf16.gmra.mrb[0].mxu0 %v1282
        %v1447 = vpop.f32.mrb[0].mxu0
        %v1448 = vadd.f32 0.0, %v1447
        %v1449 = vpop.f32.mrb[0].mxu0
        %v1450 = vpop.f32.mrb[0].mxu0
        %v1451 = vadd.f32 0.0, %v1450
        %v1452 = vpop.f32.mrb[0].mxu0
        %1453 = vmatprep.mubr.bf16.mxu0 0
        %1454 = vmatmul.mubr.bf16.gmra.mrb[0].mxu0 %v1285
        %v1455 = vpop.f32.mrb[0].mxu0
        %v1456 = vadd.f32 0.0, %v1455
        %v1457 = vpop.f32.mrb[0].mxu0
        %v1458 = vpop.f32.mrb[0].mxu0
        %v1459 = vadd.f32 0.0, %v1458
        %v1460 = vpop.f32.mrb[0].mxu0
        %1461 = vmatprep.mubr.bf16.mxu0 0
        %1462 = vmatmul.mubr.bf16.gmra.mrb[0].mxu0 %v1288
        %v1463 = vpop.f32.mrb[0].mxu0
        %v1464 = vadd.f32 0.0, %v1463
        %v1465 = vpop.f32.mrb[0].mxu0
        %v1466 = vpop.f32.mrb[0].mxu0
        %v1467 = vadd.f32 0.0, %v1466
        %v1468 = vpop.f32.mrb[0].mxu0
        %1469 = vdwg.mxu0
        %v1470 = vadd.f32 %v1050, %v1328
        %v1471 = vadd.f32 %v1053, %v1331
        %v1472 = vadd.f32 %v1058, %v1336
        %v1473 = vadd.f32 %v1061, %v1339
        %v1474 = vadd.f32 %v1066, %v1344
        %v1475 = vadd.f32 %v1069, %v1347
        %v1476 = vadd.f32 %v1074, %v1352
        %v1477 = vadd.f32 %v1077, %v1355
        %v1478 = vadd.f32 %v1082, %v1360
        %v1479 = vadd.f32 %v1085, %v1363
        %v1480 = vadd.f32 %v1090, %v1368
        %v1481 = vadd.f32 %v1093, %v1371
        %v1482 = vadd.f32 %v1098, %v1376
        %v1483 = vadd.f32 %v1101, %v1379
        %v1484 = vadd.f32 %v1106, %v1384
        %v1485 = vadd.f32 %v1109, %v1387
        %v1486 = vadd.f32 %v1114, %v1392
        %v1487 = vadd.f32 %v1117, %v1395
        %v1488 = vadd.f32 %v1122, %v1400
        %v1489 = vadd.f32 %v1125, %v1403
        %v1490 = vadd.f32 %v1130, %v1408
        %v1491 = vadd.f32 %v1133, %v1411
        %v1492 = vadd.f32 %v1138, %v1416
        %v1493 = vadd.f32 %v1141, %v1419
        %v1494 = vadd.f32 %v1146, %v1424
        %v1495 = vadd.f32 %v1149, %v1427
        %v1496 = vadd.f32 %v1154, %v1432
        %v1497 = vadd.f32 %v1157, %v1435
        %v1498 = vadd.f32 %v1162, %v1440
        %v1499 = vadd.f32 %v1165, %v1443
        %v1500 = vadd.f32 %v1170, %v1448
        %v1501 = vadd.f32 %v1173, %v1451
        %v1502 = vadd.f32 %v1178, %v1456
        %v1503 = vadd.f32 %v1181, %v1459
        %v1504 = vadd.f32 %v1186, %v1464
        %v1505 = vadd.f32 %v1189, %v1467
        %v1506 = vld [vmem:[%s405 + $0x8] sm:$0xe]
        %v1507 = vld [vmem:[%s405 + $0xc] sm:$0xf]
        %v1508 = vld [vmem:[%s405 + $0x10] sm:$0xf]
        %v1509 = vld [vmem:[%s405 + $0x14] sm:$0xf]
        %v1510 = vld [vmem:[%s405 + $0x18] sm:$0xf]
        %v1511 = vld [vmem:[%s405 + $0x1c] sm:$0xf]
        %v1512 = vld [vmem:[%s405 + $0x20] sm:$0xf]
        %v1513 = vld [vmem:[%s405 + $0x24] sm:$0xf]
        %v1514 = vld [vmem:[%s405 + $0x28] sm:$0xf]
        %v1515 = vld [vmem:[%s405 + $0x2c] sm:$0xf]
        %v1516 = vld [vmem:[%s405 + $0x30] sm:$0xf]
        %v1517 = vld [vmem:[%s405 + $0x34] sm:$0xf]
        %v1518 = vld [vmem:[%s405 + $0x38] sm:$0xf]
        %v1519 = vld [vmem:[%s405 + $0x3c] sm:$0xf]
        %v1520 = vld [vmem:[%s405 + $0x40] sm:$0xf]
        %v1521 = vld [vmem:[%s405 + $0x44] sm:$0xf]
        %v1522 = vld [vmem:[%s405 + $0x48] sm:$0xf]
        %v1523 = vld [vmem:[%s405 + $0x4c] sm:$0xf]
        %v1524 = vld [vmem:[%s405 + $0x50] sm:$0xf]
        %v1525 = vld [vmem:[%s405 + $0x54] sm:$0xf]
        %v1526 = vld [vmem:[%s405 + $0x58] sm:$0xf]
        %v1527 = vld [vmem:[%s405 + $0x5c] sm:$0xf]
        %v1528 = vld [vmem:[%s405 + $0x60] sm:$0xf]
        %v1529 = vld [vmem:[%s405 + $0x64] sm:$0xf]
        %v1530 = vld [vmem:[%s405 + $0x68] sm:$0xf]
        %v1531 = vld [vmem:[%s405 + $0x6c] sm:$0xf]
        %v1532 = vld [vmem:[%s405 + $0x70] sm:$0xf]
        %v1533 = vld [vmem:[%s405 + $0x74] sm:$0xf]
        %v1534 = vld [vmem:[%s405 + $0x78] sm:$0xf]
        %v1535 = vld [vmem:[%s405 + $0x7c] sm:$0xf]
        %v1536 = vld [vmem:[%s405 + $0x80] sm:$0xf]
        %v1537 = vld [vmem:[%s405 + $0x84] sm:$0xf]
        %v1538 = vld [vmem:[%s405 + $0x88] sm:$0xf]
        %v1539 = vld [vmem:[%s405 + $0x8c] sm:$0xf]
        %v1540 = vld [vmem:[%s405 + $0x90] sm:$0xf]
        %v1541 = vld [vmem:[%s405 + $0x94] sm:$0xf]
        %v1542 = vld [vmem:[%s405 + $0x98] sm:$0x1]
        %s1543 = scalar_lea.vmem %s4, 12
        %v1544 = vld [vmem:[%s1543] sm:$0x7]
        %v1582 = vunpack.c.l.b16 %v1506
        %v1583 = vunpack.c.l.b16 %v1507
        %v1584 = vunpack.c.l.b16 %v1508
        %v1585 = vunpack.c.l.b16 %v1509
        %v1586 = vunpack.c.l.b16 %v1510
        %v1587 = vunpack.c.l.b16 %v1511
        %v1588 = vunpack.c.l.b16 %v1512
        %v1589 = vunpack.c.l.b16 %v1513
        %v1590 = vunpack.c.l.b16 %v1514
        %v1591 = vunpack.c.l.b16 %v1515
        %v1592 = vunpack.c.l.b16 %v1516
        %v1593 = vunpack.c.l.b16 %v1517
        %v1594 = vunpack.c.l.b16 %v1518
        %v1595 = vunpack.c.l.b16 %v1519
        %v1596 = vunpack.c.l.b16 %v1520
        %v1597 = vunpack.c.l.b16 %v1521
        %v1598 = vunpack.c.l.b16 %v1522
        %v1599 = vunpack.c.l.b16 %v1523
        %v1600 = vunpack.c.l.b16 %v1524
        %v1601 = vunpack.c.l.b16 %v1525
        %v1602 = vunpack.c.l.b16 %v1526
        %v1603 = vunpack.c.l.b16 %v1527
        %v1604 = vunpack.c.l.b16 %v1528
        %v1605 = vunpack.c.l.b16 %v1529
        %v1606 = vunpack.c.l.b16 %v1530
        %v1607 = vunpack.c.l.b16 %v1531
        %v1608 = vunpack.c.l.b16 %v1532
        %v1609 = vunpack.c.l.b16 %v1533
        %v1610 = vunpack.c.l.b16 %v1534
        %v1611 = vunpack.c.l.b16 %v1535
        %v1612 = vunpack.c.l.b16 %v1536
        %v1613 = vunpack.c.l.b16 %v1537
        %v1614 = vunpack.c.l.b16 %v1538
        %v1615 = vunpack.c.l.b16 %v1539
        %v1616 = vunpack.c.l.b16 %v1540
        %v1617 = vunpack.c.l.b16 %v1541
        %v1618 = vunpack.c.l.b16 %v1542
        %v1619 = vpack.c.b16 %v1583, %v1582
        %v1620 = vpack.c.b16 %v1585, %v1584
        %v1621 = vpack.c.b16 %v1587, %v1586
        %v1622 = vpack.c.b16 %v1589, %v1588
        %v1623 = vpack.c.b16 %v1591, %v1590
        %v1624 = vpack.c.b16 %v1593, %v1592
        %v1625 = vpack.c.b16 %v1595, %v1594
        %v1626 = vpack.c.b16 %v1597, %v1596
        %v1627 = vpack.c.b16 %v1599, %v1598
        %v1628 = vpack.c.b16 %v1601, %v1600
        %v1629 = vpack.c.b16 %v1603, %v1602
        %v1630 = vpack.c.b16 %v1605, %v1604
        %v1631 = vpack.c.b16 %v1607, %v1606
        %v1632 = vpack.c.b16 %v1609, %v1608
        %v1633 = vpack.c.b16 %v1611, %v1610
        %v1634 = vpack.c.b16 %v1613, %v1612
        %v1635 = vpack.c.b16 %v1615, %v1614
        %v1636 = vpack.c.b16 %v1617, %v1616
        %v1637 = vpack.c.b16 %v1618, %v1618
        %v1638 = vrot.slane %v1619, 1
        %v1639 = vrot.slane %v1620, 1
        %v1640 = vsel %vm1198, %v1638, %v1639
        %v1641 = vrot.slane %v1621, 1
        %v1642 = vsel %vm1198, %v1639, %v1641
        %v1643 = vrot.slane %v1622, 1
        %v1644 = vsel %vm1198, %v1641, %v1643
        %v1645 = vrot.slane %v1623, 1
        %v1646 = vsel %vm1198, %v1643, %v1645
        %v1647 = vrot.slane %v1624, 1
        %v1648 = vsel %vm1198, %v1645, %v1647
        %v1649 = vrot.slane %v1625, 1
        %v1650 = vsel %vm1198, %v1647, %v1649
        %v1651 = vrot.slane %v1626, 1
        %v1652 = vsel %vm1198, %v1649, %v1651
        %v1653 = vrot.slane %v1627, 1
        %v1654 = vsel %vm1198, %v1651, %v1653
        %v1655 = vrot.slane %v1628, 1
        %v1656 = vsel %vm1198, %v1653, %v1655
        %v1657 = vrot.slane %v1629, 1
        %v1658 = vsel %vm1198, %v1655, %v1657
        %v1659 = vrot.slane %v1630, 1
        %v1660 = vsel %vm1198, %v1657, %v1659
        %v1661 = vrot.slane %v1631, 1
        %v1662 = vsel %vm1198, %v1659, %v1661
        %v1663 = vrot.slane %v1632, 1
        %v1664 = vsel %vm1198, %v1661, %v1663
        %v1665 = vrot.slane %v1633, 1
        %v1666 = vsel %vm1198, %v1663, %v1665
        %v1667 = vrot.slane %v1634, 1
        %v1668 = vsel %vm1198, %v1665, %v1667
        %v1669 = vrot.slane %v1635, 1
        %v1670 = vsel %vm1198, %v1667, %v1669
        %v1671 = vrot.slane %v1636, 1
        %v1672 = vsel %vm1198, %v1669, %v1671
        %v1673 = vrot.slane %v1637, 1
        %v1674 = vsel %vm1198, %v1671, %v1673
        %v1676 = vsel %vm737, %v1640, 0
        %v1679 = vsel %vm737, %v1642, 0
        %v1682 = vsel %vm737, %v1644, 0
        %v1685 = vsel %vm737, %v1646, 0
        %v1688 = vsel %vm737, %v1648, 0
        %v1691 = vsel %vm737, %v1650, 0
        %v1694 = vsel %vm737, %v1652, 0
        %v1697 = vsel %vm737, %v1654, 0
        %v1700 = vsel %vm737, %v1656, 0
        %v1703 = vsel %vm737, %v1658, 0
        %v1706 = vsel %vm737, %v1660, 0
        %v1709 = vsel %vm737, %v1662, 0
        %v1712 = vsel %vm737, %v1664, 0
        %v1715 = vsel %vm737, %v1666, 0
        %v1718 = vsel %vm737, %v1668, 0
        %v1721 = vsel %vm737, %v1670, 0
        %v1724 = vsel %vm737, %v1672, 0
        %v1727 = vsel %vm737, %v1674, 0
        %v1730 = vand.u32 %v1544, %v795
        %1732 = vmatprep.subr.bf16.mxu0 0
        %1733 = vmatpush1.bf16.msra.mxu0 %v1730
        %1734 = vmatprep.subr.bf16.mxu0 0
        %1735 = vmatpush1.bf16.msra.mxu0 0
        %1736 = vmatprep.subr.bf16.mxu0 0
        %1737 = vmatpush1.bf16.msra.mxu0 0
        %1738 = vmatprep.subr.bf16.mxu0 0
        %1739 = vmatpush1.bf16.msra.mxu0 0
        %1740 = vmatprep.subr.bf16.mxu0 0
        %1741 = vmatpush1.bf16.msra.mxu0 0
        %1742 = vmatprep.subr.bf16.mxu0 0
        %1743 = vmatpush1.bf16.msra.mxu0 0
        %1744 = vmatprep.subr.bf16.mxu0 0
        %1745 = vmatpush1.bf16.msra.mxu0 0
        %1746 = vmatprep.subr.bf16.mxu0 0
        %1747 = vmatpush1.bf16.msra.mxu0 0
        %1748 = vmatprep.subr.bf16.mxu0 0
        %1749 = vmatpush1.bf16.msra.mxu0 0
        %1750 = vmatprep.subr.bf16.mxu0 0
        %1751 = vmatpush1.bf16.msra.mxu0 0
        %1752 = vmatprep.subr.bf16.mxu0 0
        %1753 = vmatpush1.bf16.msra.mxu0 0
        %1754 = vmatprep.subr.bf16.mxu0 0
        %1755 = vmatpush1.bf16.msra.mxu0 0
        %1756 = vmatprep.subr.bf16.mxu0 0
        %1757 = vmatpush1.bf16.msra.mxu0 0
        %1758 = vmatprep.subr.bf16.mxu0 0
        %1759 = vmatpush1.bf16.msra.mxu0 0
        %1760 = vmatprep.subr.bf16.mxu0 0
        %1761 = vmatpush1.bf16.msra.mxu0 0
        %1762 = vmatprep.subr.bf16.mxu0 0
        %1763 = vmatpush1.bf16.msra.mxu0 0
        %1764 = vmatprep.mubr.bf16.mxu0 0
        %1765 = vmatmul.mubr.bf16.gmra.mrb[0].mxu0 %v1676
        %v1766 = vpop.f32.mrb[0].mxu0
        %v1767 = vadd.f32 0.0, %v1766
        %v1768 = vpop.f32.mrb[0].mxu0
        %v1769 = vpop.f32.mrb[0].mxu0
        %v1770 = vadd.f32 0.0, %v1769
        %v1771 = vpop.f32.mrb[0].mxu0
        %1772 = vmatprep.mubr.bf16.mxu0 0
        %1773 = vmatmul.mubr.bf16.gmra.mrb[0].mxu0 %v1679
        %v1774 = vpop.f32.mrb[0].mxu0
        %v1775 = vadd.f32 0.0, %v1774
        %v1776 = vpop.f32.mrb[0].mxu0
        %v1777 = vpop.f32.mrb[0].mxu0
        %v1778 = vadd.f32 0.0, %v1777
        %v1779 = vpop.f32.mrb[0].mxu0
        %1780 = vmatprep.mubr.bf16.mxu0 0
        %1781 = vmatmul.mubr.bf16.gmra.mrb[0].mxu0 %v1682
        %v1782 = vpop.f32.mrb[0].mxu0
        %v1783 = vadd.f32 0.0, %v1782
        %v1784 = vpop.f32.mrb[0].mxu0
        %v1785 = vpop.f32.mrb[0].mxu0
        %v1786 = vadd.f32 0.0, %v1785
        %v1787 = vpop.f32.mrb[0].mxu0
        %1788 = vmatprep.mubr.bf16.mxu0 0
        %1789 = vmatmul.mubr.bf16.gmra.mrb[0].mxu0 %v1685
        %v1790 = vpop.f32.mrb[0].mxu0
        %v1791 = vadd.f32 0.0, %v1790
        %v1792 = vpop.f32.mrb[0].mxu0
        %v1793 = vpop.f32.mrb[0].mxu0
        %v1794 = vadd.f32 0.0, %v1793
        %v1795 = vpop.f32.mrb[0].mxu0
        %1796 = vmatprep.mubr.bf16.mxu0 0
        %1797 = vmatmul.mubr.bf16.gmra.mrb[0].mxu0 %v1688
        %v1798 = vpop.f32.mrb[0].mxu0
        %v1799 = vadd.f32 0.0, %v1798
        %v1800 = vpop.f32.mrb[0].mxu0
        %v1801 = vpop.f32.mrb[0].mxu0
        %v1802 = vadd.f32 0.0, %v1801
        %v1803 = vpop.f32.mrb[0].mxu0
        %1804 = vmatprep.mubr.bf16.mxu0 0
        %1805 = vmatmul.mubr.bf16.gmra.mrb[0].mxu0 %v1691
        %v1806 = vpop.f32.mrb[0].mxu0
        %v1807 = vadd.f32 0.0, %v1806
        %v1808 = vpop.f32.mrb[0].mxu0
        %v1809 = vpop.f32.mrb[0].mxu0
        %v1810 = vadd.f32 0.0, %v1809
        %v1811 = vpop.f32.mrb[0].mxu0
        %1812 = vmatprep.mubr.bf16.mxu0 0
        %1813 = vmatmul.mubr.bf16.gmra.mrb[0].mxu0 %v1694
        %v1814 = vpop.f32.mrb[0].mxu0
        %v1815 = vadd.f32 0.0, %v1814
        %v1816 = vpop.f32.mrb[0].mxu0
        %v1817 = vpop.f32.mrb[0].mxu0
        %v1818 = vadd.f32 0.0, %v1817
        %v1819 = vpop.f32.mrb[0].mxu0
        %1820 = vmatprep.mubr.bf16.mxu0 0
        %1821 = vmatmul.mubr.bf16.gmra.mrb[0].mxu0 %v1697
        %v1822 = vpop.f32.mrb[0].mxu0
        %v1823 = vadd.f32 0.0, %v1822
        %v1824 = vpop.f32.mrb[0].mxu0
        %v1825 = vpop.f32.mrb[0].mxu0
        %v1826 = vadd.f32 0.0, %v1825
        %v1827 = vpop.f32.mrb[0].mxu0
        %1828 = vmatprep.mubr.bf16.mxu0 0
        %1829 = vmatmul.mubr.bf16.gmra.mrb[0].mxu0 %v1700
        %v1830 = vpop.f32.mrb[0].mxu0
        %v1831 = vadd.f32 0.0, %v1830
        %v1832 = vpop.f32.mrb[0].mxu0
        %v1833 = vpop.f32.mrb[0].mxu0
        %v1834 = vadd.f32 0.0, %v1833
        %v1835 = vpop.f32.mrb[0].mxu0
        %1836 = vmatprep.mubr.bf16.mxu0 0
        %1837 = vmatmul.mubr.bf16.gmra.mrb[0].mxu0 %v1703
        %v1838 = vpop.f32.mrb[0].mxu0
        %v1839 = vadd.f32 0.0, %v1838
        %v1840 = vpop.f32.mrb[0].mxu0
        %v1841 = vpop.f32.mrb[0].mxu0
        %v1842 = vadd.f32 0.0, %v1841
        %v1843 = vpop.f32.mrb[0].mxu0
        %1844 = vmatprep.mubr.bf16.mxu0 0
        %1845 = vmatmul.mubr.bf16.gmra.mrb[0].mxu0 %v1706
        %v1846 = vpop.f32.mrb[0].mxu0
        %v1847 = vadd.f32 0.0, %v1846
        %v1848 = vpop.f32.mrb[0].mxu0
        %v1849 = vpop.f32.mrb[0].mxu0
        %v1850 = vadd.f32 0.0, %v1849
        %v1851 = vpop.f32.mrb[0].mxu0
        %1852 = vmatprep.mubr.bf16.mxu0 0
        %1853 = vmatmul.mubr.bf16.gmra.mrb[0].mxu0 %v1709
        %v1854 = vpop.f32.mrb[0].mxu0
        %v1855 = vadd.f32 0.0, %v1854
        %v1856 = vpop.f32.mrb[0].mxu0
        %v1857 = vpop.f32.mrb[0].mxu0
        %v1858 = vadd.f32 0.0, %v1857
        %v1859 = vpop.f32.mrb[0].mxu0
        %1860 = vmatprep.mubr.bf16.mxu0 0
        %1861 = vmatmul.mubr.bf16.gmra.mrb[0].mxu0 %v1712
        %v1862 = vpop.f32.mrb[0].mxu0
        %v1863 = vadd.f32 0.0, %v1862
        %v1864 = vpop.f32.mrb[0].mxu0
        %v1865 = vpop.f32.mrb[0].mxu0
        %v1866 = vadd.f32 0.0, %v1865
        %v1867 = vpop.f32.mrb[0].mxu0
        %1868 = vmatprep.mubr.bf16.mxu0 0
        %1869 = vmatmul.mubr.bf16.gmra.mrb[0].mxu0 %v1715
        %v1870 = vpop.f32.mrb[0].mxu0
        %v1871 = vadd.f32 0.0, %v1870
        %v1872 = vpop.f32.mrb[0].mxu0
        %v1873 = vpop.f32.mrb[0].mxu0
        %v1874 = vadd.f32 0.0, %v1873
        %v1875 = vpop.f32.mrb[0].mxu0
        %1876 = vmatprep.mubr.bf16.mxu0 0
        %1877 = vmatmul.mubr.bf16.gmra.mrb[0].mxu0 %v1718
        %v1878 = vpop.f32.mrb[0].mxu0
        %v1879 = vadd.f32 0.0, %v1878
        %v1880 = vpop.f32.mrb[0].mxu0
        %v1881 = vpop.f32.mrb[0].mxu0
        %v1882 = vadd.f32 0.0, %v1881
        %v1883 = vpop.f32.mrb[0].mxu0
        %1884 = vmatprep.mubr.bf16.mxu0 0
        %1885 = vmatmul.mubr.bf16.gmra.mrb[0].mxu0 %v1721
        %v1886 = vpop.f32.mrb[0].mxu0
        %v1887 = vadd.f32 0.0, %v1886
        %v1888 = vpop.f32.mrb[0].mxu0
        %v1889 = vpop.f32.mrb[0].mxu0
        %v1890 = vadd.f32 0.0, %v1889
        %v1891 = vpop.f32.mrb[0].mxu0
        %1892 = vmatprep.mubr.bf16.mxu0 0
        %1893 = vmatmul.mubr.bf16.gmra.mrb[0].mxu0 %v1724
        %v1894 = vpop.f32.mrb[0].mxu0
        %v1895 = vadd.f32 0.0, %v1894
        %v1896 = vpop.f32.mrb[0].mxu0
        %v1897 = vpop.f32.mrb[0].mxu0
        %v1898 = vadd.f32 0.0, %v1897
        %v1899 = vpop.f32.mrb[0].mxu0
        %1900 = vmatprep.mubr.bf16.mxu0 0
        %1901 = vmatmul.mubr.bf16.gmra.mrb[0].mxu0 %v1727
        %v1902 = vpop.f32.mrb[0].mxu0
        %v1903 = vadd.f32 0.0, %v1902
        %v1904 = vpop.f32.mrb[0].mxu0
        %v1905 = vpop.f32.mrb[0].mxu0
        %v1906 = vadd.f32 0.0, %v1905
        %v1907 = vpop.f32.mrb[0].mxu0
        %1908 = vdwg.mxu0
        %v1909 = vadd.f32 %v1470, %v1767
        %v1910 = vadd.f32 %v1471, %v1770
        %v1911 = vadd.f32 %v1472, %v1775
        %v1912 = vadd.f32 %v1473, %v1778
        %v1913 = vadd.f32 %v1474, %v1783
        %v1914 = vadd.f32 %v1475, %v1786
        %v1915 = vadd.f32 %v1476, %v1791
        %v1916 = vadd.f32 %v1477, %v1794
        %v1917 = vadd.f32 %v1478, %v1799
        %v1918 = vadd.f32 %v1479, %v1802
        %v1919 = vadd.f32 %v1480, %v1807
        %v1920 = vadd.f32 %v1481, %v1810
        %v1921 = vadd.f32 %v1482, %v1815
        %v1922 = vadd.f32 %v1483, %v1818
        %v1923 = vadd.f32 %v1484, %v1823
        %v1924 = vadd.f32 %v1485, %v1826
        %v1925 = vadd.f32 %v1486, %v1831
        %v1926 = vadd.f32 %v1487, %v1834
        %v1927 = vadd.f32 %v1488, %v1839
        %v1928 = vadd.f32 %v1489, %v1842
        %v1929 = vadd.f32 %v1490, %v1847
        %v1930 = vadd.f32 %v1491, %v1850
        %v1931 = vadd.f32 %v1492, %v1855
        %v1932 = vadd.f32 %v1493, %v1858
        %v1933 = vadd.f32 %v1494, %v1863
        %v1934 = vadd.f32 %v1495, %v1866
        %v1935 = vadd.f32 %v1496, %v1871
        %v1936 = vadd.f32 %v1497, %v1874
        %v1937 = vadd.f32 %v1498, %v1879
        %v1938 = vadd.f32 %v1499, %v1882
        %v1939 = vadd.f32 %v1500, %v1887
        %v1940 = vadd.f32 %v1501, %v1890
        %v1941 = vadd.f32 %v1502, %v1895
        %v1942 = vadd.f32 %v1503, %v1898
        %v1943 = vadd.f32 %v1504, %v1903
        %v1944 = vadd.f32 %v1505, %v1906
        %v1945 = vld [vmem:[%s405 + $0x98] sm:$0x3]
        %s1946 = scalar_lea.vmem %s4, 16
        %v1947 = vld [vmem:[%s1946] sm:$0x7]
        %v1949 = vunpack.c.l.b16 %v1945
        %v1950 = vpack.c.b16 %v1949, %v1949
        %vm1951 = vsmask.f32 6400
        %v1953 = vshrl.u32 %v1619, 16
        %v1955 = vrot.slane %v1953, 1
        %v1956 = vshll.u32 %v1619, 16
        %v1958 = vrot.slane %v1956, 2
        %v1959 = vor.u32 %v1955, %v1958
        %v1961 = vshrl.u32 %v1620, 16
        %v1963 = vrot.slane %v1961, 1
        %v1964 = vshll.u32 %v1620, 16
        %v1966 = vrot.slane %v1964, 2
        %v1967 = vor.u32 %v1963, %v1966
        %v1968 = vsel %vm1951, %v1959, %v1967
        %v1970 = vshrl.u32 %v1621, 16
        %v1972 = vrot.slane %v1970, 1
        %v1973 = vshll.u32 %v1621, 16
        %v1975 = vrot.slane %v1973, 2
        %v1976 = vor.u32 %v1972, %v1975
        %v1977 = vsel %vm1951, %v1967, %v1976
        %v1979 = vshrl.u32 %v1622, 16
        %v1981 = vrot.slane %v1979, 1
        %v1982 = vshll.u32 %v1622, 16
        %v1984 = vrot.slane %v1982, 2
        %v1985 = vor.u32 %v1981, %v1984
        %v1986 = vsel %vm1951, %v1976, %v1985
        %v1988 = vshrl.u32 %v1623, 16
        %v1990 = vrot.slane %v1988, 1
        %v1991 = vshll.u32 %v1623, 16
        %v1993 = vrot.slane %v1991, 2
        %v1994 = vor.u32 %v1990, %v1993
        %v1995 = vsel %vm1951, %v1985, %v1994
        %v1997 = vshrl.u32 %v1624, 16
        %v1999 = vrot.slane %v1997, 1
        %v2000 = vshll.u32 %v1624, 16
        %v2002 = vrot.slane %v2000, 2
        %v2003 = vor.u32 %v1999, %v2002
        %v2004 = vsel %vm1951, %v1994, %v2003
        %v2006 = vshrl.u32 %v1625, 16
        %v2008 = vrot.slane %v2006, 1
        %v2009 = vshll.u32 %v1625, 16
        %v2011 = vrot.slane %v2009, 2
        %v2012 = vor.u32 %v2008, %v2011
        %v2013 = vsel %vm1951, %v2003, %v2012
        %v2015 = vshrl.u32 %v1626, 16
        %v2017 = vrot.slane %v2015, 1
        %v2018 = vshll.u32 %v1626, 16
        %v2020 = vrot.slane %v2018, 2
        %v2021 = vor.u32 %v2017, %v2020
        %v2022 = vsel %vm1951, %v2012, %v2021
        %v2024 = vshrl.u32 %v1627, 16
        %v2026 = vrot.slane %v2024, 1
        %v2027 = vshll.u32 %v1627, 16
        %v2029 = vrot.slane %v2027, 2
        %v2030 = vor.u32 %v2026, %v2029
        %v2031 = vsel %vm1951, %v2021, %v2030
        %v2033 = vshrl.u32 %v1628, 16
        %v2035 = vrot.slane %v2033, 1
        %v2036 = vshll.u32 %v1628, 16
        %v2038 = vrot.slane %v2036, 2
        %v2039 = vor.u32 %v2035, %v2038
        %v2040 = vsel %vm1951, %v2030, %v2039
        %v2042 = vshrl.u32 %v1629, 16
        %v2044 = vrot.slane %v2042, 1
        %v2045 = vshll.u32 %v1629, 16
        %v2047 = vrot.slane %v2045, 2
        %v2048 = vor.u32 %v2044, %v2047
        %v2049 = vsel %vm1951, %v2039, %v2048
        %v2051 = vshrl.u32 %v1630, 16
        %v2053 = vrot.slane %v2051, 1
        %v2054 = vshll.u32 %v1630, 16
        %v2056 = vrot.slane %v2054, 2
        %v2057 = vor.u32 %v2053, %v2056
        %v2058 = vsel %vm1951, %v2048, %v2057
        %v2060 = vshrl.u32 %v1631, 16
        %v2062 = vrot.slane %v2060, 1
        %v2063 = vshll.u32 %v1631, 16
        %v2065 = vrot.slane %v2063, 2
        %v2066 = vor.u32 %v2062, %v2065
        %v2067 = vsel %vm1951, %v2057, %v2066
        %v2069 = vshrl.u32 %v1632, 16
        %v2071 = vrot.slane %v2069, 1
        %v2072 = vshll.u32 %v1632, 16
        %v2074 = vrot.slane %v2072, 2
        %v2075 = vor.u32 %v2071, %v2074
        %v2076 = vsel %vm1951, %v2066, %v2075
        %v2078 = vshrl.u32 %v1633, 16
        %v2080 = vrot.slane %v2078, 1
        %v2081 = vshll.u32 %v1633, 16
        %v2083 = vrot.slane %v2081, 2
        %v2084 = vor.u32 %v2080, %v2083
        %v2085 = vsel %vm1951, %v2075, %v2084
        %v2087 = vshrl.u32 %v1634, 16
        %v2089 = vrot.slane %v2087, 1
        %v2090 = vshll.u32 %v1634, 16
        %v2092 = vrot.slane %v2090, 2
        %v2093 = vor.u32 %v2089, %v2092
        %v2094 = vsel %vm1951, %v2084, %v2093
        %v2096 = vshrl.u32 %v1635, 16
        %v2098 = vrot.slane %v2096, 1
        %v2099 = vshll.u32 %v1635, 16
        %v2101 = vrot.slane %v2099, 2
        %v2102 = vor.u32 %v2098, %v2101
        %v2103 = vsel %vm1951, %v2093, %v2102
        %v2105 = vshrl.u32 %v1636, 16
        %v2107 = vrot.slane %v2105, 1
        %v2108 = vshll.u32 %v1636, 16
        %v2110 = vrot.slane %v2108, 2
        %v2111 = vor.u32 %v2107, %v2110
        %v2112 = vsel %vm1951, %v2102, %v2111
        %v2114 = vshrl.u32 %v1950, 16
        %v2116 = vrot.slane %v2114, 1
        %v2117 = vshll.u32 %v1950, 16
        %v2119 = vrot.slane %v2117, 2
        %v2120 = vor.u32 %v2116, %v2119
        %v2121 = vsel %vm1951, %v2111, %v2120
        %v2123 = vsel %vm737, %v1968, 0
        %v2126 = vsel %vm737, %v1977, 0
        %v2129 = vsel %vm737, %v1986, 0
        %v2132 = vsel %vm737, %v1995, 0
        %v2135 = vsel %vm737, %v2004, 0
        %v2138 = vsel %vm737, %v2013, 0
        %v2141 = vsel %vm737, %v2022, 0
        %v2144 = vsel %vm737, %v2031, 0
        %v2147 = vsel %vm737, %v2040, 0
        %v2150 = vsel %vm737, %v2049, 0
        %v2153 = vsel %vm737, %v2058, 0
        %v2156 = vsel %vm737, %v2067, 0
        %v2159 = vsel %vm737, %v2076, 0
        %v2162 = vsel %vm737, %v2085, 0
        %v2165 = vsel %vm737, %v2094, 0
        %v2168 = vsel %vm737, %v2103, 0
        %v2171 = vsel %vm737, %v2112, 0
        %v2174 = vsel %vm737, %v2121, 0
        %v2177 = vand.u32 %v1947, %v795
        %2179 = vmatprep.subr.bf16.mxu0 0
        %2180 = vmatpush1.bf16.msra.mxu0 %v2177
        %2181 = vmatprep.subr.bf16.mxu0 0
        %2182 = vmatpush1.bf16.msra.mxu0 0
        %2183 = vmatprep.subr.bf16.mxu0 0
        %2184 = vmatpush1.bf16.msra.mxu0 0
        %2185 = vmatprep.subr.bf16.mxu0 0
        %2186 = vmatpush1.bf16.msra.mxu0 0
        %2187 = vmatprep.subr.bf16.mxu0 0
        %2188 = vmatpush1.bf16.msra.mxu0 0
        %2189 = vmatprep.subr.bf16.mxu0 0
        %2190 = vmatpush1.bf16.msra.mxu0 0
        %2191 = vmatprep.subr.bf16.mxu0 0
        %2192 = vmatpush1.bf16.msra.mxu0 0
        %2193 = vmatprep.subr.bf16.mxu0 0
        %2194 = vmatpush1.bf16.msra.mxu0 0
        %2195 = vmatprep.subr.bf16.mxu0 0
        %2196 = vmatpush1.bf16.msra.mxu0 0
        %2197 = vmatprep.subr.bf16.mxu0 0
        %2198 = vmatpush1.bf16.msra.mxu0 0
        %2199 = vmatprep.subr.bf16.mxu0 0
        %2200 = vmatpush1.bf16.msra.mxu0 0
        %2201 = vmatprep.subr.bf16.mxu0 0
        %2202 = vmatpush1.bf16.msra.mxu0 0
        %2203 = vmatprep.subr.bf16.mxu0 0
        %2204 = vmatpush1.bf16.msra.mxu0 0
        %2205 = vmatprep.subr.bf16.mxu0 0
        %2206 = vmatpush1.bf16.msra.mxu0 0
        %2207 = vmatprep.subr.bf16.mxu0 0
        %2208 = vmatpush1.bf16.msra.mxu0 0
        %2209 = vmatprep.subr.bf16.mxu0 0
        %2210 = vmatpush1.bf16.msra.mxu0 0
        %2211 = vmatprep.mubr.bf16.mxu0 0
        %2212 = vmatmul.mubr.bf16.gmra.mrb[0].mxu0 %v2123
        %v2213 = vpop.f32.mrb[0].mxu0
        %v2214 = vadd.f32 0.0, %v2213
        %v2215 = vpop.f32.mrb[0].mxu0
        %v2216 = vpop.f32.mrb[0].mxu0
        %v2217 = vadd.f32 0.0, %v2216
        %v2218 = vpop.f32.mrb[0].mxu0
        %2219 = vmatprep.mubr.bf16.mxu0 0
        %2220 = vmatmul.mubr.bf16.gmra.mrb[0].mxu0 %v2126
        %v2221 = vpop.f32.mrb[0].mxu0
        %v2222 = vadd.f32 0.0, %v2221
        %v2223 = vpop.f32.mrb[0].mxu0
        %v2224 = vpop.f32.mrb[0].mxu0
        %v2225 = vadd.f32 0.0, %v2224
        %v2226 = vpop.f32.mrb[0].mxu0
        %2227 = vmatprep.mubr.bf16.mxu0 0
        %2228 = vmatmul.mubr.bf16.gmra.mrb[0].mxu0 %v2129
        %v2229 = vpop.f32.mrb[0].mxu0
        %v2230 = vadd.f32 0.0, %v2229
        %v2231 = vpop.f32.mrb[0].mxu0
        %v2232 = vpop.f32.mrb[0].mxu0
        %v2233 = vadd.f32 0.0, %v2232
        %v2234 = vpop.f32.mrb[0].mxu0
        %2235 = vmatprep.mubr.bf16.mxu0 0
        %2236 = vmatmul.mubr.bf16.gmra.mrb[0].mxu0 %v2132
        %v2237 = vpop.f32.mrb[0].mxu0
        %v2238 = vadd.f32 0.0, %v2237
        %v2239 = vpop.f32.mrb[0].mxu0
        %v2240 = vpop.f32.mrb[0].mxu0
        %v2241 = vadd.f32 0.0, %v2240
        %v2242 = vpop.f32.mrb[0].mxu0
        %2243 = vmatprep.mubr.bf16.mxu0 0
        %2244 = vmatmul.mubr.bf16.gmra.mrb[0].mxu0 %v2135
        %v2245 = vpop.f32.mrb[0].mxu0
        %v2246 = vadd.f32 0.0, %v2245
        %v2247 = vpop.f32.mrb[0].mxu0
        %v2248 = vpop.f32.mrb[0].mxu0
        %v2249 = vadd.f32 0.0, %v2248
        %v2250 = vpop.f32.mrb[0].mxu0
        %2251 = vmatprep.mubr.bf16.mxu0 0
        %2252 = vmatmul.mubr.bf16.gmra.mrb[0].mxu0 %v2138
        %v2253 = vpop.f32.mrb[0].mxu0
        %v2254 = vadd.f32 0.0, %v2253
        %v2255 = vpop.f32.mrb[0].mxu0
        %v2256 = vpop.f32.mrb[0].mxu0
        %v2257 = vadd.f32 0.0, %v2256
        %v2258 = vpop.f32.mrb[0].mxu0
        %2259 = vmatprep.mubr.bf16.mxu0 0
        %2260 = vmatmul.mubr.bf16.gmra.mrb[0].mxu0 %v2141
        %v2261 = vpop.f32.mrb[0].mxu0
        %v2262 = vadd.f32 0.0, %v2261
        %v2263 = vpop.f32.mrb[0].mxu0
        %v2264 = vpop.f32.mrb[0].mxu0
        %v2265 = vadd.f32 0.0, %v2264
        %v2266 = vpop.f32.mrb[0].mxu0
        %2267 = vmatprep.mubr.bf16.mxu0 0
        %2268 = vmatmul.mubr.bf16.gmra.mrb[0].mxu0 %v2144
        %v2269 = vpop.f32.mrb[0].mxu0
        %v2270 = vadd.f32 0.0, %v2269
        %v2271 = vpop.f32.mrb[0].mxu0
        %v2272 = vpop.f32.mrb[0].mxu0
        %v2273 = vadd.f32 0.0, %v2272
        %v2274 = vpop.f32.mrb[0].mxu0
        %2275 = vmatprep.mubr.bf16.mxu0 0
        %2276 = vmatmul.mubr.bf16.gmra.mrb[0].mxu0 %v2147
        %v2277 = vpop.f32.mrb[0].mxu0
        %v2278 = vadd.f32 0.0, %v2277
        %v2279 = vpop.f32.mrb[0].mxu0
        %v2280 = vpop.f32.mrb[0].mxu0
        %v2281 = vadd.f32 0.0, %v2280
        %v2282 = vpop.f32.mrb[0].mxu0
        %2283 = vmatprep.mubr.bf16.mxu0 0
        %2284 = vmatmul.mubr.bf16.gmra.mrb[0].mxu0 %v2150
        %v2285 = vpop.f32.mrb[0].mxu0
        %v2286 = vadd.f32 0.0, %v2285
        %v2287 = vpop.f32.mrb[0].mxu0
        %v2288 = vpop.f32.mrb[0].mxu0
        %v2289 = vadd.f32 0.0, %v2288
        %v2290 = vpop.f32.mrb[0].mxu0
        %2291 = vmatprep.mubr.bf16.mxu0 0
        %2292 = vmatmul.mubr.bf16.gmra.mrb[0].mxu0 %v2153
        %v2293 = vpop.f32.mrb[0].mxu0
        %v2294 = vadd.f32 0.0, %v2293
        %v2295 = vpop.f32.mrb[0].mxu0
        %v2296 = vpop.f32.mrb[0].mxu0
        %v2297 = vadd.f32 0.0, %v2296
        %v2298 = vpop.f32.mrb[0].mxu0
        %2299 = vmatprep.mubr.bf16.mxu0 0
        %2300 = vmatmul.mubr.bf16.gmra.mrb[0].mxu0 %v2156
        %v2301 = vpop.f32.mrb[0].mxu0
        %v2302 = vadd.f32 0.0, %v2301
        %v2303 = vpop.f32.mrb[0].mxu0
        %v2304 = vpop.f32.mrb[0].mxu0
        %v2305 = vadd.f32 0.0, %v2304
        %v2306 = vpop.f32.mrb[0].mxu0
        %2307 = vmatprep.mubr.bf16.mxu0 0
        %2308 = vmatmul.mubr.bf16.gmra.mrb[0].mxu0 %v2159
        %v2309 = vpop.f32.mrb[0].mxu0
        %v2310 = vadd.f32 0.0, %v2309
        %v2311 = vpop.f32.mrb[0].mxu0
        %v2312 = vpop.f32.mrb[0].mxu0
        %v2313 = vadd.f32 0.0, %v2312
        %v2314 = vpop.f32.mrb[0].mxu0
        %2315 = vmatprep.mubr.bf16.mxu0 0
        %2316 = vmatmul.mubr.bf16.gmra.mrb[0].mxu0 %v2162
        %v2317 = vpop.f32.mrb[0].mxu0
        %v2318 = vadd.f32 0.0, %v2317
        %v2319 = vpop.f32.mrb[0].mxu0
        %v2320 = vpop.f32.mrb[0].mxu0
        %v2321 = vadd.f32 0.0, %v2320
        %v2322 = vpop.f32.mrb[0].mxu0
        %2323 = vmatprep.mubr.bf16.mxu0 0
        %2324 = vmatmul.mubr.bf16.gmra.mrb[0].mxu0 %v2165
        %v2325 = vpop.f32.mrb[0].mxu0
        %v2326 = vadd.f32 0.0, %v2325
        %v2327 = vpop.f32.mrb[0].mxu0
        %v2328 = vpop.f32.mrb[0].mxu0
        %v2329 = vadd.f32 0.0, %v2328
        %v2330 = vpop.f32.mrb[0].mxu0
        %2331 = vmatprep.mubr.bf16.mxu0 0
        %2332 = vmatmul.mubr.bf16.gmra.mrb[0].mxu0 %v2168
        %v2333 = vpop.f32.mrb[0].mxu0
        %v2334 = vadd.f32 0.0, %v2333
        %v2335 = vpop.f32.mrb[0].mxu0
        %v2336 = vpop.f32.mrb[0].mxu0
        %v2337 = vadd.f32 0.0, %v2336
        %v2338 = vpop.f32.mrb[0].mxu0
        %2339 = vmatprep.mubr.bf16.mxu0 0
        %2340 = vmatmul.mubr.bf16.gmra.mrb[0].mxu0 %v2171
        %v2341 = vpop.f32.mrb[0].mxu0
        %v2342 = vadd.f32 0.0, %v2341
        %v2343 = vpop.f32.mrb[0].mxu0
        %v2344 = vpop.f32.mrb[0].mxu0
        %v2345 = vadd.f32 0.0, %v2344
        %v2346 = vpop.f32.mrb[0].mxu0
        %2347 = vmatprep.mubr.bf16.mxu0 0
        %2348 = vmatmul.mubr.bf16.gmra.mrb[0].mxu0 %v2174
        %v2349 = vpop.f32.mrb[0].mxu0
        %v2350 = vadd.f32 0.0, %v2349
        %v2351 = vpop.f32.mrb[0].mxu0
        %v2352 = vpop.f32.mrb[0].mxu0
        %v2353 = vadd.f32 0.0, %v2352
        %v2354 = vpop.f32.mrb[0].mxu0
        %2355 = vdwg.mxu0
        %v2356 = vadd.f32 %v1909, %v2214
        %v2357 = vadd.f32 %v1910, %v2217
        %v2358 = vadd.f32 %v1911, %v2222
        %v2359 = vadd.f32 %v1912, %v2225
        %v2360 = vadd.f32 %v1913, %v2230
        %v2361 = vadd.f32 %v1914, %v2233
        %v2362 = vadd.f32 %v1915, %v2238
        %v2363 = vadd.f32 %v1916, %v2241
        %v2364 = vadd.f32 %v1917, %v2246
        %v2365 = vadd.f32 %v1918, %v2249
        %v2366 = vadd.f32 %v1919, %v2254
        %v2367 = vadd.f32 %v1920, %v2257
        %v2368 = vadd.f32 %v1921, %v2262
        %v2369 = vadd.f32 %v1922, %v2265
        %v2370 = vadd.f32 %v1923, %v2270
        %v2371 = vadd.f32 %v1924, %v2273
        %v2372 = vadd.f32 %v1925, %v2278
        %v2373 = vadd.f32 %v1926, %v2281
        %v2374 = vadd.f32 %v1927, %v2286
        %v2375 = vadd.f32 %v1928, %v2289
        %v2376 = vadd.f32 %v1929, %v2294
        %v2377 = vadd.f32 %v1930, %v2297
        %v2378 = vadd.f32 %v1931, %v2302
        %v2379 = vadd.f32 %v1932, %v2305
        %v2380 = vadd.f32 %v1933, %v2310
        %v2381 = vadd.f32 %v1934, %v2313
        %v2382 = vadd.f32 %v1935, %v2318
        %v2383 = vadd.f32 %v1936, %v2321
        %v2384 = vadd.f32 %v1937, %v2326
        %v2385 = vadd.f32 %v1938, %v2329
        %v2386 = vadd.f32 %v1939, %v2334
        %v2387 = vadd.f32 %v1940, %v2337
        %v2388 = vadd.f32 %v1941, %v2342
        %v2389 = vadd.f32 %v1942, %v2345
        %v2390 = vadd.f32 %v1943, %v2350
        %v2391 = vadd.f32 %v1944, %v2353
        %v2392 = vld [vmem:[%s405 + $0x8] sm:$0xc]
        %s2393 = scalar_lea.vmem %s4, 20
        %v2394 = vld [vmem:[%s2393] sm:$0x7]
        %v2396 = vunpack.c.l.b16 %v2392
        %v2397 = vpack.c.b16 %v1583, %v2396
        %vm2398 = vcmask 1045504
        %v2399 = vrot.slane %v2397, 2
        %v2400 = vrot.slane %v1620, 2
        %v2401 = vsel %vm2398, %v2399, %v2400
        %v2402 = vrot.slane %v1621, 2
        %v2403 = vsel %vm2398, %v2400, %v2402
        %v2404 = vrot.slane %v1622, 2
        %v2405 = vsel %vm2398, %v2402, %v2404
        %v2406 = vrot.slane %v1623, 2
        %v2407 = vsel %vm2398, %v2404, %v2406
        %v2408 = vrot.slane %v1624, 2
        %v2409 = vsel %vm2398, %v2406, %v2408
        %v2410 = vrot.slane %v1625, 2
        %v2411 = vsel %vm2398, %v2408, %v2410
        %v2412 = vrot.slane %v1626, 2
        %v2413 = vsel %vm2398, %v2410, %v2412
        %v2414 = vrot.slane %v1627, 2
        %v2415 = vsel %vm2398, %v2412, %v2414
        %v2416 = vrot.slane %v1628, 2
        %v2417 = vsel %vm2398, %v2414, %v2416
        %v2418 = vrot.slane %v1629, 2
        %v2419 = vsel %vm2398, %v2416, %v2418
        %v2420 = vrot.slane %v1630, 2
        %v2421 = vsel %vm2398, %v2418, %v2420
        %v2422 = vrot.slane %v1631, 2
        %v2423 = vsel %vm2398, %v2420, %v2422
        %v2424 = vrot.slane %v1632, 2
        %v2425 = vsel %vm2398, %v2422, %v2424
        %v2426 = vrot.slane %v1633, 2
        %v2427 = vsel %vm2398, %v2424, %v2426
        %v2428 = vrot.slane %v1634, 2
        %v2429 = vsel %vm2398, %v2426, %v2428
        %v2430 = vrot.slane %v1635, 2
        %v2431 = vsel %vm2398, %v2428, %v2430
        %v2432 = vrot.slane %v1636, 2
        %v2433 = vsel %vm2398, %v2430, %v2432
        %v2434 = vrot.slane %v1950, 2
        %v2435 = vsel %vm2398, %v2432, %v2434
        %v2437 = vsel %vm737, %v2401, 0
        %v2440 = vsel %vm737, %v2403, 0
        %v2443 = vsel %vm737, %v2405, 0
        %v2446 = vsel %vm737, %v2407, 0
        %v2449 = vsel %vm737, %v2409, 0
        %v2452 = vsel %vm737, %v2411, 0
        %v2455 = vsel %vm737, %v2413, 0
        %v2458 = vsel %vm737, %v2415, 0
        %v2461 = vsel %vm737, %v2417, 0
        %v2464 = vsel %vm737, %v2419, 0
        %v2467 = vsel %vm737, %v2421, 0
        %v2470 = vsel %vm737, %v2423, 0
        %v2473 = vsel %vm737, %v2425, 0
        %v2476 = vsel %vm737, %v2427, 0
        %v2479 = vsel %vm737, %v2429, 0
        %v2482 = vsel %vm737, %v2431, 0
        %v2485 = vsel %vm737, %v2433, 0
        %v2488 = vsel %vm737, %v2435, 0
        %v2491 = vand.u32 %v2394, %v795
        %2493 = vmatprep.subr.bf16.mxu0 0
        %2494 = vmatpush1.bf16.msra.mxu0 %v2491
        %2495 = vmatprep.subr.bf16.mxu0 0
        %2496 = vmatpush1.bf16.msra.mxu0 0
        %2497 = vmatprep.subr.bf16.mxu0 0
        %2498 = vmatpush1.bf16.msra.mxu0 0
        %2499 = vmatprep.subr.bf16.mxu0 0
        %2500 = vmatpush1.bf16.msra.mxu0 0
        %2501 = vmatprep.subr.bf16.mxu0 0
        %2502 = vmatpush1.bf16.msra.mxu0 0
        %2503 = vmatprep.subr.bf16.mxu0 0
        %2504 = vmatpush1.bf16.msra.mxu0 0
        %2505 = vmatprep.subr.bf16.mxu0 0
        %2506 = vmatpush1.bf16.msra.mxu0 0
        %2507 = vmatprep.subr.bf16.mxu0 0
        %2508 = vmatpush1.bf16.msra.mxu0 0
        %2509 = vmatprep.subr.bf16.mxu0 0
        %2510 = vmatpush1.bf16.msra.mxu0 0
        %2511 = vmatprep.subr.bf16.mxu0 0
        %2512 = vmatpush1.bf16.msra.mxu0 0
        %2513 = vmatprep.subr.bf16.mxu0 0
        %2514 = vmatpush1.bf16.msra.mxu0 0
        %2515 = vmatprep.subr.bf16.mxu0 0
        %2516 = vmatpush1.bf16.msra.mxu0 0
        %2517 = vmatprep.subr.bf16.mxu0 0
        %2518 = vmatpush1.bf16.msra.mxu0 0
        %2519 = vmatprep.subr.bf16.mxu0 0
        %2520 = vmatpush1.bf16.msra.mxu0 0
        %2521 = vmatprep.subr.bf16.mxu0 0
        %2522 = vmatpush1.bf16.msra.mxu0 0
        %2523 = vmatprep.subr.bf16.mxu0 0
        %2524 = vmatpush1.bf16.msra.mxu0 0
        %2525 = vmatprep.mubr.bf16.mxu0 0
        %2526 = vmatmul.mubr.bf16.gmra.mrb[0].mxu0 %v2437
        %v2527 = vpop.f32.mrb[0].mxu0
        %v2528 = vadd.f32 0.0, %v2527
        %v2529 = vpop.f32.mrb[0].mxu0
        %v2530 = vpop.f32.mrb[0].mxu0
        %v2531 = vadd.f32 0.0, %v2530
        %v2532 = vpop.f32.mrb[0].mxu0
        %2533 = vmatprep.mubr.bf16.mxu0 0
        %2534 = vmatmul.mubr.bf16.gmra.mrb[0].mxu0 %v2440
        %v2535 = vpop.f32.mrb[0].mxu0
        %v2536 = vadd.f32 0.0, %v2535
        %v2537 = vpop.f32.mrb[0].mxu0
        %v2538 = vpop.f32.mrb[0].mxu0
        %v2539 = vadd.f32 0.0, %v2538
        %v2540 = vpop.f32.mrb[0].mxu0
        %2541 = vmatprep.mubr.bf16.mxu0 0
        %2542 = vmatmul.mubr.bf16.gmra.mrb[0].mxu0 %v2443
        %v2543 = vpop.f32.mrb[0].mxu0
        %v2544 = vadd.f32 0.0, %v2543
        %v2545 = vpop.f32.mrb[0].mxu0
        %v2546 = vpop.f32.mrb[0].mxu0
        %v2547 = vadd.f32 0.0, %v2546
        %v2548 = vpop.f32.mrb[0].mxu0
        %2549 = vmatprep.mubr.bf16.mxu0 0
        %2550 = vmatmul.mubr.bf16.gmra.mrb[0].mxu0 %v2446
        %v2551 = vpop.f32.mrb[0].mxu0
        %v2552 = vadd.f32 0.0, %v2551
        %v2553 = vpop.f32.mrb[0].mxu0
        %v2554 = vpop.f32.mrb[0].mxu0
        %v2555 = vadd.f32 0.0, %v2554
        %v2556 = vpop.f32.mrb[0].mxu0
        %2557 = vmatprep.mubr.bf16.mxu0 0
        %2558 = vmatmul.mubr.bf16.gmra.mrb[0].mxu0 %v2449
        %v2559 = vpop.f32.mrb[0].mxu0
        %v2560 = vadd.f32 0.0, %v2559
        %v2561 = vpop.f32.mrb[0].mxu0
        %v2562 = vpop.f32.mrb[0].mxu0
        %v2563 = vadd.f32 0.0, %v2562
        %v2564 = vpop.f32.mrb[0].mxu0
        %2565 = vmatprep.mubr.bf16.mxu0 0
        %2566 = vmatmul.mubr.bf16.gmra.mrb[0].mxu0 %v2452
        %v2567 = vpop.f32.mrb[0].mxu0
        %v2568 = vadd.f32 0.0, %v2567
        %v2569 = vpop.f32.mrb[0].mxu0
        %v2570 = vpop.f32.mrb[0].mxu0
        %v2571 = vadd.f32 0.0, %v2570
        %v2572 = vpop.f32.mrb[0].mxu0
        %2573 = vmatprep.mubr.bf16.mxu0 0
        %2574 = vmatmul.mubr.bf16.gmra.mrb[0].mxu0 %v2455
        %v2575 = vpop.f32.mrb[0].mxu0
        %v2576 = vadd.f32 0.0, %v2575
        %v2577 = vpop.f32.mrb[0].mxu0
        %v2578 = vpop.f32.mrb[0].mxu0
        %v2579 = vadd.f32 0.0, %v2578
        %v2580 = vpop.f32.mrb[0].mxu0
        %2581 = vmatprep.mubr.bf16.mxu0 0
        %2582 = vmatmul.mubr.bf16.gmra.mrb[0].mxu0 %v2458
        %v2583 = vpop.f32.mrb[0].mxu0
        %v2584 = vadd.f32 0.0, %v2583
        %v2585 = vpop.f32.mrb[0].mxu0
        %v2586 = vpop.f32.mrb[0].mxu0
        %v2587 = vadd.f32 0.0, %v2586
        %v2588 = vpop.f32.mrb[0].mxu0
        %2589 = vmatprep.mubr.bf16.mxu0 0
        %2590 = vmatmul.mubr.bf16.gmra.mrb[0].mxu0 %v2461
        %v2591 = vpop.f32.mrb[0].mxu0
        %v2592 = vadd.f32 0.0, %v2591
        %v2593 = vpop.f32.mrb[0].mxu0
        %v2594 = vpop.f32.mrb[0].mxu0
        %v2595 = vadd.f32 0.0, %v2594
        %v2596 = vpop.f32.mrb[0].mxu0
        %2597 = vmatprep.mubr.bf16.mxu0 0
        %2598 = vmatmul.mubr.bf16.gmra.mrb[0].mxu0 %v2464
        %v2599 = vpop.f32.mrb[0].mxu0
        %v2600 = vadd.f32 0.0, %v2599
        %v2601 = vpop.f32.mrb[0].mxu0
        %v2602 = vpop.f32.mrb[0].mxu0
        %v2603 = vadd.f32 0.0, %v2602
        %v2604 = vpop.f32.mrb[0].mxu0
        %2605 = vmatprep.mubr.bf16.mxu0 0
        %2606 = vmatmul.mubr.bf16.gmra.mrb[0].mxu0 %v2467
        %v2607 = vpop.f32.mrb[0].mxu0
        %v2608 = vadd.f32 0.0, %v2607
        %v2609 = vpop.f32.mrb[0].mxu0
        %v2610 = vpop.f32.mrb[0].mxu0
        %v2611 = vadd.f32 0.0, %v2610
        %v2612 = vpop.f32.mrb[0].mxu0
        %2613 = vmatprep.mubr.bf16.mxu0 0
        %2614 = vmatmul.mubr.bf16.gmra.mrb[0].mxu0 %v2470
        %v2615 = vpop.f32.mrb[0].mxu0
        %v2616 = vadd.f32 0.0, %v2615
        %v2617 = vpop.f32.mrb[0].mxu0
        %v2618 = vpop.f32.mrb[0].mxu0
        %v2619 = vadd.f32 0.0, %v2618
        %v2620 = vpop.f32.mrb[0].mxu0
        %2621 = vmatprep.mubr.bf16.mxu0 0
        %2622 = vmatmul.mubr.bf16.gmra.mrb[0].mxu0 %v2473
        %v2623 = vpop.f32.mrb[0].mxu0
        %v2624 = vadd.f32 0.0, %v2623
        %v2625 = vpop.f32.mrb[0].mxu0
        %v2626 = vpop.f32.mrb[0].mxu0
        %v2627 = vadd.f32 0.0, %v2626
        %v2628 = vpop.f32.mrb[0].mxu0
        %2629 = vmatprep.mubr.bf16.mxu0 0
        %2630 = vmatmul.mubr.bf16.gmra.mrb[0].mxu0 %v2476
        %v2631 = vpop.f32.mrb[0].mxu0
        %v2632 = vadd.f32 0.0, %v2631
        %v2633 = vpop.f32.mrb[0].mxu0
        %v2634 = vpop.f32.mrb[0].mxu0
        %v2635 = vadd.f32 0.0, %v2634
        %v2636 = vpop.f32.mrb[0].mxu0
        %2637 = vmatprep.mubr.bf16.mxu0 0
        %2638 = vmatmul.mubr.bf16.gmra.mrb[0].mxu0 %v2479
        %v2639 = vpop.f32.mrb[0].mxu0
        %v2640 = vadd.f32 0.0, %v2639
        %v2641 = vpop.f32.mrb[0].mxu0
        %v2642 = vpop.f32.mrb[0].mxu0
        %v2643 = vadd.f32 0.0, %v2642
        %v2644 = vpop.f32.mrb[0].mxu0
        %2645 = vmatprep.mubr.bf16.mxu0 0
        %2646 = vmatmul.mubr.bf16.gmra.mrb[0].mxu0 %v2482
        %v2647 = vpop.f32.mrb[0].mxu0
        %v2648 = vadd.f32 0.0, %v2647
        %v2649 = vpop.f32.mrb[0].mxu0
        %v2650 = vpop.f32.mrb[0].mxu0
        %v2651 = vadd.f32 0.0, %v2650
        %v2652 = vpop.f32.mrb[0].mxu0
        %2653 = vmatprep.mubr.bf16.mxu0 0
        %2654 = vmatmul.mubr.bf16.gmra.mrb[0].mxu0 %v2485
        %v2655 = vpop.f32.mrb[0].mxu0
        %v2656 = vadd.f32 0.0, %v2655
        %v2657 = vpop.f32.mrb[0].mxu0
        %v2658 = vpop.f32.mrb[0].mxu0
        %v2659 = vadd.f32 0.0, %v2658
        %v2660 = vpop.f32.mrb[0].mxu0
        %2661 = vmatprep.mubr.bf16.mxu0 0
        %2662 = vmatmul.mubr.bf16.gmra.mrb[0].mxu0 %v2488
        %v2663 = vpop.f32.mrb[0].mxu0
        %v2664 = vadd.f32 0.0, %v2663
        %v2665 = vpop.f32.mrb[0].mxu0
        %v2666 = vpop.f32.mrb[0].mxu0
        %v2667 = vadd.f32 0.0, %v2666
        %v2668 = vpop.f32.mrb[0].mxu0
        %2669 = vdwg.mxu0
        %v2670 = vadd.f32 %v2356, %v2528
        %v2671 = vadd.f32 %v2357, %v2531
        %v2672 = vadd.f32 %v2358, %v2536
        %v2673 = vadd.f32 %v2359, %v2539
        %v2674 = vadd.f32 %v2360, %v2544
        %v2675 = vadd.f32 %v2361, %v2547
        %v2676 = vadd.f32 %v2362, %v2552
        %v2677 = vadd.f32 %v2363, %v2555
        %v2678 = vadd.f32 %v2364, %v2560
        %v2679 = vadd.f32 %v2365, %v2563
        %v2680 = vadd.f32 %v2366, %v2568
        %v2681 = vadd.f32 %v2367, %v2571
        %v2682 = vadd.f32 %v2368, %v2576
        %v2683 = vadd.f32 %v2369, %v2579
        %v2684 = vadd.f32 %v2370, %v2584
        %v2685 = vadd.f32 %v2371, %v2587
        %v2686 = vadd.f32 %v2372, %v2592
        %v2687 = vadd.f32 %v2373, %v2595
        %v2688 = vadd.f32 %v2374, %v2600
        %v2689 = vadd.f32 %v2375, %v2603
        %v2690 = vadd.f32 %v2376, %v2608
        %v2691 = vadd.f32 %v2377, %v2611
        %v2692 = vadd.f32 %v2378, %v2616
        %v2693 = vadd.f32 %v2379, %v2619
        %v2694 = vadd.f32 %v2380, %v2624
        %v2695 = vadd.f32 %v2381, %v2627
        %v2696 = vadd.f32 %v2382, %v2632
        %v2697 = vadd.f32 %v2383, %v2635
        %v2698 = vadd.f32 %v2384, %v2640
        %v2699 = vadd.f32 %v2385, %v2643
        %v2700 = vadd.f32 %v2386, %v2648
        %v2701 = vadd.f32 %v2387, %v2651
        %v2702 = vadd.f32 %v2388, %v2656
        %v2703 = vadd.f32 %v2389, %v2659
        %v2704 = vadd.f32 %v2390, %v2664
        %v2705 = vadd.f32 %v2391, %v2667
        %v2706 = vld [vmem:[%s405 + $0x10] sm:$0xc]
        %v2707 = vld [vmem:[%s405 + $0x14] sm:$0xf]
        %v2708 = vld [vmem:[%s405 + $0x18] sm:$0xf]
        %v2709 = vld [vmem:[%s405 + $0x1c] sm:$0xf]
        %v2710 = vld [vmem:[%s405 + $0x20] sm:$0xf]
        %v2711 = vld [vmem:[%s405 + $0x24] sm:$0xf]
        %v2712 = vld [vmem:[%s405 + $0x28] sm:$0xf]
        %v2713 = vld [vmem:[%s405 + $0x2c] sm:$0xf]
        %v2714 = vld [vmem:[%s405 + $0x30] sm:$0xf]
        %v2715 = vld [vmem:[%s405 + $0x34] sm:$0xf]
        %v2716 = vld [vmem:[%s405 + $0x38] sm:$0xf]
        %v2717 = vld [vmem:[%s405 + $0x3c] sm:$0xf]
        %v2718 = vld [vmem:[%s405 + $0x40] sm:$0xf]
        %v2719 = vld [vmem:[%s405 + $0x44] sm:$0xf]
        %v2720 = vld [vmem:[%s405 + $0x48] sm:$0xf]
        %v2721 = vld [vmem:[%s405 + $0x4c] sm:$0xf]
        %v2722 = vld [vmem:[%s405 + $0x50] sm:$0xf]
        %v2723 = vld [vmem:[%s405 + $0x54] sm:$0xf]
        %v2724 = vld [vmem:[%s405 + $0x58] sm:$0xf]
        %v2725 = vld [vmem:[%s405 + $0x5c] sm:$0xf]
        %v2726 = vld [vmem:[%s405 + $0x60] sm:$0xf]
        %v2727 = vld [vmem:[%s405 + $0x64] sm:$0xf]
        %v2728 = vld [vmem:[%s405 + $0x68] sm:$0xf]
        %v2729 = vld [vmem:[%s405 + $0x6c] sm:$0xf]
        %v2730 = vld [vmem:[%s405 + $0x70] sm:$0xf]
        %v2731 = vld [vmem:[%s405 + $0x74] sm:$0xf]
        %v2732 = vld [vmem:[%s405 + $0x78] sm:$0xf]
        %v2733 = vld [vmem:[%s405 + $0x7c] sm:$0xf]
        %v2734 = vld [vmem:[%s405 + $0x80] sm:$0xf]
        %v2735 = vld [vmem:[%s405 + $0x84] sm:$0xf]
        %v2736 = vld [vmem:[%s405 + $0x88] sm:$0xf]
        %v2737 = vld [vmem:[%s405 + $0x8c] sm:$0xf]
        %v2738 = vld [vmem:[%s405 + $0x90] sm:$0xf]
        %v2739 = vld [vmem:[%s405 + $0x94] sm:$0xf]
        %v2740 = vld [vmem:[%s405 + $0x98] sm:$0xf]
        %v2741 = vld [vmem:[%s405 + $0x9c] sm:$0xf]
        %v2742 = vld [vmem:[%s405 + $0xa0] sm:$0x3]
        %s2743 = scalar_lea.vmem %s4, 24
        %v2744 = vld [vmem:[%s2743] sm:$0x7]
        %v2782 = vunpack.c.l.b16 %v2706
        %v2783 = vunpack.c.l.b16 %v2707
        %v2784 = vunpack.c.l.b16 %v2708
        %v2785 = vunpack.c.l.b16 %v2709
        %v2786 = vunpack.c.l.b16 %v2710
        %v2787 = vunpack.c.l.b16 %v2711
        %v2788 = vunpack.c.l.b16 %v2712
        %v2789 = vunpack.c.l.b16 %v2713
        %v2790 = vunpack.c.l.b16 %v2714
        %v2791 = vunpack.c.l.b16 %v2715
        %v2792 = vunpack.c.l.b16 %v2716
        %v2793 = vunpack.c.l.b16 %v2717
        %v2794 = vunpack.c.l.b16 %v2718
        %v2795 = vunpack.c.l.b16 %v2719
        %v2796 = vunpack.c.l.b16 %v2720
        %v2797 = vunpack.c.l.b16 %v2721
        %v2798 = vunpack.c.l.b16 %v2722
        %v2799 = vunpack.c.l.b16 %v2723
        %v2800 = vunpack.c.l.b16 %v2724
        %v2801 = vunpack.c.l.b16 %v2725
        %v2802 = vunpack.c.l.b16 %v2726
        %v2803 = vunpack.c.l.b16 %v2727
        %v2804 = vunpack.c.l.b16 %v2728
        %v2805 = vunpack.c.l.b16 %v2729
        %v2806 = vunpack.c.l.b16 %v2730
        %v2807 = vunpack.c.l.b16 %v2731
        %v2808 = vunpack.c.l.b16 %v2732
        %v2809 = vunpack.c.l.b16 %v2733
        %v2810 = vunpack.c.l.b16 %v2734
        %v2811 = vunpack.c.l.b16 %v2735
        %v2812 = vunpack.c.l.b16 %v2736
        %v2813 = vunpack.c.l.b16 %v2737
        %v2814 = vunpack.c.l.b16 %v2738
        %v2815 = vunpack.c.l.b16 %v2739
        %v2816 = vunpack.c.l.b16 %v2740
        %v2817 = vunpack.c.l.b16 %v2741
        %v2818 = vunpack.c.l.b16 %v2742
        %v2819 = vpack.c.b16 %v2783, %v2782
        %v2820 = vpack.c.b16 %v2785, %v2784
        %v2821 = vpack.c.b16 %v2787, %v2786
        %v2822 = vpack.c.b16 %v2789, %v2788
        %v2823 = vpack.c.b16 %v2791, %v2790
        %v2824 = vpack.c.b16 %v2793, %v2792
        %v2825 = vpack.c.b16 %v2795, %v2794
        %v2826 = vpack.c.b16 %v2797, %v2796
        %v2827 = vpack.c.b16 %v2799, %v2798
        %v2828 = vpack.c.b16 %v2801, %v2800
        %v2829 = vpack.c.b16 %v2803, %v2802
        %v2830 = vpack.c.b16 %v2805, %v2804
        %v2831 = vpack.c.b16 %v2807, %v2806
        %v2832 = vpack.c.b16 %v2809, %v2808
        %v2833 = vpack.c.b16 %v2811, %v2810
        %v2834 = vpack.c.b16 %v2813, %v2812
        %v2835 = vpack.c.b16 %v2815, %v2814
        %v2836 = vpack.c.b16 %v2817, %v2816
        %v2837 = vpack.c.b16 %v2818, %v2818
        %v2838 = vrot.slane %v2819, 2
        %v2839 = vrot.slane %v2820, 2
        %v2840 = vsel %vm2398, %v2838, %v2839
        %v2841 = vrot.slane %v2821, 2
        %v2842 = vsel %vm2398, %v2839, %v2841
        %v2843 = vrot.slane %v2822, 2
        %v2844 = vsel %vm2398, %v2841, %v2843
        %v2845 = vrot.slane %v2823, 2
        %v2846 = vsel %vm2398, %v2843, %v2845
        %v2847 = vrot.slane %v2824, 2
        %v2848 = vsel %vm2398, %v2845, %v2847
        %v2849 = vrot.slane %v2825, 2
        %v2850 = vsel %vm2398, %v2847, %v2849
        %v2851 = vrot.slane %v2826, 2
        %v2852 = vsel %vm2398, %v2849, %v2851
        %v2853 = vrot.slane %v2827, 2
        %v2854 = vsel %vm2398, %v2851, %v2853
        %v2855 = vrot.slane %v2828, 2
        %v2856 = vsel %vm2398, %v2853, %v2855
        %v2857 = vrot.slane %v2829, 2
        %v2858 = vsel %vm2398, %v2855, %v2857
        %v2859 = vrot.slane %v2830, 2
        %v2860 = vsel %vm2398, %v2857, %v2859
        %v2861 = vrot.slane %v2831, 2
        %v2862 = vsel %vm2398, %v2859, %v2861
        %v2863 = vrot.slane %v2832, 2
        %v2864 = vsel %vm2398, %v2861, %v2863
        %v2865 = vrot.slane %v2833, 2
        %v2866 = vsel %vm2398, %v2863, %v2865
        %v2867 = vrot.slane %v2834, 2
        %v2868 = vsel %vm2398, %v2865, %v2867
        %v2869 = vrot.slane %v2835, 2
        %v2870 = vsel %vm2398, %v2867, %v2869
        %v2871 = vrot.slane %v2836, 2
        %v2872 = vsel %vm2398, %v2869, %v2871
        %v2873 = vrot.slane %v2837, 2
        %v2874 = vsel %vm2398, %v2871, %v2873
        %v2876 = vsel %vm737, %v2840, 0
        %v2879 = vsel %vm737, %v2842, 0
        %v2882 = vsel %vm737, %v2844, 0
        %v2885 = vsel %vm737, %v2846, 0
        %v2888 = vsel %vm737, %v2848, 0
        %v2891 = vsel %vm737, %v2850, 0
        %v2894 = vsel %vm737, %v2852, 0
        %v2897 = vsel %vm737, %v2854, 0
        %v2900 = vsel %vm737, %v2856, 0
        %v2903 = vsel %vm737, %v2858, 0
        %v2906 = vsel %vm737, %v2860, 0
        %v2909 = vsel %vm737, %v2862, 0
        %v2912 = vsel %vm737, %v2864, 0
        %v2915 = vsel %vm737, %v2866, 0
        %v2918 = vsel %vm737, %v2868, 0
        %v2921 = vsel %vm737, %v2870, 0
        %v2924 = vsel %vm737, %v2872, 0
        %v2927 = vsel %vm737, %v2874, 0
        %v2930 = vand.u32 %v2744, %v795
        %2932 = vmatprep.subr.bf16.mxu0 0
        %2933 = vmatpush1.bf16.msra.mxu0 %v2930
        %2934 = vmatprep.subr.bf16.mxu0 0
        %2935 = vmatpush1.bf16.msra.mxu0 0
        %2936 = vmatprep.subr.bf16.mxu0 0
        %2937 = vmatpush1.bf16.msra.mxu0 0
        %2938 = vmatprep.subr.bf16.mxu0 0
        %2939 = vmatpush1.bf16.msra.mxu0 0
        %2940 = vmatprep.subr.bf16.mxu0 0
        %2941 = vmatpush1.bf16.msra.mxu0 0
        %2942 = vmatprep.subr.bf16.mxu0 0
        %2943 = vmatpush1.bf16.msra.mxu0 0
        %2944 = vmatprep.subr.bf16.mxu0 0
        %2945 = vmatpush1.bf16.msra.mxu0 0
        %2946 = vmatprep.subr.bf16.mxu0 0
        %2947 = vmatpush1.bf16.msra.mxu0 0
        %2948 = vmatprep.subr.bf16.mxu0 0
        %2949 = vmatpush1.bf16.msra.mxu0 0
        %2950 = vmatprep.subr.bf16.mxu0 0
        %2951 = vmatpush1.bf16.msra.mxu0 0
        %2952 = vmatprep.subr.bf16.mxu0 0
        %2953 = vmatpush1.bf16.msra.mxu0 0
        %2954 = vmatprep.subr.bf16.mxu0 0
        %2955 = vmatpush1.bf16.msra.mxu0 0
        %2956 = vmatprep.subr.bf16.mxu0 0
        %2957 = vmatpush1.bf16.msra.mxu0 0
        %2958 = vmatprep.subr.bf16.mxu0 0
        %2959 = vmatpush1.bf16.msra.mxu0 0
        %2960 = vmatprep.subr.bf16.mxu0 0
        %2961 = vmatpush1.bf16.msra.mxu0 0
        %2962 = vmatprep.subr.bf16.mxu0 0
        %2963 = vmatpush1.bf16.msra.mxu0 0
        %2964 = vmatprep.mubr.bf16.mxu0 0
        %2965 = vmatmul.mubr.bf16.gmra.mrb[0].mxu0 %v2876
        %v2966 = vpop.f32.mrb[0].mxu0
        %v2967 = vadd.f32 0.0, %v2966
        %v2968 = vpop.f32.mrb[0].mxu0
        %v2969 = vpop.f32.mrb[0].mxu0
        %v2970 = vadd.f32 0.0, %v2969
        %v2971 = vpop.f32.mrb[0].mxu0
        %2972 = vmatprep.mubr.bf16.mxu0 0
        %2973 = vmatmul.mubr.bf16.gmra.mrb[0].mxu0 %v2879
        %v2974 = vpop.f32.mrb[0].mxu0
        %v2975 = vadd.f32 0.0, %v2974
        %v2976 = vpop.f32.mrb[0].mxu0
        %v2977 = vpop.f32.mrb[0].mxu0
        %v2978 = vadd.f32 0.0, %v2977
        %v2979 = vpop.f32.mrb[0].mxu0
        %2980 = vmatprep.mubr.bf16.mxu0 0
        %2981 = vmatmul.mubr.bf16.gmra.mrb[0].mxu0 %v2882
        %v2982 = vpop.f32.mrb[0].mxu0
        %v2983 = vadd.f32 0.0, %v2982
        %v2984 = vpop.f32.mrb[0].mxu0
        %v2985 = vpop.f32.mrb[0].mxu0
        %v2986 = vadd.f32 0.0, %v2985
        %v2987 = vpop.f32.mrb[0].mxu0
        %2988 = vmatprep.mubr.bf16.mxu0 0
        %2989 = vmatmul.mubr.bf16.gmra.mrb[0].mxu0 %v2885
        %v2990 = vpop.f32.mrb[0].mxu0
        %v2991 = vadd.f32 0.0, %v2990
        %v2992 = vpop.f32.mrb[0].mxu0
        %v2993 = vpop.f32.mrb[0].mxu0
        %v2994 = vadd.f32 0.0, %v2993
        %v2995 = vpop.f32.mrb[0].mxu0
        %2996 = vmatprep.mubr.bf16.mxu0 0
        %2997 = vmatmul.mubr.bf16.gmra.mrb[0].mxu0 %v2888
        %v2998 = vpop.f32.mrb[0].mxu0
        %v2999 = vadd.f32 0.0, %v2998
        %v3000 = vpop.f32.mrb[0].mxu0
        %v3001 = vpop.f32.mrb[0].mxu0
        %v3002 = vadd.f32 0.0, %v3001
        %v3003 = vpop.f32.mrb[0].mxu0
        %3004 = vmatprep.mubr.bf16.mxu0 0
        %3005 = vmatmul.mubr.bf16.gmra.mrb[0].mxu0 %v2891
        %v3006 = vpop.f32.mrb[0].mxu0
        %v3007 = vadd.f32 0.0, %v3006
        %v3008 = vpop.f32.mrb[0].mxu0
        %v3009 = vpop.f32.mrb[0].mxu0
        %v3010 = vadd.f32 0.0, %v3009
        %v3011 = vpop.f32.mrb[0].mxu0
        %3012 = vmatprep.mubr.bf16.mxu0 0
        %3013 = vmatmul.mubr.bf16.gmra.mrb[0].mxu0 %v2894
        %v3014 = vpop.f32.mrb[0].mxu0
        %v3015 = vadd.f32 0.0, %v3014
        %v3016 = vpop.f32.mrb[0].mxu0
        %v3017 = vpop.f32.mrb[0].mxu0
        %v3018 = vadd.f32 0.0, %v3017
        %v3019 = vpop.f32.mrb[0].mxu0
        %3020 = vmatprep.mubr.bf16.mxu0 0
        %3021 = vmatmul.mubr.bf16.gmra.mrb[0].mxu0 %v2897
        %v3022 = vpop.f32.mrb[0].mxu0
        %v3023 = vadd.f32 0.0, %v3022
        %v3024 = vpop.f32.mrb[0].mxu0
        %v3025 = vpop.f32.mrb[0].mxu0
        %v3026 = vadd.f32 0.0, %v3025
        %v3027 = vpop.f32.mrb[0].mxu0
        %3028 = vmatprep.mubr.bf16.mxu0 0
        %3029 = vmatmul.mubr.bf16.gmra.mrb[0].mxu0 %v2900
        %v3030 = vpop.f32.mrb[0].mxu0
        %v3031 = vadd.f32 0.0, %v3030
        %v3032 = vpop.f32.mrb[0].mxu0
        %v3033 = vpop.f32.mrb[0].mxu0
        %v3034 = vadd.f32 0.0, %v3033
        %v3035 = vpop.f32.mrb[0].mxu0
        %3036 = vmatprep.mubr.bf16.mxu0 0
        %3037 = vmatmul.mubr.bf16.gmra.mrb[0].mxu0 %v2903
        %v3038 = vpop.f32.mrb[0].mxu0
        %v3039 = vadd.f32 0.0, %v3038
        %v3040 = vpop.f32.mrb[0].mxu0
        %v3041 = vpop.f32.mrb[0].mxu0
        %v3042 = vadd.f32 0.0, %v3041
        %v3043 = vpop.f32.mrb[0].mxu0
        %3044 = vmatprep.mubr.bf16.mxu0 0
        %3045 = vmatmul.mubr.bf16.gmra.mrb[0].mxu0 %v2906
        %v3046 = vpop.f32.mrb[0].mxu0
        %v3047 = vadd.f32 0.0, %v3046
        %v3048 = vpop.f32.mrb[0].mxu0
        %v3049 = vpop.f32.mrb[0].mxu0
        %v3050 = vadd.f32 0.0, %v3049
        %v3051 = vpop.f32.mrb[0].mxu0
        %3052 = vmatprep.mubr.bf16.mxu0 0
        %3053 = vmatmul.mubr.bf16.gmra.mrb[0].mxu0 %v2909
        %v3054 = vpop.f32.mrb[0].mxu0
        %v3055 = vadd.f32 0.0, %v3054
        %v3056 = vpop.f32.mrb[0].mxu0
        %v3057 = vpop.f32.mrb[0].mxu0
        %v3058 = vadd.f32 0.0, %v3057
        %v3059 = vpop.f32.mrb[0].mxu0
        %3060 = vmatprep.mubr.bf16.mxu0 0
        %3061 = vmatmul.mubr.bf16.gmra.mrb[0].mxu0 %v2912
        %v3062 = vpop.f32.mrb[0].mxu0
        %v3063 = vadd.f32 0.0, %v3062
        %v3064 = vpop.f32.mrb[0].mxu0
        %v3065 = vpop.f32.mrb[0].mxu0
        %v3066 = vadd.f32 0.0, %v3065
        %v3067 = vpop.f32.mrb[0].mxu0
        %3068 = vmatprep.mubr.bf16.mxu0 0
        %3069 = vmatmul.mubr.bf16.gmra.mrb[0].mxu0 %v2915
        %v3070 = vpop.f32.mrb[0].mxu0
        %v3071 = vadd.f32 0.0, %v3070
        %v3072 = vpop.f32.mrb[0].mxu0
        %v3073 = vpop.f32.mrb[0].mxu0
        %v3074 = vadd.f32 0.0, %v3073
        %v3075 = vpop.f32.mrb[0].mxu0
        %3076 = vmatprep.mubr.bf16.mxu0 0
        %3077 = vmatmul.mubr.bf16.gmra.mrb[0].mxu0 %v2918
        %v3078 = vpop.f32.mrb[0].mxu0
        %v3079 = vadd.f32 0.0, %v3078
        %v3080 = vpop.f32.mrb[0].mxu0
        %v3081 = vpop.f32.mrb[0].mxu0
        %v3082 = vadd.f32 0.0, %v3081
        %v3083 = vpop.f32.mrb[0].mxu0
        %3084 = vmatprep.mubr.bf16.mxu0 0
        %3085 = vmatmul.mubr.bf16.gmra.mrb[0].mxu0 %v2921
        %v3086 = vpop.f32.mrb[0].mxu0
        %v3087 = vadd.f32 0.0, %v3086
        %v3088 = vpop.f32.mrb[0].mxu0
        %v3089 = vpop.f32.mrb[0].mxu0
        %v3090 = vadd.f32 0.0, %v3089
        %v3091 = vpop.f32.mrb[0].mxu0
        %3092 = vmatprep.mubr.bf16.mxu0 0
        %3093 = vmatmul.mubr.bf16.gmra.mrb[0].mxu0 %v2924
        %v3094 = vpop.f32.mrb[0].mxu0
        %v3095 = vadd.f32 0.0, %v3094
        %v3096 = vpop.f32.mrb[0].mxu0
        %v3097 = vpop.f32.mrb[0].mxu0
        %v3098 = vadd.f32 0.0, %v3097
        %v3099 = vpop.f32.mrb[0].mxu0
        %3100 = vmatprep.mubr.bf16.mxu0 0
        %3101 = vmatmul.mubr.bf16.gmra.mrb[0].mxu0 %v2927
        %v3102 = vpop.f32.mrb[0].mxu0
        %v3103 = vadd.f32 0.0, %v3102
        %v3104 = vpop.f32.mrb[0].mxu0
        %v3105 = vpop.f32.mrb[0].mxu0
        %v3106 = vadd.f32 0.0, %v3105
        %v3107 = vpop.f32.mrb[0].mxu0
        %3108 = vdwg.mxu0
        %v3109 = vadd.f32 %v2670, %v2967
        %v3110 = vadd.f32 %v2671, %v2970
        %v3111 = vadd.f32 %v2672, %v2975
        %v3112 = vadd.f32 %v2673, %v2978
        %v3113 = vadd.f32 %v2674, %v2983
        %v3114 = vadd.f32 %v2675, %v2986
        %v3115 = vadd.f32 %v2676, %v2991
        %v3116 = vadd.f32 %v2677, %v2994
        %v3117 = vadd.f32 %v2678, %v2999
        %v3118 = vadd.f32 %v2679, %v3002
        %v3119 = vadd.f32 %v2680, %v3007
        %v3120 = vadd.f32 %v2681, %v3010
        %v3121 = vadd.f32 %v2682, %v3015
        %v3122 = vadd.f32 %v2683, %v3018
        %v3123 = vadd.f32 %v2684, %v3023
        %v3124 = vadd.f32 %v2685, %v3026
        %v3125 = vadd.f32 %v2686, %v3031
        %v3126 = vadd.f32 %v2687, %v3034
        %v3127 = vadd.f32 %v2688, %v3039
        %v3128 = vadd.f32 %v2689, %v3042
        %v3129 = vadd.f32 %v2690, %v3047
        %v3130 = vadd.f32 %v2691, %v3050
        %v3131 = vadd.f32 %v2692, %v3055
        %v3132 = vadd.f32 %v2693, %v3058
        %v3133 = vadd.f32 %v2694, %v3063
        %v3134 = vadd.f32 %v2695, %v3066
        %v3135 = vadd.f32 %v2696, %v3071
        %v3136 = vadd.f32 %v2697, %v3074
        %v3137 = vadd.f32 %v2698, %v3079
        %v3138 = vadd.f32 %v2699, %v3082
        %v3139 = vadd.f32 %v2700, %v3087
        %v3140 = vadd.f32 %v2701, %v3090
        %v3141 = vadd.f32 %v2702, %v3095
        %v3142 = vadd.f32 %v2703, %v3098
        %v3143 = vadd.f32 %v2704, %v3103
        %v3144 = vadd.f32 %v2705, %v3106
        %v3145 = vld [vmem:[%s405 + $0xa0] sm:$0x7]
        %s3146 = scalar_lea.vmem %s4, 28
        %v3147 = vld [vmem:[%s3146] sm:$0x7]
        %v3149 = vunpack.c.l.b16 %v3145
        %v3150 = vpack.c.b16 %v3149, %v3149
        %vm3151 = vsmask.f32 5376
        %v3153 = vshrl.u32 %v2819, 16
        %v3155 = vrot.slane %v3153, 2
        %v3156 = vshll.u32 %v2819, 16
        %v3158 = vrot.slane %v3156, 3
        %v3159 = vor.u32 %v3155, %v3158
        %v3161 = vshrl.u32 %v2820, 16
        %v3163 = vrot.slane %v3161, 2
        %v3164 = vshll.u32 %v2820, 16
        %v3166 = vrot.slane %v3164, 3
        %v3167 = vor.u32 %v3163, %v3166
        %v3168 = vsel %vm3151, %v3159, %v3167
        %v3170 = vshrl.u32 %v2821, 16
        %v3172 = vrot.slane %v3170, 2
        %v3173 = vshll.u32 %v2821, 16
        %v3175 = vrot.slane %v3173, 3
        %v3176 = vor.u32 %v3172, %v3175
        %v3177 = vsel %vm3151, %v3167, %v3176
        %v3179 = vshrl.u32 %v2822, 16
        %v3181 = vrot.slane %v3179, 2
        %v3182 = vshll.u32 %v2822, 16
        %v3184 = vrot.slane %v3182, 3
        %v3185 = vor.u32 %v3181, %v3184
        %v3186 = vsel %vm3151, %v3176, %v3185
        %v3188 = vshrl.u32 %v2823, 16
        %v3190 = vrot.slane %v3188, 2
        %v3191 = vshll.u32 %v2823, 16
        %v3193 = vrot.slane %v3191, 3
        %v3194 = vor.u32 %v3190, %v3193
        %v3195 = vsel %vm3151, %v3185, %v3194
        %v3197 = vshrl.u32 %v2824, 16
        %v3199 = vrot.slane %v3197, 2
        %v3200 = vshll.u32 %v2824, 16
        %v3202 = vrot.slane %v3200, 3
        %v3203 = vor.u32 %v3199, %v3202
        %v3204 = vsel %vm3151, %v3194, %v3203
        %v3206 = vshrl.u32 %v2825, 16
        %v3208 = vrot.slane %v3206, 2
        %v3209 = vshll.u32 %v2825, 16
        %v3211 = vrot.slane %v3209, 3
        %v3212 = vor.u32 %v3208, %v3211
        %v3213 = vsel %vm3151, %v3203, %v3212
        %v3215 = vshrl.u32 %v2826, 16
        %v3217 = vrot.slane %v3215, 2
        %v3218 = vshll.u32 %v2826, 16
        %v3220 = vrot.slane %v3218, 3
        %v3221 = vor.u32 %v3217, %v3220
        %v3222 = vsel %vm3151, %v3212, %v3221
        %v3224 = vshrl.u32 %v2827, 16
        %v3226 = vrot.slane %v3224, 2
        %v3227 = vshll.u32 %v2827, 16
        %v3229 = vrot.slane %v3227, 3
        %v3230 = vor.u32 %v3226, %v3229
        %v3231 = vsel %vm3151, %v3221, %v3230
        %v3233 = vshrl.u32 %v2828, 16
        %v3235 = vrot.slane %v3233, 2
        %v3236 = vshll.u32 %v2828, 16
        %v3238 = vrot.slane %v3236, 3
        %v3239 = vor.u32 %v3235, %v3238
        %v3240 = vsel %vm3151, %v3230, %v3239
        %v3242 = vshrl.u32 %v2829, 16
        %v3244 = vrot.slane %v3242, 2
        %v3245 = vshll.u32 %v2829, 16
        %v3247 = vrot.slane %v3245, 3
        %v3248 = vor.u32 %v3244, %v3247
        %v3249 = vsel %vm3151, %v3239, %v3248
        %v3251 = vshrl.u32 %v2830, 16
        %v3253 = vrot.slane %v3251, 2
        %v3254 = vshll.u32 %v2830, 16
        %v3256 = vrot.slane %v3254, 3
        %v3257 = vor.u32 %v3253, %v3256
        %v3258 = vsel %vm3151, %v3248, %v3257
        %v3260 = vshrl.u32 %v2831, 16
        %v3262 = vrot.slane %v3260, 2
        %v3263 = vshll.u32 %v2831, 16
        %v3265 = vrot.slane %v3263, 3
        %v3266 = vor.u32 %v3262, %v3265
        %v3267 = vsel %vm3151, %v3257, %v3266
        %v3269 = vshrl.u32 %v2832, 16
        %v3271 = vrot.slane %v3269, 2
        %v3272 = vshll.u32 %v2832, 16
        %v3274 = vrot.slane %v3272, 3
        %v3275 = vor.u32 %v3271, %v3274
        %v3276 = vsel %vm3151, %v3266, %v3275
        %v3278 = vshrl.u32 %v2833, 16
        %v3280 = vrot.slane %v3278, 2
        %v3281 = vshll.u32 %v2833, 16
        %v3283 = vrot.slane %v3281, 3
        %v3284 = vor.u32 %v3280, %v3283
        %v3285 = vsel %vm3151, %v3275, %v3284
        %v3287 = vshrl.u32 %v2834, 16
        %v3289 = vrot.slane %v3287, 2
        %v3290 = vshll.u32 %v2834, 16
        %v3292 = vrot.slane %v3290, 3
        %v3293 = vor.u32 %v3289, %v3292
        %v3294 = vsel %vm3151, %v3284, %v3293
        %v3296 = vshrl.u32 %v2835, 16
        %v3298 = vrot.slane %v3296, 2
        %v3299 = vshll.u32 %v2835, 16
        %v3301 = vrot.slane %v3299, 3
        %v3302 = vor.u32 %v3298, %v3301
        %v3303 = vsel %vm3151, %v3293, %v3302
        %v3305 = vshrl.u32 %v2836, 16
        %v3307 = vrot.slane %v3305, 2
        %v3308 = vshll.u32 %v2836, 16
        %v3310 = vrot.slane %v3308, 3
        %v3311 = vor.u32 %v3307, %v3310
        %v3312 = vsel %vm3151, %v3302, %v3311
        %v3314 = vshrl.u32 %v3150, 16
        %v3316 = vrot.slane %v3314, 2
        %v3317 = vshll.u32 %v3150, 16
        %v3319 = vrot.slane %v3317, 3
        %v3320 = vor.u32 %v3316, %v3319
        %v3321 = vsel %vm3151, %v3311, %v3320
        %v3323 = vsel %vm737, %v3168, 0
        %v3326 = vsel %vm737, %v3177, 0
        %v3329 = vsel %vm737, %v3186, 0
        %v3332 = vsel %vm737, %v3195, 0
        %v3335 = vsel %vm737, %v3204, 0
        %v3338 = vsel %vm737, %v3213, 0
        %v3341 = vsel %vm737, %v3222, 0
        %v3344 = vsel %vm737, %v3231, 0
        %v3347 = vsel %vm737, %v3240, 0
        %v3350 = vsel %vm737, %v3249, 0
        %v3353 = vsel %vm737, %v3258, 0
        %v3356 = vsel %vm737, %v3267, 0
        %v3359 = vsel %vm737, %v3276, 0
        %v3362 = vsel %vm737, %v3285, 0
        %v3365 = vsel %vm737, %v3294, 0
        %v3368 = vsel %vm737, %v3303, 0
        %v3371 = vsel %vm737, %v3312, 0
        %v3374 = vsel %vm737, %v3321, 0
        %v3377 = vand.u32 %v3147, %v795
        %3379 = vmatprep.subr.bf16.mxu0 0
        %3380 = vmatpush1.bf16.msra.mxu0 %v3377
        %3381 = vmatprep.subr.bf16.mxu0 0
        %3382 = vmatpush1.bf16.msra.mxu0 0
        %3383 = vmatprep.subr.bf16.mxu0 0
        %3384 = vmatpush1.bf16.msra.mxu0 0
        %3385 = vmatprep.subr.bf16.mxu0 0
        %3386 = vmatpush1.bf16.msra.mxu0 0
        %3387 = vmatprep.subr.bf16.mxu0 0
        %3388 = vmatpush1.bf16.msra.mxu0 0
        %3389 = vmatprep.subr.bf16.mxu0 0
        %3390 = vmatpush1.bf16.msra.mxu0 0
        %3391 = vmatprep.subr.bf16.mxu0 0
        %3392 = vmatpush1.bf16.msra.mxu0 0
        %3393 = vmatprep.subr.bf16.mxu0 0
        %3394 = vmatpush1.bf16.msra.mxu0 0
        %3395 = vmatprep.subr.bf16.mxu0 0
        %3396 = vmatpush1.bf16.msra.mxu0 0
        %3397 = vmatprep.subr.bf16.mxu0 0
        %3398 = vmatpush1.bf16.msra.mxu0 0
        %3399 = vmatprep.subr.bf16.mxu0 0
        %3400 = vmatpush1.bf16.msra.mxu0 0
        %3401 = vmatprep.subr.bf16.mxu0 0
        %3402 = vmatpush1.bf16.msra.mxu0 0
        %3403 = vmatprep.subr.bf16.mxu0 0
        %3404 = vmatpush1.bf16.msra.mxu0 0
        %3405 = vmatprep.subr.bf16.mxu0 0
        %3406 = vmatpush1.bf16.msra.mxu0 0
        %3407 = vmatprep.subr.bf16.mxu0 0
        %3408 = vmatpush1.bf16.msra.mxu0 0
        %3409 = vmatprep.subr.bf16.mxu0 0
        %3410 = vmatpush1.bf16.msra.mxu0 0
        %3411 = vmatprep.mubr.bf16.mxu0 0
        %3412 = vmatmul.mubr.bf16.gmra.mrb[0].mxu0 %v3323
        %v3413 = vpop.f32.mrb[0].mxu0
        %v3414 = vadd.f32 0.0, %v3413
        %v3415 = vpop.f32.mrb[0].mxu0
        %v3416 = vpop.f32.mrb[0].mxu0
        %v3417 = vadd.f32 0.0, %v3416
        %v3418 = vpop.f32.mrb[0].mxu0
        %3419 = vmatprep.mubr.bf16.mxu0 0
        %3420 = vmatmul.mubr.bf16.gmra.mrb[0].mxu0 %v3326
        %v3421 = vpop.f32.mrb[0].mxu0
        %v3422 = vadd.f32 0.0, %v3421
        %v3423 = vpop.f32.mrb[0].mxu0
        %v3424 = vpop.f32.mrb[0].mxu0
        %v3425 = vadd.f32 0.0, %v3424
        %v3426 = vpop.f32.mrb[0].mxu0
        %3427 = vmatprep.mubr.bf16.mxu0 0
        %3428 = vmatmul.mubr.bf16.gmra.mrb[0].mxu0 %v3329
        %v3429 = vpop.f32.mrb[0].mxu0
        %v3430 = vadd.f32 0.0, %v3429
        %v3431 = vpop.f32.mrb[0].mxu0
        %v3432 = vpop.f32.mrb[0].mxu0
        %v3433 = vadd.f32 0.0, %v3432
        %v3434 = vpop.f32.mrb[0].mxu0
        %3435 = vmatprep.mubr.bf16.mxu0 0
        %3436 = vmatmul.mubr.bf16.gmra.mrb[0].mxu0 %v3332
        %v3437 = vpop.f32.mrb[0].mxu0
        %v3438 = vadd.f32 0.0, %v3437
        %v3439 = vpop.f32.mrb[0].mxu0
        %v3440 = vpop.f32.mrb[0].mxu0
        %v3441 = vadd.f32 0.0, %v3440
        %v3442 = vpop.f32.mrb[0].mxu0
        %3443 = vmatprep.mubr.bf16.mxu0 0
        %3444 = vmatmul.mubr.bf16.gmra.mrb[0].mxu0 %v3335
        %v3445 = vpop.f32.mrb[0].mxu0
        %v3446 = vadd.f32 0.0, %v3445
        %v3447 = vpop.f32.mrb[0].mxu0
        %v3448 = vpop.f32.mrb[0].mxu0
        %v3449 = vadd.f32 0.0, %v3448
        %v3450 = vpop.f32.mrb[0].mxu0
        %3451 = vmatprep.mubr.bf16.mxu0 0
        %3452 = vmatmul.mubr.bf16.gmra.mrb[0].mxu0 %v3338
        %v3453 = vpop.f32.mrb[0].mxu0
        %v3454 = vadd.f32 0.0, %v3453
        %v3455 = vpop.f32.mrb[0].mxu0
        %v3456 = vpop.f32.mrb[0].mxu0
        %v3457 = vadd.f32 0.0, %v3456
        %v3458 = vpop.f32.mrb[0].mxu0
        %3459 = vmatprep.mubr.bf16.mxu0 0
        %3460 = vmatmul.mubr.bf16.gmra.mrb[0].mxu0 %v3341
        %v3461 = vpop.f32.mrb[0].mxu0
        %v3462 = vadd.f32 0.0, %v3461
        %v3463 = vpop.f32.mrb[0].mxu0
        %v3464 = vpop.f32.mrb[0].mxu0
        %v3465 = vadd.f32 0.0, %v3464
        %v3466 = vpop.f32.mrb[0].mxu0
        %3467 = vmatprep.mubr.bf16.mxu0 0
        %3468 = vmatmul.mubr.bf16.gmra.mrb[0].mxu0 %v3344
        %v3469 = vpop.f32.mrb[0].mxu0
        %v3470 = vadd.f32 0.0, %v3469
        %v3471 = vpop.f32.mrb[0].mxu0
        %v3472 = vpop.f32.mrb[0].mxu0
        %v3473 = vadd.f32 0.0, %v3472
        %v3474 = vpop.f32.mrb[0].mxu0
        %3475 = vmatprep.mubr.bf16.mxu0 0
        %3476 = vmatmul.mubr.bf16.gmra.mrb[0].mxu0 %v3347
        %v3477 = vpop.f32.mrb[0].mxu0
        %v3478 = vadd.f32 0.0, %v3477
        %v3479 = vpop.f32.mrb[0].mxu0
        %v3480 = vpop.f32.mrb[0].mxu0
        %v3481 = vadd.f32 0.0, %v3480
        %v3482 = vpop.f32.mrb[0].mxu0
        %3483 = vmatprep.mubr.bf16.mxu0 0
        %3484 = vmatmul.mubr.bf16.gmra.mrb[0].mxu0 %v3350
        %v3485 = vpop.f32.mrb[0].mxu0
        %v3486 = vadd.f32 0.0, %v3485
        %v3487 = vpop.f32.mrb[0].mxu0
        %v3488 = vpop.f32.mrb[0].mxu0
        %v3489 = vadd.f32 0.0, %v3488
        %v3490 = vpop.f32.mrb[0].mxu0
        %3491 = vmatprep.mubr.bf16.mxu0 0
        %3492 = vmatmul.mubr.bf16.gmra.mrb[0].mxu0 %v3353
        %v3493 = vpop.f32.mrb[0].mxu0
        %v3494 = vadd.f32 0.0, %v3493
        %v3495 = vpop.f32.mrb[0].mxu0
        %v3496 = vpop.f32.mrb[0].mxu0
        %v3497 = vadd.f32 0.0, %v3496
        %v3498 = vpop.f32.mrb[0].mxu0
        %3499 = vmatprep.mubr.bf16.mxu0 0
        %3500 = vmatmul.mubr.bf16.gmra.mrb[0].mxu0 %v3356
        %v3501 = vpop.f32.mrb[0].mxu0
        %v3502 = vadd.f32 0.0, %v3501
        %v3503 = vpop.f32.mrb[0].mxu0
        %v3504 = vpop.f32.mrb[0].mxu0
        %v3505 = vadd.f32 0.0, %v3504
        %v3506 = vpop.f32.mrb[0].mxu0
        %3507 = vmatprep.mubr.bf16.mxu0 0
        %3508 = vmatmul.mubr.bf16.gmra.mrb[0].mxu0 %v3359
        %v3509 = vpop.f32.mrb[0].mxu0
        %v3510 = vadd.f32 0.0, %v3509
        %v3511 = vpop.f32.mrb[0].mxu0
        %v3512 = vpop.f32.mrb[0].mxu0
        %v3513 = vadd.f32 0.0, %v3512
        %v3514 = vpop.f32.mrb[0].mxu0
        %3515 = vmatprep.mubr.bf16.mxu0 0
        %3516 = vmatmul.mubr.bf16.gmra.mrb[0].mxu0 %v3362
        %v3517 = vpop.f32.mrb[0].mxu0
        %v3518 = vadd.f32 0.0, %v3517
        %v3519 = vpop.f32.mrb[0].mxu0
        %v3520 = vpop.f32.mrb[0].mxu0
        %v3521 = vadd.f32 0.0, %v3520
        %v3522 = vpop.f32.mrb[0].mxu0
        %3523 = vmatprep.mubr.bf16.mxu0 0
        %3524 = vmatmul.mubr.bf16.gmra.mrb[0].mxu0 %v3365
        %v3525 = vpop.f32.mrb[0].mxu0
        %v3526 = vadd.f32 0.0, %v3525
        %v3527 = vpop.f32.mrb[0].mxu0
        %v3528 = vpop.f32.mrb[0].mxu0
        %v3529 = vadd.f32 0.0, %v3528
        %v3530 = vpop.f32.mrb[0].mxu0
        %3531 = vmatprep.mubr.bf16.mxu0 0
        %3532 = vmatmul.mubr.bf16.gmra.mrb[0].mxu0 %v3368
        %v3533 = vpop.f32.mrb[0].mxu0
        %v3534 = vadd.f32 0.0, %v3533
        %v3535 = vpop.f32.mrb[0].mxu0
        %v3536 = vpop.f32.mrb[0].mxu0
        %v3537 = vadd.f32 0.0, %v3536
        %v3538 = vpop.f32.mrb[0].mxu0
        %3539 = vmatprep.mubr.bf16.mxu0 0
        %3540 = vmatmul.mubr.bf16.gmra.mrb[0].mxu0 %v3371
        %v3541 = vpop.f32.mrb[0].mxu0
        %v3542 = vadd.f32 0.0, %v3541
        %v3543 = vpop.f32.mrb[0].mxu0
        %v3544 = vpop.f32.mrb[0].mxu0
        %v3545 = vadd.f32 0.0, %v3544
        %v3546 = vpop.f32.mrb[0].mxu0
        %3547 = vmatprep.mubr.bf16.mxu0 0
        %3548 = vmatmul.mubr.bf16.gmra.mrb[0].mxu0 %v3374
        %v3549 = vpop.f32.mrb[0].mxu0
        %v3550 = vadd.f32 0.0, %v3549
        %v3551 = vpop.f32.mrb[0].mxu0
        %v3552 = vpop.f32.mrb[0].mxu0
        %v3553 = vadd.f32 0.0, %v3552
        %v3554 = vpop.f32.mrb[0].mxu0
        %3555 = vdwg.mxu0
        %v3556 = vadd.f32 %v3109, %v3414
        %v3557 = vadd.f32 %v3110, %v3417
        %v3558 = vadd.f32 %v3111, %v3422
        %v3559 = vadd.f32 %v3112, %v3425
        %v3560 = vadd.f32 %v3113, %v3430
        %v3561 = vadd.f32 %v3114, %v3433
        %v3562 = vadd.f32 %v3115, %v3438
        %v3563 = vadd.f32 %v3116, %v3441
        %v3564 = vadd.f32 %v3117, %v3446
        %v3565 = vadd.f32 %v3118, %v3449
        %v3566 = vadd.f32 %v3119, %v3454
        %v3567 = vadd.f32 %v3120, %v3457
        %v3568 = vadd.f32 %v3121, %v3462
        %v3569 = vadd.f32 %v3122, %v3465
        %v3570 = vadd.f32 %v3123, %v3470
        %v3571 = vadd.f32 %v3124, %v3473
        %v3572 = vadd.f32 %v3125, %v3478
        %v3573 = vadd.f32 %v3126, %v3481
        %v3574 = vadd.f32 %v3127, %v3486
        %v3575 = vadd.f32 %v3128, %v3489
        %v3576 = vadd.f32 %v3129, %v3494
        %v3577 = vadd.f32 %v3130, %v3497
        %v3578 = vadd.f32 %v3131, %v3502
        %v3579 = vadd.f32 %v3132, %v3505
        %v3580 = vadd.f32 %v3133, %v3510
        %v3581 = vadd.f32 %v3134, %v3513
        %v3582 = vadd.f32 %v3135, %v3518
        %v3583 = vadd.f32 %v3136, %v3521
        %v3584 = vadd.f32 %v3137, %v3526
        %v3585 = vadd.f32 %v3138, %v3529
        %v3586 = vadd.f32 %v3139, %v3534
        %v3587 = vadd.f32 %v3140, %v3537
        %v3588 = vadd.f32 %v3141, %v3542
        %v3589 = vadd.f32 %v3142, %v3545
        %v3590 = vadd.f32 %v3143, %v3550
        %v3591 = vadd.f32 %v3144, %v3553
        %v3592 = vld [vmem:[%s405 + $0x10] sm:$0x8]
        %s3593 = scalar_lea.vmem %s4, 32
        %v3594 = vld [vmem:[%s3593] sm:$0x7]
        %v3596 = vunpack.c.l.b16 %v3592
        %v3597 = vpack.c.b16 %v2783, %v3596
        %vm3598 = vcmask 1044480
        %v3599 = vrot.slane %v3597, 3
        %v3600 = vrot.slane %v2820, 3
        %v3601 = vsel %vm3598, %v3599, %v3600
        %v3602 = vrot.slane %v2821, 3
        %v3603 = vsel %vm3598, %v3600, %v3602
        %v3604 = vrot.slane %v2822, 3
        %v3605 = vsel %vm3598, %v3602, %v3604
        %v3606 = vrot.slane %v2823, 3
        %v3607 = vsel %vm3598, %v3604, %v3606
        %v3608 = vrot.slane %v2824, 3
        %v3609 = vsel %vm3598, %v3606, %v3608
        %v3610 = vrot.slane %v2825, 3
        %v3611 = vsel %vm3598, %v3608, %v3610
        %v3612 = vrot.slane %v2826, 3
        %v3613 = vsel %vm3598, %v3610, %v3612
        %v3614 = vrot.slane %v2827, 3
        %v3615 = vsel %vm3598, %v3612, %v3614
        %v3616 = vrot.slane %v2828, 3
        %v3617 = vsel %vm3598, %v3614, %v3616
        %v3618 = vrot.slane %v2829, 3
        %v3619 = vsel %vm3598, %v3616, %v3618
        %v3620 = vrot.slane %v2830, 3
        %v3621 = vsel %vm3598, %v3618, %v3620
        %v3622 = vrot.slane %v2831, 3
        %v3623 = vsel %vm3598, %v3620, %v3622
        %v3624 = vrot.slane %v2832, 3
        %v3625 = vsel %vm3598, %v3622, %v3624
        %v3626 = vrot.slane %v2833, 3
        %v3627 = vsel %vm3598, %v3624, %v3626
        %v3628 = vrot.slane %v2834, 3
        %v3629 = vsel %vm3598, %v3626, %v3628
        %v3630 = vrot.slane %v2835, 3
        %v3631 = vsel %vm3598, %v3628, %v3630
        %v3632 = vrot.slane %v2836, 3
        %v3633 = vsel %vm3598, %v3630, %v3632
        %v3634 = vrot.slane %v3150, 3
        %v3635 = vsel %vm3598, %v3632, %v3634
        %v3637 = vsel %vm737, %v3601, 0
        %v3640 = vsel %vm737, %v3603, 0
        %v3643 = vsel %vm737, %v3605, 0
        %v3646 = vsel %vm737, %v3607, 0
        %v3649 = vsel %vm737, %v3609, 0
        %v3652 = vsel %vm737, %v3611, 0
        %v3655 = vsel %vm737, %v3613, 0
        %v3658 = vsel %vm737, %v3615, 0
        %v3661 = vsel %vm737, %v3617, 0
        %v3664 = vsel %vm737, %v3619, 0
        %v3667 = vsel %vm737, %v3621, 0
        %v3670 = vsel %vm737, %v3623, 0
        %v3673 = vsel %vm737, %v3625, 0
        %v3676 = vsel %vm737, %v3627, 0
        %v3679 = vsel %vm737, %v3629, 0
        %v3682 = vsel %vm737, %v3631, 0
        %v3685 = vsel %vm737, %v3633, 0
        %v3688 = vsel %vm737, %v3635, 0
        %v3691 = vand.u32 %v3594, %v795
        %3693 = vmatprep.subr.bf16.mxu0 0
        %3694 = vmatpush1.bf16.msra.mxu0 %v3691
        %3695 = vmatprep.subr.bf16.mxu0 0
        %3696 = vmatpush1.bf16.msra.mxu0 0
        %3697 = vmatprep.subr.bf16.mxu0 0
        %3698 = vmatpush1.bf16.msra.mxu0 0
        %3699 = vmatprep.subr.bf16.mxu0 0
        %3700 = vmatpush1.bf16.msra.mxu0 0
        %3701 = vmatprep.subr.bf16.mxu0 0
        %3702 = vmatpush1.bf16.msra.mxu0 0
        %3703 = vmatprep.subr.bf16.mxu0 0
        %3704 = vmatpush1.bf16.msra.mxu0 0
        %3705 = vmatprep.subr.bf16.mxu0 0
        %3706 = vmatpush1.bf16.msra.mxu0 0
        %3707 = vmatprep.subr.bf16.mxu0 0
        %3708 = vmatpush1.bf16.msra.mxu0 0
        %3709 = vmatprep.subr.bf16.mxu0 0
        %3710 = vmatpush1.bf16.msra.mxu0 0
        %3711 = vmatprep.subr.bf16.mxu0 0
        %3712 = vmatpush1.bf16.msra.mxu0 0
        %3713 = vmatprep.subr.bf16.mxu0 0
        %3714 = vmatpush1.bf16.msra.mxu0 0
        %3715 = vmatprep.subr.bf16.mxu0 0
        %3716 = vmatpush1.bf16.msra.mxu0 0
        %3717 = vmatprep.subr.bf16.mxu0 0
        %3718 = vmatpush1.bf16.msra.mxu0 0
        %3719 = vmatprep.subr.bf16.mxu0 0
        %3720 = vmatpush1.bf16.msra.mxu0 0
        %3721 = vmatprep.subr.bf16.mxu0 0
        %3722 = vmatpush1.bf16.msra.mxu0 0
        %3723 = vmatprep.subr.bf16.mxu0 0
        %3724 = vmatpush1.bf16.msra.mxu0 0
        %3725 = vmatprep.mubr.bf16.mxu0 0
        %3726 = vmatmul.mubr.bf16.gmra.mrb[0].mxu0 %v3637
        %v3727 = vpop.f32.mrb[0].mxu0
        %v3728 = vadd.f32 0.0, %v3727
        %v3729 = vpop.f32.mrb[0].mxu0
        %v3730 = vpop.f32.mrb[0].mxu0
        %v3731 = vadd.f32 0.0, %v3730
        %v3732 = vpop.f32.mrb[0].mxu0
        %3733 = vmatprep.mubr.bf16.mxu0 0
        %3734 = vmatmul.mubr.bf16.gmra.mrb[0].mxu0 %v3640
        %v3735 = vpop.f32.mrb[0].mxu0
        %v3736 = vadd.f32 0.0, %v3735
        %v3737 = vpop.f32.mrb[0].mxu0
        %v3738 = vpop.f32.mrb[0].mxu0
        %v3739 = vadd.f32 0.0, %v3738
        %v3740 = vpop.f32.mrb[0].mxu0
        %3741 = vmatprep.mubr.bf16.mxu0 0
        %3742 = vmatmul.mubr.bf16.gmra.mrb[0].mxu0 %v3643
        %v3743 = vpop.f32.mrb[0].mxu0
        %v3744 = vadd.f32 0.0, %v3743
        %v3745 = vpop.f32.mrb[0].mxu0
        %v3746 = vpop.f32.mrb[0].mxu0
        %v3747 = vadd.f32 0.0, %v3746
        %v3748 = vpop.f32.mrb[0].mxu0
        %3749 = vmatprep.mubr.bf16.mxu0 0
        %3750 = vmatmul.mubr.bf16.gmra.mrb[0].mxu0 %v3646
        %v3751 = vpop.f32.mrb[0].mxu0
        %v3752 = vadd.f32 0.0, %v3751
        %v3753 = vpop.f32.mrb[0].mxu0
        %v3754 = vpop.f32.mrb[0].mxu0
        %v3755 = vadd.f32 0.0, %v3754
        %v3756 = vpop.f32.mrb[0].mxu0
        %3757 = vmatprep.mubr.bf16.mxu0 0
        %3758 = vmatmul.mubr.bf16.gmra.mrb[0].mxu0 %v3649
        %v3759 = vpop.f32.mrb[0].mxu0
        %v3760 = vadd.f32 0.0, %v3759
        %v3761 = vpop.f32.mrb[0].mxu0
        %v3762 = vpop.f32.mrb[0].mxu0
        %v3763 = vadd.f32 0.0, %v3762
        %v3764 = vpop.f32.mrb[0].mxu0
        %3765 = vmatprep.mubr.bf16.mxu0 0
        %3766 = vmatmul.mubr.bf16.gmra.mrb[0].mxu0 %v3652
        %v3767 = vpop.f32.mrb[0].mxu0
        %v3768 = vadd.f32 0.0, %v3767
        %v3769 = vpop.f32.mrb[0].mxu0
        %v3770 = vpop.f32.mrb[0].mxu0
        %v3771 = vadd.f32 0.0, %v3770
        %v3772 = vpop.f32.mrb[0].mxu0
        %3773 = vmatprep.mubr.bf16.mxu0 0
        %3774 = vmatmul.mubr.bf16.gmra.mrb[0].mxu0 %v3655
        %v3775 = vpop.f32.mrb[0].mxu0
        %v3776 = vadd.f32 0.0, %v3775
        %v3777 = vpop.f32.mrb[0].mxu0
        %v3778 = vpop.f32.mrb[0].mxu0
        %v3779 = vadd.f32 0.0, %v3778
        %v3780 = vpop.f32.mrb[0].mxu0
        %3781 = vmatprep.mubr.bf16.mxu0 0
        %3782 = vmatmul.mubr.bf16.gmra.mrb[0].mxu0 %v3658
        %v3783 = vpop.f32.mrb[0].mxu0
        %v3784 = vadd.f32 0.0, %v3783
        %v3785 = vpop.f32.mrb[0].mxu0
        %v3786 = vpop.f32.mrb[0].mxu0
        %v3787 = vadd.f32 0.0, %v3786
        %v3788 = vpop.f32.mrb[0].mxu0
        %3789 = vmatprep.mubr.bf16.mxu0 0
        %3790 = vmatmul.mubr.bf16.gmra.mrb[0].mxu0 %v3661
        %v3791 = vpop.f32.mrb[0].mxu0
        %v3792 = vadd.f32 0.0, %v3791
        %v3793 = vpop.f32.mrb[0].mxu0
        %v3794 = vpop.f32.mrb[0].mxu0
        %v3795 = vadd.f32 0.0, %v3794
        %v3796 = vpop.f32.mrb[0].mxu0
        %3797 = vmatprep.mubr.bf16.mxu0 0
        %3798 = vmatmul.mubr.bf16.gmra.mrb[0].mxu0 %v3664
        %v3799 = vpop.f32.mrb[0].mxu0
        %v3800 = vadd.f32 0.0, %v3799
        %v3801 = vpop.f32.mrb[0].mxu0
        %v3802 = vpop.f32.mrb[0].mxu0
        %v3803 = vadd.f32 0.0, %v3802
        %v3804 = vpop.f32.mrb[0].mxu0
        %3805 = vmatprep.mubr.bf16.mxu0 0
        %3806 = vmatmul.mubr.bf16.gmra.mrb[0].mxu0 %v3667
        %v3807 = vpop.f32.mrb[0].mxu0
        %v3808 = vadd.f32 0.0, %v3807
        %v3809 = vpop.f32.mrb[0].mxu0
        %v3810 = vpop.f32.mrb[0].mxu0
        %v3811 = vadd.f32 0.0, %v3810
        %v3812 = vpop.f32.mrb[0].mxu0
        %3813 = vmatprep.mubr.bf16.mxu0 0
        %3814 = vmatmul.mubr.bf16.gmra.mrb[0].mxu0 %v3670
        %v3815 = vpop.f32.mrb[0].mxu0
        %v3816 = vadd.f32 0.0, %v3815
        %v3817 = vpop.f32.mrb[0].mxu0
        %v3818 = vpop.f32.mrb[0].mxu0
        %v3819 = vadd.f32 0.0, %v3818
        %v3820 = vpop.f32.mrb[0].mxu0
        %3821 = vmatprep.mubr.bf16.mxu0 0
        %3822 = vmatmul.mubr.bf16.gmra.mrb[0].mxu0 %v3673
        %v3823 = vpop.f32.mrb[0].mxu0
        %v3824 = vadd.f32 0.0, %v3823
        %v3825 = vpop.f32.mrb[0].mxu0
        %v3826 = vpop.f32.mrb[0].mxu0
        %v3827 = vadd.f32 0.0, %v3826
        %v3828 = vpop.f32.mrb[0].mxu0
        %3829 = vmatprep.mubr.bf16.mxu0 0
        %3830 = vmatmul.mubr.bf16.gmra.mrb[0].mxu0 %v3676
        %v3831 = vpop.f32.mrb[0].mxu0
        %v3832 = vadd.f32 0.0, %v3831
        %v3833 = vpop.f32.mrb[0].mxu0
        %v3834 = vpop.f32.mrb[0].mxu0
        %v3835 = vadd.f32 0.0, %v3834
        %v3836 = vpop.f32.mrb[0].mxu0
        %3837 = vmatprep.mubr.bf16.mxu0 0
        %3838 = vmatmul.mubr.bf16.gmra.mrb[0].mxu0 %v3679
        %v3839 = vpop.f32.mrb[0].mxu0
        %v3840 = vadd.f32 0.0, %v3839
        %v3841 = vpop.f32.mrb[0].mxu0
        %v3842 = vpop.f32.mrb[0].mxu0
        %v3843 = vadd.f32 0.0, %v3842
        %v3844 = vpop.f32.mrb[0].mxu0
        %3845 = vmatprep.mubr.bf16.mxu0 0
        %3846 = vmatmul.mubr.bf16.gmra.mrb[0].mxu0 %v3682
        %v3847 = vpop.f32.mrb[0].mxu0
        %v3848 = vadd.f32 0.0, %v3847
        %v3849 = vpop.f32.mrb[0].mxu0
        %v3850 = vpop.f32.mrb[0].mxu0
        %v3851 = vadd.f32 0.0, %v3850
        %v3852 = vpop.f32.mrb[0].mxu0
        %3853 = vmatprep.mubr.bf16.mxu0 0
        %3854 = vmatmul.mubr.bf16.gmra.mrb[0].mxu0 %v3685
        %v3855 = vpop.f32.mrb[0].mxu0
        %v3856 = vadd.f32 0.0, %v3855
        %v3857 = vpop.f32.mrb[0].mxu0
        %v3858 = vpop.f32.mrb[0].mxu0
        %v3859 = vadd.f32 0.0, %v3858
        %v3860 = vpop.f32.mrb[0].mxu0
        %3861 = vmatprep.mubr.bf16.mxu0 0
        %3862 = vmatmul.mubr.bf16.gmra.mrb[0].mxu0 %v3688
        %v3863 = vpop.f32.mrb[0].mxu0
        %v3864 = vadd.f32 0.0, %v3863
        %v3865 = vpop.f32.mrb[0].mxu0
        %v3866 = vpop.f32.mrb[0].mxu0
        %v3867 = vadd.f32 0.0, %v3866
        %v3868 = vpop.f32.mrb[0].mxu0
        %3869 = vdwg.mxu0
        %v3870 = vadd.f32 %v3556, %v3728
        %v3871 = vadd.f32 %v3557, %v3731
        %v3872 = vadd.f32 %v3558, %v3736
        %v3873 = vadd.f32 %v3559, %v3739
        %v3874 = vadd.f32 %v3560, %v3744
        %v3875 = vadd.f32 %v3561, %v3747
        %v3876 = vadd.f32 %v3562, %v3752
        %v3877 = vadd.f32 %v3563, %v3755
        %v3878 = vadd.f32 %v3564, %v3760
        %v3879 = vadd.f32 %v3565, %v3763
        %v3880 = vadd.f32 %v3566, %v3768
        %v3881 = vadd.f32 %v3567, %v3771
        %v3882 = vadd.f32 %v3568, %v3776
        %v3883 = vadd.f32 %v3569, %v3779
        %v3884 = vadd.f32 %v3570, %v3784
        %v3885 = vadd.f32 %v3571, %v3787
        %v3886 = vadd.f32 %v3572, %v3792
        %v3887 = vadd.f32 %v3573, %v3795
        %v3888 = vadd.f32 %v3574, %v3800
        %v3889 = vadd.f32 %v3575, %v3803
        %v3890 = vadd.f32 %v3576, %v3808
        %v3891 = vadd.f32 %v3577, %v3811
        %v3892 = vadd.f32 %v3578, %v3816
        %v3893 = vadd.f32 %v3579, %v3819
        %v3894 = vadd.f32 %v3580, %v3824
        %v3895 = vadd.f32 %v3581, %v3827
        %v3896 = vadd.f32 %v3582, %v3832
        %v3897 = vadd.f32 %v3583, %v3835
        %v3898 = vadd.f32 %v3584, %v3840
        %v3899 = vadd.f32 %v3585, %v3843
        %v3900 = vadd.f32 %v3586, %v3848
        %v3901 = vadd.f32 %v3587, %v3851
        %v3902 = vadd.f32 %v3588, %v3856
        %v3903 = vadd.f32 %v3589, %v3859
        %v3904 = vadd.f32 %v3590, %v3864
        %v3905 = vadd.f32 %v3591, %v3867
        %v3907 = vlaneseq
        %v3908 = vshrl.u32 %v3907, 7
        %v3909 = vsub.s32 0, %v3908
        %v3910 = vrot.slane %v415, %v3909
        %v3912 = vadd.f32 %v3870, %v3910
        %v3913 = vadd.f32 %v3871, %v3910
        %v3914 = vadd.f32 %v3872, %v3910
        %v3915 = vadd.f32 %v3873, %v3910
        %v3916 = vadd.f32 %v3874, %v3910
        %v3917 = vadd.f32 %v3875, %v3910
        %v3918 = vadd.f32 %v3876, %v3910
        %v3919 = vadd.f32 %v3877, %v3910
        %v3920 = vadd.f32 %v3878, %v3910
        %v3921 = vadd.f32 %v3879, %v3910
        %v3922 = vadd.f32 %v3880, %v3910
        %v3923 = vadd.f32 %v3881, %v3910
        %v3924 = vadd.f32 %v3882, %v3910
        %v3925 = vadd.f32 %v3883, %v3910
        %v3926 = vadd.f32 %v3884, %v3910
        %v3927 = vadd.f32 %v3885, %v3910
        %v3928 = vadd.f32 %v3886, %v3910
        %v3929 = vadd.f32 %v3887, %v3910
        %v3930 = vadd.f32 %v3888, %v3910
        %v3931 = vadd.f32 %v3889, %v3910
        %v3932 = vadd.f32 %v3890, %v3910
        %v3933 = vadd.f32 %v3891, %v3910
        %v3934 = vadd.f32 %v3892, %v3910
        %v3935 = vadd.f32 %v3893, %v3910
        %v3936 = vadd.f32 %v3894, %v3910
        %v3937 = vadd.f32 %v3895, %v3910
        %v3938 = vadd.f32 %v3896, %v3910
        %v3939 = vadd.f32 %v3897, %v3910
        %v3940 = vadd.f32 %v3898, %v3910
        %v3941 = vadd.f32 %v3899, %v3910
        %v3942 = vadd.f32 %v3900, %v3910
        %v3943 = vadd.f32 %v3901, %v3910
        %v3944 = vadd.f32 %v3902, %v3910
        %v3945 = vadd.f32 %v3903, %v3910
        %v3946 = vadd.f32 %v3904, %v3910
        %v3947 = vadd.f32 %v3905, %v3910
        %vm3948 = vcmp.gt.f32.partialorder %v3912, 0.0
        %vm3949 = vcmp.gt.f32.partialorder %v3913, 0.0
        %vm3950 = vcmp.gt.f32.partialorder %v3914, 0.0
        %vm3951 = vcmp.gt.f32.partialorder %v3915, 0.0
        %vm3952 = vcmp.gt.f32.partialorder %v3916, 0.0
        %vm3953 = vcmp.gt.f32.partialorder %v3917, 0.0
        %vm3954 = vcmp.gt.f32.partialorder %v3918, 0.0
        %vm3955 = vcmp.gt.f32.partialorder %v3919, 0.0
        %vm3956 = vcmp.gt.f32.partialorder %v3920, 0.0
        %vm3957 = vcmp.gt.f32.partialorder %v3921, 0.0
        %vm3958 = vcmp.gt.f32.partialorder %v3922, 0.0
        %vm3959 = vcmp.gt.f32.partialorder %v3923, 0.0
        %vm3960 = vcmp.gt.f32.partialorder %v3924, 0.0
        %vm3961 = vcmp.gt.f32.partialorder %v3925, 0.0
        %vm3962 = vcmp.gt.f32.partialorder %v3926, 0.0
        %vm3963 = vcmp.gt.f32.partialorder %v3927, 0.0
        %vm3964 = vcmp.gt.f32.partialorder %v3928, 0.0
        %vm3965 = vcmp.gt.f32.partialorder %v3929, 0.0
        %vm3966 = vcmp.gt.f32.partialorder %v3930, 0.0
        %vm3967 = vcmp.gt.f32.partialorder %v3931, 0.0
        %vm3968 = vcmp.gt.f32.partialorder %v3932, 0.0
        %vm3969 = vcmp.gt.f32.partialorder %v3933, 0.0
        %vm3970 = vcmp.gt.f32.partialorder %v3934, 0.0
        %vm3971 = vcmp.gt.f32.partialorder %v3935, 0.0
        %vm3972 = vcmp.gt.f32.partialorder %v3936, 0.0
        %vm3973 = vcmp.gt.f32.partialorder %v3937, 0.0
        %vm3974 = vcmp.gt.f32.partialorder %v3938, 0.0
        %vm3975 = vcmp.gt.f32.partialorder %v3939, 0.0
        %vm3976 = vcmp.gt.f32.partialorder %v3940, 0.0
        %vm3977 = vcmp.gt.f32.partialorder %v3941, 0.0
        %vm3978 = vcmp.gt.f32.partialorder %v3942, 0.0
        %vm3979 = vcmp.gt.f32.partialorder %v3943, 0.0
        %vm3980 = vcmp.gt.f32.partialorder %v3944, 0.0
        %vm3981 = vcmp.gt.f32.partialorder %v3945, 0.0
        %vm3982 = vcmp.gt.f32.partialorder %v3946, 0.0
        %vm3983 = vcmp.gt.f32.partialorder %v3947, 0.0
        %v3984 = vmin.f32 %v3912, 0.0
        %v3985 = vmin.f32 %v3913, 0.0
        %v3986 = vmin.f32 %v3914, 0.0
        %v3987 = vmin.f32 %v3915, 0.0
        %v3988 = vmin.f32 %v3916, 0.0
        %v3989 = vmin.f32 %v3917, 0.0
        %v3990 = vmin.f32 %v3918, 0.0
        %v3991 = vmin.f32 %v3919, 0.0
        %v3992 = vmin.f32 %v3920, 0.0
        %v3993 = vmin.f32 %v3921, 0.0
        %v3994 = vmin.f32 %v3922, 0.0
        %v3995 = vmin.f32 %v3923, 0.0
        %v3996 = vmin.f32 %v3924, 0.0
        %v3997 = vmin.f32 %v3925, 0.0
        %v3998 = vmin.f32 %v3926, 0.0
        %v3999 = vmin.f32 %v3927, 0.0
        %v4000 = vmin.f32 %v3928, 0.0
        %v4001 = vmin.f32 %v3929, 0.0
        %v4002 = vmin.f32 %v3930, 0.0
        %v4003 = vmin.f32 %v3931, 0.0
        %v4004 = vmin.f32 %v3932, 0.0
        %v4005 = vmin.f32 %v3933, 0.0
        %v4006 = vmin.f32 %v3934, 0.0
        %v4007 = vmin.f32 %v3935, 0.0
        %v4008 = vmin.f32 %v3936, 0.0
        %v4009 = vmin.f32 %v3937, 0.0
        %v4010 = vmin.f32 %v3938, 0.0
        %v4011 = vmin.f32 %v3939, 0.0
        %v4012 = vmin.f32 %v3940, 0.0
        %v4013 = vmin.f32 %v3941, 0.0
        %v4014 = vmin.f32 %v3942, 0.0
        %v4015 = vmin.f32 %v3943, 0.0
        %v4016 = vmin.f32 %v3944, 0.0
        %v4017 = vmin.f32 %v3945, 0.0
        %v4018 = vmin.f32 %v3946, 0.0
        %v4019 = vmin.f32 %v3947, 0.0
        %v4020 = vmul.f32 %v3984, 1.442695
        %v4021 = vpow.pop %v4020
        %v4022 = vmul.f32 %v3985, 1.442695
        %v4023 = vpow.pop %v4022
        %v4024 = vmul.f32 %v3986, 1.442695
        %v4025 = vpow.pop %v4024
        %v4026 = vmul.f32 %v3987, 1.442695
        %v4027 = vpow.pop %v4026
        %v4028 = vmul.f32 %v3988, 1.442695
        %v4029 = vpow.pop %v4028
        %v4030 = vmul.f32 %v3989, 1.442695
        %v4031 = vpow.pop %v4030
        %v4032 = vmul.f32 %v3990, 1.442695
        %v4033 = vpow.pop %v4032
        %v4034 = vmul.f32 %v3991, 1.442695
        %v4035 = vpow.pop %v4034
        %v4036 = vmul.f32 %v3992, 1.442695
        %v4037 = vpow.pop %v4036
        %v4038 = vmul.f32 %v3993, 1.442695
        %v4039 = vpow.pop %v4038
        %v4040 = vmul.f32 %v3994, 1.442695
        %v4041 = vpow.pop %v4040
        %v4042 = vmul.f32 %v3995, 1.442695
        %v4043 = vpow.pop %v4042
        %v4044 = vmul.f32 %v3996, 1.442695
        %v4045 = vpow.pop %v4044
        %v4046 = vmul.f32 %v3997, 1.442695
        %v4047 = vpow.pop %v4046
        %v4048 = vmul.f32 %v3998, 1.442695
        %v4049 = vpow.pop %v4048
        %v4050 = vmul.f32 %v3999, 1.442695
        %v4051 = vpow.pop %v4050
        %v4052 = vmul.f32 %v4000, 1.442695
        %v4053 = vpow.pop %v4052
        %v4054 = vmul.f32 %v4001, 1.442695
        %v4055 = vpow.pop %v4054
        %v4056 = vmul.f32 %v4002, 1.442695
        %v4057 = vpow.pop %v4056
        %v4058 = vmul.f32 %v4003, 1.442695
        %v4059 = vpow.pop %v4058
        %v4060 = vmul.f32 %v4004, 1.442695
        %v4061 = vpow.pop %v4060
        %v4062 = vmul.f32 %v4005, 1.442695
        %v4063 = vpow.pop %v4062
        %v4064 = vmul.f32 %v4006, 1.442695
        %v4065 = vpow.pop %v4064
        %v4066 = vmul.f32 %v4007, 1.442695
        %v4067 = vpow.pop %v4066
        %v4068 = vmul.f32 %v4008, 1.442695
        %v4069 = vpow.pop %v4068
        %v4070 = vmul.f32 %v4009, 1.442695
        %v4071 = vpow.pop %v4070
        %v4072 = vmul.f32 %v4010, 1.442695
        %v4073 = vpow.pop %v4072
        %v4074 = vmul.f32 %v4011, 1.442695
        %v4075 = vpow.pop %v4074
        %v4076 = vmul.f32 %v4012, 1.442695
        %v4077 = vpow.pop %v4076
        %v4078 = vmul.f32 %v4013, 1.442695
        %v4079 = vpow.pop %v4078
        %v4080 = vmul.f32 %v4014, 1.442695
        %v4081 = vpow.pop %v4080
        %v4082 = vmul.f32 %v4015, 1.442695
        %v4083 = vpow.pop %v4082
        %v4084 = vmul.f32 %v4016, 1.442695
        %v4085 = vpow.pop %v4084
        %v4086 = vmul.f32 %v4017, 1.442695
        %v4087 = vpow.pop %v4086
        %v4088 = vmul.f32 %v4018, 1.442695
        %v4089 = vpow.pop %v4088
        %v4090 = vmul.f32 %v4019, 1.442695
        %v4091 = vpow.pop %v4090
        %v4092 = vsub.f32 %v4021, 1.0
        %v4093 = vsub.f32 %v4023, 1.0
        %v4094 = vsub.f32 %v4025, 1.0
        %v4095 = vsub.f32 %v4027, 1.0
        %v4096 = vsub.f32 %v4029, 1.0
        %v4097 = vsub.f32 %v4031, 1.0
        %v4098 = vsub.f32 %v4033, 1.0
        %v4099 = vsub.f32 %v4035, 1.0
        %v4100 = vsub.f32 %v4037, 1.0
        %v4101 = vsub.f32 %v4039, 1.0
        %v4102 = vsub.f32 %v4041, 1.0
        %v4103 = vsub.f32 %v4043, 1.0
        %v4104 = vsub.f32 %v4045, 1.0
        %v4105 = vsub.f32 %v4047, 1.0
        %v4106 = vsub.f32 %v4049, 1.0
        %v4107 = vsub.f32 %v4051, 1.0
        %v4108 = vsub.f32 %v4053, 1.0
        %v4109 = vsub.f32 %v4055, 1.0
        %v4110 = vsub.f32 %v4057, 1.0
        %v4111 = vsub.f32 %v4059, 1.0
        %v4112 = vsub.f32 %v4061, 1.0
        %v4113 = vsub.f32 %v4063, 1.0
        %v4114 = vsub.f32 %v4065, 1.0
        %v4115 = vsub.f32 %v4067, 1.0
        %v4116 = vsub.f32 %v4069, 1.0
        %v4117 = vsub.f32 %v4071, 1.0
        %v4118 = vsub.f32 %v4073, 1.0
        %v4119 = vsub.f32 %v4075, 1.0
        %v4120 = vsub.f32 %v4077, 1.0
        %v4121 = vsub.f32 %v4079, 1.0
        %v4122 = vsub.f32 %v4081, 1.0
        %v4123 = vsub.f32 %v4083, 1.0
        %v4124 = vsub.f32 %v4085, 1.0
        %v4125 = vsub.f32 %v4087, 1.0
        %v4126 = vsub.f32 %v4089, 1.0
        %v4127 = vsub.f32 %v4091, 1.0
        %v4128 = vsel %vm3948, %v3912, %v4092
        %v4129 = vsel %vm3949, %v3913, %v4093
        %v4130 = vsel %vm3950, %v3914, %v4094
        %v4131 = vsel %vm3951, %v3915, %v4095
        %v4132 = vsel %vm3952, %v3916, %v4096
        %v4133 = vsel %vm3953, %v3917, %v4097
        %v4134 = vsel %vm3954, %v3918, %v4098
        %v4135 = vsel %vm3955, %v3919, %v4099
        %v4136 = vsel %vm3956, %v3920, %v4100
        %v4137 = vsel %vm3957, %v3921, %v4101
        %v4138 = vsel %vm3958, %v3922, %v4102
        %v4139 = vsel %vm3959, %v3923, %v4103
        %v4140 = vsel %vm3960, %v3924, %v4104
        %v4141 = vsel %vm3961, %v3925, %v4105
        %v4142 = vsel %vm3962, %v3926, %v4106
        %v4143 = vsel %vm3963, %v3927, %v4107
        %v4144 = vsel %vm3964, %v3928, %v4108
        %v4145 = vsel %vm3965, %v3929, %v4109
        %v4146 = vsel %vm3966, %v3930, %v4110
        %v4147 = vsel %vm3967, %v3931, %v4111
        %v4148 = vsel %vm3968, %v3932, %v4112
        %v4149 = vsel %vm3969, %v3933, %v4113
        %v4150 = vsel %vm3970, %v3934, %v4114
        %v4151 = vsel %vm3971, %v3935, %v4115
        %v4152 = vsel %vm3972, %v3936, %v4116
        %v4153 = vsel %vm3973, %v3937, %v4117
        %v4154 = vsel %vm3974, %v3938, %v4118
        %v4155 = vsel %vm3975, %v3939, %v4119
        %v4156 = vsel %vm3976, %v3940, %v4120
        %v4157 = vsel %vm3977, %v3941, %v4121
        %v4158 = vsel %vm3978, %v3942, %v4122
        %v4159 = vsel %vm3979, %v3943, %v4123
        %v4160 = vsel %vm3980, %v3944, %v4124
        %v4161 = vsel %vm3981, %v3945, %v4125
        %v4162 = vsel %vm3982, %v3946, %v4126
        %v4163 = vsel %vm3983, %v3947, %v4127
        %v4164 = vpack.c.bf16 %v4129, %v4128
        %v4165 = vpack.c.bf16 %v4131, %v4130
        %v4166 = vpack.c.bf16 %v4133, %v4132
        %v4167 = vpack.c.bf16 %v4135, %v4134
        %v4168 = vpack.c.bf16 %v4137, %v4136
        %v4169 = vpack.c.bf16 %v4139, %v4138
        %v4170 = vpack.c.bf16 %v4141, %v4140
        %v4171 = vpack.c.bf16 %v4143, %v4142
        %v4172 = vpack.c.bf16 %v4145, %v4144
        %v4173 = vpack.c.bf16 %v4147, %v4146
        %v4174 = vpack.c.bf16 %v4149, %v4148
        %v4175 = vpack.c.bf16 %v4151, %v4150
        %v4176 = vpack.c.bf16 %v4153, %v4152
        %v4177 = vpack.c.bf16 %v4155, %v4154
        %v4178 = vpack.c.bf16 %v4157, %v4156
        %v4179 = vpack.c.bf16 %v4159, %v4158
        %v4180 = vpack.c.bf16 %v4161, %v4160
        %v4181 = vpack.c.bf16 %v4163, %v4162
        %v4182 = vld [vmem:[%s6] sm:$0xf]
        %v4183 = vld [vmem:[%s6 + $0x4] sm:$0xf]
        %v4184 = vld [vmem:[%s6 + $0x8] sm:$0xf]
        %v4185 = vld [vmem:[%s6 + $0xc] sm:$0xf]
        %v4187 = vlaneseq
        %v4188 = vshrl.u32 %v4187, 7
        %v4189 = vsub.s32 0, %v4188
        %v4190 = vrot.slane %v416, %v4189
        %v4196 = vunpack.c.l.b16 %v4182
        %v4197 = vunpack.c.l.b16 %v4183
        %v4198 = vunpack.c.l.b16 %v4184
        %v4199 = vunpack.c.l.b16 %v4185
        %v4200 = vpack.c.b16 %v4197, %v4196
        %v4201 = vpack.c.b16 %v4199, %v4198
        %vm4204 = vcmask 261120
        %v4206 = vsel %vm4204, %v4164, 0
        %v4209 = vsel %vm4204, %v4165, 0
        %v4212 = vsel %vm4204, %v4166, 0
        %v4215 = vsel %vm4204, %v4167, 0
        %v4218 = vsel %vm4204, %v4168, 0
        %v4221 = vsel %vm4204, %v4169, 0
        %v4224 = vsel %vm4204, %v4170, 0
        %v4227 = vsel %vm4204, %v4171, 0
        %v4230 = vsel %vm4204, %v4172, 0
        %v4233 = vsel %vm4204, %v4173, 0
        %v4236 = vsel %vm4204, %v4174, 0
        %v4239 = vsel %vm4204, %v4175, 0
        %v4242 = vsel %vm4204, %v4176, 0
        %v4245 = vsel %vm4204, %v4177, 0
        %v4248 = vsel %vm4204, %v4178, 0
        %v4251 = vsel %vm4204, %v4179, 0
        %v4254 = vsel %vm4204, %v4180, 0
        %v4257 = vsel %vm4204, %v4181, 0
        %4259 = vmatprep.subr.bf16.mxu0 0
        %4260 = vmatpush1.bf16.msra.mxu0 %v4200
        %4261 = vmatprep.subr.bf16.mxu0 0
        %4262 = vmatpush1.bf16.msra.mxu0 %v4201
        %4263 = vmatprep.subr.bf16.mxu0 0
        %4264 = vmatpush1.bf16.msra.mxu0 0
        %4265 = vmatprep.subr.bf16.mxu0 0
        %4266 = vmatpush1.bf16.msra.mxu0 0
        %4267 = vmatprep.subr.bf16.mxu0 0
        %4268 = vmatpush1.bf16.msra.mxu0 0
        %4269 = vmatprep.subr.bf16.mxu0 0
        %4270 = vmatpush1.bf16.msra.mxu0 0
        %4271 = vmatprep.subr.bf16.mxu0 0
        %4272 = vmatpush1.bf16.msra.mxu0 0
        %4273 = vmatprep.subr.bf16.mxu0 0
        %4274 = vmatpush1.bf16.msra.mxu0 0
        %4275 = vmatprep.subr.bf16.mxu0 0
        %4276 = vmatpush1.bf16.msra.mxu0 0
        %4277 = vmatprep.subr.bf16.mxu0 0
        %4278 = vmatpush1.bf16.msra.mxu0 0
        %4279 = vmatprep.subr.bf16.mxu0 0
        %4280 = vmatpush1.bf16.msra.mxu0 0
        %4281 = vmatprep.subr.bf16.mxu0 0
        %4282 = vmatpush1.bf16.msra.mxu0 0
        %4283 = vmatprep.subr.bf16.mxu0 0
        %4284 = vmatpush1.bf16.msra.mxu0 0
        %4285 = vmatprep.subr.bf16.mxu0 0
        %4286 = vmatpush1.bf16.msra.mxu0 0
        %4287 = vmatprep.subr.bf16.mxu0 0
        %4288 = vmatpush1.bf16.msra.mxu0 0
        %4289 = vmatprep.subr.bf16.mxu0 0
        %4290 = vmatpush1.bf16.msra.mxu0 0
        %4291 = vmatprep.mubr.bf16.mxu0 0
        %4292 = vmatmul.mubr.bf16.gmra.mrb[0].mxu0 %v4206
        %v4293 = vpop.f32.mrb[0].mxu0
        %v4294 = vadd.f32 %v4190, %v4293
        %v4295 = vpop.f32.mrb[0].mxu0
        %v4296 = vpop.f32.mrb[0].mxu0
        %v4297 = vadd.f32 %v4190, %v4296
        %v4298 = vpop.f32.mrb[0].mxu0
        %4299 = vmatprep.mubr.bf16.mxu0 0
        %4300 = vmatmul.mubr.bf16.gmra.mrb[0].mxu0 %v4209
        %v4301 = vpop.f32.mrb[0].mxu0
        %v4302 = vadd.f32 %v4190, %v4301
        %v4303 = vpop.f32.mrb[0].mxu0
        %v4304 = vpop.f32.mrb[0].mxu0
        %v4305 = vadd.f32 %v4190, %v4304
        %v4306 = vpop.f32.mrb[0].mxu0
        %4307 = vmatprep.mubr.bf16.mxu0 0
        %4308 = vmatmul.mubr.bf16.gmra.mrb[0].mxu0 %v4212
        %v4309 = vpop.f32.mrb[0].mxu0
        %v4310 = vadd.f32 %v4190, %v4309
        %v4311 = vpop.f32.mrb[0].mxu0
        %v4312 = vpop.f32.mrb[0].mxu0
        %v4313 = vadd.f32 %v4190, %v4312
        %v4314 = vpop.f32.mrb[0].mxu0
        %4315 = vmatprep.mubr.bf16.mxu0 0
        %4316 = vmatmul.mubr.bf16.gmra.mrb[0].mxu0 %v4215
        %v4317 = vpop.f32.mrb[0].mxu0
        %v4318 = vadd.f32 %v4190, %v4317
        %v4319 = vpop.f32.mrb[0].mxu0
        %v4320 = vpop.f32.mrb[0].mxu0
        %v4321 = vadd.f32 %v4190, %v4320
        %v4322 = vpop.f32.mrb[0].mxu0
        %4323 = vmatprep.mubr.bf16.mxu0 0
        %4324 = vmatmul.mubr.bf16.gmra.mrb[0].mxu0 %v4218
        %v4325 = vpop.f32.mrb[0].mxu0
        %v4326 = vadd.f32 %v4190, %v4325
        %v4327 = vpop.f32.mrb[0].mxu0
        %v4328 = vpop.f32.mrb[0].mxu0
        %v4329 = vadd.f32 %v4190, %v4328
        %v4330 = vpop.f32.mrb[0].mxu0
        %4331 = vmatprep.mubr.bf16.mxu0 0
        %4332 = vmatmul.mubr.bf16.gmra.mrb[0].mxu0 %v4221
        %v4333 = vpop.f32.mrb[0].mxu0
        %v4334 = vadd.f32 %v4190, %v4333
        %v4335 = vpop.f32.mrb[0].mxu0
        %v4336 = vpop.f32.mrb[0].mxu0
        %v4337 = vadd.f32 %v4190, %v4336
        %v4338 = vpop.f32.mrb[0].mxu0
        %4339 = vmatprep.mubr.bf16.mxu0 0
        %4340 = vmatmul.mubr.bf16.gmra.mrb[0].mxu0 %v4224
        %v4341 = vpop.f32.mrb[0].mxu0
        %v4342 = vadd.f32 %v4190, %v4341
        %v4343 = vpop.f32.mrb[0].mxu0
        %v4344 = vpop.f32.mrb[0].mxu0
        %v4345 = vadd.f32 %v4190, %v4344
        %v4346 = vpop.f32.mrb[0].mxu0
        %4347 = vmatprep.mubr.bf16.mxu0 0
        %4348 = vmatmul.mubr.bf16.gmra.mrb[0].mxu0 %v4227
        %v4349 = vpop.f32.mrb[0].mxu0
        %v4350 = vadd.f32 %v4190, %v4349
        %v4351 = vpop.f32.mrb[0].mxu0
        %v4352 = vpop.f32.mrb[0].mxu0
        %v4353 = vadd.f32 %v4190, %v4352
        %v4354 = vpop.f32.mrb[0].mxu0
        %4355 = vmatprep.mubr.bf16.mxu0 0
        %4356 = vmatmul.mubr.bf16.gmra.mrb[0].mxu0 %v4230
        %v4357 = vpop.f32.mrb[0].mxu0
        %v4358 = vadd.f32 %v4190, %v4357
        %v4359 = vpop.f32.mrb[0].mxu0
        %v4360 = vpop.f32.mrb[0].mxu0
        %v4361 = vadd.f32 %v4190, %v4360
        %v4362 = vpop.f32.mrb[0].mxu0
        %4363 = vmatprep.mubr.bf16.mxu0 0
        %4364 = vmatmul.mubr.bf16.gmra.mrb[0].mxu0 %v4233
        %v4365 = vpop.f32.mrb[0].mxu0
        %v4366 = vadd.f32 %v4190, %v4365
        %v4367 = vpop.f32.mrb[0].mxu0
        %v4368 = vpop.f32.mrb[0].mxu0
        %v4369 = vadd.f32 %v4190, %v4368
        %v4370 = vpop.f32.mrb[0].mxu0
        %4371 = vmatprep.mubr.bf16.mxu0 0
        %4372 = vmatmul.mubr.bf16.gmra.mrb[0].mxu0 %v4236
        %v4373 = vpop.f32.mrb[0].mxu0
        %v4374 = vadd.f32 %v4190, %v4373
        %v4375 = vpop.f32.mrb[0].mxu0
        %v4376 = vpop.f32.mrb[0].mxu0
        %v4377 = vadd.f32 %v4190, %v4376
        %v4378 = vpop.f32.mrb[0].mxu0
        %4379 = vmatprep.mubr.bf16.mxu0 0
        %4380 = vmatmul.mubr.bf16.gmra.mrb[0].mxu0 %v4239
        %v4381 = vpop.f32.mrb[0].mxu0
        %v4382 = vadd.f32 %v4190, %v4381
        %v4383 = vpop.f32.mrb[0].mxu0
        %v4384 = vpop.f32.mrb[0].mxu0
        %v4385 = vadd.f32 %v4190, %v4384
        %v4386 = vpop.f32.mrb[0].mxu0
        %4387 = vmatprep.mubr.bf16.mxu0 0
        %4388 = vmatmul.mubr.bf16.gmra.mrb[0].mxu0 %v4242
        %v4389 = vpop.f32.mrb[0].mxu0
        %v4390 = vadd.f32 %v4190, %v4389
        %v4391 = vpop.f32.mrb[0].mxu0
        %v4392 = vpop.f32.mrb[0].mxu0
        %v4393 = vadd.f32 %v4190, %v4392
        %v4394 = vpop.f32.mrb[0].mxu0
        %4395 = vmatprep.mubr.bf16.mxu0 0
        %4396 = vmatmul.mubr.bf16.gmra.mrb[0].mxu0 %v4245
        %v4397 = vpop.f32.mrb[0].mxu0
        %v4398 = vadd.f32 %v4190, %v4397
        %v4399 = vpop.f32.mrb[0].mxu0
        %v4400 = vpop.f32.mrb[0].mxu0
        %v4401 = vadd.f32 %v4190, %v4400
        %v4402 = vpop.f32.mrb[0].mxu0
        %4403 = vmatprep.mubr.bf16.mxu0 0
        %4404 = vmatmul.mubr.bf16.gmra.mrb[0].mxu0 %v4248
        %v4405 = vpop.f32.mrb[0].mxu0
        %v4406 = vadd.f32 %v4190, %v4405
        %v4407 = vpop.f32.mrb[0].mxu0
        %v4408 = vpop.f32.mrb[0].mxu0
        %v4409 = vadd.f32 %v4190, %v4408
        %v4410 = vpop.f32.mrb[0].mxu0
        %4411 = vmatprep.mubr.bf16.mxu0 0
        %4412 = vmatmul.mubr.bf16.gmra.mrb[0].mxu0 %v4251
        %v4413 = vpop.f32.mrb[0].mxu0
        %v4414 = vadd.f32 %v4190, %v4413
        %v4415 = vpop.f32.mrb[0].mxu0
        %v4416 = vpop.f32.mrb[0].mxu0
        %v4417 = vadd.f32 %v4190, %v4416
        %v4418 = vpop.f32.mrb[0].mxu0
        %4419 = vmatprep.mubr.bf16.mxu0 0
        %4420 = vmatmul.mubr.bf16.gmra.mrb[0].mxu0 %v4254
        %v4421 = vpop.f32.mrb[0].mxu0
        %v4422 = vadd.f32 %v4190, %v4421
        %v4423 = vpop.f32.mrb[0].mxu0
        %v4424 = vpop.f32.mrb[0].mxu0
        %v4425 = vadd.f32 %v4190, %v4424
        %v4426 = vpop.f32.mrb[0].mxu0
        %4427 = vmatprep.mubr.bf16.mxu0 0
        %4428 = vmatmul.mubr.bf16.gmra.mrb[0].mxu0 %v4257
        %v4429 = vpop.f32.mrb[0].mxu0
        %v4430 = vadd.f32 %v4190, %v4429
        %v4431 = vpop.f32.mrb[0].mxu0
        %v4432 = vpop.f32.mrb[0].mxu0
        %v4433 = vadd.f32 %v4190, %v4432
        %v4434 = vpop.f32.mrb[0].mxu0
        %4435 = vdwg.mxu0
        %vm4436 = vcmp.gt.f32.partialorder %v4294, 0.0
        %vm4437 = vcmp.gt.f32.partialorder %v4297, 0.0
        %vm4438 = vcmp.gt.f32.partialorder %v4302, 0.0
        %vm4439 = vcmp.gt.f32.partialorder %v4305, 0.0
        %vm4440 = vcmp.gt.f32.partialorder %v4310, 0.0
        %vm4441 = vcmp.gt.f32.partialorder %v4313, 0.0
        %vm4442 = vcmp.gt.f32.partialorder %v4318, 0.0
        %vm4443 = vcmp.gt.f32.partialorder %v4321, 0.0
        %vm4444 = vcmp.gt.f32.partialorder %v4326, 0.0
        %vm4445 = vcmp.gt.f32.partialorder %v4329, 0.0
        %vm4446 = vcmp.gt.f32.partialorder %v4334, 0.0
        %vm4447 = vcmp.gt.f32.partialorder %v4337, 0.0
        %vm4448 = vcmp.gt.f32.partialorder %v4342, 0.0
        %vm4449 = vcmp.gt.f32.partialorder %v4345, 0.0
        %vm4450 = vcmp.gt.f32.partialorder %v4350, 0.0
        %vm4451 = vcmp.gt.f32.partialorder %v4353, 0.0
        %vm4452 = vcmp.gt.f32.partialorder %v4358, 0.0
        %vm4453 = vcmp.gt.f32.partialorder %v4361, 0.0
        %vm4454 = vcmp.gt.f32.partialorder %v4366, 0.0
        %vm4455 = vcmp.gt.f32.partialorder %v4369, 0.0
        %vm4456 = vcmp.gt.f32.partialorder %v4374, 0.0
        %vm4457 = vcmp.gt.f32.partialorder %v4377, 0.0
        %vm4458 = vcmp.gt.f32.partialorder %v4382, 0.0
        %vm4459 = vcmp.gt.f32.partialorder %v4385, 0.0
        %vm4460 = vcmp.gt.f32.partialorder %v4390, 0.0
        %vm4461 = vcmp.gt.f32.partialorder %v4393, 0.0
        %vm4462 = vcmp.gt.f32.partialorder %v4398, 0.0
        %vm4463 = vcmp.gt.f32.partialorder %v4401, 0.0
        %vm4464 = vcmp.gt.f32.partialorder %v4406, 0.0
        %vm4465 = vcmp.gt.f32.partialorder %v4409, 0.0
        %vm4466 = vcmp.gt.f32.partialorder %v4414, 0.0
        %vm4467 = vcmp.gt.f32.partialorder %v4417, 0.0
        %vm4468 = vcmp.gt.f32.partialorder %v4422, 0.0
        %vm4469 = vcmp.gt.f32.partialorder %v4425, 0.0
        %vm4470 = vcmp.gt.f32.partialorder %v4430, 0.0
        %vm4471 = vcmp.gt.f32.partialorder %v4433, 0.0
        %v4472 = vmin.f32 %v4294, 0.0
        %v4473 = vmin.f32 %v4297, 0.0
        %v4474 = vmin.f32 %v4302, 0.0
        %v4475 = vmin.f32 %v4305, 0.0
        %v4476 = vmin.f32 %v4310, 0.0
        %v4477 = vmin.f32 %v4313, 0.0
        %v4478 = vmin.f32 %v4318, 0.0
        %v4479 = vmin.f32 %v4321, 0.0
        %v4480 = vmin.f32 %v4326, 0.0
        %v4481 = vmin.f32 %v4329, 0.0
        %v4482 = vmin.f32 %v4334, 0.0
        %v4483 = vmin.f32 %v4337, 0.0
        %v4484 = vmin.f32 %v4342, 0.0
        %v4485 = vmin.f32 %v4345, 0.0
        %v4486 = vmin.f32 %v4350, 0.0
        %v4487 = vmin.f32 %v4353, 0.0
        %v4488 = vmin.f32 %v4358, 0.0
        %v4489 = vmin.f32 %v4361, 0.0
        %v4490 = vmin.f32 %v4366, 0.0
        %v4491 = vmin.f32 %v4369, 0.0
        %v4492 = vmin.f32 %v4374, 0.0
        %v4493 = vmin.f32 %v4377, 0.0
        %v4494 = vmin.f32 %v4382, 0.0
        %v4495 = vmin.f32 %v4385, 0.0
        %v4496 = vmin.f32 %v4390, 0.0
        %v4497 = vmin.f32 %v4393, 0.0
        %v4498 = vmin.f32 %v4398, 0.0
        %v4499 = vmin.f32 %v4401, 0.0
        %v4500 = vmin.f32 %v4406, 0.0
        %v4501 = vmin.f32 %v4409, 0.0
        %v4502 = vmin.f32 %v4414, 0.0
        %v4503 = vmin.f32 %v4417, 0.0
        %v4504 = vmin.f32 %v4422, 0.0
        %v4505 = vmin.f32 %v4425, 0.0
        %v4506 = vmin.f32 %v4430, 0.0
        %v4507 = vmin.f32 %v4433, 0.0
        %v4508 = vmul.f32 %v4472, 1.442695
        %v4509 = vpow.pop %v4508
        %v4510 = vmul.f32 %v4473, 1.442695
        %v4511 = vpow.pop %v4510
        %v4512 = vmul.f32 %v4474, 1.442695
        %v4513 = vpow.pop %v4512
        %v4514 = vmul.f32 %v4475, 1.442695
        %v4515 = vpow.pop %v4514
        %v4516 = vmul.f32 %v4476, 1.442695
        %v4517 = vpow.pop %v4516
        %v4518 = vmul.f32 %v4477, 1.442695
        %v4519 = vpow.pop %v4518
        %v4520 = vmul.f32 %v4478, 1.442695
        %v4521 = vpow.pop %v4520
        %v4522 = vmul.f32 %v4479, 1.442695
        %v4523 = vpow.pop %v4522
        %v4524 = vmul.f32 %v4480, 1.442695
        %v4525 = vpow.pop %v4524
        %v4526 = vmul.f32 %v4481, 1.442695
        %v4527 = vpow.pop %v4526
        %v4528 = vmul.f32 %v4482, 1.442695
        %v4529 = vpow.pop %v4528
        %v4530 = vmul.f32 %v4483, 1.442695
        %v4531 = vpow.pop %v4530
        %v4532 = vmul.f32 %v4484, 1.442695
        %v4533 = vpow.pop %v4532
        %v4534 = vmul.f32 %v4485, 1.442695
        %v4535 = vpow.pop %v4534
        %v4536 = vmul.f32 %v4486, 1.442695
        %v4537 = vpow.pop %v4536
        %v4538 = vmul.f32 %v4487, 1.442695
        %v4539 = vpow.pop %v4538
        %v4540 = vmul.f32 %v4488, 1.442695
        %v4541 = vpow.pop %v4540
        %v4542 = vmul.f32 %v4489, 1.442695
        %v4543 = vpow.pop %v4542
        %v4544 = vmul.f32 %v4490, 1.442695
        %v4545 = vpow.pop %v4544
        %v4546 = vmul.f32 %v4491, 1.442695
        %v4547 = vpow.pop %v4546
        %v4548 = vmul.f32 %v4492, 1.442695
        %v4549 = vpow.pop %v4548
        %v4550 = vmul.f32 %v4493, 1.442695
        %v4551 = vpow.pop %v4550
        %v4552 = vmul.f32 %v4494, 1.442695
        %v4553 = vpow.pop %v4552
        %v4554 = vmul.f32 %v4495, 1.442695
        %v4555 = vpow.pop %v4554
        %v4556 = vmul.f32 %v4496, 1.442695
        %v4557 = vpow.pop %v4556
        %v4558 = vmul.f32 %v4497, 1.442695
        %v4559 = vpow.pop %v4558
        %v4560 = vmul.f32 %v4498, 1.442695
        %v4561 = vpow.pop %v4560
        %v4562 = vmul.f32 %v4499, 1.442695
        %v4563 = vpow.pop %v4562
        %v4564 = vmul.f32 %v4500, 1.442695
        %v4565 = vpow.pop %v4564
        %v4566 = vmul.f32 %v4501, 1.442695
        %v4567 = vpow.pop %v4566
        %v4568 = vmul.f32 %v4502, 1.442695
        %v4569 = vpow.pop %v4568
        %v4570 = vmul.f32 %v4503, 1.442695
        %v4571 = vpow.pop %v4570
        %v4572 = vmul.f32 %v4504, 1.442695
        %v4573 = vpow.pop %v4572
        %v4574 = vmul.f32 %v4505, 1.442695
        %v4575 = vpow.pop %v4574
        %v4576 = vmul.f32 %v4506, 1.442695
        %v4577 = vpow.pop %v4576
        %v4578 = vmul.f32 %v4507, 1.442695
        %v4579 = vpow.pop %v4578
        %v4580 = vsub.f32 %v4509, 1.0
        %v4581 = vsub.f32 %v4511, 1.0
        %v4582 = vsub.f32 %v4513, 1.0
        %v4583 = vsub.f32 %v4515, 1.0
        %v4584 = vsub.f32 %v4517, 1.0
        %v4585 = vsub.f32 %v4519, 1.0
        %v4586 = vsub.f32 %v4521, 1.0
        %v4587 = vsub.f32 %v4523, 1.0
        %v4588 = vsub.f32 %v4525, 1.0
        %v4589 = vsub.f32 %v4527, 1.0
        %v4590 = vsub.f32 %v4529, 1.0
        %v4591 = vsub.f32 %v4531, 1.0
        %v4592 = vsub.f32 %v4533, 1.0
        %v4593 = vsub.f32 %v4535, 1.0
        %v4594 = vsub.f32 %v4537, 1.0
        %v4595 = vsub.f32 %v4539, 1.0
        %v4596 = vsub.f32 %v4541, 1.0
        %v4597 = vsub.f32 %v4543, 1.0
        %v4598 = vsub.f32 %v4545, 1.0
        %v4599 = vsub.f32 %v4547, 1.0
        %v4600 = vsub.f32 %v4549, 1.0
        %v4601 = vsub.f32 %v4551, 1.0
        %v4602 = vsub.f32 %v4553, 1.0
        %v4603 = vsub.f32 %v4555, 1.0
        %v4604 = vsub.f32 %v4557, 1.0
        %v4605 = vsub.f32 %v4559, 1.0
        %v4606 = vsub.f32 %v4561, 1.0
        %v4607 = vsub.f32 %v4563, 1.0
        %v4608 = vsub.f32 %v4565, 1.0
        %v4609 = vsub.f32 %v4567, 1.0
        %v4610 = vsub.f32 %v4569, 1.0
        %v4611 = vsub.f32 %v4571, 1.0
        %v4612 = vsub.f32 %v4573, 1.0
        %v4613 = vsub.f32 %v4575, 1.0
        %v4614 = vsub.f32 %v4577, 1.0
        %v4615 = vsub.f32 %v4579, 1.0
        %v4616 = vsel %vm4436, %v4294, %v4580
        %v4617 = vsel %vm4437, %v4297, %v4581
        %v4618 = vsel %vm4438, %v4302, %v4582
        %v4619 = vsel %vm4439, %v4305, %v4583
        %v4620 = vsel %vm4440, %v4310, %v4584
        %v4621 = vsel %vm4441, %v4313, %v4585
        %v4622 = vsel %vm4442, %v4318, %v4586
        %v4623 = vsel %vm4443, %v4321, %v4587
        %v4624 = vsel %vm4444, %v4326, %v4588
        %v4625 = vsel %vm4445, %v4329, %v4589
        %v4626 = vsel %vm4446, %v4334, %v4590
        %v4627 = vsel %vm4447, %v4337, %v4591
        %v4628 = vsel %vm4448, %v4342, %v4592
        %v4629 = vsel %vm4449, %v4345, %v4593
        %v4630 = vsel %vm4450, %v4350, %v4594
        %v4631 = vsel %vm4451, %v4353, %v4595
        %v4632 = vsel %vm4452, %v4358, %v4596
        %v4633 = vsel %vm4453, %v4361, %v4597
        %v4634 = vsel %vm4454, %v4366, %v4598
        %v4635 = vsel %vm4455, %v4369, %v4599
        %v4636 = vsel %vm4456, %v4374, %v4600
        %v4637 = vsel %vm4457, %v4377, %v4601
        %v4638 = vsel %vm4458, %v4382, %v4602
        %v4639 = vsel %vm4459, %v4385, %v4603
        %v4640 = vsel %vm4460, %v4390, %v4604
        %v4641 = vsel %vm4461, %v4393, %v4605
        %v4642 = vsel %vm4462, %v4398, %v4606
        %v4643 = vsel %vm4463, %v4401, %v4607
        %v4644 = vsel %vm4464, %v4406, %v4608
        %v4645 = vsel %vm4465, %v4409, %v4609
        %v4646 = vsel %vm4466, %v4414, %v4610
        %v4647 = vsel %vm4467, %v4417, %v4611
        %v4648 = vsel %vm4468, %v4422, %v4612
        %v4649 = vsel %vm4469, %v4425, %v4613
        %v4650 = vsel %vm4470, %v4430, %v4614
        %v4651 = vsel %vm4471, %v4433, %v4615
        %vm4652 = vcmask 257024
        %4653 = vst.msk [vmem:[#allocation2] sm:$0xf] %vm4652, 0
        %4654 = vst.msk [vmem:[#allocation2 + $0x4] sm:$0xf] %vm4652, 0
        %vm4655 = vcmask 254976
        %vm4656 = vsmask.f32 1280
        %vm4657 = vmand %vm4655, %vm4656
        %v4658 = vld [vmem:[#allocation2 + $0x8] sm:$0x3]
        %v4659 = vsel %vm4657, 0, %v4658
        %4660 = vst [vmem:[#allocation2 + $0x8] sm:$0x3] %v4659
        %vm4661 = vcmask 257025
        %vm4662 = vsmask.f32 7942
        %vm4663 = vmand %vm4661, %vm4662
        %v4664 = vld [vmem:[#allocation2 + $0x98] sm:$0xe]
        %v4665 = vsel %vm4663, 0, %v4664
        %4666 = vst [vmem:[#allocation2 + $0x98] sm:$0xe] %v4665
        %4667 = vst.msk [vmem:[#allocation2 + $0x9c] sm:$0xf] %vm4652, 0
        %vm4668 = vcmask 256000
        %4669 = vst.msk [vmem:[#allocation2 + $0xa0] sm:$0x7] %vm4668, 0
        %4671 = vset.pattern.permute.xlu0 0
        %4672 = vperm.xlu0 %4671, %v418
        %v4673 = vpop.permute.xlu0 %4672
        %4676 = vset.pattern.permute.xlu0 0
        %4677 = vperm.xlu0 %4676, %v419
        %v4678 = vpop.permute.xlu0 %4677
        %4681 = vset.pattern.permute.xlu0 0
        %4682 = vperm.xlu0 %4681, %v420
        %v4683 = vpop.permute.xlu0 %4682
        %4686 = vset.pattern.permute.xlu0 0
        %4687 = vperm.xlu0 %4686, %v421
        %v4688 = vpop.permute.xlu0 %4687
        %4691 = vset.pattern.permute.xlu0 0
        %4692 = vperm.xlu0 %4691, %v422
        %v4693 = vpop.permute.xlu0 %4692
        %4696 = vset.pattern.permute.xlu0 0
        %4697 = vperm.xlu0 %4696, %v423
        %v4698 = vpop.permute.xlu0 %4697
        %4701 = vset.pattern.permute.xlu0 0
        %4702 = vperm.xlu0 %4701, %v424
        %v4703 = vpop.permute.xlu0 %4702
        %4706 = vset.pattern.permute.xlu0 0
        %4707 = vperm.xlu0 %4706, %v425
        %v4708 = vpop.permute.xlu0 %4707
        %4711 = vset.pattern.permute.xlu0 0
        %4712 = vperm.xlu0 %4711, %v426
        %v4713 = vpop.permute.xlu0 %4712
        %4716 = vset.pattern.permute.xlu0 0
        %4717 = vperm.xlu0 %4716, %v427
        %v4718 = vpop.permute.xlu0 %4717
        %4721 = vset.pattern.permute.xlu0 0
        %4722 = vperm.xlu0 %4721, %v428
        %v4723 = vpop.permute.xlu0 %4722
        %4726 = vset.pattern.permute.xlu0 0
        %4727 = vperm.xlu0 %4726, %v429
        %v4728 = vpop.permute.xlu0 %4727
        %4731 = vset.pattern.permute.xlu0 0
        %4732 = vperm.xlu0 %4731, %v430
        %v4733 = vpop.permute.xlu0 %4732
        %4736 = vset.pattern.permute.xlu0 0
        %4737 = vperm.xlu0 %4736, %v431
        %v4738 = vpop.permute.xlu0 %4737
        %4741 = vset.pattern.permute.xlu0 0
        %4742 = vperm.xlu0 %4741, %v432
        %v4743 = vpop.permute.xlu0 %4742
        %4746 = vset.pattern.permute.xlu0 0
        %4747 = vperm.xlu0 %4746, %v433
        %v4748 = vpop.permute.xlu0 %4747
        %4751 = vset.pattern.permute.xlu0 0
        %4752 = vperm.xlu0 %4751, %v434
        %v4753 = vpop.permute.xlu0 %4752
        %4756 = vset.pattern.permute.xlu0 0
        %4757 = vperm.xlu0 %4756, %v435
        %v4758 = vpop.permute.xlu0 %4757
        %4761 = vset.pattern.permute.xlu0 0
        %4762 = vperm.xlu0 %4761, %v436
        %v4763 = vpop.permute.xlu0 %4762
        %4766 = vset.pattern.permute.xlu0 0
        %4767 = vperm.xlu0 %4766, %v437
        %v4768 = vpop.permute.xlu0 %4767
        %4771 = vset.pattern.permute.xlu0 0
        %4772 = vperm.xlu0 %4771, %v438
        %v4773 = vpop.permute.xlu0 %4772
        %4776 = vset.pattern.permute.xlu0 0
        %4777 = vperm.xlu0 %4776, %v439
        %v4778 = vpop.permute.xlu0 %4777
        %4781 = vset.pattern.permute.xlu0 0
        %4782 = vperm.xlu0 %4781, %v440
        %v4783 = vpop.permute.xlu0 %4782
        %4786 = vset.pattern.permute.xlu0 0
        %4787 = vperm.xlu0 %4786, %v441
        %v4788 = vpop.permute.xlu0 %4787
        %4791 = vset.pattern.permute.xlu0 0
        %4792 = vperm.xlu0 %4791, %v442
        %v4793 = vpop.permute.xlu0 %4792
        %4796 = vset.pattern.permute.xlu0 0
        %4797 = vperm.xlu0 %4796, %v443
        %v4798 = vpop.permute.xlu0 %4797
        %4801 = vset.pattern.permute.xlu0 0
        %4802 = vperm.xlu0 %4801, %v444
        %v4803 = vpop.permute.xlu0 %4802
        %4806 = vset.pattern.permute.xlu0 0
        %4807 = vperm.xlu0 %4806, %v445
        %v4808 = vpop.permute.xlu0 %4807
        %4811 = vset.pattern.permute.xlu0 0
        %4812 = vperm.xlu0 %4811, %v446
        %v4813 = vpop.permute.xlu0 %4812
        %4816 = vset.pattern.permute.xlu0 0
        %4817 = vperm.xlu0 %4816, %v447
        %v4818 = vpop.permute.xlu0 %4817
        %4821 = vset.pattern.permute.xlu0 0
        %4822 = vperm.xlu0 %4821, %v448
        %v4823 = vpop.permute.xlu0 %4822
        %4826 = vset.pattern.permute.xlu0 0
        %4827 = vperm.xlu0 %4826, %v449
        %v4828 = vpop.permute.xlu0 %4827
        %4831 = vset.pattern.permute.xlu0 0
        %4832 = vperm.xlu0 %4831, %v450
        %v4833 = vpop.permute.xlu0 %4832
        %4836 = vset.pattern.permute.xlu0 0
        %4837 = vperm.xlu0 %4836, %v451
        %v4838 = vpop.permute.xlu0 %4837
        %4841 = vset.pattern.permute.xlu0 0
        %4842 = vperm.xlu0 %4841, %v452
        %v4843 = vpop.permute.xlu0 %4842
        %4846 = vset.pattern.permute.xlu0 0
        %4847 = vperm.xlu0 %4846, %v453
        %v4848 = vpop.permute.xlu0 %4847
        %v4850 = vmul.f32 %v4616, %v4673
        %v4851 = vmul.f32 %v4617, %v4678
        %v4852 = vmul.f32 %v4618, %v4683
        %v4853 = vmul.f32 %v4619, %v4688
        %v4854 = vmul.f32 %v4620, %v4693
        %v4855 = vmul.f32 %v4621, %v4698
        %v4856 = vmul.f32 %v4622, %v4703
        %v4857 = vmul.f32 %v4623, %v4708
        %v4858 = vmul.f32 %v4624, %v4713
        %v4859 = vmul.f32 %v4625, %v4718
        %v4860 = vmul.f32 %v4626, %v4723
        %v4861 = vmul.f32 %v4627, %v4728
        %v4862 = vmul.f32 %v4628, %v4733
        %v4863 = vmul.f32 %v4629, %v4738
        %v4864 = vmul.f32 %v4630, %v4743
        %v4865 = vmul.f32 %v4631, %v4748
        %v4866 = vmul.f32 %v4632, %v4753
        %v4867 = vmul.f32 %v4633, %v4758
        %v4868 = vmul.f32 %v4634, %v4763
        %v4869 = vmul.f32 %v4635, %v4768
        %v4870 = vmul.f32 %v4636, %v4773
        %v4871 = vmul.f32 %v4637, %v4778
        %v4872 = vmul.f32 %v4638, %v4783
        %v4873 = vmul.f32 %v4639, %v4788
        %v4874 = vmul.f32 %v4640, %v4793
        %v4875 = vmul.f32 %v4641, %v4798
        %v4876 = vmul.f32 %v4642, %v4803
        %v4877 = vmul.f32 %v4643, %v4808
        %v4878 = vmul.f32 %v4644, %v4813
        %v4879 = vmul.f32 %v4645, %v4818
        %v4880 = vmul.f32 %v4646, %v4823
        %v4881 = vmul.f32 %v4647, %v4828
        %v4882 = vmul.f32 %v4648, %v4833
        %v4883 = vmul.f32 %v4649, %v4838
        %v4884 = vmul.f32 %v4650, %v4843
        %v4885 = vmul.f32 %v4651, %v4848
        %v4886 = vpack.c.bf16 %v4851, %v4850
        %v4887 = vpack.c.bf16 %v4853, %v4852
        %v4888 = vpack.c.bf16 %v4855, %v4854
        %v4889 = vpack.c.bf16 %v4857, %v4856
        %v4890 = vpack.c.bf16 %v4859, %v4858
        %v4891 = vpack.c.bf16 %v4861, %v4860
        %v4892 = vpack.c.bf16 %v4863, %v4862
        %v4893 = vpack.c.bf16 %v4865, %v4864
        %v4894 = vpack.c.bf16 %v4867, %v4866
        %v4895 = vpack.c.bf16 %v4869, %v4868
        %v4896 = vpack.c.bf16 %v4871, %v4870
        %v4897 = vpack.c.bf16 %v4873, %v4872
        %v4898 = vpack.c.bf16 %v4875, %v4874
        %v4899 = vpack.c.bf16 %v4877, %v4876
        %v4900 = vpack.c.bf16 %v4879, %v4878
        %v4901 = vpack.c.bf16 %v4881, %v4880
        %v4902 = vpack.c.bf16 %v4883, %v4882
        %v4903 = vpack.c.bf16 %v4885, %v4884
        %v4922 = vunpack.c.l.b16 %v4886
        %v4923 = vunpack.c.h.b16 %v4886
        %v4924 = vunpack.c.l.b16 %v4887
        %v4925 = vunpack.c.h.b16 %v4887
        %v4926 = vunpack.c.l.b16 %v4888
        %v4927 = vunpack.c.h.b16 %v4888
        %v4928 = vunpack.c.l.b16 %v4889
        %v4929 = vunpack.c.h.b16 %v4889
        %v4930 = vunpack.c.l.b16 %v4890
        %v4931 = vunpack.c.h.b16 %v4890
        %v4932 = vunpack.c.l.b16 %v4891
        %v4933 = vunpack.c.h.b16 %v4891
        %v4934 = vunpack.c.l.b16 %v4892
        %v4935 = vunpack.c.h.b16 %v4892
        %v4936 = vunpack.c.l.b16 %v4893
        %v4937 = vunpack.c.h.b16 %v4893
        %v4938 = vunpack.c.l.b16 %v4894
        %v4939 = vunpack.c.h.b16 %v4894
        %v4940 = vunpack.c.l.b16 %v4895
        %v4941 = vunpack.c.h.b16 %v4895
        %v4942 = vunpack.c.l.b16 %v4896
        %v4943 = vunpack.c.h.b16 %v4896
        %v4944 = vunpack.c.l.b16 %v4897
        %v4945 = vunpack.c.h.b16 %v4897
        %v4946 = vunpack.c.l.b16 %v4898
        %v4947 = vunpack.c.h.b16 %v4898
        %v4948 = vunpack.c.l.b16 %v4899
        %v4949 = vunpack.c.h.b16 %v4899
        %v4950 = vunpack.c.l.b16 %v4900
        %v4951 = vunpack.c.h.b16 %v4900
        %v4952 = vunpack.c.l.b16 %v4901
        %v4953 = vunpack.c.h.b16 %v4901
        %v4954 = vunpack.c.l.b16 %v4902
        %v4955 = vunpack.c.h.b16 %v4902
        %v4956 = vunpack.c.l.b16 %v4903
        %v4957 = vunpack.c.h.b16 %v4903
        %v4958 = vpack.c.b16 %v4922, %v4922
        %v4959 = vpack.c.b16 %v4923, %v4923
        %v4960 = vpack.c.b16 %v4924, %v4924
        %v4961 = vpack.c.b16 %v4925, %v4925
        %v4962 = vpack.c.b16 %v4926, %v4926
        %v4963 = vpack.c.b16 %v4927, %v4927
        %v4964 = vpack.c.b16 %v4928, %v4928
        %v4965 = vpack.c.b16 %v4929, %v4929
        %v4966 = vpack.c.b16 %v4930, %v4930
        %v4967 = vpack.c.b16 %v4931, %v4931
        %v4968 = vpack.c.b16 %v4932, %v4932
        %v4969 = vpack.c.b16 %v4933, %v4933
        %v4970 = vpack.c.b16 %v4934, %v4934
        %v4971 = vpack.c.b16 %v4935, %v4935
        %v4972 = vpack.c.b16 %v4936, %v4936
        %v4973 = vpack.c.b16 %v4937, %v4937
        %v4974 = vpack.c.b16 %v4938, %v4938
        %v4975 = vpack.c.b16 %v4939, %v4939
        %v4976 = vpack.c.b16 %v4940, %v4940
        %v4977 = vpack.c.b16 %v4941, %v4941
        %v4978 = vpack.c.b16 %v4942, %v4942
        %v4979 = vpack.c.b16 %v4943, %v4943
        %v4980 = vpack.c.b16 %v4944, %v4944
        %v4981 = vpack.c.b16 %v4945, %v4945
        %v4982 = vpack.c.b16 %v4946, %v4946
        %v4983 = vpack.c.b16 %v4947, %v4947
        %v4984 = vpack.c.b16 %v4948, %v4948
        %v4985 = vpack.c.b16 %v4949, %v4949
        %v4986 = vpack.c.b16 %v4950, %v4950
        %v4987 = vpack.c.b16 %v4951, %v4951
        %v4988 = vpack.c.b16 %v4952, %v4952
        %v4989 = vpack.c.b16 %v4953, %v4953
        %v4990 = vpack.c.b16 %v4954, %v4954
        %v4991 = vpack.c.b16 %v4955, %v4955
        %v4992 = vpack.c.b16 %v4956, %v4956
        %v4993 = vpack.c.b16 %v4957, %v4957
        %vm4994 = vsmask.f32 5392
        %vm4995 = vmor %vm4656, %vm4994
        %v4997 = vshrl.u32 %v4958, 16
        %v4999 = vrot.slane %v4997, 6
        %v5000 = vshll.u32 %v4958, 16
        %v5002 = vrot.slane %v5000, 7
        %v5003 = vor.u32 %v4999, %v5002
        %v5004 = vrot.slane %v5003, 4
        %v5006 = vshrl.u32 %v4959, 16
        %v5008 = vrot.slane %v5006, 6
        %v5009 = vshll.u32 %v4959, 16
        %v5011 = vrot.slane %v5009, 7
        %v5012 = vor.u32 %v5008, %v5011
        %v5013 = vsel %vm4995, %v5004, %v5012
        %v5014 = vrot.slane %v5012, 4
        %v5016 = vshrl.u32 %v4960, 16
        %v5018 = vrot.slane %v5016, 6
        %v5019 = vshll.u32 %v4960, 16
        %v5021 = vrot.slane %v5019, 7
        %v5022 = vor.u32 %v5018, %v5021
        %v5023 = vsel %vm4995, %v5014, %v5022
        %v5024 = vrot.slane %v5022, 4
        %v5026 = vshrl.u32 %v4961, 16
        %v5028 = vrot.slane %v5026, 6
        %v5029 = vshll.u32 %v4961, 16
        %v5031 = vrot.slane %v5029, 7
        %v5032 = vor.u32 %v5028, %v5031
        %v5033 = vsel %vm4995, %v5024, %v5032
        %v5034 = vrot.slane %v5032, 4
        %v5036 = vshrl.u32 %v4962, 16
        %v5038 = vrot.slane %v5036, 6
        %v5039 = vshll.u32 %v4962, 16
        %v5041 = vrot.slane %v5039, 7
        %v5042 = vor.u32 %v5038, %v5041
        %v5043 = vsel %vm4995, %v5034, %v5042
        %v5044 = vrot.slane %v5042, 4
        %v5046 = vshrl.u32 %v4963, 16
        %v5048 = vrot.slane %v5046, 6
        %v5049 = vshll.u32 %v4963, 16
        %v5051 = vrot.slane %v5049, 7
        %v5052 = vor.u32 %v5048, %v5051
        %v5053 = vsel %vm4995, %v5044, %v5052
        %v5054 = vrot.slane %v5052, 4
        %v5056 = vshrl.u32 %v4964, 16
        %v5058 = vrot.slane %v5056, 6
        %v5059 = vshll.u32 %v4964, 16
        %v5061 = vrot.slane %v5059, 7
        %v5062 = vor.u32 %v5058, %v5061
        %v5063 = vsel %vm4995, %v5054, %v5062
        %v5064 = vrot.slane %v5062, 4
        %v5066 = vshrl.u32 %v4965, 16
        %v5068 = vrot.slane %v5066, 6
        %v5069 = vshll.u32 %v4965, 16
        %v5071 = vrot.slane %v5069, 7
        %v5072 = vor.u32 %v5068, %v5071
        %v5073 = vsel %vm4995, %v5064, %v5072
        %v5074 = vrot.slane %v5072, 4
        %v5076 = vshrl.u32 %v4966, 16
        %v5078 = vrot.slane %v5076, 6
        %v5079 = vshll.u32 %v4966, 16
        %v5081 = vrot.slane %v5079, 7
        %v5082 = vor.u32 %v5078, %v5081
        %v5083 = vsel %vm4995, %v5074, %v5082
        %v5084 = vrot.slane %v5082, 4
        %v5086 = vshrl.u32 %v4967, 16
        %v5088 = vrot.slane %v5086, 6
        %v5089 = vshll.u32 %v4967, 16
        %v5091 = vrot.slane %v5089, 7
        %v5092 = vor.u32 %v5088, %v5091
        %v5093 = vsel %vm4995, %v5084, %v5092
        %v5094 = vrot.slane %v5092, 4
        %v5096 = vshrl.u32 %v4968, 16
        %v5098 = vrot.slane %v5096, 6
        %v5099 = vshll.u32 %v4968, 16
        %v5101 = vrot.slane %v5099, 7
        %v5102 = vor.u32 %v5098, %v5101
        %v5103 = vsel %vm4995, %v5094, %v5102
        %v5104 = vrot.slane %v5102, 4
        %v5106 = vshrl.u32 %v4969, 16
        %v5108 = vrot.slane %v5106, 6
        %v5109 = vshll.u32 %v4969, 16
        %v5111 = vrot.slane %v5109, 7
        %v5112 = vor.u32 %v5108, %v5111
        %v5113 = vsel %vm4995, %v5104, %v5112
        %v5114 = vrot.slane %v5112, 4
        %v5116 = vshrl.u32 %v4970, 16
        %v5118 = vrot.slane %v5116, 6
        %v5119 = vshll.u32 %v4970, 16
        %v5121 = vrot.slane %v5119, 7
        %v5122 = vor.u32 %v5118, %v5121
        %v5123 = vsel %vm4995, %v5114, %v5122
        %v5124 = vrot.slane %v5122, 4
        %v5126 = vshrl.u32 %v4971, 16
        %v5128 = vrot.slane %v5126, 6
        %v5129 = vshll.u32 %v4971, 16
        %v5131 = vrot.slane %v5129, 7
        %v5132 = vor.u32 %v5128, %v5131
        %v5133 = vsel %vm4995, %v5124, %v5132
        %v5134 = vrot.slane %v5132, 4
        %v5136 = vshrl.u32 %v4972, 16
        %v5138 = vrot.slane %v5136, 6
        %v5139 = vshll.u32 %v4972, 16
        %v5141 = vrot.slane %v5139, 7
        %v5142 = vor.u32 %v5138, %v5141
        %v5143 = vsel %vm4995, %v5134, %v5142
        %v5144 = vrot.slane %v5142, 4
        %v5146 = vshrl.u32 %v4973, 16
        %v5148 = vrot.slane %v5146, 6
        %v5149 = vshll.u32 %v4973, 16
        %v5151 = vrot.slane %v5149, 7
        %v5152 = vor.u32 %v5148, %v5151
        %v5153 = vsel %vm4995, %v5144, %v5152
        %v5154 = vrot.slane %v5152, 4
        %v5156 = vshrl.u32 %v4974, 16
        %v5158 = vrot.slane %v5156, 6
        %v5159 = vshll.u32 %v4974, 16
        %v5161 = vrot.slane %v5159, 7
        %v5162 = vor.u32 %v5158, %v5161
        %v5163 = vsel %vm4995, %v5154, %v5162
        %v5164 = vrot.slane %v5162, 4
        %v5166 = vshrl.u32 %v4975, 16
        %v5168 = vrot.slane %v5166, 6
        %v5169 = vshll.u32 %v4975, 16
        %v5171 = vrot.slane %v5169, 7
        %v5172 = vor.u32 %v5168, %v5171
        %v5173 = vsel %vm4995, %v5164, %v5172
        %v5174 = vrot.slane %v5172, 4
        %v5176 = vshrl.u32 %v4976, 16
        %v5178 = vrot.slane %v5176, 6
        %v5179 = vshll.u32 %v4976, 16
        %v5181 = vrot.slane %v5179, 7
        %v5182 = vor.u32 %v5178, %v5181
        %v5183 = vsel %vm4995, %v5174, %v5182
        %v5184 = vrot.slane %v5182, 4
        %v5186 = vshrl.u32 %v4977, 16
        %v5188 = vrot.slane %v5186, 6
        %v5189 = vshll.u32 %v4977, 16
        %v5191 = vrot.slane %v5189, 7
        %v5192 = vor.u32 %v5188, %v5191
        %v5193 = vsel %vm4995, %v5184, %v5192
        %v5194 = vrot.slane %v5192, 4
        %v5196 = vshrl.u32 %v4978, 16
        %v5198 = vrot.slane %v5196, 6
        %v5199 = vshll.u32 %v4978, 16
        %v5201 = vrot.slane %v5199, 7
        %v5202 = vor.u32 %v5198, %v5201
        %v5203 = vsel %vm4995, %v5194, %v5202
        %v5204 = vrot.slane %v5202, 4
        %v5206 = vshrl.u32 %v4979, 16
        %v5208 = vrot.slane %v5206, 6
        %v5209 = vshll.u32 %v4979, 16
        %v5211 = vrot.slane %v5209, 7
        %v5212 = vor.u32 %v5208, %v5211
        %v5213 = vsel %vm4995, %v5204, %v5212
        %v5214 = vrot.slane %v5212, 4
        %v5216 = vshrl.u32 %v4980, 16
        %v5218 = vrot.slane %v5216, 6
        %v5219 = vshll.u32 %v4980, 16
        %v5221 = vrot.slane %v5219, 7
        %v5222 = vor.u32 %v5218, %v5221
        %v5223 = vsel %vm4995, %v5214, %v5222
        %v5224 = vrot.slane %v5222, 4
        %v5226 = vshrl.u32 %v4981, 16
        %v5228 = vrot.slane %v5226, 6
        %v5229 = vshll.u32 %v4981, 16
        %v5231 = vrot.slane %v5229, 7
        %v5232 = vor.u32 %v5228, %v5231
        %v5233 = vsel %vm4995, %v5224, %v5232
        %v5234 = vrot.slane %v5232, 4
        %v5236 = vshrl.u32 %v4982, 16
        %v5238 = vrot.slane %v5236, 6
        %v5239 = vshll.u32 %v4982, 16
        %v5241 = vrot.slane %v5239, 7
        %v5242 = vor.u32 %v5238, %v5241
        %v5243 = vsel %vm4995, %v5234, %v5242
        %v5244 = vrot.slane %v5242, 4
        %v5246 = vshrl.u32 %v4983, 16
        %v5248 = vrot.slane %v5246, 6
        %v5249 = vshll.u32 %v4983, 16
        %v5251 = vrot.slane %v5249, 7
        %v5252 = vor.u32 %v5248, %v5251
        %v5253 = vsel %vm4995, %v5244, %v5252
        %v5254 = vrot.slane %v5252, 4
        %v5256 = vshrl.u32 %v4984, 16
        %v5258 = vrot.slane %v5256, 6
        %v5259 = vshll.u32 %v4984, 16
        %v5261 = vrot.slane %v5259, 7
        %v5262 = vor.u32 %v5258, %v5261
        %v5263 = vsel %vm4995, %v5254, %v5262
        %v5264 = vrot.slane %v5262, 4
        %v5266 = vshrl.u32 %v4985, 16
        %v5268 = vrot.slane %v5266, 6
        %v5269 = vshll.u32 %v4985, 16
        %v5271 = vrot.slane %v5269, 7
        %v5272 = vor.u32 %v5268, %v5271
        %v5273 = vsel %vm4995, %v5264, %v5272
        %v5274 = vrot.slane %v5272, 4
        %v5276 = vshrl.u32 %v4986, 16
        %v5278 = vrot.slane %v5276, 6
        %v5279 = vshll.u32 %v4986, 16
        %v5281 = vrot.slane %v5279, 7
        %v5282 = vor.u32 %v5278, %v5281
        %v5283 = vsel %vm4995, %v5274, %v5282
        %v5284 = vrot.slane %v5282, 4
        %v5286 = vshrl.u32 %v4987, 16
        %v5288 = vrot.slane %v5286, 6
        %v5289 = vshll.u32 %v4987, 16
        %v5291 = vrot.slane %v5289, 7
        %v5292 = vor.u32 %v5288, %v5291
        %v5293 = vsel %vm4995, %v5284, %v5292
        %v5294 = vrot.slane %v5292, 4
        %v5296 = vshrl.u32 %v4988, 16
        %v5298 = vrot.slane %v5296, 6
        %v5299 = vshll.u32 %v4988, 16
        %v5301 = vrot.slane %v5299, 7
        %v5302 = vor.u32 %v5298, %v5301
        %v5303 = vsel %vm4995, %v5294, %v5302
        %v5304 = vrot.slane %v5302, 4
        %v5306 = vshrl.u32 %v4989, 16
        %v5308 = vrot.slane %v5306, 6
        %v5309 = vshll.u32 %v4989, 16
        %v5311 = vrot.slane %v5309, 7
        %v5312 = vor.u32 %v5308, %v5311
        %v5313 = vsel %vm4995, %v5304, %v5312
        %v5314 = vrot.slane %v5312, 4
        %v5316 = vshrl.u32 %v4990, 16
        %v5318 = vrot.slane %v5316, 6
        %v5319 = vshll.u32 %v4990, 16
        %v5321 = vrot.slane %v5319, 7
        %v5322 = vor.u32 %v5318, %v5321
        %v5323 = vsel %vm4995, %v5314, %v5322
        %v5324 = vrot.slane %v5322, 4
        %v5326 = vshrl.u32 %v4991, 16
        %v5328 = vrot.slane %v5326, 6
        %v5329 = vshll.u32 %v4991, 16
        %v5331 = vrot.slane %v5329, 7
        %v5332 = vor.u32 %v5328, %v5331
        %v5333 = vsel %vm4995, %v5324, %v5332
        %v5334 = vrot.slane %v5332, 4
        %v5336 = vshrl.u32 %v4992, 16
        %v5338 = vrot.slane %v5336, 6
        %v5339 = vshll.u32 %v4992, 16
        %v5341 = vrot.slane %v5339, 7
        %v5342 = vor.u32 %v5338, %v5341
        %v5343 = vsel %vm4995, %v5334, %v5342
        %v5344 = vrot.slane %v5342, 4
        %v5346 = vshrl.u32 %v4993, 16
        %v5348 = vrot.slane %v5346, 6
        %v5349 = vshll.u32 %v4993, 16
        %v5351 = vrot.slane %v5349, 7
        %v5352 = vor.u32 %v5348, %v5351
        %v5353 = vsel %vm4995, %v5344, %v5352
        %v5354 = vrot.slane %v5352, 4
        %v5392 = vld [vmem:[#allocation2 + $0x8] sm:$0xe]
        %v5393 = vsel %vm4663, %v5003, %v5392
        %5394 = vst [vmem:[#allocation2 + $0x8] sm:$0xe] %v5393
        %5395 = vst.msk [vmem:[#allocation2 + $0xc] sm:$0xf] %vm4652, %v5013
        %5396 = vst.msk [vmem:[#allocation2 + $0x10] sm:$0xf] %vm4652, %v5023
        %5397 = vst.msk [vmem:[#allocation2 + $0x14] sm:$0xf] %vm4652, %v5033
        %5398 = vst.msk [vmem:[#allocation2 + $0x18] sm:$0xf] %vm4652, %v5043
        %5399 = vst.msk [vmem:[#allocation2 + $0x1c] sm:$0xf] %vm4652, %v5053
        %5400 = vst.msk [vmem:[#allocation2 + $0x20] sm:$0xf] %vm4652, %v5063
        %5401 = vst.msk [vmem:[#allocation2 + $0x24] sm:$0xf] %vm4652, %v5073
        %5402 = vst.msk [vmem:[#allocation2 + $0x28] sm:$0xf] %vm4652, %v5083
        %5403 = vst.msk [vmem:[#allocation2 + $0x2c] sm:$0xf] %vm4652, %v5093
        %5404 = vst.msk [vmem:[#allocation2 + $0x30] sm:$0xf] %vm4652, %v5103
        %5405 = vst.msk [vmem:[#allocation2 + $0x34] sm:$0xf] %vm4652, %v5113
        %5406 = vst.msk [vmem:[#allocation2 + $0x38] sm:$0xf] %vm4652, %v5123
        %5407 = vst.msk [vmem:[#allocation2 + $0x3c] sm:$0xf] %vm4652, %v5133
        %5408 = vst.msk [vmem:[#allocation2 + $0x40] sm:$0xf] %vm4652, %v5143
        %5409 = vst.msk [vmem:[#allocation2 + $0x44] sm:$0xf] %vm4652, %v5153
        %5410 = vst.msk [vmem:[#allocation2 + $0x48] sm:$0xf] %vm4652, %v5163
        %5411 = vst.msk [vmem:[#allocation2 + $0x4c] sm:$0xf] %vm4652, %v5173
        %5412 = vst.msk [vmem:[#allocation2 + $0x50] sm:$0xf] %vm4652, %v5183
        %5413 = vst.msk [vmem:[#allocation2 + $0x54] sm:$0xf] %vm4652, %v5193
        %5414 = vst.msk [vmem:[#allocation2 + $0x58] sm:$0xf] %vm4652, %v5203
        %5415 = vst.msk [vmem:[#allocation2 + $0x5c] sm:$0xf] %vm4652, %v5213
        %5416 = vst.msk [vmem:[#allocation2 + $0x60] sm:$0xf] %vm4652, %v5223
        %5417 = vst.msk [vmem:[#allocation2 + $0x64] sm:$0xf] %vm4652, %v5233
        %5418 = vst.msk [vmem:[#allocation2 + $0x68] sm:$0xf] %vm4652, %v5243
        %5419 = vst.msk [vmem:[#allocation2 + $0x6c] sm:$0xf] %vm4652, %v5253
        %5420 = vst.msk [vmem:[#allocation2 + $0x70] sm:$0xf] %vm4652, %v5263
        %5421 = vst.msk [vmem:[#allocation2 + $0x74] sm:$0xf] %vm4652, %v5273
        %5422 = vst.msk [vmem:[#allocation2 + $0x78] sm:$0xf] %vm4652, %v5283
        %5423 = vst.msk [vmem:[#allocation2 + $0x7c] sm:$0xf] %vm4652, %v5293
        %5424 = vst.msk [vmem:[#allocation2 + $0x80] sm:$0xf] %vm4652, %v5303
        %5425 = vst.msk [vmem:[#allocation2 + $0x84] sm:$0xf] %vm4652, %v5313
        %5426 = vst.msk [vmem:[#allocation2 + $0x88] sm:$0xf] %vm4652, %v5323
        %5427 = vst.msk [vmem:[#allocation2 + $0x8c] sm:$0xf] %vm4652, %v5333
        %5428 = vst.msk [vmem:[#allocation2 + $0x90] sm:$0xf] %vm4652, %v5343
        %5429 = vst.msk [vmem:[#allocation2 + $0x94] sm:$0xf] %vm4652, %v5353
        %v5430 = vld [vmem:[#allocation2 + $0x98] sm:$0x3]
        %v5431 = vsel %vm4657, %v5354, %v5430
        %5432 = vst [vmem:[#allocation2 + $0x98] sm:$0x3] %v5431
        %v5433 = vld [vmem:[#allocation2] sm:$0xf]
        %v5434 = vld [vmem:[#allocation2 + $0x4] sm:$0xf]
        %v5435 = vld [vmem:[#allocation2 + $0x8] sm:$0xf]
        %v5436 = vld [vmem:[#allocation2 + $0xc] sm:$0xf]
        %v5437 = vld [vmem:[#allocation2 + $0x10] sm:$0xf]
        %v5438 = vld [vmem:[#allocation2 + $0x14] sm:$0xf]
        %v5439 = vld [vmem:[#allocation2 + $0x18] sm:$0xf]
        %v5440 = vld [vmem:[#allocation2 + $0x1c] sm:$0xf]
        %v5441 = vld [vmem:[#allocation2 + $0x20] sm:$0xf]
        %v5442 = vld [vmem:[#allocation2 + $0x24] sm:$0xf]
        %v5443 = vld [vmem:[#allocation2 + $0x28] sm:$0xf]
        %v5444 = vld [vmem:[#allocation2 + $0x2c] sm:$0xf]
        %v5445 = vld [vmem:[#allocation2 + $0x30] sm:$0xf]
        %v5446 = vld [vmem:[#allocation2 + $0x34] sm:$0xf]
        %v5447 = vld [vmem:[#allocation2 + $0x38] sm:$0xf]
        %v5448 = vld [vmem:[#allocation2 + $0x3c] sm:$0xf]
        %v5449 = vld [vmem:[#allocation2 + $0x40] sm:$0xf]
        %v5450 = vld [vmem:[#allocation2 + $0x44] sm:$0xf]
        %v5451 = vld [vmem:[#allocation2 + $0x48] sm:$0xf]
        %v5452 = vld [vmem:[#allocation2 + $0x4c] sm:$0xf]
        %v5453 = vld [vmem:[#allocation2 + $0x50] sm:$0xf]
        %v5454 = vld [vmem:[#allocation2 + $0x54] sm:$0xf]
        %v5455 = vld [vmem:[#allocation2 + $0x58] sm:$0xf]
        %v5456 = vld [vmem:[#allocation2 + $0x5c] sm:$0xf]
        %v5457 = vld [vmem:[#allocation2 + $0x60] sm:$0xf]
        %v5458 = vld [vmem:[#allocation2 + $0x64] sm:$0xf]
        %v5459 = vld [vmem:[#allocation2 + $0x68] sm:$0xf]
        %v5460 = vld [vmem:[#allocation2 + $0x6c] sm:$0xf]
        %v5461 = vld [vmem:[#allocation2 + $0x70] sm:$0xf]
        %v5462 = vld [vmem:[#allocation2 + $0x74] sm:$0xf]
        %v5463 = vld [vmem:[#allocation2 + $0x78] sm:$0xf]
        %v5464 = vld [vmem:[#allocation2 + $0x7c] sm:$0xf]
        %v5465 = vld [vmem:[#allocation2 + $0x80] sm:$0xf]
        %v5466 = vld [vmem:[#allocation2 + $0x84] sm:$0xf]
        %v5467 = vld [vmem:[#allocation2 + $0x88] sm:$0xf]
        %v5468 = vld [vmem:[#allocation2 + $0x8c] sm:$0xf]
        %v5469 = vld [vmem:[%s8] sm:$0xf]
        %v5470 = vld [vmem:[%s8 + $0x4] sm:$0xf]
        %v5471 = vld [vmem:[%s8 + $0x8] sm:$0xf]
        %v5472 = vld [vmem:[%s8 + $0xc] sm:$0xf]
        %v5473 = vld [vmem:[#allocation2 + $0x90] sm:$0x1]
        %s5474 = scalar_lea.vmem %s8, 16
        %v5475 = vld [vmem:[%s5474] sm:$0xf]
        %v5476 = vld [vmem:[%s5474 + $0x4] sm:$0xf]
        %v5477 = vld [vmem:[%s5474 + $0x8] sm:$0xf]
        %v5478 = vld [vmem:[%s5474 + $0xc] sm:$0xf]
        %v5516 = vunpack.c.l.b16 %v5433
        %v5517 = vunpack.c.l.b16 %v5434
        %v5518 = vunpack.c.l.b16 %v5435
        %v5519 = vunpack.c.l.b16 %v5436
        %v5520 = vunpack.c.l.b16 %v5437
        %v5521 = vunpack.c.l.b16 %v5438
        %v5522 = vunpack.c.l.b16 %v5439
        %v5523 = vunpack.c.l.b16 %v5440
        %v5524 = vunpack.c.l.b16 %v5441
        %v5525 = vunpack.c.l.b16 %v5442
        %v5526 = vunpack.c.l.b16 %v5443
        %v5527 = vunpack.c.l.b16 %v5444
        %v5528 = vunpack.c.l.b16 %v5445
        %v5529 = vunpack.c.l.b16 %v5446
        %v5530 = vunpack.c.l.b16 %v5447
        %v5531 = vunpack.c.l.b16 %v5448
        %v5532 = vunpack.c.l.b16 %v5449
        %v5533 = vunpack.c.l.b16 %v5450
        %v5534 = vunpack.c.l.b16 %v5451
        %v5535 = vunpack.c.l.b16 %v5452
        %v5536 = vunpack.c.l.b16 %v5453
        %v5537 = vunpack.c.l.b16 %v5454
        %v5538 = vunpack.c.l.b16 %v5455
        %v5539 = vunpack.c.l.b16 %v5456
        %v5540 = vunpack.c.l.b16 %v5457
        %v5541 = vunpack.c.l.b16 %v5458
        %v5542 = vunpack.c.l.b16 %v5459
        %v5543 = vunpack.c.l.b16 %v5460
        %v5544 = vunpack.c.l.b16 %v5461
        %v5545 = vunpack.c.l.b16 %v5462
        %v5546 = vunpack.c.l.b16 %v5463
        %v5547 = vunpack.c.l.b16 %v5464
        %v5548 = vunpack.c.l.b16 %v5465
        %v5549 = vunpack.c.l.b16 %v5466
        %v5550 = vunpack.c.l.b16 %v5467
        %v5551 = vunpack.c.l.b16 %v5468
        %v5552 = vunpack.c.l.b16 %v5473
        %v5553 = vpack.c.b16 %v5517, %v5516
        %v5554 = vpack.c.b16 %v5519, %v5518
        %v5555 = vpack.c.b16 %v5521, %v5520
        %v5556 = vpack.c.b16 %v5523, %v5522
        %v5557 = vpack.c.b16 %v5525, %v5524
        %v5558 = vpack.c.b16 %v5527, %v5526
        %v5559 = vpack.c.b16 %v5529, %v5528
        %v5560 = vpack.c.b16 %v5531, %v5530
        %v5561 = vpack.c.b16 %v5533, %v5532
        %v5562 = vpack.c.b16 %v5535, %v5534
        %v5563 = vpack.c.b16 %v5537, %v5536
        %v5564 = vpack.c.b16 %v5539, %v5538
        %v5565 = vpack.c.b16 %v5541, %v5540
        %v5566 = vpack.c.b16 %v5543, %v5542
        %v5567 = vpack.c.b16 %v5545, %v5544
        %v5568 = vpack.c.b16 %v5547, %v5546
        %v5569 = vpack.c.b16 %v5549, %v5548
        %v5570 = vpack.c.b16 %v5551, %v5550
        %v5571 = vpack.c.b16 %v5552, %v5552
        %v5573 = vshrl.u32 %v5553, 16
        %v5575 = vshll.u32 %v5553, 16
        %v5577 = vrot.slane %v5575, 1
        %v5578 = vor.u32 %v5573, %v5577
        %v5580 = vshll.u32 %v5554, 16
        %v5582 = vrot.slane %v5580, 1
        %v5583 = vsel %vm588, %v5578, %v5582
        %v5584 = vshrl.u32 %v5554, 16
        %v5586 = vor.u32 %v5584, %v5582
        %v5588 = vshll.u32 %v5555, 16
        %v5590 = vrot.slane %v5588, 1
        %v5591 = vsel %vm588, %v5586, %v5590
        %v5592 = vshrl.u32 %v5555, 16
        %v5594 = vor.u32 %v5592, %v5590
        %v5596 = vshll.u32 %v5556, 16
        %v5598 = vrot.slane %v5596, 1
        %v5599 = vsel %vm588, %v5594, %v5598
        %v5600 = vshrl.u32 %v5556, 16
        %v5602 = vor.u32 %v5600, %v5598
        %v5604 = vshll.u32 %v5557, 16
        %v5606 = vrot.slane %v5604, 1
        %v5607 = vsel %vm588, %v5602, %v5606
        %v5608 = vshrl.u32 %v5557, 16
        %v5610 = vor.u32 %v5608, %v5606
        %v5612 = vshll.u32 %v5558, 16
        %v5614 = vrot.slane %v5612, 1
        %v5615 = vsel %vm588, %v5610, %v5614
        %v5616 = vshrl.u32 %v5558, 16
        %v5618 = vor.u32 %v5616, %v5614
        %v5620 = vshll.u32 %v5559, 16
        %v5622 = vrot.slane %v5620, 1
        %v5623 = vsel %vm588, %v5618, %v5622
        %v5624 = vshrl.u32 %v5559, 16
        %v5626 = vor.u32 %v5624, %v5622
        %v5628 = vshll.u32 %v5560, 16
        %v5630 = vrot.slane %v5628, 1
        %v5631 = vsel %vm588, %v5626, %v5630
        %v5632 = vshrl.u32 %v5560, 16
        %v5634 = vor.u32 %v5632, %v5630
        %v5636 = vshll.u32 %v5561, 16
        %v5638 = vrot.slane %v5636, 1
        %v5639 = vsel %vm588, %v5634, %v5638
        %v5640 = vshrl.u32 %v5561, 16
        %v5642 = vor.u32 %v5640, %v5638
        %v5644 = vshll.u32 %v5562, 16
        %v5646 = vrot.slane %v5644, 1
        %v5647 = vsel %vm588, %v5642, %v5646
        %v5648 = vshrl.u32 %v5562, 16
        %v5650 = vor.u32 %v5648, %v5646
        %v5652 = vshll.u32 %v5563, 16
        %v5654 = vrot.slane %v5652, 1
        %v5655 = vsel %vm588, %v5650, %v5654
        %v5656 = vshrl.u32 %v5563, 16
        %v5658 = vor.u32 %v5656, %v5654
        %v5660 = vshll.u32 %v5564, 16
        %v5662 = vrot.slane %v5660, 1
        %v5663 = vsel %vm588, %v5658, %v5662
        %v5664 = vshrl.u32 %v5564, 16
        %v5666 = vor.u32 %v5664, %v5662
        %v5668 = vshll.u32 %v5565, 16
        %v5670 = vrot.slane %v5668, 1
        %v5671 = vsel %vm588, %v5666, %v5670
        %v5672 = vshrl.u32 %v5565, 16
        %v5674 = vor.u32 %v5672, %v5670
        %v5676 = vshll.u32 %v5566, 16
        %v5678 = vrot.slane %v5676, 1
        %v5679 = vsel %vm588, %v5674, %v5678
        %v5680 = vshrl.u32 %v5566, 16
        %v5682 = vor.u32 %v5680, %v5678
        %v5684 = vshll.u32 %v5567, 16
        %v5686 = vrot.slane %v5684, 1
        %v5687 = vsel %vm588, %v5682, %v5686
        %v5688 = vshrl.u32 %v5567, 16
        %v5690 = vor.u32 %v5688, %v5686
        %v5692 = vshll.u32 %v5568, 16
        %v5694 = vrot.slane %v5692, 1
        %v5695 = vsel %vm588, %v5690, %v5694
        %v5696 = vshrl.u32 %v5568, 16
        %v5698 = vor.u32 %v5696, %v5694
        %v5700 = vshll.u32 %v5569, 16
        %v5702 = vrot.slane %v5700, 1
        %v5703 = vsel %vm588, %v5698, %v5702
        %v5704 = vshrl.u32 %v5569, 16
        %v5706 = vor.u32 %v5704, %v5702
        %v5708 = vshll.u32 %v5570, 16
        %v5710 = vrot.slane %v5708, 1
        %v5711 = vsel %vm588, %v5706, %v5710
        %v5712 = vshrl.u32 %v5570, 16
        %v5714 = vor.u32 %v5712, %v5710
        %v5716 = vshll.u32 %v5571, 16
        %v5718 = vrot.slane %v5716, 1
        %v5719 = vsel %vm588, %v5714, %v5718
        %v5724 = vunpack.c.l.b16 %v5475
        %v5725 = vunpack.c.l.b16 %v5476
        %v5726 = vunpack.c.l.b16 %v5477
        %v5727 = vunpack.c.l.b16 %v5478
        %v5728 = vpack.c.b16 %v5725, %v5724
        %v5729 = vpack.c.b16 %v5727, %v5726
        %v5733 = vsel %vm4204, %v5583, 0
        %v5736 = vsel %vm4204, %v5591, 0
        %v5739 = vsel %vm4204, %v5599, 0
        %v5742 = vsel %vm4204, %v5607, 0
        %v5745 = vsel %vm4204, %v5615, 0
        %v5748 = vsel %vm4204, %v5623, 0
        %v5751 = vsel %vm4204, %v5631, 0
        %v5754 = vsel %vm4204, %v5639, 0
        %v5757 = vsel %vm4204, %v5647, 0
        %v5760 = vsel %vm4204, %v5655, 0
        %v5763 = vsel %vm4204, %v5663, 0
        %v5766 = vsel %vm4204, %v5671, 0
        %v5769 = vsel %vm4204, %v5679, 0
        %v5772 = vsel %vm4204, %v5687, 0
        %v5775 = vsel %vm4204, %v5695, 0
        %v5778 = vsel %vm4204, %v5703, 0
        %v5781 = vsel %vm4204, %v5711, 0
        %v5784 = vsel %vm4204, %v5719, 0
        %5786 = vmatprep.subr.bf16.mxu0 0
        %5787 = vmatpush1.bf16.msra.mxu0 %v5728
        %5788 = vmatprep.subr.bf16.mxu0 0
        %5789 = vmatpush1.bf16.msra.mxu0 %v5729
        %5790 = vmatprep.subr.bf16.mxu0 0
        %5791 = vmatpush1.bf16.msra.mxu0 0
        %5792 = vmatprep.subr.bf16.mxu0 0
        %5793 = vmatpush1.bf16.msra.mxu0 0
        %5794 = vmatprep.subr.bf16.mxu0 0
        %5795 = vmatpush1.bf16.msra.mxu0 0
        %5796 = vmatprep.subr.bf16.mxu0 0
        %5797 = vmatpush1.bf16.msra.mxu0 0
        %5798 = vmatprep.subr.bf16.mxu0 0
        %5799 = vmatpush1.bf16.msra.mxu0 0
        %5800 = vmatprep.subr.bf16.mxu0 0
        %5801 = vmatpush1.bf16.msra.mxu0 0
        %5802 = vmatprep.subr.bf16.mxu0 0
        %5803 = vmatpush1.bf16.msra.mxu0 0
        %5804 = vmatprep.subr.bf16.mxu0 0
        %5805 = vmatpush1.bf16.msra.mxu0 0
        %5806 = vmatprep.subr.bf16.mxu0 0
        %5807 = vmatpush1.bf16.msra.mxu0 0
        %5808 = vmatprep.subr.bf16.mxu0 0
        %5809 = vmatpush1.bf16.msra.mxu0 0
        %5810 = vmatprep.subr.bf16.mxu0 0
        %5811 = vmatpush1.bf16.msra.mxu0 0
        %5812 = vmatprep.subr.bf16.mxu0 0
        %5813 = vmatpush1.bf16.msra.mxu0 0
        %5814 = vmatprep.subr.bf16.mxu0 0
        %5815 = vmatpush1.bf16.msra.mxu0 0
        %5816 = vmatprep.subr.bf16.mxu0 0
        %5817 = vmatpush1.bf16.msra.mxu0 0
        %5818 = vmatprep.mubr.bf16.mxu0 0
        %5819 = vmatmul.mubr.bf16.gmra.mrb[0].mxu0 %v5733
        %v5820 = vpop.f32.mrb[0].mxu0
        %v5821 = vadd.f32 0.0, %v5820
        %v5822 = vpop.f32.mrb[0].mxu0
        %v5823 = vpop.f32.mrb[0].mxu0
        %v5824 = vadd.f32 0.0, %v5823
        %v5825 = vpop.f32.mrb[0].mxu0
        %5826 = vmatprep.mubr.bf16.mxu0 0
        %5827 = vmatmul.mubr.bf16.gmra.mrb[0].mxu0 %v5736
        %v5828 = vpop.f32.mrb[0].mxu0
        %v5829 = vadd.f32 0.0, %v5828
        %v5830 = vpop.f32.mrb[0].mxu0
        %v5831 = vpop.f32.mrb[0].mxu0
        %v5832 = vadd.f32 0.0, %v5831
        %v5833 = vpop.f32.mrb[0].mxu0
        %5834 = vmatprep.mubr.bf16.mxu0 0
        %5835 = vmatmul.mubr.bf16.gmra.mrb[0].mxu0 %v5739
        %v5836 = vpop.f32.mrb[0].mxu0
        %v5837 = vadd.f32 0.0, %v5836
        %v5838 = vpop.f32.mrb[0].mxu0
        %v5839 = vpop.f32.mrb[0].mxu0
        %v5840 = vadd.f32 0.0, %v5839
        %v5841 = vpop.f32.mrb[0].mxu0
        %5842 = vmatprep.mubr.bf16.mxu0 0
        %5843 = vmatmul.mubr.bf16.gmra.mrb[0].mxu0 %v5742
        %v5844 = vpop.f32.mrb[0].mxu0
        %v5845 = vadd.f32 0.0, %v5844
        %v5846 = vpop.f32.mrb[0].mxu0
        %v5847 = vpop.f32.mrb[0].mxu0
        %v5848 = vadd.f32 0.0, %v5847
        %v5849 = vpop.f32.mrb[0].mxu0
        %5850 = vmatprep.mubr.bf16.mxu0 0
        %5851 = vmatmul.mubr.bf16.gmra.mrb[0].mxu0 %v5745
        %v5852 = vpop.f32.mrb[0].mxu0
        %v5853 = vadd.f32 0.0, %v5852
        %v5854 = vpop.f32.mrb[0].mxu0
        %v5855 = vpop.f32.mrb[0].mxu0
        %v5856 = vadd.f32 0.0, %v5855
        %v5857 = vpop.f32.mrb[0].mxu0
        %5858 = vmatprep.mubr.bf16.mxu0 0
        %5859 = vmatmul.mubr.bf16.gmra.mrb[0].mxu0 %v5748
        %v5860 = vpop.f32.mrb[0].mxu0
        %v5861 = vadd.f32 0.0, %v5860
        %v5862 = vpop.f32.mrb[0].mxu0
        %v5863 = vpop.f32.mrb[0].mxu0
        %v5864 = vadd.f32 0.0, %v5863
        %v5865 = vpop.f32.mrb[0].mxu0
        %5866 = vmatprep.mubr.bf16.mxu0 0
        %5867 = vmatmul.mubr.bf16.gmra.mrb[0].mxu0 %v5751
        %v5868 = vpop.f32.mrb[0].mxu0
        %v5869 = vadd.f32 0.0, %v5868
        %v5870 = vpop.f32.mrb[0].mxu0
        %v5871 = vpop.f32.mrb[0].mxu0
        %v5872 = vadd.f32 0.0, %v5871
        %v5873 = vpop.f32.mrb[0].mxu0
        %5874 = vmatprep.mubr.bf16.mxu0 0
        %5875 = vmatmul.mubr.bf16.gmra.mrb[0].mxu0 %v5754
        %v5876 = vpop.f32.mrb[0].mxu0
        %v5877 = vadd.f32 0.0, %v5876
        %v5878 = vpop.f32.mrb[0].mxu0
        %v5879 = vpop.f32.mrb[0].mxu0
        %v5880 = vadd.f32 0.0, %v5879
        %v5881 = vpop.f32.mrb[0].mxu0
        %5882 = vmatprep.mubr.bf16.mxu0 0
        %5883 = vmatmul.mubr.bf16.gmra.mrb[0].mxu0 %v5757
        %v5884 = vpop.f32.mrb[0].mxu0
        %v5885 = vadd.f32 0.0, %v5884
        %v5886 = vpop.f32.mrb[0].mxu0
        %v5887 = vpop.f32.mrb[0].mxu0
        %v5888 = vadd.f32 0.0, %v5887
        %v5889 = vpop.f32.mrb[0].mxu0
        %5890 = vmatprep.mubr.bf16.mxu0 0
        %5891 = vmatmul.mubr.bf16.gmra.mrb[0].mxu0 %v5760
        %v5892 = vpop.f32.mrb[0].mxu0
        %v5893 = vadd.f32 0.0, %v5892
        %v5894 = vpop.f32.mrb[0].mxu0
        %v5895 = vpop.f32.mrb[0].mxu0
        %v5896 = vadd.f32 0.0, %v5895
        %v5897 = vpop.f32.mrb[0].mxu0
        %5898 = vmatprep.mubr.bf16.mxu0 0
        %5899 = vmatmul.mubr.bf16.gmra.mrb[0].mxu0 %v5763
        %v5900 = vpop.f32.mrb[0].mxu0
        %v5901 = vadd.f32 0.0, %v5900
        %v5902 = vpop.f32.mrb[0].mxu0
        %v5903 = vpop.f32.mrb[0].mxu0
        %v5904 = vadd.f32 0.0, %v5903
        %v5905 = vpop.f32.mrb[0].mxu0
        %5906 = vmatprep.mubr.bf16.mxu0 0
        %5907 = vmatmul.mubr.bf16.gmra.mrb[0].mxu0 %v5766
        %v5908 = vpop.f32.mrb[0].mxu0
        %v5909 = vadd.f32 0.0, %v5908
        %v5910 = vpop.f32.mrb[0].mxu0
        %v5911 = vpop.f32.mrb[0].mxu0
        %v5912 = vadd.f32 0.0, %v5911
        %v5913 = vpop.f32.mrb[0].mxu0
        %5914 = vmatprep.mubr.bf16.mxu0 0
        %5915 = vmatmul.mubr.bf16.gmra.mrb[0].mxu0 %v5769
        %v5916 = vpop.f32.mrb[0].mxu0
        %v5917 = vadd.f32 0.0, %v5916
        %v5918 = vpop.f32.mrb[0].mxu0
        %v5919 = vpop.f32.mrb[0].mxu0
        %v5920 = vadd.f32 0.0, %v5919
        %v5921 = vpop.f32.mrb[0].mxu0
        %5922 = vmatprep.mubr.bf16.mxu0 0
        %5923 = vmatmul.mubr.bf16.gmra.mrb[0].mxu0 %v5772
        %v5924 = vpop.f32.mrb[0].mxu0
        %v5925 = vadd.f32 0.0, %v5924
        %v5926 = vpop.f32.mrb[0].mxu0
        %v5927 = vpop.f32.mrb[0].mxu0
        %v5928 = vadd.f32 0.0, %v5927
        %v5929 = vpop.f32.mrb[0].mxu0
        %5930 = vmatprep.mubr.bf16.mxu0 0
        %5931 = vmatmul.mubr.bf16.gmra.mrb[0].mxu0 %v5775
        %v5932 = vpop.f32.mrb[0].mxu0
        %v5933 = vadd.f32 0.0, %v5932
        %v5934 = vpop.f32.mrb[0].mxu0
        %v5935 = vpop.f32.mrb[0].mxu0
        %v5936 = vadd.f32 0.0, %v5935
        %v5937 = vpop.f32.mrb[0].mxu0
        %5938 = vmatprep.mubr.bf16.mxu0 0
        %5939 = vmatmul.mubr.bf16.gmra.mrb[0].mxu0 %v5778
        %v5940 = vpop.f32.mrb[0].mxu0
        %v5941 = vadd.f32 0.0, %v5940
        %v5942 = vpop.f32.mrb[0].mxu0
        %v5943 = vpop.f32.mrb[0].mxu0
        %v5944 = vadd.f32 0.0, %v5943
        %v5945 = vpop.f32.mrb[0].mxu0
        %5946 = vmatprep.mubr.bf16.mxu0 0
        %5947 = vmatmul.mubr.bf16.gmra.mrb[0].mxu0 %v5781
        %v5948 = vpop.f32.mrb[0].mxu0
        %v5949 = vadd.f32 0.0, %v5948
        %v5950 = vpop.f32.mrb[0].mxu0
        %v5951 = vpop.f32.mrb[0].mxu0
        %v5952 = vadd.f32 0.0, %v5951
        %v5953 = vpop.f32.mrb[0].mxu0
        %5954 = vmatprep.mubr.bf16.mxu0 0
        %5955 = vmatmul.mubr.bf16.gmra.mrb[0].mxu0 %v5784
        %v5956 = vpop.f32.mrb[0].mxu0
        %v5957 = vadd.f32 0.0, %v5956
        %v5958 = vpop.f32.mrb[0].mxu0
        %v5959 = vpop.f32.mrb[0].mxu0
        %v5960 = vadd.f32 0.0, %v5959
        %v5961 = vpop.f32.mrb[0].mxu0
        %5962 = vdwg.mxu0
        %v5967 = vunpack.c.l.b16 %v5469
        %v5968 = vunpack.c.l.b16 %v5470
        %v5969 = vunpack.c.l.b16 %v5471
        %v5970 = vunpack.c.l.b16 %v5472
        %v5971 = vpack.c.b16 %v5968, %v5967
        %v5972 = vpack.c.b16 %v5970, %v5969
        %v5975 = vsel %vm4204, %v5553, 0
        %v5977 = vsel %vm4204, %v5554, 0
        %v5979 = vsel %vm4204, %v5555, 0
        %v5981 = vsel %vm4204, %v5556, 0
        %v5983 = vsel %vm4204, %v5557, 0
        %v5985 = vsel %vm4204, %v5558, 0
        %v5987 = vsel %vm4204, %v5559, 0
        %v5989 = vsel %vm4204, %v5560, 0
        %v5991 = vsel %vm4204, %v5561, 0
        %v5993 = vsel %vm4204, %v5562, 0
        %v5995 = vsel %vm4204, %v5563, 0
        %v5997 = vsel %vm4204, %v5564, 0
        %v5999 = vsel %vm4204, %v5565, 0
        %v6001 = vsel %vm4204, %v5566, 0
        %v6003 = vsel %vm4204, %v5567, 0
        %v6005 = vsel %vm4204, %v5568, 0
        %v6007 = vsel %vm4204, %v5569, 0
        %v6009 = vsel %vm4204, %v5570, 0
        %6011 = vmatprep.subr.bf16.mxu0 0
        %6012 = vmatpush1.bf16.msra.mxu0 %v5971
        %6013 = vmatprep.subr.bf16.mxu0 0
        %6014 = vmatpush1.bf16.msra.mxu0 %v5972
        %6015 = vmatprep.subr.bf16.mxu0 0
        %6016 = vmatpush1.bf16.msra.mxu0 0
        %6017 = vmatprep.subr.bf16.mxu0 0
        %6018 = vmatpush1.bf16.msra.mxu0 0
        %6019 = vmatprep.subr.bf16.mxu0 0
        %6020 = vmatpush1.bf16.msra.mxu0 0
        %6021 = vmatprep.subr.bf16.mxu0 0
        %6022 = vmatpush1.bf16.msra.mxu0 0
        %6023 = vmatprep.subr.bf16.mxu0 0
        %6024 = vmatpush1.bf16.msra.mxu0 0
        %6025 = vmatprep.subr.bf16.mxu0 0
        %6026 = vmatpush1.bf16.msra.mxu0 0
        %6027 = vmatprep.subr.bf16.mxu0 0
        %6028 = vmatpush1.bf16.msra.mxu0 0
        %6029 = vmatprep.subr.bf16.mxu0 0
        %6030 = vmatpush1.bf16.msra.mxu0 0
        %6031 = vmatprep.subr.bf16.mxu0 0
        %6032 = vmatpush1.bf16.msra.mxu0 0
        %6033 = vmatprep.subr.bf16.mxu0 0
        %6034 = vmatpush1.bf16.msra.mxu0 0
        %6035 = vmatprep.subr.bf16.mxu0 0
        %6036 = vmatpush1.bf16.msra.mxu0 0
        %6037 = vmatprep.subr.bf16.mxu0 0
        %6038 = vmatpush1.bf16.msra.mxu0 0
        %6039 = vmatprep.subr.bf16.mxu0 0
        %6040 = vmatpush1.bf16.msra.mxu0 0
        %6041 = vmatprep.subr.bf16.mxu0 0
        %6042 = vmatpush1.bf16.msra.mxu0 0
        %6043 = vmatprep.mubr.bf16.mxu0 0
        %6044 = vmatmul.mubr.bf16.gmra.mrb[0].mxu0 %v5975
        %v6045 = vpop.f32.mrb[0].mxu0
        %v6046 = vadd.f32 %v5821, %v6045
        %v6047 = vpop.f32.mrb[0].mxu0
        %v6048 = vpop.f32.mrb[0].mxu0
        %v6049 = vadd.f32 %v5824, %v6048
        %v6050 = vpop.f32.mrb[0].mxu0
        %6051 = vmatprep.mubr.bf16.mxu0 0
        %6052 = vmatmul.mubr.bf16.gmra.mrb[0].mxu0 %v5977
        %v6053 = vpop.f32.mrb[0].mxu0
        %v6054 = vadd.f32 %v5829, %v6053
        %v6055 = vpop.f32.mrb[0].mxu0
        %v6056 = vpop.f32.mrb[0].mxu0
        %v6057 = vadd.f32 %v5832, %v6056
        %v6058 = vpop.f32.mrb[0].mxu0
        %6059 = vmatprep.mubr.bf16.mxu0 0
        %6060 = vmatmul.mubr.bf16.gmra.mrb[0].mxu0 %v5979
        %v6061 = vpop.f32.mrb[0].mxu0
        %v6062 = vadd.f32 %v5837, %v6061
        %v6063 = vpop.f32.mrb[0].mxu0
        %v6064 = vpop.f32.mrb[0].mxu0
        %v6065 = vadd.f32 %v5840, %v6064
        %v6066 = vpop.f32.mrb[0].mxu0
        %6067 = vmatprep.mubr.bf16.mxu0 0
        %6068 = vmatmul.mubr.bf16.gmra.mrb[0].mxu0 %v5981
        %v6069 = vpop.f32.mrb[0].mxu0
        %v6070 = vadd.f32 %v5845, %v6069
        %v6071 = vpop.f32.mrb[0].mxu0
        %v6072 = vpop.f32.mrb[0].mxu0
        %v6073 = vadd.f32 %v5848, %v6072
        %v6074 = vpop.f32.mrb[0].mxu0
        %6075 = vmatprep.mubr.bf16.mxu0 0
        %6076 = vmatmul.mubr.bf16.gmra.mrb[0].mxu0 %v5983
        %v6077 = vpop.f32.mrb[0].mxu0
        %v6078 = vadd.f32 %v5853, %v6077
        %v6079 = vpop.f32.mrb[0].mxu0
        %v6080 = vpop.f32.mrb[0].mxu0
        %v6081 = vadd.f32 %v5856, %v6080
        %v6082 = vpop.f32.mrb[0].mxu0
        %6083 = vmatprep.mubr.bf16.mxu0 0
        %6084 = vmatmul.mubr.bf16.gmra.mrb[0].mxu0 %v5985
        %v6085 = vpop.f32.mrb[0].mxu0
        %v6086 = vadd.f32 %v5861, %v6085
        %v6087 = vpop.f32.mrb[0].mxu0
        %v6088 = vpop.f32.mrb[0].mxu0
        %v6089 = vadd.f32 %v5864, %v6088
        %v6090 = vpop.f32.mrb[0].mxu0
        %6091 = vmatprep.mubr.bf16.mxu0 0
        %6092 = vmatmul.mubr.bf16.gmra.mrb[0].mxu0 %v5987
        %v6093 = vpop.f32.mrb[0].mxu0
        %v6094 = vadd.f32 %v5869, %v6093
        %v6095 = vpop.f32.mrb[0].mxu0
        %v6096 = vpop.f32.mrb[0].mxu0
        %v6097 = vadd.f32 %v5872, %v6096
        %v6098 = vpop.f32.mrb[0].mxu0
        %6099 = vmatprep.mubr.bf16.mxu0 0
        %6100 = vmatmul.mubr.bf16.gmra.mrb[0].mxu0 %v5989
        %v6101 = vpop.f32.mrb[0].mxu0
        %v6102 = vadd.f32 %v5877, %v6101
        %v6103 = vpop.f32.mrb[0].mxu0
        %v6104 = vpop.f32.mrb[0].mxu0
        %v6105 = vadd.f32 %v5880, %v6104
        %v6106 = vpop.f32.mrb[0].mxu0
        %6107 = vmatprep.mubr.bf16.mxu0 0
        %6108 = vmatmul.mubr.bf16.gmra.mrb[0].mxu0 %v5991
        %v6109 = vpop.f32.mrb[0].mxu0
        %v6110 = vadd.f32 %v5885, %v6109
        %v6111 = vpop.f32.mrb[0].mxu0
        %v6112 = vpop.f32.mrb[0].mxu0
        %v6113 = vadd.f32 %v5888, %v6112
        %v6114 = vpop.f32.mrb[0].mxu0
        %6115 = vmatprep.mubr.bf16.mxu0 0
        %6116 = vmatmul.mubr.bf16.gmra.mrb[0].mxu0 %v5993
        %v6117 = vpop.f32.mrb[0].mxu0
        %v6118 = vadd.f32 %v5893, %v6117
        %v6119 = vpop.f32.mrb[0].mxu0
        %v6120 = vpop.f32.mrb[0].mxu0
        %v6121 = vadd.f32 %v5896, %v6120
        %v6122 = vpop.f32.mrb[0].mxu0
        %6123 = vmatprep.mubr.bf16.mxu0 0
        %6124 = vmatmul.mubr.bf16.gmra.mrb[0].mxu0 %v5995
        %v6125 = vpop.f32.mrb[0].mxu0
        %v6126 = vadd.f32 %v5901, %v6125
        %v6127 = vpop.f32.mrb[0].mxu0
        %v6128 = vpop.f32.mrb[0].mxu0
        %v6129 = vadd.f32 %v5904, %v6128
        %v6130 = vpop.f32.mrb[0].mxu0
        %6131 = vmatprep.mubr.bf16.mxu0 0
        %6132 = vmatmul.mubr.bf16.gmra.mrb[0].mxu0 %v5997
        %v6133 = vpop.f32.mrb[0].mxu0
        %v6134 = vadd.f32 %v5909, %v6133
        %v6135 = vpop.f32.mrb[0].mxu0
        %v6136 = vpop.f32.mrb[0].mxu0
        %v6137 = vadd.f32 %v5912, %v6136
        %v6138 = vpop.f32.mrb[0].mxu0
        %6139 = vmatprep.mubr.bf16.mxu0 0
        %6140 = vmatmul.mubr.bf16.gmra.mrb[0].mxu0 %v5999
        %v6141 = vpop.f32.mrb[0].mxu0
        %v6142 = vadd.f32 %v5917, %v6141
        %v6143 = vpop.f32.mrb[0].mxu0
        %v6144 = vpop.f32.mrb[0].mxu0
        %v6145 = vadd.f32 %v5920, %v6144
        %v6146 = vpop.f32.mrb[0].mxu0
        %6147 = vmatprep.mubr.bf16.mxu0 0
        %6148 = vmatmul.mubr.bf16.gmra.mrb[0].mxu0 %v6001
        %v6149 = vpop.f32.mrb[0].mxu0
        %v6150 = vadd.f32 %v5925, %v6149
        %v6151 = vpop.f32.mrb[0].mxu0
        %v6152 = vpop.f32.mrb[0].mxu0
        %v6153 = vadd.f32 %v5928, %v6152
        %v6154 = vpop.f32.mrb[0].mxu0
        %6155 = vmatprep.mubr.bf16.mxu0 0
        %6156 = vmatmul.mubr.bf16.gmra.mrb[0].mxu0 %v6003
        %v6157 = vpop.f32.mrb[0].mxu0
        %v6158 = vadd.f32 %v5933, %v6157
        %v6159 = vpop.f32.mrb[0].mxu0
        %v6160 = vpop.f32.mrb[0].mxu0
        %v6161 = vadd.f32 %v5936, %v6160
        %v6162 = vpop.f32.mrb[0].mxu0
        %6163 = vmatprep.mubr.bf16.mxu0 0
        %6164 = vmatmul.mubr.bf16.gmra.mrb[0].mxu0 %v6005
        %v6165 = vpop.f32.mrb[0].mxu0
        %v6166 = vadd.f32 %v5941, %v6165
        %v6167 = vpop.f32.mrb[0].mxu0
        %v6168 = vpop.f32.mrb[0].mxu0
        %v6169 = vadd.f32 %v5944, %v6168
        %v6170 = vpop.f32.mrb[0].mxu0
        %6171 = vmatprep.mubr.bf16.mxu0 0
        %6172 = vmatmul.mubr.bf16.gmra.mrb[0].mxu0 %v6007
        %v6173 = vpop.f32.mrb[0].mxu0
        %v6174 = vadd.f32 %v5949, %v6173
        %v6175 = vpop.f32.mrb[0].mxu0
        %v6176 = vpop.f32.mrb[0].mxu0
        %v6177 = vadd.f32 %v5952, %v6176
        %v6178 = vpop.f32.mrb[0].mxu0
        %6179 = vmatprep.mubr.bf16.mxu0 0
        %6180 = vmatmul.mubr.bf16.gmra.mrb[0].mxu0 %v6009
        %v6181 = vpop.f32.mrb[0].mxu0
        %v6182 = vadd.f32 %v5957, %v6181
        %v6183 = vpop.f32.mrb[0].mxu0
        %v6184 = vpop.f32.mrb[0].mxu0
        %v6185 = vadd.f32 %v5960, %v6184
        %v6186 = vpop.f32.mrb[0].mxu0
        %6187 = vdwg.mxu0
        %v6188 = vld [vmem:[#allocation2] sm:$0xe]
        %s6189 = scalar_lea.vmem %s8, 32
        %v6190 = vld [vmem:[%s6189] sm:$0xf]
        %v6191 = vld [vmem:[%s6189 + $0x4] sm:$0xf]
        %v6192 = vld [vmem:[%s6189 + $0x8] sm:$0xf]
        %v6193 = vld [vmem:[%s6189 + $0xc] sm:$0xf]
        %v6195 = vunpack.c.l.b16 %v6188
        %v6196 = vpack.c.b16 %v5517, %v6195
        %v6197 = vrot.slane %v6196, 1
        %v6198 = vrot.slane %v5554, 1
        %v6199 = vsel %vm1198, %v6197, %v6198
        %v6200 = vrot.slane %v5555, 1
        %v6201 = vsel %vm1198, %v6198, %v6200
        %v6202 = vrot.slane %v5556, 1
        %v6203 = vsel %vm1198, %v6200, %v6202
        %v6204 = vrot.slane %v5557, 1
        %v6205 = vsel %vm1198, %v6202, %v6204
        %v6206 = vrot.slane %v5558, 1
        %v6207 = vsel %vm1198, %v6204, %v6206
        %v6208 = vrot.slane %v5559, 1
        %v6209 = vsel %vm1198, %v6206, %v6208
        %v6210 = vrot.slane %v5560, 1
        %v6211 = vsel %vm1198, %v6208, %v6210
        %v6212 = vrot.slane %v5561, 1
        %v6213 = vsel %vm1198, %v6210, %v6212
        %v6214 = vrot.slane %v5562, 1
        %v6215 = vsel %vm1198, %v6212, %v6214
        %v6216 = vrot.slane %v5563, 1
        %v6217 = vsel %vm1198, %v6214, %v6216
        %v6218 = vrot.slane %v5564, 1
        %v6219 = vsel %vm1198, %v6216, %v6218
        %v6220 = vrot.slane %v5565, 1
        %v6221 = vsel %vm1198, %v6218, %v6220
        %v6222 = vrot.slane %v5566, 1
        %v6223 = vsel %vm1198, %v6220, %v6222
        %v6224 = vrot.slane %v5567, 1
        %v6225 = vsel %vm1198, %v6222, %v6224
        %v6226 = vrot.slane %v5568, 1
        %v6227 = vsel %vm1198, %v6224, %v6226
        %v6228 = vrot.slane %v5569, 1
        %v6229 = vsel %vm1198, %v6226, %v6228
        %v6230 = vrot.slane %v5570, 1
        %v6231 = vsel %vm1198, %v6228, %v6230
        %v6232 = vrot.slane %v5571, 1
        %v6233 = vsel %vm1198, %v6230, %v6232
        %v6238 = vunpack.c.l.b16 %v6190
        %v6239 = vunpack.c.l.b16 %v6191
        %v6240 = vunpack.c.l.b16 %v6192
        %v6241 = vunpack.c.l.b16 %v6193
        %v6242 = vpack.c.b16 %v6239, %v6238
        %v6243 = vpack.c.b16 %v6241, %v6240
        %v6247 = vsel %vm4204, %v6199, 0
        %v6250 = vsel %vm4204, %v6201, 0
        %v6253 = vsel %vm4204, %v6203, 0
        %v6256 = vsel %vm4204, %v6205, 0
        %v6259 = vsel %vm4204, %v6207, 0
        %v6262 = vsel %vm4204, %v6209, 0
        %v6265 = vsel %vm4204, %v6211, 0
        %v6268 = vsel %vm4204, %v6213, 0
        %v6271 = vsel %vm4204, %v6215, 0
        %v6274 = vsel %vm4204, %v6217, 0
        %v6277 = vsel %vm4204, %v6219, 0
        %v6280 = vsel %vm4204, %v6221, 0
        %v6283 = vsel %vm4204, %v6223, 0
        %v6286 = vsel %vm4204, %v6225, 0
        %v6289 = vsel %vm4204, %v6227, 0
        %v6292 = vsel %vm4204, %v6229, 0
        %v6295 = vsel %vm4204, %v6231, 0
        %v6298 = vsel %vm4204, %v6233, 0
        %6300 = vmatprep.subr.bf16.mxu0 0
        %6301 = vmatpush1.bf16.msra.mxu0 %v6242
        %6302 = vmatprep.subr.bf16.mxu0 0
        %6303 = vmatpush1.bf16.msra.mxu0 %v6243
        %6304 = vmatprep.subr.bf16.mxu0 0
        %6305 = vmatpush1.bf16.msra.mxu0 0
        %6306 = vmatprep.subr.bf16.mxu0 0
        %6307 = vmatpush1.bf16.msra.mxu0 0
        %6308 = vmatprep.subr.bf16.mxu0 0
        %6309 = vmatpush1.bf16.msra.mxu0 0
        %6310 = vmatprep.subr.bf16.mxu0 0
        %6311 = vmatpush1.bf16.msra.mxu0 0
        %6312 = vmatprep.subr.bf16.mxu0 0
        %6313 = vmatpush1.bf16.msra.mxu0 0
        %6314 = vmatprep.subr.bf16.mxu0 0
        %6315 = vmatpush1.bf16.msra.mxu0 0
        %6316 = vmatprep.subr.bf16.mxu0 0
        %6317 = vmatpush1.bf16.msra.mxu0 0
        %6318 = vmatprep.subr.bf16.mxu0 0
        %6319 = vmatpush1.bf16.msra.mxu0 0
        %6320 = vmatprep.subr.bf16.mxu0 0
        %6321 = vmatpush1.bf16.msra.mxu0 0
        %6322 = vmatprep.subr.bf16.mxu0 0
        %6323 = vmatpush1.bf16.msra.mxu0 0
        %6324 = vmatprep.subr.bf16.mxu0 0
        %6325 = vmatpush1.bf16.msra.mxu0 0
        %6326 = vmatprep.subr.bf16.mxu0 0
        %6327 = vmatpush1.bf16.msra.mxu0 0
        %6328 = vmatprep.subr.bf16.mxu0 0
        %6329 = vmatpush1.bf16.msra.mxu0 0
        %6330 = vmatprep.subr.bf16.mxu0 0
        %6331 = vmatpush1.bf16.msra.mxu0 0
        %6332 = vmatprep.mubr.bf16.mxu0 0
        %6333 = vmatmul.mubr.bf16.gmra.mrb[0].mxu0 %v6247
        %v6334 = vpop.f32.mrb[0].mxu0
        %v6335 = vadd.f32 0.0, %v6334
        %v6336 = vpop.f32.mrb[0].mxu0
        %v6337 = vpop.f32.mrb[0].mxu0
        %v6338 = vadd.f32 0.0, %v6337
        %v6339 = vpop.f32.mrb[0].mxu0
        %6340 = vmatprep.mubr.bf16.mxu0 0
        %6341 = vmatmul.mubr.bf16.gmra.mrb[0].mxu0 %v6250
        %v6342 = vpop.f32.mrb[0].mxu0
        %v6343 = vadd.f32 0.0, %v6342
        %v6344 = vpop.f32.mrb[0].mxu0
        %v6345 = vpop.f32.mrb[0].mxu0
        %v6346 = vadd.f32 0.0, %v6345
        %v6347 = vpop.f32.mrb[0].mxu0
        %6348 = vmatprep.mubr.bf16.mxu0 0
        %6349 = vmatmul.mubr.bf16.gmra.mrb[0].mxu0 %v6253
        %v6350 = vpop.f32.mrb[0].mxu0
        %v6351 = vadd.f32 0.0, %v6350
        %v6352 = vpop.f32.mrb[0].mxu0
        %v6353 = vpop.f32.mrb[0].mxu0
        %v6354 = vadd.f32 0.0, %v6353
        %v6355 = vpop.f32.mrb[0].mxu0
        %6356 = vmatprep.mubr.bf16.mxu0 0
        %6357 = vmatmul.mubr.bf16.gmra.mrb[0].mxu0 %v6256
        %v6358 = vpop.f32.mrb[0].mxu0
        %v6359 = vadd.f32 0.0, %v6358
        %v6360 = vpop.f32.mrb[0].mxu0
        %v6361 = vpop.f32.mrb[0].mxu0
        %v6362 = vadd.f32 0.0, %v6361
        %v6363 = vpop.f32.mrb[0].mxu0
        %6364 = vmatprep.mubr.bf16.mxu0 0
        %6365 = vmatmul.mubr.bf16.gmra.mrb[0].mxu0 %v6259
        %v6366 = vpop.f32.mrb[0].mxu0
        %v6367 = vadd.f32 0.0, %v6366
        %v6368 = vpop.f32.mrb[0].mxu0
        %v6369 = vpop.f32.mrb[0].mxu0
        %v6370 = vadd.f32 0.0, %v6369
        %v6371 = vpop.f32.mrb[0].mxu0
        %6372 = vmatprep.mubr.bf16.mxu0 0
        %6373 = vmatmul.mubr.bf16.gmra.mrb[0].mxu0 %v6262
        %v6374 = vpop.f32.mrb[0].mxu0
        %v6375 = vadd.f32 0.0, %v6374
        %v6376 = vpop.f32.mrb[0].mxu0
        %v6377 = vpop.f32.mrb[0].mxu0
        %v6378 = vadd.f32 0.0, %v6377
        %v6379 = vpop.f32.mrb[0].mxu0
        %6380 = vmatprep.mubr.bf16.mxu0 0
        %6381 = vmatmul.mubr.bf16.gmra.mrb[0].mxu0 %v6265
        %v6382 = vpop.f32.mrb[0].mxu0
        %v6383 = vadd.f32 0.0, %v6382
        %v6384 = vpop.f32.mrb[0].mxu0
        %v6385 = vpop.f32.mrb[0].mxu0
        %v6386 = vadd.f32 0.0, %v6385
        %v6387 = vpop.f32.mrb[0].mxu0
        %6388 = vmatprep.mubr.bf16.mxu0 0
        %6389 = vmatmul.mubr.bf16.gmra.mrb[0].mxu0 %v6268
        %v6390 = vpop.f32.mrb[0].mxu0
        %v6391 = vadd.f32 0.0, %v6390
        %v6392 = vpop.f32.mrb[0].mxu0
        %v6393 = vpop.f32.mrb[0].mxu0
        %v6394 = vadd.f32 0.0, %v6393
        %v6395 = vpop.f32.mrb[0].mxu0
        %6396 = vmatprep.mubr.bf16.mxu0 0
        %6397 = vmatmul.mubr.bf16.gmra.mrb[0].mxu0 %v6271
        %v6398 = vpop.f32.mrb[0].mxu0
        %v6399 = vadd.f32 0.0, %v6398
        %v6400 = vpop.f32.mrb[0].mxu0
        %v6401 = vpop.f32.mrb[0].mxu0
        %v6402 = vadd.f32 0.0, %v6401
        %v6403 = vpop.f32.mrb[0].mxu0
        %6404 = vmatprep.mubr.bf16.mxu0 0
        %6405 = vmatmul.mubr.bf16.gmra.mrb[0].mxu0 %v6274
        %v6406 = vpop.f32.mrb[0].mxu0
        %v6407 = vadd.f32 0.0, %v6406
        %v6408 = vpop.f32.mrb[0].mxu0
        %v6409 = vpop.f32.mrb[0].mxu0
        %v6410 = vadd.f32 0.0, %v6409
        %v6411 = vpop.f32.mrb[0].mxu0
        %6412 = vmatprep.mubr.bf16.mxu0 0
        %6413 = vmatmul.mubr.bf16.gmra.mrb[0].mxu0 %v6277
        %v6414 = vpop.f32.mrb[0].mxu0
        %v6415 = vadd.f32 0.0, %v6414
        %v6416 = vpop.f32.mrb[0].mxu0
        %v6417 = vpop.f32.mrb[0].mxu0
        %v6418 = vadd.f32 0.0, %v6417
        %v6419 = vpop.f32.mrb[0].mxu0
        %6420 = vmatprep.mubr.bf16.mxu0 0
        %6421 = vmatmul.mubr.bf16.gmra.mrb[0].mxu0 %v6280
        %v6422 = vpop.f32.mrb[0].mxu0
        %v6423 = vadd.f32 0.0, %v6422
        %v6424 = vpop.f32.mrb[0].mxu0
        %v6425 = vpop.f32.mrb[0].mxu0
        %v6426 = vadd.f32 0.0, %v6425
        %v6427 = vpop.f32.mrb[0].mxu0
        %6428 = vmatprep.mubr.bf16.mxu0 0
        %6429 = vmatmul.mubr.bf16.gmra.mrb[0].mxu0 %v6283
        %v6430 = vpop.f32.mrb[0].mxu0
        %v6431 = vadd.f32 0.0, %v6430
        %v6432 = vpop.f32.mrb[0].mxu0
        %v6433 = vpop.f32.mrb[0].mxu0
        %v6434 = vadd.f32 0.0, %v6433
        %v6435 = vpop.f32.mrb[0].mxu0
        %6436 = vmatprep.mubr.bf16.mxu0 0
        %6437 = vmatmul.mubr.bf16.gmra.mrb[0].mxu0 %v6286
        %v6438 = vpop.f32.mrb[0].mxu0
        %v6439 = vadd.f32 0.0, %v6438
        %v6440 = vpop.f32.mrb[0].mxu0
        %v6441 = vpop.f32.mrb[0].mxu0
        %v6442 = vadd.f32 0.0, %v6441
        %v6443 = vpop.f32.mrb[0].mxu0
        %6444 = vmatprep.mubr.bf16.mxu0 0
        %6445 = vmatmul.mubr.bf16.gmra.mrb[0].mxu0 %v6289
        %v6446 = vpop.f32.mrb[0].mxu0
        %v6447 = vadd.f32 0.0, %v6446
        %v6448 = vpop.f32.mrb[0].mxu0
        %v6449 = vpop.f32.mrb[0].mxu0
        %v6450 = vadd.f32 0.0, %v6449
        %v6451 = vpop.f32.mrb[0].mxu0
        %6452 = vmatprep.mubr.bf16.mxu0 0
        %6453 = vmatmul.mubr.bf16.gmra.mrb[0].mxu0 %v6292
        %v6454 = vpop.f32.mrb[0].mxu0
        %v6455 = vadd.f32 0.0, %v6454
        %v6456 = vpop.f32.mrb[0].mxu0
        %v6457 = vpop.f32.mrb[0].mxu0
        %v6458 = vadd.f32 0.0, %v6457
        %v6459 = vpop.f32.mrb[0].mxu0
        %6460 = vmatprep.mubr.bf16.mxu0 0
        %6461 = vmatmul.mubr.bf16.gmra.mrb[0].mxu0 %v6295
        %v6462 = vpop.f32.mrb[0].mxu0
        %v6463 = vadd.f32 0.0, %v6462
        %v6464 = vpop.f32.mrb[0].mxu0
        %v6465 = vpop.f32.mrb[0].mxu0
        %v6466 = vadd.f32 0.0, %v6465
        %v6467 = vpop.f32.mrb[0].mxu0
        %6468 = vmatprep.mubr.bf16.mxu0 0
        %6469 = vmatmul.mubr.bf16.gmra.mrb[0].mxu0 %v6298
        %v6470 = vpop.f32.mrb[0].mxu0
        %v6471 = vadd.f32 0.0, %v6470
        %v6472 = vpop.f32.mrb[0].mxu0
        %v6473 = vpop.f32.mrb[0].mxu0
        %v6474 = vadd.f32 0.0, %v6473
        %v6475 = vpop.f32.mrb[0].mxu0
        %6476 = vdwg.mxu0
        %v6477 = vadd.f32 %v6046, %v6335
        %v6478 = vadd.f32 %v6049, %v6338
        %v6479 = vadd.f32 %v6054, %v6343
        %v6480 = vadd.f32 %v6057, %v6346
        %v6481 = vadd.f32 %v6062, %v6351
        %v6482 = vadd.f32 %v6065, %v6354
        %v6483 = vadd.f32 %v6070, %v6359
        %v6484 = vadd.f32 %v6073, %v6362
        %v6485 = vadd.f32 %v6078, %v6367
        %v6486 = vadd.f32 %v6081, %v6370
        %v6487 = vadd.f32 %v6086, %v6375
        %v6488 = vadd.f32 %v6089, %v6378
        %v6489 = vadd.f32 %v6094, %v6383
        %v6490 = vadd.f32 %v6097, %v6386
        %v6491 = vadd.f32 %v6102, %v6391
        %v6492 = vadd.f32 %v6105, %v6394
        %v6493 = vadd.f32 %v6110, %v6399
        %v6494 = vadd.f32 %v6113, %v6402
        %v6495 = vadd.f32 %v6118, %v6407
        %v6496 = vadd.f32 %v6121, %v6410
        %v6497 = vadd.f32 %v6126, %v6415
        %v6498 = vadd.f32 %v6129, %v6418
        %v6499 = vadd.f32 %v6134, %v6423
        %v6500 = vadd.f32 %v6137, %v6426
        %v6501 = vadd.f32 %v6142, %v6431
        %v6502 = vadd.f32 %v6145, %v6434
        %v6503 = vadd.f32 %v6150, %v6439
        %v6504 = vadd.f32 %v6153, %v6442
        %v6505 = vadd.f32 %v6158, %v6447
        %v6506 = vadd.f32 %v6161, %v6450
        %v6507 = vadd.f32 %v6166, %v6455
        %v6508 = vadd.f32 %v6169, %v6458
        %v6509 = vadd.f32 %v6174, %v6463
        %v6510 = vadd.f32 %v6177, %v6466
        %v6511 = vadd.f32 %v6182, %v6471
        %v6512 = vadd.f32 %v6185, %v6474
        %v6513 = vld [vmem:[#allocation2 + $0x8] sm:$0xe]
        %v6514 = vld [vmem:[#allocation2 + $0xc] sm:$0xf]
        %v6515 = vld [vmem:[#allocation2 + $0x10] sm:$0xf]
        %v6516 = vld [vmem:[#allocation2 + $0x14] sm:$0xf]
        %v6517 = vld [vmem:[#allocation2 + $0x18] sm:$0xf]
        %v6518 = vld [vmem:[#allocation2 + $0x1c] sm:$0xf]
        %v6519 = vld [vmem:[#allocation2 + $0x20] sm:$0xf]
        %v6520 = vld [vmem:[#allocation2 + $0x24] sm:$0xf]
        %v6521 = vld [vmem:[#allocation2 + $0x28] sm:$0xf]
        %v6522 = vld [vmem:[#allocation2 + $0x2c] sm:$0xf]
        %v6523 = vld [vmem:[#allocation2 + $0x30] sm:$0xf]
        %v6524 = vld [vmem:[#allocation2 + $0x34] sm:$0xf]
        %v6525 = vld [vmem:[#allocation2 + $0x38] sm:$0xf]
        %v6526 = vld [vmem:[#allocation2 + $0x3c] sm:$0xf]
        %v6527 = vld [vmem:[#allocation2 + $0x40] sm:$0xf]
        %v6528 = vld [vmem:[#allocation2 + $0x44] sm:$0xf]
        %v6529 = vld [vmem:[#allocation2 + $0x48] sm:$0xf]
        %v6530 = vld [vmem:[#allocation2 + $0x4c] sm:$0xf]
        %v6531 = vld [vmem:[#allocation2 + $0x50] sm:$0xf]
        %v6532 = vld [vmem:[#allocation2 + $0x54] sm:$0xf]
        %v6533 = vld [vmem:[#allocation2 + $0x58] sm:$0xf]
        %v6534 = vld [vmem:[#allocation2 + $0x5c] sm:$0xf]
        %v6535 = vld [vmem:[#allocation2 + $0x60] sm:$0xf]
        %v6536 = vld [vmem:[#allocation2 + $0x64] sm:$0xf]
        %v6537 = vld [vmem:[#allocation2 + $0x68] sm:$0xf]
        %v6538 = vld [vmem:[#allocation2 + $0x6c] sm:$0xf]
        %v6539 = vld [vmem:[#allocation2 + $0x70] sm:$0xf]
        %v6540 = vld [vmem:[#allocation2 + $0x74] sm:$0xf]
        %v6541 = vld [vmem:[#allocation2 + $0x78] sm:$0xf]
        %v6542 = vld [vmem:[#allocation2 + $0x7c] sm:$0xf]
        %v6543 = vld [vmem:[#allocation2 + $0x80] sm:$0xf]
        %v6544 = vld [vmem:[#allocation2 + $0x84] sm:$0xf]
        %v6545 = vld [vmem:[#allocation2 + $0x88] sm:$0xf]
        %v6546 = vld [vmem:[#allocation2 + $0x8c] sm:$0xf]
        %v6547 = vld [vmem:[#allocation2 + $0x90] sm:$0xf]
        %v6548 = vld [vmem:[#allocation2 + $0x94] sm:$0xf]
        %v6549 = vld [vmem:[#allocation2 + $0x98] sm:$0x1]
        %s6550 = scalar_lea.vmem %s8, 48
        %v6551 = vld [vmem:[%s6550] sm:$0xf]
        %v6552 = vld [vmem:[%s6550 + $0x4] sm:$0xf]
        %v6553 = vld [vmem:[%s6550 + $0x8] sm:$0xf]
        %v6554 = vld [vmem:[%s6550 + $0xc] sm:$0xf]
        %v6592 = vunpack.c.l.b16 %v6513
        %v6593 = vunpack.c.l.b16 %v6514
        %v6594 = vunpack.c.l.b16 %v6515
        %v6595 = vunpack.c.l.b16 %v6516
        %v6596 = vunpack.c.l.b16 %v6517
        %v6597 = vunpack.c.l.b16 %v6518
        %v6598 = vunpack.c.l.b16 %v6519
        %v6599 = vunpack.c.l.b16 %v6520
        %v6600 = vunpack.c.l.b16 %v6521
        %v6601 = vunpack.c.l.b16 %v6522
        %v6602 = vunpack.c.l.b16 %v6523
        %v6603 = vunpack.c.l.b16 %v6524
        %v6604 = vunpack.c.l.b16 %v6525
        %v6605 = vunpack.c.l.b16 %v6526
        %v6606 = vunpack.c.l.b16 %v6527
        %v6607 = vunpack.c.l.b16 %v6528
        %v6608 = vunpack.c.l.b16 %v6529
        %v6609 = vunpack.c.l.b16 %v6530
        %v6610 = vunpack.c.l.b16 %v6531
        %v6611 = vunpack.c.l.b16 %v6532
        %v6612 = vunpack.c.l.b16 %v6533
        %v6613 = vunpack.c.l.b16 %v6534
        %v6614 = vunpack.c.l.b16 %v6535
        %v6615 = vunpack.c.l.b16 %v6536
        %v6616 = vunpack.c.l.b16 %v6537
        %v6617 = vunpack.c.l.b16 %v6538
        %v6618 = vunpack.c.l.b16 %v6539
        %v6619 = vunpack.c.l.b16 %v6540
        %v6620 = vunpack.c.l.b16 %v6541
        %v6621 = vunpack.c.l.b16 %v6542
        %v6622 = vunpack.c.l.b16 %v6543
        %v6623 = vunpack.c.l.b16 %v6544
        %v6624 = vunpack.c.l.b16 %v6545
        %v6625 = vunpack.c.l.b16 %v6546
        %v6626 = vunpack.c.l.b16 %v6547
        %v6627 = vunpack.c.l.b16 %v6548
        %v6628 = vunpack.c.l.b16 %v6549
        %v6629 = vpack.c.b16 %v6593, %v6592
        %v6630 = vpack.c.b16 %v6595, %v6594
        %v6631 = vpack.c.b16 %v6597, %v6596
        %v6632 = vpack.c.b16 %v6599, %v6598
        %v6633 = vpack.c.b16 %v6601, %v6600
        %v6634 = vpack.c.b16 %v6603, %v6602
        %v6635 = vpack.c.b16 %v6605, %v6604
        %v6636 = vpack.c.b16 %v6607, %v6606
        %v6637 = vpack.c.b16 %v6609, %v6608
        %v6638 = vpack.c.b16 %v6611, %v6610
        %v6639 = vpack.c.b16 %v6613, %v6612
        %v6640 = vpack.c.b16 %v6615, %v6614
        %v6641 = vpack.c.b16 %v6617, %v6616
        %v6642 = vpack.c.b16 %v6619, %v6618
        %v6643 = vpack.c.b16 %v6621, %v6620
        %v6644 = vpack.c.b16 %v6623, %v6622
        %v6645 = vpack.c.b16 %v6625, %v6624
        %v6646 = vpack.c.b16 %v6627, %v6626
        %v6647 = vpack.c.b16 %v6628, %v6628
        %v6648 = vrot.slane %v6629, 1
        %v6649 = vrot.slane %v6630, 1
        %v6650 = vsel %vm1198, %v6648, %v6649
        %v6651 = vrot.slane %v6631, 1
        %v6652 = vsel %vm1198, %v6649, %v6651
        %v6653 = vrot.slane %v6632, 1
        %v6654 = vsel %vm1198, %v6651, %v6653
        %v6655 = vrot.slane %v6633, 1
        %v6656 = vsel %vm1198, %v6653, %v6655
        %v6657 = vrot.slane %v6634, 1
        %v6658 = vsel %vm1198, %v6655, %v6657
        %v6659 = vrot.slane %v6635, 1
        %v6660 = vsel %vm1198, %v6657, %v6659
        %v6661 = vrot.slane %v6636, 1
        %v6662 = vsel %vm1198, %v6659, %v6661
        %v6663 = vrot.slane %v6637, 1
        %v6664 = vsel %vm1198, %v6661, %v6663
        %v6665 = vrot.slane %v6638, 1
        %v6666 = vsel %vm1198, %v6663, %v6665
        %v6667 = vrot.slane %v6639, 1
        %v6668 = vsel %vm1198, %v6665, %v6667
        %v6669 = vrot.slane %v6640, 1
        %v6670 = vsel %vm1198, %v6667, %v6669
        %v6671 = vrot.slane %v6641, 1
        %v6672 = vsel %vm1198, %v6669, %v6671
        %v6673 = vrot.slane %v6642, 1
        %v6674 = vsel %vm1198, %v6671, %v6673
        %v6675 = vrot.slane %v6643, 1
        %v6676 = vsel %vm1198, %v6673, %v6675
        %v6677 = vrot.slane %v6644, 1
        %v6678 = vsel %vm1198, %v6675, %v6677
        %v6679 = vrot.slane %v6645, 1
        %v6680 = vsel %vm1198, %v6677, %v6679
        %v6681 = vrot.slane %v6646, 1
        %v6682 = vsel %vm1198, %v6679, %v6681
        %v6683 = vrot.slane %v6647, 1
        %v6684 = vsel %vm1198, %v6681, %v6683
        %v6689 = vunpack.c.l.b16 %v6551
        %v6690 = vunpack.c.l.b16 %v6552
        %v6691 = vunpack.c.l.b16 %v6553
        %v6692 = vunpack.c.l.b16 %v6554
        %v6693 = vpack.c.b16 %v6690, %v6689
        %v6694 = vpack.c.b16 %v6692, %v6691
        %v6698 = vsel %vm4204, %v6650, 0
        %v6701 = vsel %vm4204, %v6652, 0
        %v6704 = vsel %vm4204, %v6654, 0
        %v6707 = vsel %vm4204, %v6656, 0
        %v6710 = vsel %vm4204, %v6658, 0
        %v6713 = vsel %vm4204, %v6660, 0
        %v6716 = vsel %vm4204, %v6662, 0
        %v6719 = vsel %vm4204, %v6664, 0
        %v6722 = vsel %vm4204, %v6666, 0
        %v6725 = vsel %vm4204, %v6668, 0
        %v6728 = vsel %vm4204, %v6670, 0
        %v6731 = vsel %vm4204, %v6672, 0
        %v6734 = vsel %vm4204, %v6674, 0
        %v6737 = vsel %vm4204, %v6676, 0
        %v6740 = vsel %vm4204, %v6678, 0
        %v6743 = vsel %vm4204, %v6680, 0
        %v6746 = vsel %vm4204, %v6682, 0
        %v6749 = vsel %vm4204, %v6684, 0
        %6751 = vmatprep.subr.bf16.mxu0 0
        %6752 = vmatpush1.bf16.msra.mxu0 %v6693
        %6753 = vmatprep.subr.bf16.mxu0 0
        %6754 = vmatpush1.bf16.msra.mxu0 %v6694
        %6755 = vmatprep.subr.bf16.mxu0 0
        %6756 = vmatpush1.bf16.msra.mxu0 0
        %6757 = vmatprep.subr.bf16.mxu0 0
        %6758 = vmatpush1.bf16.msra.mxu0 0
        %6759 = vmatprep.subr.bf16.mxu0 0
        %6760 = vmatpush1.bf16.msra.mxu0 0
        %6761 = vmatprep.subr.bf16.mxu0 0
        %6762 = vmatpush1.bf16.msra.mxu0 0
        %6763 = vmatprep.subr.bf16.mxu0 0
        %6764 = vmatpush1.bf16.msra.mxu0 0
        %6765 = vmatprep.subr.bf16.mxu0 0
        %6766 = vmatpush1.bf16.msra.mxu0 0
        %6767 = vmatprep.subr.bf16.mxu0 0
        %6768 = vmatpush1.bf16.msra.mxu0 0
        %6769 = vmatprep.subr.bf16.mxu0 0
        %6770 = vmatpush1.bf16.msra.mxu0 0
        %6771 = vmatprep.subr.bf16.mxu0 0
        %6772 = vmatpush1.bf16.msra.mxu0 0
        %6773 = vmatprep.subr.bf16.mxu0 0
        %6774 = vmatpush1.bf16.msra.mxu0 0
        %6775 = vmatprep.subr.bf16.mxu0 0
        %6776 = vmatpush1.bf16.msra.mxu0 0
        %6777 = vmatprep.subr.bf16.mxu0 0
        %6778 = vmatpush1.bf16.msra.mxu0 0
        %6779 = vmatprep.subr.bf16.mxu0 0
        %6780 = vmatpush1.bf16.msra.mxu0 0
        %6781 = vmatprep.subr.bf16.mxu0 0
        %6782 = vmatpush1.bf16.msra.mxu0 0
        %6783 = vmatprep.mubr.bf16.mxu0 0
        %6784 = vmatmul.mubr.bf16.gmra.mrb[0].mxu0 %v6698
        %v6785 = vpop.f32.mrb[0].mxu0
        %v6786 = vadd.f32 0.0, %v6785
        %v6787 = vpop.f32.mrb[0].mxu0
        %v6788 = vpop.f32.mrb[0].mxu0
        %v6789 = vadd.f32 0.0, %v6788
        %v6790 = vpop.f32.mrb[0].mxu0
        %6791 = vmatprep.mubr.bf16.mxu0 0
        %6792 = vmatmul.mubr.bf16.gmra.mrb[0].mxu0 %v6701
        %v6793 = vpop.f32.mrb[0].mxu0
        %v6794 = vadd.f32 0.0, %v6793
        %v6795 = vpop.f32.mrb[0].mxu0
        %v6796 = vpop.f32.mrb[0].mxu0
        %v6797 = vadd.f32 0.0, %v6796
        %v6798 = vpop.f32.mrb[0].mxu0
        %6799 = vmatprep.mubr.bf16.mxu0 0
        %6800 = vmatmul.mubr.bf16.gmra.mrb[0].mxu0 %v6704
        %v6801 = vpop.f32.mrb[0].mxu0
        %v6802 = vadd.f32 0.0, %v6801
        %v6803 = vpop.f32.mrb[0].mxu0
        %v6804 = vpop.f32.mrb[0].mxu0
        %v6805 = vadd.f32 0.0, %v6804
        %v6806 = vpop.f32.mrb[0].mxu0
        %6807 = vmatprep.mubr.bf16.mxu0 0
        %6808 = vmatmul.mubr.bf16.gmra.mrb[0].mxu0 %v6707
        %v6809 = vpop.f32.mrb[0].mxu0
        %v6810 = vadd.f32 0.0, %v6809
        %v6811 = vpop.f32.mrb[0].mxu0
        %v6812 = vpop.f32.mrb[0].mxu0
        %v6813 = vadd.f32 0.0, %v6812
        %v6814 = vpop.f32.mrb[0].mxu0
        %6815 = vmatprep.mubr.bf16.mxu0 0
        %6816 = vmatmul.mubr.bf16.gmra.mrb[0].mxu0 %v6710
        %v6817 = vpop.f32.mrb[0].mxu0
        %v6818 = vadd.f32 0.0, %v6817
        %v6819 = vpop.f32.mrb[0].mxu0
        %v6820 = vpop.f32.mrb[0].mxu0
        %v6821 = vadd.f32 0.0, %v6820
        %v6822 = vpop.f32.mrb[0].mxu0
        %6823 = vmatprep.mubr.bf16.mxu0 0
        %6824 = vmatmul.mubr.bf16.gmra.mrb[0].mxu0 %v6713
        %v6825 = vpop.f32.mrb[0].mxu0
        %v6826 = vadd.f32 0.0, %v6825
        %v6827 = vpop.f32.mrb[0].mxu0
        %v6828 = vpop.f32.mrb[0].mxu0
        %v6829 = vadd.f32 0.0, %v6828
        %v6830 = vpop.f32.mrb[0].mxu0
        %6831 = vmatprep.mubr.bf16.mxu0 0
        %6832 = vmatmul.mubr.bf16.gmra.mrb[0].mxu0 %v6716
        %v6833 = vpop.f32.mrb[0].mxu0
        %v6834 = vadd.f32 0.0, %v6833
        %v6835 = vpop.f32.mrb[0].mxu0
        %v6836 = vpop.f32.mrb[0].mxu0
        %v6837 = vadd.f32 0.0, %v6836
        %v6838 = vpop.f32.mrb[0].mxu0
        %6839 = vmatprep.mubr.bf16.mxu0 0
        %6840 = vmatmul.mubr.bf16.gmra.mrb[0].mxu0 %v6719
        %v6841 = vpop.f32.mrb[0].mxu0
        %v6842 = vadd.f32 0.0, %v6841
        %v6843 = vpop.f32.mrb[0].mxu0
        %v6844 = vpop.f32.mrb[0].mxu0
        %v6845 = vadd.f32 0.0, %v6844
        %v6846 = vpop.f32.mrb[0].mxu0
        %6847 = vmatprep.mubr.bf16.mxu0 0
        %6848 = vmatmul.mubr.bf16.gmra.mrb[0].mxu0 %v6722
        %v6849 = vpop.f32.mrb[0].mxu0
        %v6850 = vadd.f32 0.0, %v6849
        %v6851 = vpop.f32.mrb[0].mxu0
        %v6852 = vpop.f32.mrb[0].mxu0
        %v6853 = vadd.f32 0.0, %v6852
        %v6854 = vpop.f32.mrb[0].mxu0
        %6855 = vmatprep.mubr.bf16.mxu0 0
        %6856 = vmatmul.mubr.bf16.gmra.mrb[0].mxu0 %v6725
        %v6857 = vpop.f32.mrb[0].mxu0
        %v6858 = vadd.f32 0.0, %v6857
        %v6859 = vpop.f32.mrb[0].mxu0
        %v6860 = vpop.f32.mrb[0].mxu0
        %v6861 = vadd.f32 0.0, %v6860
        %v6862 = vpop.f32.mrb[0].mxu0
        %6863 = vmatprep.mubr.bf16.mxu0 0
        %6864 = vmatmul.mubr.bf16.gmra.mrb[0].mxu0 %v6728
        %v6865 = vpop.f32.mrb[0].mxu0
        %v6866 = vadd.f32 0.0, %v6865
        %v6867 = vpop.f32.mrb[0].mxu0
        %v6868 = vpop.f32.mrb[0].mxu0
        %v6869 = vadd.f32 0.0, %v6868
        %v6870 = vpop.f32.mrb[0].mxu0
        %6871 = vmatprep.mubr.bf16.mxu0 0
        %6872 = vmatmul.mubr.bf16.gmra.mrb[0].mxu0 %v6731
        %v6873 = vpop.f32.mrb[0].mxu0
        %v6874 = vadd.f32 0.0, %v6873
        %v6875 = vpop.f32.mrb[0].mxu0
        %v6876 = vpop.f32.mrb[0].mxu0
        %v6877 = vadd.f32 0.0, %v6876
        %v6878 = vpop.f32.mrb[0].mxu0
        %6879 = vmatprep.mubr.bf16.mxu0 0
        %6880 = vmatmul.mubr.bf16.gmra.mrb[0].mxu0 %v6734
        %v6881 = vpop.f32.mrb[0].mxu0
        %v6882 = vadd.f32 0.0, %v6881
        %v6883 = vpop.f32.mrb[0].mxu0
        %v6884 = vpop.f32.mrb[0].mxu0
        %v6885 = vadd.f32 0.0, %v6884
        %v6886 = vpop.f32.mrb[0].mxu0
        %6887 = vmatprep.mubr.bf16.mxu0 0
        %6888 = vmatmul.mubr.bf16.gmra.mrb[0].mxu0 %v6737
        %v6889 = vpop.f32.mrb[0].mxu0
        %v6890 = vadd.f32 0.0, %v6889
        %v6891 = vpop.f32.mrb[0].mxu0
        %v6892 = vpop.f32.mrb[0].mxu0
        %v6893 = vadd.f32 0.0, %v6892
        %v6894 = vpop.f32.mrb[0].mxu0
        %6895 = vmatprep.mubr.bf16.mxu0 0
        %6896 = vmatmul.mubr.bf16.gmra.mrb[0].mxu0 %v6740
        %v6897 = vpop.f32.mrb[0].mxu0
        %v6898 = vadd.f32 0.0, %v6897
        %v6899 = vpop.f32.mrb[0].mxu0
        %v6900 = vpop.f32.mrb[0].mxu0
        %v6901 = vadd.f32 0.0, %v6900
        %v6902 = vpop.f32.mrb[0].mxu0
        %6903 = vmatprep.mubr.bf16.mxu0 0
        %6904 = vmatmul.mubr.bf16.gmra.mrb[0].mxu0 %v6743
        %v6905 = vpop.f32.mrb[0].mxu0
        %v6906 = vadd.f32 0.0, %v6905
        %v6907 = vpop.f32.mrb[0].mxu0
        %v6908 = vpop.f32.mrb[0].mxu0
        %v6909 = vadd.f32 0.0, %v6908
        %v6910 = vpop.f32.mrb[0].mxu0
        %6911 = vmatprep.mubr.bf16.mxu0 0
        %6912 = vmatmul.mubr.bf16.gmra.mrb[0].mxu0 %v6746
        %v6913 = vpop.f32.mrb[0].mxu0
        %v6914 = vadd.f32 0.0, %v6913
        %v6915 = vpop.f32.mrb[0].mxu0
        %v6916 = vpop.f32.mrb[0].mxu0
        %v6917 = vadd.f32 0.0, %v6916
        %v6918 = vpop.f32.mrb[0].mxu0
        %6919 = vmatprep.mubr.bf16.mxu0 0
        %6920 = vmatmul.mubr.bf16.gmra.mrb[0].mxu0 %v6749
        %v6921 = vpop.f32.mrb[0].mxu0
        %v6922 = vadd.f32 0.0, %v6921
        %v6923 = vpop.f32.mrb[0].mxu0
        %v6924 = vpop.f32.mrb[0].mxu0
        %v6925 = vadd.f32 0.0, %v6924
        %v6926 = vpop.f32.mrb[0].mxu0
        %6927 = vdwg.mxu0
        %v6928 = vadd.f32 %v6477, %v6786
        %v6929 = vadd.f32 %v6478, %v6789
        %v6930 = vadd.f32 %v6479, %v6794
        %v6931 = vadd.f32 %v6480, %v6797
        %v6932 = vadd.f32 %v6481, %v6802
        %v6933 = vadd.f32 %v6482, %v6805
        %v6934 = vadd.f32 %v6483, %v6810
        %v6935 = vadd.f32 %v6484, %v6813
        %v6936 = vadd.f32 %v6485, %v6818
        %v6937 = vadd.f32 %v6486, %v6821
        %v6938 = vadd.f32 %v6487, %v6826
        %v6939 = vadd.f32 %v6488, %v6829
        %v6940 = vadd.f32 %v6489, %v6834
        %v6941 = vadd.f32 %v6490, %v6837
        %v6942 = vadd.f32 %v6491, %v6842
        %v6943 = vadd.f32 %v6492, %v6845
        %v6944 = vadd.f32 %v6493, %v6850
        %v6945 = vadd.f32 %v6494, %v6853
        %v6946 = vadd.f32 %v6495, %v6858
        %v6947 = vadd.f32 %v6496, %v6861
        %v6948 = vadd.f32 %v6497, %v6866
        %v6949 = vadd.f32 %v6498, %v6869
        %v6950 = vadd.f32 %v6499, %v6874
        %v6951 = vadd.f32 %v6500, %v6877
        %v6952 = vadd.f32 %v6501, %v6882
        %v6953 = vadd.f32 %v6502, %v6885
        %v6954 = vadd.f32 %v6503, %v6890
        %v6955 = vadd.f32 %v6504, %v6893
        %v6956 = vadd.f32 %v6505, %v6898
        %v6957 = vadd.f32 %v6506, %v6901
        %v6958 = vadd.f32 %v6507, %v6906
        %v6959 = vadd.f32 %v6508, %v6909
        %v6960 = vadd.f32 %v6509, %v6914
        %v6961 = vadd.f32 %v6510, %v6917
        %v6962 = vadd.f32 %v6511, %v6922
        %v6963 = vadd.f32 %v6512, %v6925
        %v6964 = vld [vmem:[#allocation2 + $0x98] sm:$0x3]
        %s6965 = scalar_lea.vmem %s8, 64
        %v6966 = vld [vmem:[%s6965] sm:$0xf]
        %v6967 = vld [vmem:[%s6965 + $0x4] sm:$0xf]
        %v6968 = vld [vmem:[%s6965 + $0x8] sm:$0xf]
        %v6969 = vld [vmem:[%s6965 + $0xc] sm:$0xf]
        %v6971 = vunpack.c.l.b16 %v6964
        %v6972 = vpack.c.b16 %v6971, %v6971
        %v6974 = vshrl.u32 %v6629, 16
        %v6976 = vrot.slane %v6974, 1
        %v6977 = vshll.u32 %v6629, 16
        %v6979 = vrot.slane %v6977, 2
        %v6980 = vor.u32 %v6976, %v6979
        %v6982 = vshrl.u32 %v6630, 16
        %v6984 = vrot.slane %v6982, 1
        %v6985 = vshll.u32 %v6630, 16
        %v6987 = vrot.slane %v6985, 2
        %v6988 = vor.u32 %v6984, %v6987
        %v6989 = vsel %vm1951, %v6980, %v6988
        %v6991 = vshrl.u32 %v6631, 16
        %v6993 = vrot.slane %v6991, 1
        %v6994 = vshll.u32 %v6631, 16
        %v6996 = vrot.slane %v6994, 2
        %v6997 = vor.u32 %v6993, %v6996
        %v6998 = vsel %vm1951, %v6988, %v6997
        %v7000 = vshrl.u32 %v6632, 16
        %v7002 = vrot.slane %v7000, 1
        %v7003 = vshll.u32 %v6632, 16
        %v7005 = vrot.slane %v7003, 2
        %v7006 = vor.u32 %v7002, %v7005
        %v7007 = vsel %vm1951, %v6997, %v7006
        %v7009 = vshrl.u32 %v6633, 16
        %v7011 = vrot.slane %v7009, 1
        %v7012 = vshll.u32 %v6633, 16
        %v7014 = vrot.slane %v7012, 2
        %v7015 = vor.u32 %v7011, %v7014
        %v7016 = vsel %vm1951, %v7006, %v7015
        %v7018 = vshrl.u32 %v6634, 16
        %v7020 = vrot.slane %v7018, 1
        %v7021 = vshll.u32 %v6634, 16
        %v7023 = vrot.slane %v7021, 2
        %v7024 = vor.u32 %v7020, %v7023
        %v7025 = vsel %vm1951, %v7015, %v7024
        %v7027 = vshrl.u32 %v6635, 16
        %v7029 = vrot.slane %v7027, 1
        %v7030 = vshll.u32 %v6635, 16
        %v7032 = vrot.slane %v7030, 2
        %v7033 = vor.u32 %v7029, %v7032
        %v7034 = vsel %vm1951, %v7024, %v7033
        %v7036 = vshrl.u32 %v6636, 16
        %v7038 = vrot.slane %v7036, 1
        %v7039 = vshll.u32 %v6636, 16
        %v7041 = vrot.slane %v7039, 2
        %v7042 = vor.u32 %v7038, %v7041
        %v7043 = vsel %vm1951, %v7033, %v7042
        %v7045 = vshrl.u32 %v6637, 16
        %v7047 = vrot.slane %v7045, 1
        %v7048 = vshll.u32 %v6637, 16
        %v7050 = vrot.slane %v7048, 2
        %v7051 = vor.u32 %v7047, %v7050
        %v7052 = vsel %vm1951, %v7042, %v7051
        %v7054 = vshrl.u32 %v6638, 16
        %v7056 = vrot.slane %v7054, 1
        %v7057 = vshll.u32 %v6638, 16
        %v7059 = vrot.slane %v7057, 2
        %v7060 = vor.u32 %v7056, %v7059
        %v7061 = vsel %vm1951, %v7051, %v7060
        %v7063 = vshrl.u32 %v6639, 16
        %v7065 = vrot.slane %v7063, 1
        %v7066 = vshll.u32 %v6639, 16
        %v7068 = vrot.slane %v7066, 2
        %v7069 = vor.u32 %v7065, %v7068
        %v7070 = vsel %vm1951, %v7060, %v7069
        %v7072 = vshrl.u32 %v6640, 16
        %v7074 = vrot.slane %v7072, 1
        %v7075 = vshll.u32 %v6640, 16
        %v7077 = vrot.slane %v7075, 2
        %v7078 = vor.u32 %v7074, %v7077
        %v7079 = vsel %vm1951, %v7069, %v7078
        %v7081 = vshrl.u32 %v6641, 16
        %v7083 = vrot.slane %v7081, 1
        %v7084 = vshll.u32 %v6641, 16
        %v7086 = vrot.slane %v7084, 2
        %v7087 = vor.u32 %v7083, %v7086
        %v7088 = vsel %vm1951, %v7078, %v7087
        %v7090 = vshrl.u32 %v6642, 16
        %v7092 = vrot.slane %v7090, 1
        %v7093 = vshll.u32 %v6642, 16
        %v7095 = vrot.slane %v7093, 2
        %v7096 = vor.u32 %v7092, %v7095
        %v7097 = vsel %vm1951, %v7087, %v7096
        %v7099 = vshrl.u32 %v6643, 16
        %v7101 = vrot.slane %v7099, 1
        %v7102 = vshll.u32 %v6643, 16
        %v7104 = vrot.slane %v7102, 2
        %v7105 = vor.u32 %v7101, %v7104
        %v7106 = vsel %vm1951, %v7096, %v7105
        %v7108 = vshrl.u32 %v6644, 16
        %v7110 = vrot.slane %v7108, 1
        %v7111 = vshll.u32 %v6644, 16
        %v7113 = vrot.slane %v7111, 2
        %v7114 = vor.u32 %v7110, %v7113
        %v7115 = vsel %vm1951, %v7105, %v7114
        %v7117 = vshrl.u32 %v6645, 16
        %v7119 = vrot.slane %v7117, 1
        %v7120 = vshll.u32 %v6645, 16
        %v7122 = vrot.slane %v7120, 2
        %v7123 = vor.u32 %v7119, %v7122
        %v7124 = vsel %vm1951, %v7114, %v7123
        %v7126 = vshrl.u32 %v6646, 16
        %v7128 = vrot.slane %v7126, 1
        %v7129 = vshll.u32 %v6646, 16
        %v7131 = vrot.slane %v7129, 2
        %v7132 = vor.u32 %v7128, %v7131
        %v7133 = vsel %vm1951, %v7123, %v7132
        %v7135 = vshrl.u32 %v6972, 16
        %v7137 = vrot.slane %v7135, 1
        %v7138 = vshll.u32 %v6972, 16
        %v7140 = vrot.slane %v7138, 2
        %v7141 = vor.u32 %v7137, %v7140
        %v7142 = vsel %vm1951, %v7132, %v7141
        %v7147 = vunpack.c.l.b16 %v6966
        %v7148 = vunpack.c.l.b16 %v6967
        %v7149 = vunpack.c.l.b16 %v6968
        %v7150 = vunpack.c.l.b16 %v6969
        %v7151 = vpack.c.b16 %v7148, %v7147
        %v7152 = vpack.c.b16 %v7150, %v7149
        %v7156 = vsel %vm4204, %v6989, 0
        %v7159 = vsel %vm4204, %v6998, 0
        %v7162 = vsel %vm4204, %v7007, 0
        %v7165 = vsel %vm4204, %v7016, 0
        %v7168 = vsel %vm4204, %v7025, 0
        %v7171 = vsel %vm4204, %v7034, 0
        %v7174 = vsel %vm4204, %v7043, 0
        %v7177 = vsel %vm4204, %v7052, 0
        %v7180 = vsel %vm4204, %v7061, 0
        %v7183 = vsel %vm4204, %v7070, 0
        %v7186 = vsel %vm4204, %v7079, 0
        %v7189 = vsel %vm4204, %v7088, 0
        %v7192 = vsel %vm4204, %v7097, 0
        %v7195 = vsel %vm4204, %v7106, 0
        %v7198 = vsel %vm4204, %v7115, 0
        %v7201 = vsel %vm4204, %v7124, 0
        %v7204 = vsel %vm4204, %v7133, 0
        %v7207 = vsel %vm4204, %v7142, 0
        %7209 = vmatprep.subr.bf16.mxu0 0
        %7210 = vmatpush1.bf16.msra.mxu0 %v7151
        %7211 = vmatprep.subr.bf16.mxu0 0
        %7212 = vmatpush1.bf16.msra.mxu0 %v7152
        %7213 = vmatprep.subr.bf16.mxu0 0
        %7214 = vmatpush1.bf16.msra.mxu0 0
        %7215 = vmatprep.subr.bf16.mxu0 0
        %7216 = vmatpush1.bf16.msra.mxu0 0
        %7217 = vmatprep.subr.bf16.mxu0 0
        %7218 = vmatpush1.bf16.msra.mxu0 0
        %7219 = vmatprep.subr.bf16.mxu0 0
        %7220 = vmatpush1.bf16.msra.mxu0 0
        %7221 = vmatprep.subr.bf16.mxu0 0
        %7222 = vmatpush1.bf16.msra.mxu0 0
        %7223 = vmatprep.subr.bf16.mxu0 0
        %7224 = vmatpush1.bf16.msra.mxu0 0
        %7225 = vmatprep.subr.bf16.mxu0 0
        %7226 = vmatpush1.bf16.msra.mxu0 0
        %7227 = vmatprep.subr.bf16.mxu0 0
        %7228 = vmatpush1.bf16.msra.mxu0 0
        %7229 = vmatprep.subr.bf16.mxu0 0
        %7230 = vmatpush1.bf16.msra.mxu0 0
        %7231 = vmatprep.subr.bf16.mxu0 0
        %7232 = vmatpush1.bf16.msra.mxu0 0
        %7233 = vmatprep.subr.bf16.mxu0 0
        %7234 = vmatpush1.bf16.msra.mxu0 0
        %7235 = vmatprep.subr.bf16.mxu0 0
        %7236 = vmatpush1.bf16.msra.mxu0 0
        %7237 = vmatprep.subr.bf16.mxu0 0
        %7238 = vmatpush1.bf16.msra.mxu0 0
        %7239 = vmatprep.subr.bf16.mxu0 0
        %7240 = vmatpush1.bf16.msra.mxu0 0
        %7241 = vmatprep.mubr.bf16.mxu0 0
        %7242 = vmatmul.mubr.bf16.gmra.mrb[0].mxu0 %v7156
        %v7243 = vpop.f32.mrb[0].mxu0
        %v7244 = vadd.f32 0.0, %v7243
        %v7245 = vpop.f32.mrb[0].mxu0
        %v7246 = vpop.f32.mrb[0].mxu0
        %v7247 = vadd.f32 0.0, %v7246
        %v7248 = vpop.f32.mrb[0].mxu0
        %7249 = vmatprep.mubr.bf16.mxu0 0
        %7250 = vmatmul.mubr.bf16.gmra.mrb[0].mxu0 %v7159
        %v7251 = vpop.f32.mrb[0].mxu0
        %v7252 = vadd.f32 0.0, %v7251
        %v7253 = vpop.f32.mrb[0].mxu0
        %v7254 = vpop.f32.mrb[0].mxu0
        %v7255 = vadd.f32 0.0, %v7254
        %v7256 = vpop.f32.mrb[0].mxu0
        %7257 = vmatprep.mubr.bf16.mxu0 0
        %7258 = vmatmul.mubr.bf16.gmra.mrb[0].mxu0 %v7162
        %v7259 = vpop.f32.mrb[0].mxu0
        %v7260 = vadd.f32 0.0, %v7259
        %v7261 = vpop.f32.mrb[0].mxu0
        %v7262 = vpop.f32.mrb[0].mxu0
        %v7263 = vadd.f32 0.0, %v7262
        %v7264 = vpop.f32.mrb[0].mxu0
        %7265 = vmatprep.mubr.bf16.mxu0 0
        %7266 = vmatmul.mubr.bf16.gmra.mrb[0].mxu0 %v7165
        %v7267 = vpop.f32.mrb[0].mxu0
        %v7268 = vadd.f32 0.0, %v7267
        %v7269 = vpop.f32.mrb[0].mxu0
        %v7270 = vpop.f32.mrb[0].mxu0
        %v7271 = vadd.f32 0.0, %v7270
        %v7272 = vpop.f32.mrb[0].mxu0
        %7273 = vmatprep.mubr.bf16.mxu0 0
        %7274 = vmatmul.mubr.bf16.gmra.mrb[0].mxu0 %v7168
        %v7275 = vpop.f32.mrb[0].mxu0
        %v7276 = vadd.f32 0.0, %v7275
        %v7277 = vpop.f32.mrb[0].mxu0
        %v7278 = vpop.f32.mrb[0].mxu0
        %v7279 = vadd.f32 0.0, %v7278
        %v7280 = vpop.f32.mrb[0].mxu0
        %7281 = vmatprep.mubr.bf16.mxu0 0
        %7282 = vmatmul.mubr.bf16.gmra.mrb[0].mxu0 %v7171
        %v7283 = vpop.f32.mrb[0].mxu0
        %v7284 = vadd.f32 0.0, %v7283
        %v7285 = vpop.f32.mrb[0].mxu0
        %v7286 = vpop.f32.mrb[0].mxu0
        %v7287 = vadd.f32 0.0, %v7286
        %v7288 = vpop.f32.mrb[0].mxu0
        %7289 = vmatprep.mubr.bf16.mxu0 0
        %7290 = vmatmul.mubr.bf16.gmra.mrb[0].mxu0 %v7174
        %v7291 = vpop.f32.mrb[0].mxu0
        %v7292 = vadd.f32 0.0, %v7291
        %v7293 = vpop.f32.mrb[0].mxu0
        %v7294 = vpop.f32.mrb[0].mxu0
        %v7295 = vadd.f32 0.0, %v7294
        %v7296 = vpop.f32.mrb[0].mxu0
        %7297 = vmatprep.mubr.bf16.mxu0 0
        %7298 = vmatmul.mubr.bf16.gmra.mrb[0].mxu0 %v7177
        %v7299 = vpop.f32.mrb[0].mxu0
        %v7300 = vadd.f32 0.0, %v7299
        %v7301 = vpop.f32.mrb[0].mxu0
        %v7302 = vpop.f32.mrb[0].mxu0
        %v7303 = vadd.f32 0.0, %v7302
        %v7304 = vpop.f32.mrb[0].mxu0
        %7305 = vmatprep.mubr.bf16.mxu0 0
        %7306 = vmatmul.mubr.bf16.gmra.mrb[0].mxu0 %v7180
        %v7307 = vpop.f32.mrb[0].mxu0
        %v7308 = vadd.f32 0.0, %v7307
        %v7309 = vpop.f32.mrb[0].mxu0
        %v7310 = vpop.f32.mrb[0].mxu0
        %v7311 = vadd.f32 0.0, %v7310
        %v7312 = vpop.f32.mrb[0].mxu0
        %7313 = vmatprep.mubr.bf16.mxu0 0
        %7314 = vmatmul.mubr.bf16.gmra.mrb[0].mxu0 %v7183
        %v7315 = vpop.f32.mrb[0].mxu0
        %v7316 = vadd.f32 0.0, %v7315
        %v7317 = vpop.f32.mrb[0].mxu0
        %v7318 = vpop.f32.mrb[0].mxu0
        %v7319 = vadd.f32 0.0, %v7318
        %v7320 = vpop.f32.mrb[0].mxu0
        %7321 = vmatprep.mubr.bf16.mxu0 0
        %7322 = vmatmul.mubr.bf16.gmra.mrb[0].mxu0 %v7186
        %v7323 = vpop.f32.mrb[0].mxu0
        %v7324 = vadd.f32 0.0, %v7323
        %v7325 = vpop.f32.mrb[0].mxu0
        %v7326 = vpop.f32.mrb[0].mxu0
        %v7327 = vadd.f32 0.0, %v7326
        %v7328 = vpop.f32.mrb[0].mxu0
        %7329 = vmatprep.mubr.bf16.mxu0 0
        %7330 = vmatmul.mubr.bf16.gmra.mrb[0].mxu0 %v7189
        %v7331 = vpop.f32.mrb[0].mxu0
        %v7332 = vadd.f32 0.0, %v7331
        %v7333 = vpop.f32.mrb[0].mxu0
        %v7334 = vpop.f32.mrb[0].mxu0
        %v7335 = vadd.f32 0.0, %v7334
        %v7336 = vpop.f32.mrb[0].mxu0
        %7337 = vmatprep.mubr.bf16.mxu0 0
        %7338 = vmatmul.mubr.bf16.gmra.mrb[0].mxu0 %v7192
        %v7339 = vpop.f32.mrb[0].mxu0
        %v7340 = vadd.f32 0.0, %v7339
        %v7341 = vpop.f32.mrb[0].mxu0
        %v7342 = vpop.f32.mrb[0].mxu0
        %v7343 = vadd.f32 0.0, %v7342
        %v7344 = vpop.f32.mrb[0].mxu0
        %7345 = vmatprep.mubr.bf16.mxu0 0
        %7346 = vmatmul.mubr.bf16.gmra.mrb[0].mxu0 %v7195
        %v7347 = vpop.f32.mrb[0].mxu0
        %v7348 = vadd.f32 0.0, %v7347
        %v7349 = vpop.f32.mrb[0].mxu0
        %v7350 = vpop.f32.mrb[0].mxu0
        %v7351 = vadd.f32 0.0, %v7350
        %v7352 = vpop.f32.mrb[0].mxu0
        %7353 = vmatprep.mubr.bf16.mxu0 0
        %7354 = vmatmul.mubr.bf16.gmra.mrb[0].mxu0 %v7198
        %v7355 = vpop.f32.mrb[0].mxu0
        %v7356 = vadd.f32 0.0, %v7355
        %v7357 = vpop.f32.mrb[0].mxu0
        %v7358 = vpop.f32.mrb[0].mxu0
        %v7359 = vadd.f32 0.0, %v7358
        %v7360 = vpop.f32.mrb[0].mxu0
        %7361 = vmatprep.mubr.bf16.mxu0 0
        %7362 = vmatmul.mubr.bf16.gmra.mrb[0].mxu0 %v7201
        %v7363 = vpop.f32.mrb[0].mxu0
        %v7364 = vadd.f32 0.0, %v7363
        %v7365 = vpop.f32.mrb[0].mxu0
        %v7366 = vpop.f32.mrb[0].mxu0
        %v7367 = vadd.f32 0.0, %v7366
        %v7368 = vpop.f32.mrb[0].mxu0
        %7369 = vmatprep.mubr.bf16.mxu0 0
        %7370 = vmatmul.mubr.bf16.gmra.mrb[0].mxu0 %v7204
        %v7371 = vpop.f32.mrb[0].mxu0
        %v7372 = vadd.f32 0.0, %v7371
        %v7373 = vpop.f32.mrb[0].mxu0
        %v7374 = vpop.f32.mrb[0].mxu0
        %v7375 = vadd.f32 0.0, %v7374
        %v7376 = vpop.f32.mrb[0].mxu0
        %7377 = vmatprep.mubr.bf16.mxu0 0
        %7378 = vmatmul.mubr.bf16.gmra.mrb[0].mxu0 %v7207
        %v7379 = vpop.f32.mrb[0].mxu0
        %v7380 = vadd.f32 0.0, %v7379
        %v7381 = vpop.f32.mrb[0].mxu0
        %v7382 = vpop.f32.mrb[0].mxu0
        %v7383 = vadd.f32 0.0, %v7382
        %v7384 = vpop.f32.mrb[0].mxu0
        %7385 = vdwg.mxu0
        %v7386 = vadd.f32 %v6928, %v7244
        %v7387 = vadd.f32 %v6929, %v7247
        %v7388 = vadd.f32 %v6930, %v7252
        %v7389 = vadd.f32 %v6931, %v7255
        %v7390 = vadd.f32 %v6932, %v7260
        %v7391 = vadd.f32 %v6933, %v7263
        %v7392 = vadd.f32 %v6934, %v7268
        %v7393 = vadd.f32 %v6935, %v7271
        %v7394 = vadd.f32 %v6936, %v7276
        %v7395 = vadd.f32 %v6937, %v7279
        %v7396 = vadd.f32 %v6938, %v7284
        %v7397 = vadd.f32 %v6939, %v7287
        %v7398 = vadd.f32 %v6940, %v7292
        %v7399 = vadd.f32 %v6941, %v7295
        %v7400 = vadd.f32 %v6942, %v7300
        %v7401 = vadd.f32 %v6943, %v7303
        %v7402 = vadd.f32 %v6944, %v7308
        %v7403 = vadd.f32 %v6945, %v7311
        %v7404 = vadd.f32 %v6946, %v7316
        %v7405 = vadd.f32 %v6947, %v7319
        %v7406 = vadd.f32 %v6948, %v7324
        %v7407 = vadd.f32 %v6949, %v7327
        %v7408 = vadd.f32 %v6950, %v7332
        %v7409 = vadd.f32 %v6951, %v7335
        %v7410 = vadd.f32 %v6952, %v7340
        %v7411 = vadd.f32 %v6953, %v7343
        %v7412 = vadd.f32 %v6954, %v7348
        %v7413 = vadd.f32 %v6955, %v7351
        %v7414 = vadd.f32 %v6956, %v7356
        %v7415 = vadd.f32 %v6957, %v7359
        %v7416 = vadd.f32 %v6958, %v7364
        %v7417 = vadd.f32 %v6959, %v7367
        %v7418 = vadd.f32 %v6960, %v7372
        %v7419 = vadd.f32 %v6961, %v7375
        %v7420 = vadd.f32 %v6962, %v7380
        %v7421 = vadd.f32 %v6963, %v7383
        %v7422 = vld [vmem:[#allocation2 + $0x8] sm:$0xc]
        %s7423 = scalar_lea.vmem %s8, 80
        %v7424 = vld [vmem:[%s7423] sm:$0xf]
        %v7425 = vld [vmem:[%s7423 + $0x4] sm:$0xf]
        %v7426 = vld [vmem:[%s7423 + $0x8] sm:$0xf]
        %v7427 = vld [vmem:[%s7423 + $0xc] sm:$0xf]
        %v7429 = vunpack.c.l.b16 %v7422
        %v7430 = vpack.c.b16 %v6593, %v7429
        %v7431 = vrot.slane %v7430, 2
        %v7432 = vrot.slane %v6630, 2
        %v7433 = vsel %vm2398, %v7431, %v7432
        %v7434 = vrot.slane %v6631, 2
        %v7435 = vsel %vm2398, %v7432, %v7434
        %v7436 = vrot.slane %v6632, 2
        %v7437 = vsel %vm2398, %v7434, %v7436
        %v7438 = vrot.slane %v6633, 2
        %v7439 = vsel %vm2398, %v7436, %v7438
        %v7440 = vrot.slane %v6634, 2
        %v7441 = vsel %vm2398, %v7438, %v7440
        %v7442 = vrot.slane %v6635, 2
        %v7443 = vsel %vm2398, %v7440, %v7442
        %v7444 = vrot.slane %v6636, 2
        %v7445 = vsel %vm2398, %v7442, %v7444
        %v7446 = vrot.slane %v6637, 2
        %v7447 = vsel %vm2398, %v7444, %v7446
        %v7448 = vrot.slane %v6638, 2
        %v7449 = vsel %vm2398, %v7446, %v7448
        %v7450 = vrot.slane %v6639, 2
        %v7451 = vsel %vm2398, %v7448, %v7450
        %v7452 = vrot.slane %v6640, 2
        %v7453 = vsel %vm2398, %v7450, %v7452
        %v7454 = vrot.slane %v6641, 2
        %v7455 = vsel %vm2398, %v7452, %v7454
        %v7456 = vrot.slane %v6642, 2
        %v7457 = vsel %vm2398, %v7454, %v7456
        %v7458 = vrot.slane %v6643, 2
        %v7459 = vsel %vm2398, %v7456, %v7458
        %v7460 = vrot.slane %v6644, 2
        %v7461 = vsel %vm2398, %v7458, %v7460
        %v7462 = vrot.slane %v6645, 2
        %v7463 = vsel %vm2398, %v7460, %v7462
        %v7464 = vrot.slane %v6646, 2
        %v7465 = vsel %vm2398, %v7462, %v7464
        %v7466 = vrot.slane %v6972, 2
        %v7467 = vsel %vm2398, %v7464, %v7466
        %v7472 = vunpack.c.l.b16 %v7424
        %v7473 = vunpack.c.l.b16 %v7425
        %v7474 = vunpack.c.l.b16 %v7426
        %v7475 = vunpack.c.l.b16 %v7427
        %v7476 = vpack.c.b16 %v7473, %v7472
        %v7477 = vpack.c.b16 %v7475, %v7474
        %v7481 = vsel %vm4204, %v7433, 0
        %v7484 = vsel %vm4204, %v7435, 0
        %v7487 = vsel %vm4204, %v7437, 0
        %v7490 = vsel %vm4204, %v7439, 0
        %v7493 = vsel %vm4204, %v7441, 0
        %v7496 = vsel %vm4204, %v7443, 0
        %v7499 = vsel %vm4204, %v7445, 0
        %v7502 = vsel %vm4204, %v7447, 0
        %v7505 = vsel %vm4204, %v7449, 0
        %v7508 = vsel %vm4204, %v7451, 0
        %v7511 = vsel %vm4204, %v7453, 0
        %v7514 = vsel %vm4204, %v7455, 0
        %v7517 = vsel %vm4204, %v7457, 0
        %v7520 = vsel %vm4204, %v7459, 0
        %v7523 = vsel %vm4204, %v7461, 0
        %v7526 = vsel %vm4204, %v7463, 0
        %v7529 = vsel %vm4204, %v7465, 0
        %v7532 = vsel %vm4204, %v7467, 0
        %7534 = vmatprep.subr.bf16.mxu0 0
        %7535 = vmatpush1.bf16.msra.mxu0 %v7476
        %7536 = vmatprep.subr.bf16.mxu0 0
        %7537 = vmatpush1.bf16.msra.mxu0 %v7477
        %7538 = vmatprep.subr.bf16.mxu0 0
        %7539 = vmatpush1.bf16.msra.mxu0 0
        %7540 = vmatprep.subr.bf16.mxu0 0
        %7541 = vmatpush1.bf16.msra.mxu0 0
        %7542 = vmatprep.subr.bf16.mxu0 0
        %7543 = vmatpush1.bf16.msra.mxu0 0
        %7544 = vmatprep.subr.bf16.mxu0 0
        %7545 = vmatpush1.bf16.msra.mxu0 0
        %7546 = vmatprep.subr.bf16.mxu0 0
        %7547 = vmatpush1.bf16.msra.mxu0 0
        %7548 = vmatprep.subr.bf16.mxu0 0
        %7549 = vmatpush1.bf16.msra.mxu0 0
        %7550 = vmatprep.subr.bf16.mxu0 0
        %7551 = vmatpush1.bf16.msra.mxu0 0
        %7552 = vmatprep.subr.bf16.mxu0 0
        %7553 = vmatpush1.bf16.msra.mxu0 0
        %7554 = vmatprep.subr.bf16.mxu0 0
        %7555 = vmatpush1.bf16.msra.mxu0 0
        %7556 = vmatprep.subr.bf16.mxu0 0
        %7557 = vmatpush1.bf16.msra.mxu0 0
        %7558 = vmatprep.subr.bf16.mxu0 0
        %7559 = vmatpush1.bf16.msra.mxu0 0
        %7560 = vmatprep.subr.bf16.mxu0 0
        %7561 = vmatpush1.bf16.msra.mxu0 0
        %7562 = vmatprep.subr.bf16.mxu0 0
        %7563 = vmatpush1.bf16.msra.mxu0 0
        %7564 = vmatprep.subr.bf16.mxu0 0
        %7565 = vmatpush1.bf16.msra.mxu0 0
        %7566 = vmatprep.mubr.bf16.mxu0 0
        %7567 = vmatmul.mubr.bf16.gmra.mrb[0].mxu0 %v7481
        %v7568 = vpop.f32.mrb[0].mxu0
        %v7569 = vadd.f32 0.0, %v7568
        %v7570 = vpop.f32.mrb[0].mxu0
        %v7571 = vpop.f32.mrb[0].mxu0
        %v7572 = vadd.f32 0.0, %v7571
        %v7573 = vpop.f32.mrb[0].mxu0
        %7574 = vmatprep.mubr.bf16.mxu0 0
        %7575 = vmatmul.mubr.bf16.gmra.mrb[0].mxu0 %v7484
        %v7576 = vpop.f32.mrb[0].mxu0
        %v7577 = vadd.f32 0.0, %v7576
        %v7578 = vpop.f32.mrb[0].mxu0
        %v7579 = vpop.f32.mrb[0].mxu0
        %v7580 = vadd.f32 0.0, %v7579
        %v7581 = vpop.f32.mrb[0].mxu0
        %7582 = vmatprep.mubr.bf16.mxu0 0
        %7583 = vmatmul.mubr.bf16.gmra.mrb[0].mxu0 %v7487
        %v7584 = vpop.f32.mrb[0].mxu0
        %v7585 = vadd.f32 0.0, %v7584
        %v7586 = vpop.f32.mrb[0].mxu0
        %v7587 = vpop.f32.mrb[0].mxu0
        %v7588 = vadd.f32 0.0, %v7587
        %v7589 = vpop.f32.mrb[0].mxu0
        %7590 = vmatprep.mubr.bf16.mxu0 0
        %7591 = vmatmul.mubr.bf16.gmra.mrb[0].mxu0 %v7490
        %v7592 = vpop.f32.mrb[0].mxu0
        %v7593 = vadd.f32 0.0, %v7592
        %v7594 = vpop.f32.mrb[0].mxu0
        %v7595 = vpop.f32.mrb[0].mxu0
        %v7596 = vadd.f32 0.0, %v7595
        %v7597 = vpop.f32.mrb[0].mxu0
        %7598 = vmatprep.mubr.bf16.mxu0 0
        %7599 = vmatmul.mubr.bf16.gmra.mrb[0].mxu0 %v7493
        %v7600 = vpop.f32.mrb[0].mxu0
        %v7601 = vadd.f32 0.0, %v7600
        %v7602 = vpop.f32.mrb[0].mxu0
        %v7603 = vpop.f32.mrb[0].mxu0
        %v7604 = vadd.f32 0.0, %v7603
        %v7605 = vpop.f32.mrb[0].mxu0
        %7606 = vmatprep.mubr.bf16.mxu0 0
        %7607 = vmatmul.mubr.bf16.gmra.mrb[0].mxu0 %v7496
        %v7608 = vpop.f32.mrb[0].mxu0
        %v7609 = vadd.f32 0.0, %v7608
        %v7610 = vpop.f32.mrb[0].mxu0
        %v7611 = vpop.f32.mrb[0].mxu0
        %v7612 = vadd.f32 0.0, %v7611
        %v7613 = vpop.f32.mrb[0].mxu0
        %7614 = vmatprep.mubr.bf16.mxu0 0
        %7615 = vmatmul.mubr.bf16.gmra.mrb[0].mxu0 %v7499
        %v7616 = vpop.f32.mrb[0].mxu0
        %v7617 = vadd.f32 0.0, %v7616
        %v7618 = vpop.f32.mrb[0].mxu0
        %v7619 = vpop.f32.mrb[0].mxu0
        %v7620 = vadd.f32 0.0, %v7619
        %v7621 = vpop.f32.mrb[0].mxu0
        %7622 = vmatprep.mubr.bf16.mxu0 0
        %7623 = vmatmul.mubr.bf16.gmra.mrb[0].mxu0 %v7502
        %v7624 = vpop.f32.mrb[0].mxu0
        %v7625 = vadd.f32 0.0, %v7624
        %v7626 = vpop.f32.mrb[0].mxu0
        %v7627 = vpop.f32.mrb[0].mxu0
        %v7628 = vadd.f32 0.0, %v7627
        %v7629 = vpop.f32.mrb[0].mxu0
        %7630 = vmatprep.mubr.bf16.mxu0 0
        %7631 = vmatmul.mubr.bf16.gmra.mrb[0].mxu0 %v7505
        %v7632 = vpop.f32.mrb[0].mxu0
        %v7633 = vadd.f32 0.0, %v7632
        %v7634 = vpop.f32.mrb[0].mxu0
        %v7635 = vpop.f32.mrb[0].mxu0
        %v7636 = vadd.f32 0.0, %v7635
        %v7637 = vpop.f32.mrb[0].mxu0
        %7638 = vmatprep.mubr.bf16.mxu0 0
        %7639 = vmatmul.mubr.bf16.gmra.mrb[0].mxu0 %v7508
        %v7640 = vpop.f32.mrb[0].mxu0
        %v7641 = vadd.f32 0.0, %v7640
        %v7642 = vpop.f32.mrb[0].mxu0
        %v7643 = vpop.f32.mrb[0].mxu0
        %v7644 = vadd.f32 0.0, %v7643
        %v7645 = vpop.f32.mrb[0].mxu0
        %7646 = vmatprep.mubr.bf16.mxu0 0
        %7647 = vmatmul.mubr.bf16.gmra.mrb[0].mxu0 %v7511
        %v7648 = vpop.f32.mrb[0].mxu0
        %v7649 = vadd.f32 0.0, %v7648
        %v7650 = vpop.f32.mrb[0].mxu0
        %v7651 = vpop.f32.mrb[0].mxu0
        %v7652 = vadd.f32 0.0, %v7651
        %v7653 = vpop.f32.mrb[0].mxu0
        %7654 = vmatprep.mubr.bf16.mxu0 0
        %7655 = vmatmul.mubr.bf16.gmra.mrb[0].mxu0 %v7514
        %v7656 = vpop.f32.mrb[0].mxu0
        %v7657 = vadd.f32 0.0, %v7656
        %v7658 = vpop.f32.mrb[0].mxu0
        %v7659 = vpop.f32.mrb[0].mxu0
        %v7660 = vadd.f32 0.0, %v7659
        %v7661 = vpop.f32.mrb[0].mxu0
        %7662 = vmatprep.mubr.bf16.mxu0 0
        %7663 = vmatmul.mubr.bf16.gmra.mrb[0].mxu0 %v7517
        %v7664 = vpop.f32.mrb[0].mxu0
        %v7665 = vadd.f32 0.0, %v7664
        %v7666 = vpop.f32.mrb[0].mxu0
        %v7667 = vpop.f32.mrb[0].mxu0
        %v7668 = vadd.f32 0.0, %v7667
        %v7669 = vpop.f32.mrb[0].mxu0
        %7670 = vmatprep.mubr.bf16.mxu0 0
        %7671 = vmatmul.mubr.bf16.gmra.mrb[0].mxu0 %v7520
        %v7672 = vpop.f32.mrb[0].mxu0
        %v7673 = vadd.f32 0.0, %v7672
        %v7674 = vpop.f32.mrb[0].mxu0
        %v7675 = vpop.f32.mrb[0].mxu0
        %v7676 = vadd.f32 0.0, %v7675
        %v7677 = vpop.f32.mrb[0].mxu0
        %7678 = vmatprep.mubr.bf16.mxu0 0
        %7679 = vmatmul.mubr.bf16.gmra.mrb[0].mxu0 %v7523
        %v7680 = vpop.f32.mrb[0].mxu0
        %v7681 = vadd.f32 0.0, %v7680
        %v7682 = vpop.f32.mrb[0].mxu0
        %v7683 = vpop.f32.mrb[0].mxu0
        %v7684 = vadd.f32 0.0, %v7683
        %v7685 = vpop.f32.mrb[0].mxu0
        %7686 = vmatprep.mubr.bf16.mxu0 0
        %7687 = vmatmul.mubr.bf16.gmra.mrb[0].mxu0 %v7526
        %v7688 = vpop.f32.mrb[0].mxu0
        %v7689 = vadd.f32 0.0, %v7688
        %v7690 = vpop.f32.mrb[0].mxu0
        %v7691 = vpop.f32.mrb[0].mxu0
        %v7692 = vadd.f32 0.0, %v7691
        %v7693 = vpop.f32.mrb[0].mxu0
        %7694 = vmatprep.mubr.bf16.mxu0 0
        %7695 = vmatmul.mubr.bf16.gmra.mrb[0].mxu0 %v7529
        %v7696 = vpop.f32.mrb[0].mxu0
        %v7697 = vadd.f32 0.0, %v7696
        %v7698 = vpop.f32.mrb[0].mxu0
        %v7699 = vpop.f32.mrb[0].mxu0
        %v7700 = vadd.f32 0.0, %v7699
        %v7701 = vpop.f32.mrb[0].mxu0
        %7702 = vmatprep.mubr.bf16.mxu0 0
        %7703 = vmatmul.mubr.bf16.gmra.mrb[0].mxu0 %v7532
        %v7704 = vpop.f32.mrb[0].mxu0
        %v7705 = vadd.f32 0.0, %v7704
        %v7706 = vpop.f32.mrb[0].mxu0
        %v7707 = vpop.f32.mrb[0].mxu0
        %v7708 = vadd.f32 0.0, %v7707
        %v7709 = vpop.f32.mrb[0].mxu0
        %7710 = vdwg.mxu0
        %v7711 = vadd.f32 %v7386, %v7569
        %v7712 = vadd.f32 %v7387, %v7572
        %v7713 = vadd.f32 %v7388, %v7577
        %v7714 = vadd.f32 %v7389, %v7580
        %v7715 = vadd.f32 %v7390, %v7585
        %v7716 = vadd.f32 %v7391, %v7588
        %v7717 = vadd.f32 %v7392, %v7593
        %v7718 = vadd.f32 %v7393, %v7596
        %v7719 = vadd.f32 %v7394, %v7601
        %v7720 = vadd.f32 %v7395, %v7604
        %v7721 = vadd.f32 %v7396, %v7609
        %v7722 = vadd.f32 %v7397, %v7612
        %v7723 = vadd.f32 %v7398, %v7617
        %v7724 = vadd.f32 %v7399, %v7620
        %v7725 = vadd.f32 %v7400, %v7625
        %v7726 = vadd.f32 %v7401, %v7628
        %v7727 = vadd.f32 %v7402, %v7633
        %v7728 = vadd.f32 %v7403, %v7636
        %v7729 = vadd.f32 %v7404, %v7641
        %v7730 = vadd.f32 %v7405, %v7644
        %v7731 = vadd.f32 %v7406, %v7649
        %v7732 = vadd.f32 %v7407, %v7652
        %v7733 = vadd.f32 %v7408, %v7657
        %v7734 = vadd.f32 %v7409, %v7660
        %v7735 = vadd.f32 %v7410, %v7665
        %v7736 = vadd.f32 %v7411, %v7668
        %v7737 = vadd.f32 %v7412, %v7673
        %v7738 = vadd.f32 %v7413, %v7676
        %v7739 = vadd.f32 %v7414, %v7681
        %v7740 = vadd.f32 %v7415, %v7684
        %v7741 = vadd.f32 %v7416, %v7689
        %v7742 = vadd.f32 %v7417, %v7692
        %v7743 = vadd.f32 %v7418, %v7697
        %v7744 = vadd.f32 %v7419, %v7700
        %v7745 = vadd.f32 %v7420, %v7705
        %v7746 = vadd.f32 %v7421, %v7708
        %v7747 = vld [vmem:[#allocation2 + $0x10] sm:$0xc]
        %v7748 = vld [vmem:[#allocation2 + $0x14] sm:$0xf]
        %v7749 = vld [vmem:[#allocation2 + $0x18] sm:$0xf]
        %v7750 = vld [vmem:[#allocation2 + $0x1c] sm:$0xf]
        %v7751 = vld [vmem:[#allocation2 + $0x20] sm:$0xf]
        %v7752 = vld [vmem:[#allocation2 + $0x24] sm:$0xf]
        %v7753 = vld [vmem:[#allocation2 + $0x28] sm:$0xf]
        %v7754 = vld [vmem:[#allocation2 + $0x2c] sm:$0xf]
        %v7755 = vld [vmem:[#allocation2 + $0x30] sm:$0xf]
        %v7756 = vld [vmem:[#allocation2 + $0x34] sm:$0xf]
        %v7757 = vld [vmem:[#allocation2 + $0x38] sm:$0xf]
        %v7758 = vld [vmem:[#allocation2 + $0x3c] sm:$0xf]
        %v7759 = vld [vmem:[#allocation2 + $0x40] sm:$0xf]
        %v7760 = vld [vmem:[#allocation2 + $0x44] sm:$0xf]
        %v7761 = vld [vmem:[#allocation2 + $0x48] sm:$0xf]
        %v7762 = vld [vmem:[#allocation2 + $0x4c] sm:$0xf]
        %v7763 = vld [vmem:[#allocation2 + $0x50] sm:$0xf]
        %v7764 = vld [vmem:[#allocation2 + $0x54] sm:$0xf]
        %v7765 = vld [vmem:[#allocation2 + $0x58] sm:$0xf]
        %v7766 = vld [vmem:[#allocation2 + $0x5c] sm:$0xf]
        %v7767 = vld [vmem:[#allocation2 + $0x60] sm:$0xf]
        %v7768 = vld [vmem:[#allocation2 + $0x64] sm:$0xf]
        %v7769 = vld [vmem:[#allocation2 + $0x68] sm:$0xf]
        %v7770 = vld [vmem:[#allocation2 + $0x6c] sm:$0xf]
        %v7771 = vld [vmem:[#allocation2 + $0x70] sm:$0xf]
        %v7772 = vld [vmem:[#allocation2 + $0x74] sm:$0xf]
        %v7773 = vld [vmem:[#allocation2 + $0x78] sm:$0xf]
        %v7774 = vld [vmem:[#allocation2 + $0x7c] sm:$0xf]
        %v7775 = vld [vmem:[#allocation2 + $0x80] sm:$0xf]
        %v7776 = vld [vmem:[#allocation2 + $0x84] sm:$0xf]
        %v7777 = vld [vmem:[#allocation2 + $0x88] sm:$0xf]
        %v7778 = vld [vmem:[#allocation2 + $0x8c] sm:$0xf]
        %v7779 = vld [vmem:[#allocation2 + $0x90] sm:$0xf]
        %v7780 = vld [vmem:[#allocation2 + $0x94] sm:$0xf]
        %v7781 = vld [vmem:[#allocation2 + $0x98] sm:$0xf]
        %v7782 = vld [vmem:[#allocation2 + $0x9c] sm:$0xf]
        %v7783 = vld [vmem:[#allocation2 + $0xa0] sm:$0x3]
        %s7784 = scalar_lea.vmem %s8, 96
        %v7785 = vld [vmem:[%s7784] sm:$0xf]
        %v7786 = vld [vmem:[%s7784 + $0x4] sm:$0xf]
        %v7787 = vld [vmem:[%s7784 + $0x8] sm:$0xf]
        %v7788 = vld [vmem:[%s7784 + $0xc] sm:$0xf]
        %v7826 = vunpack.c.l.b16 %v7747
        %v7827 = vunpack.c.l.b16 %v7748
        %v7828 = vunpack.c.l.b16 %v7749
        %v7829 = vunpack.c.l.b16 %v7750
        %v7830 = vunpack.c.l.b16 %v7751
        %v7831 = vunpack.c.l.b16 %v7752
        %v7832 = vunpack.c.l.b16 %v7753
        %v7833 = vunpack.c.l.b16 %v7754
        %v7834 = vunpack.c.l.b16 %v7755
        %v7835 = vunpack.c.l.b16 %v7756
        %v7836 = vunpack.c.l.b16 %v7757
        %v7837 = vunpack.c.l.b16 %v7758
        %v7838 = vunpack.c.l.b16 %v7759
        %v7839 = vunpack.c.l.b16 %v7760
        %v7840 = vunpack.c.l.b16 %v7761
        %v7841 = vunpack.c.l.b16 %v7762
        %v7842 = vunpack.c.l.b16 %v7763
        %v7843 = vunpack.c.l.b16 %v7764
        %v7844 = vunpack.c.l.b16 %v7765
        %v7845 = vunpack.c.l.b16 %v7766
        %v7846 = vunpack.c.l.b16 %v7767
        %v7847 = vunpack.c.l.b16 %v7768
        %v7848 = vunpack.c.l.b16 %v7769
        %v7849 = vunpack.c.l.b16 %v7770
        %v7850 = vunpack.c.l.b16 %v7771
        %v7851 = vunpack.c.l.b16 %v7772
        %v7852 = vunpack.c.l.b16 %v7773
        %v7853 = vunpack.c.l.b16 %v7774
        %v7854 = vunpack.c.l.b16 %v7775
        %v7855 = vunpack.c.l.b16 %v7776
        %v7856 = vunpack.c.l.b16 %v7777
        %v7857 = vunpack.c.l.b16 %v7778
        %v7858 = vunpack.c.l.b16 %v7779
        %v7859 = vunpack.c.l.b16 %v7780
        %v7860 = vunpack.c.l.b16 %v7781
        %v7861 = vunpack.c.l.b16 %v7782
        %v7862 = vunpack.c.l.b16 %v7783
        %v7863 = vpack.c.b16 %v7827, %v7826
        %v7864 = vpack.c.b16 %v7829, %v7828
        %v7865 = vpack.c.b16 %v7831, %v7830
        %v7866 = vpack.c.b16 %v7833, %v7832
        %v7867 = vpack.c.b16 %v7835, %v7834
        %v7868 = vpack.c.b16 %v7837, %v7836
        %v7869 = vpack.c.b16 %v7839, %v7838
        %v7870 = vpack.c.b16 %v7841, %v7840
        %v7871 = vpack.c.b16 %v7843, %v7842
        %v7872 = vpack.c.b16 %v7845, %v7844
        %v7873 = vpack.c.b16 %v7847, %v7846
        %v7874 = vpack.c.b16 %v7849, %v7848
        %v7875 = vpack.c.b16 %v7851, %v7850
        %v7876 = vpack.c.b16 %v7853, %v7852
        %v7877 = vpack.c.b16 %v7855, %v7854
        %v7878 = vpack.c.b16 %v7857, %v7856
        %v7879 = vpack.c.b16 %v7859, %v7858
        %v7880 = vpack.c.b16 %v7861, %v7860
        %v7881 = vpack.c.b16 %v7862, %v7862
        %v7882 = vrot.slane %v7863, 2
        %v7883 = vrot.slane %v7864, 2
        %v7884 = vsel %vm2398, %v7882, %v7883
        %v7885 = vrot.slane %v7865, 2
        %v7886 = vsel %vm2398, %v7883, %v7885
        %v7887 = vrot.slane %v7866, 2
        %v7888 = vsel %vm2398, %v7885, %v7887
        %v7889 = vrot.slane %v7867, 2
        %v7890 = vsel %vm2398, %v7887, %v7889
        %v7891 = vrot.slane %v7868, 2
        %v7892 = vsel %vm2398, %v7889, %v7891
        %v7893 = vrot.slane %v7869, 2
        %v7894 = vsel %vm2398, %v7891, %v7893
        %v7895 = vrot.slane %v7870, 2
        %v7896 = vsel %vm2398, %v7893, %v7895
        %v7897 = vrot.slane %v7871, 2
        %v7898 = vsel %vm2398, %v7895, %v7897
        %v7899 = vrot.slane %v7872, 2
        %v7900 = vsel %vm2398, %v7897, %v7899
        %v7901 = vrot.slane %v7873, 2
        %v7902 = vsel %vm2398, %v7899, %v7901
        %v7903 = vrot.slane %v7874, 2
        %v7904 = vsel %vm2398, %v7901, %v7903
        %v7905 = vrot.slane %v7875, 2
        %v7906 = vsel %vm2398, %v7903, %v7905
        %v7907 = vrot.slane %v7876, 2
        %v7908 = vsel %vm2398, %v7905, %v7907
        %v7909 = vrot.slane %v7877, 2
        %v7910 = vsel %vm2398, %v7907, %v7909
        %v7911 = vrot.slane %v7878, 2
        %v7912 = vsel %vm2398, %v7909, %v7911
        %v7913 = vrot.slane %v7879, 2
        %v7914 = vsel %vm2398, %v7911, %v7913
        %v7915 = vrot.slane %v7880, 2
        %v7916 = vsel %vm2398, %v7913, %v7915
        %v7917 = vrot.slane %v7881, 2
        %v7918 = vsel %vm2398, %v7915, %v7917
        %v7923 = vunpack.c.l.b16 %v7785
        %v7924 = vunpack.c.l.b16 %v7786
        %v7925 = vunpack.c.l.b16 %v7787
        %v7926 = vunpack.c.l.b16 %v7788
        %v7927 = vpack.c.b16 %v7924, %v7923
        %v7928 = vpack.c.b16 %v7926, %v7925
        %v7932 = vsel %vm4204, %v7884, 0
        %v7935 = vsel %vm4204, %v7886, 0
        %v7938 = vsel %vm4204, %v7888, 0
        %v7941 = vsel %vm4204, %v7890, 0
        %v7944 = vsel %vm4204, %v7892, 0
        %v7947 = vsel %vm4204, %v7894, 0
        %v7950 = vsel %vm4204, %v7896, 0
        %v7953 = vsel %vm4204, %v7898, 0
        %v7956 = vsel %vm4204, %v7900, 0
        %v7959 = vsel %vm4204, %v7902, 0
        %v7962 = vsel %vm4204, %v7904, 0
        %v7965 = vsel %vm4204, %v7906, 0
        %v7968 = vsel %vm4204, %v7908, 0
        %v7971 = vsel %vm4204, %v7910, 0
        %v7974 = vsel %vm4204, %v7912, 0
        %v7977 = vsel %vm4204, %v7914, 0
        %v7980 = vsel %vm4204, %v7916, 0
        %v7983 = vsel %vm4204, %v7918, 0
        %7985 = vmatprep.subr.bf16.mxu0 0
        %7986 = vmatpush1.bf16.msra.mxu0 %v7927
        %7987 = vmatprep.subr.bf16.mxu0 0
        %7988 = vmatpush1.bf16.msra.mxu0 %v7928
        %7989 = vmatprep.subr.bf16.mxu0 0
        %7990 = vmatpush1.bf16.msra.mxu0 0
        %7991 = vmatprep.subr.bf16.mxu0 0
        %7992 = vmatpush1.bf16.msra.mxu0 0
        %7993 = vmatprep.subr.bf16.mxu0 0
        %7994 = vmatpush1.bf16.msra.mxu0 0
        %7995 = vmatprep.subr.bf16.mxu0 0
        %7996 = vmatpush1.bf16.msra.mxu0 0
        %7997 = vmatprep.subr.bf16.mxu0 0
        %7998 = vmatpush1.bf16.msra.mxu0 0
        %7999 = vmatprep.subr.bf16.mxu0 0
        %8000 = vmatpush1.bf16.msra.mxu0 0
        %8001 = vmatprep.subr.bf16.mxu0 0
        %8002 = vmatpush1.bf16.msra.mxu0 0
        %8003 = vmatprep.subr.bf16.mxu0 0
        %8004 = vmatpush1.bf16.msra.mxu0 0
        %8005 = vmatprep.subr.bf16.mxu0 0
        %8006 = vmatpush1.bf16.msra.mxu0 0
        %8007 = vmatprep.subr.bf16.mxu0 0
        %8008 = vmatpush1.bf16.msra.mxu0 0
        %8009 = vmatprep.subr.bf16.mxu0 0
        %8010 = vmatpush1.bf16.msra.mxu0 0
        %8011 = vmatprep.subr.bf16.mxu0 0
        %8012 = vmatpush1.bf16.msra.mxu0 0
        %8013 = vmatprep.subr.bf16.mxu0 0
        %8014 = vmatpush1.bf16.msra.mxu0 0
        %8015 = vmatprep.subr.bf16.mxu0 0
        %8016 = vmatpush1.bf16.msra.mxu0 0
        %8017 = vmatprep.mubr.bf16.mxu0 0
        %8018 = vmatmul.mubr.bf16.gmra.mrb[0].mxu0 %v7932
        %v8019 = vpop.f32.mrb[0].mxu0
        %v8020 = vadd.f32 0.0, %v8019
        %v8021 = vpop.f32.mrb[0].mxu0
        %v8022 = vpop.f32.mrb[0].mxu0
        %v8023 = vadd.f32 0.0, %v8022
        %v8024 = vpop.f32.mrb[0].mxu0
        %8025 = vmatprep.mubr.bf16.mxu0 0
        %8026 = vmatmul.mubr.bf16.gmra.mrb[0].mxu0 %v7935
        %v8027 = vpop.f32.mrb[0].mxu0
        %v8028 = vadd.f32 0.0, %v8027
        %v8029 = vpop.f32.mrb[0].mxu0
        %v8030 = vpop.f32.mrb[0].mxu0
        %v8031 = vadd.f32 0.0, %v8030
        %v8032 = vpop.f32.mrb[0].mxu0
        %8033 = vmatprep.mubr.bf16.mxu0 0
        %8034 = vmatmul.mubr.bf16.gmra.mrb[0].mxu0 %v7938
        %v8035 = vpop.f32.mrb[0].mxu0
        %v8036 = vadd.f32 0.0, %v8035
        %v8037 = vpop.f32.mrb[0].mxu0
        %v8038 = vpop.f32.mrb[0].mxu0
        %v8039 = vadd.f32 0.0, %v8038
        %v8040 = vpop.f32.mrb[0].mxu0
        %8041 = vmatprep.mubr.bf16.mxu0 0
        %8042 = vmatmul.mubr.bf16.gmra.mrb[0].mxu0 %v7941
        %v8043 = vpop.f32.mrb[0].mxu0
        %v8044 = vadd.f32 0.0, %v8043
        %v8045 = vpop.f32.mrb[0].mxu0
        %v8046 = vpop.f32.mrb[0].mxu0
        %v8047 = vadd.f32 0.0, %v8046
        %v8048 = vpop.f32.mrb[0].mxu0
        %8049 = vmatprep.mubr.bf16.mxu0 0
        %8050 = vmatmul.mubr.bf16.gmra.mrb[0].mxu0 %v7944
        %v8051 = vpop.f32.mrb[0].mxu0
        %v8052 = vadd.f32 0.0, %v8051
        %v8053 = vpop.f32.mrb[0].mxu0
        %v8054 = vpop.f32.mrb[0].mxu0
        %v8055 = vadd.f32 0.0, %v8054
        %v8056 = vpop.f32.mrb[0].mxu0
        %8057 = vmatprep.mubr.bf16.mxu0 0
        %8058 = vmatmul.mubr.bf16.gmra.mrb[0].mxu0 %v7947
        %v8059 = vpop.f32.mrb[0].mxu0
        %v8060 = vadd.f32 0.0, %v8059
        %v8061 = vpop.f32.mrb[0].mxu0
        %v8062 = vpop.f32.mrb[0].mxu0
        %v8063 = vadd.f32 0.0, %v8062
        %v8064 = vpop.f32.mrb[0].mxu0
        %8065 = vmatprep.mubr.bf16.mxu0 0
        %8066 = vmatmul.mubr.bf16.gmra.mrb[0].mxu0 %v7950
        %v8067 = vpop.f32.mrb[0].mxu0
        %v8068 = vadd.f32 0.0, %v8067
        %v8069 = vpop.f32.mrb[0].mxu0
        %v8070 = vpop.f32.mrb[0].mxu0
        %v8071 = vadd.f32 0.0, %v8070
        %v8072 = vpop.f32.mrb[0].mxu0
        %8073 = vmatprep.mubr.bf16.mxu0 0
        %8074 = vmatmul.mubr.bf16.gmra.mrb[0].mxu0 %v7953
        %v8075 = vpop.f32.mrb[0].mxu0
        %v8076 = vadd.f32 0.0, %v8075
        %v8077 = vpop.f32.mrb[0].mxu0
        %v8078 = vpop.f32.mrb[0].mxu0
        %v8079 = vadd.f32 0.0, %v8078
        %v8080 = vpop.f32.mrb[0].mxu0
        %8081 = vmatprep.mubr.bf16.mxu0 0
        %8082 = vmatmul.mubr.bf16.gmra.mrb[0].mxu0 %v7956
        %v8083 = vpop.f32.mrb[0].mxu0
        %v8084 = vadd.f32 0.0, %v8083
        %v8085 = vpop.f32.mrb[0].mxu0
        %v8086 = vpop.f32.mrb[0].mxu0
        %v8087 = vadd.f32 0.0, %v8086
        %v8088 = vpop.f32.mrb[0].mxu0
        %8089 = vmatprep.mubr.bf16.mxu0 0
        %8090 = vmatmul.mubr.bf16.gmra.mrb[0].mxu0 %v7959
        %v8091 = vpop.f32.mrb[0].mxu0
        %v8092 = vadd.f32 0.0, %v8091
        %v8093 = vpop.f32.mrb[0].mxu0
        %v8094 = vpop.f32.mrb[0].mxu0
        %v8095 = vadd.f32 0.0, %v8094
        %v8096 = vpop.f32.mrb[0].mxu0
        %8097 = vmatprep.mubr.bf16.mxu0 0
        %8098 = vmatmul.mubr.bf16.gmra.mrb[0].mxu0 %v7962
        %v8099 = vpop.f32.mrb[0].mxu0
        %v8100 = vadd.f32 0.0, %v8099
        %v8101 = vpop.f32.mrb[0].mxu0
        %v8102 = vpop.f32.mrb[0].mxu0
        %v8103 = vadd.f32 0.0, %v8102
        %v8104 = vpop.f32.mrb[0].mxu0
        %8105 = vmatprep.mubr.bf16.mxu0 0
        %8106 = vmatmul.mubr.bf16.gmra.mrb[0].mxu0 %v7965
        %v8107 = vpop.f32.mrb[0].mxu0
        %v8108 = vadd.f32 0.0, %v8107
        %v8109 = vpop.f32.mrb[0].mxu0
        %v8110 = vpop.f32.mrb[0].mxu0
        %v8111 = vadd.f32 0.0, %v8110
        %v8112 = vpop.f32.mrb[0].mxu0
        %8113 = vmatprep.mubr.bf16.mxu0 0
        %8114 = vmatmul.mubr.bf16.gmra.mrb[0].mxu0 %v7968
        %v8115 = vpop.f32.mrb[0].mxu0
        %v8116 = vadd.f32 0.0, %v8115
        %v8117 = vpop.f32.mrb[0].mxu0
        %v8118 = vpop.f32.mrb[0].mxu0
        %v8119 = vadd.f32 0.0, %v8118
        %v8120 = vpop.f32.mrb[0].mxu0
        %8121 = vmatprep.mubr.bf16.mxu0 0
        %8122 = vmatmul.mubr.bf16.gmra.mrb[0].mxu0 %v7971
        %v8123 = vpop.f32.mrb[0].mxu0
        %v8124 = vadd.f32 0.0, %v8123
        %v8125 = vpop.f32.mrb[0].mxu0
        %v8126 = vpop.f32.mrb[0].mxu0
        %v8127 = vadd.f32 0.0, %v8126
        %v8128 = vpop.f32.mrb[0].mxu0
        %8129 = vmatprep.mubr.bf16.mxu0 0
        %8130 = vmatmul.mubr.bf16.gmra.mrb[0].mxu0 %v7974
        %v8131 = vpop.f32.mrb[0].mxu0
        %v8132 = vadd.f32 0.0, %v8131
        %v8133 = vpop.f32.mrb[0].mxu0
        %v8134 = vpop.f32.mrb[0].mxu0
        %v8135 = vadd.f32 0.0, %v8134
        %v8136 = vpop.f32.mrb[0].mxu0
        %8137 = vmatprep.mubr.bf16.mxu0 0
        %8138 = vmatmul.mubr.bf16.gmra.mrb[0].mxu0 %v7977
        %v8139 = vpop.f32.mrb[0].mxu0
        %v8140 = vadd.f32 0.0, %v8139
        %v8141 = vpop.f32.mrb[0].mxu0
        %v8142 = vpop.f32.mrb[0].mxu0
        %v8143 = vadd.f32 0.0, %v8142
        %v8144 = vpop.f32.mrb[0].mxu0
        %8145 = vmatprep.mubr.bf16.mxu0 0
        %8146 = vmatmul.mubr.bf16.gmra.mrb[0].mxu0 %v7980
        %v8147 = vpop.f32.mrb[0].mxu0
        %v8148 = vadd.f32 0.0, %v8147
        %v8149 = vpop.f32.mrb[0].mxu0
        %v8150 = vpop.f32.mrb[0].mxu0
        %v8151 = vadd.f32 0.0, %v8150
        %v8152 = vpop.f32.mrb[0].mxu0
        %8153 = vmatprep.mubr.bf16.mxu0 0
        %8154 = vmatmul.mubr.bf16.gmra.mrb[0].mxu0 %v7983
        %v8155 = vpop.f32.mrb[0].mxu0
        %v8156 = vadd.f32 0.0, %v8155
        %v8157 = vpop.f32.mrb[0].mxu0
        %v8158 = vpop.f32.mrb[0].mxu0
        %v8159 = vadd.f32 0.0, %v8158
        %v8160 = vpop.f32.mrb[0].mxu0
        %8161 = vdwg.mxu0
        %v8162 = vadd.f32 %v7711, %v8020
        %v8163 = vadd.f32 %v7712, %v8023
        %v8164 = vadd.f32 %v7713, %v8028
        %v8165 = vadd.f32 %v7714, %v8031
        %v8166 = vadd.f32 %v7715, %v8036
        %v8167 = vadd.f32 %v7716, %v8039
        %v8168 = vadd.f32 %v7717, %v8044
        %v8169 = vadd.f32 %v7718, %v8047
        %v8170 = vadd.f32 %v7719, %v8052
        %v8171 = vadd.f32 %v7720, %v8055
        %v8172 = vadd.f32 %v7721, %v8060
        %v8173 = vadd.f32 %v7722, %v8063
        %v8174 = vadd.f32 %v7723, %v8068
        %v8175 = vadd.f32 %v7724, %v8071
        %v8176 = vadd.f32 %v7725, %v8076
        %v8177 = vadd.f32 %v7726, %v8079
        %v8178 = vadd.f32 %v7727, %v8084
        %v8179 = vadd.f32 %v7728, %v8087
        %v8180 = vadd.f32 %v7729, %v8092
        %v8181 = vadd.f32 %v7730, %v8095
        %v8182 = vadd.f32 %v7731, %v8100
        %v8183 = vadd.f32 %v7732, %v8103
        %v8184 = vadd.f32 %v7733, %v8108
        %v8185 = vadd.f32 %v7734, %v8111
        %v8186 = vadd.f32 %v7735, %v8116
        %v8187 = vadd.f32 %v7736, %v8119
        %v8188 = vadd.f32 %v7737, %v8124
        %v8189 = vadd.f32 %v7738, %v8127
        %v8190 = vadd.f32 %v7739, %v8132
        %v8191 = vadd.f32 %v7740, %v8135
        %v8192 = vadd.f32 %v7741, %v8140
        %v8193 = vadd.f32 %v7742, %v8143
        %v8194 = vadd.f32 %v7743, %v8148
        %v8195 = vadd.f32 %v7744, %v8151
        %v8196 = vadd.f32 %v7745, %v8156
        %v8197 = vadd.f32 %v7746, %v8159
        %v8198 = vld [vmem:[#allocation2 + $0xa0] sm:$0x7]
        %s8199 = scalar_lea.vmem %s8, 112
        %v8200 = vld [vmem:[%s8199] sm:$0xf]
        %v8201 = vld [vmem:[%s8199 + $0x4] sm:$0xf]
        %v8202 = vld [vmem:[%s8199 + $0x8] sm:$0xf]
        %v8203 = vld [vmem:[%s8199 + $0xc] sm:$0xf]
        %v8205 = vunpack.c.l.b16 %v8198
        %v8206 = vpack.c.b16 %v8205, %v8205
        %v8208 = vshrl.u32 %v7863, 16
        %v8210 = vrot.slane %v8208, 2
        %v8211 = vshll.u32 %v7863, 16
        %v8213 = vrot.slane %v8211, 3
        %v8214 = vor.u32 %v8210, %v8213
        %v8216 = vshrl.u32 %v7864, 16
        %v8218 = vrot.slane %v8216, 2
        %v8219 = vshll.u32 %v7864, 16
        %v8221 = vrot.slane %v8219, 3
        %v8222 = vor.u32 %v8218, %v8221
        %v8223 = vsel %vm3151, %v8214, %v8222
        %v8225 = vshrl.u32 %v7865, 16
        %v8227 = vrot.slane %v8225, 2
        %v8228 = vshll.u32 %v7865, 16
        %v8230 = vrot.slane %v8228, 3
        %v8231 = vor.u32 %v8227, %v8230
        %v8232 = vsel %vm3151, %v8222, %v8231
        %v8234 = vshrl.u32 %v7866, 16
        %v8236 = vrot.slane %v8234, 2
        %v8237 = vshll.u32 %v7866, 16
        %v8239 = vrot.slane %v8237, 3
        %v8240 = vor.u32 %v8236, %v8239
        %v8241 = vsel %vm3151, %v8231, %v8240
        %v8243 = vshrl.u32 %v7867, 16
        %v8245 = vrot.slane %v8243, 2
        %v8246 = vshll.u32 %v7867, 16
        %v8248 = vrot.slane %v8246, 3
        %v8249 = vor.u32 %v8245, %v8248
        %v8250 = vsel %vm3151, %v8240, %v8249
        %v8252 = vshrl.u32 %v7868, 16
        %v8254 = vrot.slane %v8252, 2
        %v8255 = vshll.u32 %v7868, 16
        %v8257 = vrot.slane %v8255, 3
        %v8258 = vor.u32 %v8254, %v8257
        %v8259 = vsel %vm3151, %v8249, %v8258
        %v8261 = vshrl.u32 %v7869, 16
        %v8263 = vrot.slane %v8261, 2
        %v8264 = vshll.u32 %v7869, 16
        %v8266 = vrot.slane %v8264, 3
        %v8267 = vor.u32 %v8263, %v8266
        %v8268 = vsel %vm3151, %v8258, %v8267
        %v8270 = vshrl.u32 %v7870, 16
        %v8272 = vrot.slane %v8270, 2
        %v8273 = vshll.u32 %v7870, 16
        %v8275 = vrot.slane %v8273, 3
        %v8276 = vor.u32 %v8272, %v8275
        %v8277 = vsel %vm3151, %v8267, %v8276
        %v8279 = vshrl.u32 %v7871, 16
        %v8281 = vrot.slane %v8279, 2
        %v8282 = vshll.u32 %v7871, 16
        %v8284 = vrot.slane %v8282, 3
        %v8285 = vor.u32 %v8281, %v8284
        %v8286 = vsel %vm3151, %v8276, %v8285
        %v8288 = vshrl.u32 %v7872, 16
        %v8290 = vrot.slane %v8288, 2
        %v8291 = vshll.u32 %v7872, 16
        %v8293 = vrot.slane %v8291, 3
        %v8294 = vor.u32 %v8290, %v8293
        %v8295 = vsel %vm3151, %v8285, %v8294
        %v8297 = vshrl.u32 %v7873, 16
        %v8299 = vrot.slane %v8297, 2
        %v8300 = vshll.u32 %v7873, 16
        %v8302 = vrot.slane %v8300, 3
        %v8303 = vor.u32 %v8299, %v8302
        %v8304 = vsel %vm3151, %v8294, %v8303
        %v8306 = vshrl.u32 %v7874, 16
        %v8308 = vrot.slane %v8306, 2
        %v8309 = vshll.u32 %v7874, 16
        %v8311 = vrot.slane %v8309, 3
        %v8312 = vor.u32 %v8308, %v8311
        %v8313 = vsel %vm3151, %v8303, %v8312
        %v8315 = vshrl.u32 %v7875, 16
        %v8317 = vrot.slane %v8315, 2
        %v8318 = vshll.u32 %v7875, 16
        %v8320 = vrot.slane %v8318, 3
        %v8321 = vor.u32 %v8317, %v8320
        %v8322 = vsel %vm3151, %v8312, %v8321
        %v8324 = vshrl.u32 %v7876, 16
        %v8326 = vrot.slane %v8324, 2
        %v8327 = vshll.u32 %v7876, 16
        %v8329 = vrot.slane %v8327, 3
        %v8330 = vor.u32 %v8326, %v8329
        %v8331 = vsel %vm3151, %v8321, %v8330
        %v8333 = vshrl.u32 %v7877, 16
        %v8335 = vrot.slane %v8333, 2
        %v8336 = vshll.u32 %v7877, 16
        %v8338 = vrot.slane %v8336, 3
        %v8339 = vor.u32 %v8335, %v8338
        %v8340 = vsel %vm3151, %v8330, %v8339
        %v8342 = vshrl.u32 %v7878, 16
        %v8344 = vrot.slane %v8342, 2
        %v8345 = vshll.u32 %v7878, 16
        %v8347 = vrot.slane %v8345, 3
        %v8348 = vor.u32 %v8344, %v8347
        %v8349 = vsel %vm3151, %v8339, %v8348
        %v8351 = vshrl.u32 %v7879, 16
        %v8353 = vrot.slane %v8351, 2
        %v8354 = vshll.u32 %v7879, 16
        %v8356 = vrot.slane %v8354, 3
        %v8357 = vor.u32 %v8353, %v8356
        %v8358 = vsel %vm3151, %v8348, %v8357
        %v8360 = vshrl.u32 %v7880, 16
        %v8362 = vrot.slane %v8360, 2
        %v8363 = vshll.u32 %v7880, 16
        %v8365 = vrot.slane %v8363, 3
        %v8366 = vor.u32 %v8362, %v8365
        %v8367 = vsel %vm3151, %v8357, %v8366
        %v8369 = vshrl.u32 %v8206, 16
        %v8371 = vrot.slane %v8369, 2
        %v8372 = vshll.u32 %v8206, 16
        %v8374 = vrot.slane %v8372, 3
        %v8375 = vor.u32 %v8371, %v8374
        %v8376 = vsel %vm3151, %v8366, %v8375
        %v8381 = vunpack.c.l.b16 %v8200
        %v8382 = vunpack.c.l.b16 %v8201
        %v8383 = vunpack.c.l.b16 %v8202
        %v8384 = vunpack.c.l.b16 %v8203
        %v8385 = vpack.c.b16 %v8382, %v8381
        %v8386 = vpack.c.b16 %v8384, %v8383
        %v8390 = vsel %vm4204, %v8223, 0
        %v8393 = vsel %vm4204, %v8232, 0
        %v8396 = vsel %vm4204, %v8241, 0
        %v8399 = vsel %vm4204, %v8250, 0
        %v8402 = vsel %vm4204, %v8259, 0
        %v8405 = vsel %vm4204, %v8268, 0
        %v8408 = vsel %vm4204, %v8277, 0
        %v8411 = vsel %vm4204, %v8286, 0
        %v8414 = vsel %vm4204, %v8295, 0
        %v8417 = vsel %vm4204, %v8304, 0
        %v8420 = vsel %vm4204, %v8313, 0
        %v8423 = vsel %vm4204, %v8322, 0
        %v8426 = vsel %vm4204, %v8331, 0
        %v8429 = vsel %vm4204, %v8340, 0
        %v8432 = vsel %vm4204, %v8349, 0
        %v8435 = vsel %vm4204, %v8358, 0
        %v8438 = vsel %vm4204, %v8367, 0
        %v8441 = vsel %vm4204, %v8376, 0
        %8443 = vmatprep.subr.bf16.mxu0 0
        %8444 = vmatpush1.bf16.msra.mxu0 %v8385
        %8445 = vmatprep.subr.bf16.mxu0 0
        %8446 = vmatpush1.bf16.msra.mxu0 %v8386
        %8447 = vmatprep.subr.bf16.mxu0 0
        %8448 = vmatpush1.bf16.msra.mxu0 0
        %8449 = vmatprep.subr.bf16.mxu0 0
        %8450 = vmatpush1.bf16.msra.mxu0 0
        %8451 = vmatprep.subr.bf16.mxu0 0
        %8452 = vmatpush1.bf16.msra.mxu0 0
        %8453 = vmatprep.subr.bf16.mxu0 0
        %8454 = vmatpush1.bf16.msra.mxu0 0
        %8455 = vmatprep.subr.bf16.mxu0 0
        %8456 = vmatpush1.bf16.msra.mxu0 0
        %8457 = vmatprep.subr.bf16.mxu0 0
        %8458 = vmatpush1.bf16.msra.mxu0 0
        %8459 = vmatprep.subr.bf16.mxu0 0
        %8460 = vmatpush1.bf16.msra.mxu0 0
        %8461 = vmatprep.subr.bf16.mxu0 0
        %8462 = vmatpush1.bf16.msra.mxu0 0
        %8463 = vmatprep.subr.bf16.mxu0 0
        %8464 = vmatpush1.bf16.msra.mxu0 0
        %8465 = vmatprep.subr.bf16.mxu0 0
        %8466 = vmatpush1.bf16.msra.mxu0 0
        %8467 = vmatprep.subr.bf16.mxu0 0
        %8468 = vmatpush1.bf16.msra.mxu0 0
        %8469 = vmatprep.subr.bf16.mxu0 0
        %8470 = vmatpush1.bf16.msra.mxu0 0
        %8471 = vmatprep.subr.bf16.mxu0 0
        %8472 = vmatpush1.bf16.msra.mxu0 0
        %8473 = vmatprep.subr.bf16.mxu0 0
        %8474 = vmatpush1.bf16.msra.mxu0 0
        %8475 = vmatprep.mubr.bf16.mxu0 0
        %8476 = vmatmul.mubr.bf16.gmra.mrb[0].mxu0 %v8390
        %v8477 = vpop.f32.mrb[0].mxu0
        %v8478 = vadd.f32 0.0, %v8477
        %v8479 = vpop.f32.mrb[0].mxu0
        %v8480 = vpop.f32.mrb[0].mxu0
        %v8481 = vadd.f32 0.0, %v8480
        %v8482 = vpop.f32.mrb[0].mxu0
        %8483 = vmatprep.mubr.bf16.mxu0 0
        %8484 = vmatmul.mubr.bf16.gmra.mrb[0].mxu0 %v8393
        %v8485 = vpop.f32.mrb[0].mxu0
        %v8486 = vadd.f32 0.0, %v8485
        %v8487 = vpop.f32.mrb[0].mxu0
        %v8488 = vpop.f32.mrb[0].mxu0
        %v8489 = vadd.f32 0.0, %v8488
        %v8490 = vpop.f32.mrb[0].mxu0
        %8491 = vmatprep.mubr.bf16.mxu0 0
        %8492 = vmatmul.mubr.bf16.gmra.mrb[0].mxu0 %v8396
        %v8493 = vpop.f32.mrb[0].mxu0
        %v8494 = vadd.f32 0.0, %v8493
        %v8495 = vpop.f32.mrb[0].mxu0
        %v8496 = vpop.f32.mrb[0].mxu0
        %v8497 = vadd.f32 0.0, %v8496
        %v8498 = vpop.f32.mrb[0].mxu0
        %8499 = vmatprep.mubr.bf16.mxu0 0
        %8500 = vmatmul.mubr.bf16.gmra.mrb[0].mxu0 %v8399
        %v8501 = vpop.f32.mrb[0].mxu0
        %v8502 = vadd.f32 0.0, %v8501
        %v8503 = vpop.f32.mrb[0].mxu0
        %v8504 = vpop.f32.mrb[0].mxu0
        %v8505 = vadd.f32 0.0, %v8504
        %v8506 = vpop.f32.mrb[0].mxu0
        %8507 = vmatprep.mubr.bf16.mxu0 0
        %8508 = vmatmul.mubr.bf16.gmra.mrb[0].mxu0 %v8402
        %v8509 = vpop.f32.mrb[0].mxu0
        %v8510 = vadd.f32 0.0, %v8509
        %v8511 = vpop.f32.mrb[0].mxu0
        %v8512 = vpop.f32.mrb[0].mxu0
        %v8513 = vadd.f32 0.0, %v8512
        %v8514 = vpop.f32.mrb[0].mxu0
        %8515 = vmatprep.mubr.bf16.mxu0 0
        %8516 = vmatmul.mubr.bf16.gmra.mrb[0].mxu0 %v8405
        %v8517 = vpop.f32.mrb[0].mxu0
        %v8518 = vadd.f32 0.0, %v8517
        %v8519 = vpop.f32.mrb[0].mxu0
        %v8520 = vpop.f32.mrb[0].mxu0
        %v8521 = vadd.f32 0.0, %v8520
        %v8522 = vpop.f32.mrb[0].mxu0
        %8523 = vmatprep.mubr.bf16.mxu0 0
        %8524 = vmatmul.mubr.bf16.gmra.mrb[0].mxu0 %v8408
        %v8525 = vpop.f32.mrb[0].mxu0
        %v8526 = vadd.f32 0.0, %v8525
        %v8527 = vpop.f32.mrb[0].mxu0
        %v8528 = vpop.f32.mrb[0].mxu0
        %v8529 = vadd.f32 0.0, %v8528
        %v8530 = vpop.f32.mrb[0].mxu0
        %8531 = vmatprep.mubr.bf16.mxu0 0
        %8532 = vmatmul.mubr.bf16.gmra.mrb[0].mxu0 %v8411
        %v8533 = vpop.f32.mrb[0].mxu0
        %v8534 = vadd.f32 0.0, %v8533
        %v8535 = vpop.f32.mrb[0].mxu0
        %v8536 = vpop.f32.mrb[0].mxu0
        %v8537 = vadd.f32 0.0, %v8536
        %v8538 = vpop.f32.mrb[0].mxu0
        %8539 = vmatprep.mubr.bf16.mxu0 0
        %8540 = vmatmul.mubr.bf16.gmra.mrb[0].mxu0 %v8414
        %v8541 = vpop.f32.mrb[0].mxu0
        %v8542 = vadd.f32 0.0, %v8541
        %v8543 = vpop.f32.mrb[0].mxu0
        %v8544 = vpop.f32.mrb[0].mxu0
        %v8545 = vadd.f32 0.0, %v8544
        %v8546 = vpop.f32.mrb[0].mxu0
        %8547 = vmatprep.mubr.bf16.mxu0 0
        %8548 = vmatmul.mubr.bf16.gmra.mrb[0].mxu0 %v8417
        %v8549 = vpop.f32.mrb[0].mxu0
        %v8550 = vadd.f32 0.0, %v8549
        %v8551 = vpop.f32.mrb[0].mxu0
        %v8552 = vpop.f32.mrb[0].mxu0
        %v8553 = vadd.f32 0.0, %v8552
        %v8554 = vpop.f32.mrb[0].mxu0
        %8555 = vmatprep.mubr.bf16.mxu0 0
        %8556 = vmatmul.mubr.bf16.gmra.mrb[0].mxu0 %v8420
        %v8557 = vpop.f32.mrb[0].mxu0
        %v8558 = vadd.f32 0.0, %v8557
        %v8559 = vpop.f32.mrb[0].mxu0
        %v8560 = vpop.f32.mrb[0].mxu0
        %v8561 = vadd.f32 0.0, %v8560
        %v8562 = vpop.f32.mrb[0].mxu0
        %8563 = vmatprep.mubr.bf16.mxu0 0
        %8564 = vmatmul.mubr.bf16.gmra.mrb[0].mxu0 %v8423
        %v8565 = vpop.f32.mrb[0].mxu0
        %v8566 = vadd.f32 0.0, %v8565
        %v8567 = vpop.f32.mrb[0].mxu0
        %v8568 = vpop.f32.mrb[0].mxu0
        %v8569 = vadd.f32 0.0, %v8568
        %v8570 = vpop.f32.mrb[0].mxu0
        %8571 = vmatprep.mubr.bf16.mxu0 0
        %8572 = vmatmul.mubr.bf16.gmra.mrb[0].mxu0 %v8426
        %v8573 = vpop.f32.mrb[0].mxu0
        %v8574 = vadd.f32 0.0, %v8573
        %v8575 = vpop.f32.mrb[0].mxu0
        %v8576 = vpop.f32.mrb[0].mxu0
        %v8577 = vadd.f32 0.0, %v8576
        %v8578 = vpop.f32.mrb[0].mxu0
        %8579 = vmatprep.mubr.bf16.mxu0 0
        %8580 = vmatmul.mubr.bf16.gmra.mrb[0].mxu0 %v8429
        %v8581 = vpop.f32.mrb[0].mxu0
        %v8582 = vadd.f32 0.0, %v8581
        %v8583 = vpop.f32.mrb[0].mxu0
        %v8584 = vpop.f32.mrb[0].mxu0
        %v8585 = vadd.f32 0.0, %v8584
        %v8586 = vpop.f32.mrb[0].mxu0
        %8587 = vmatprep.mubr.bf16.mxu0 0
        %8588 = vmatmul.mubr.bf16.gmra.mrb[0].mxu0 %v8432
        %v8589 = vpop.f32.mrb[0].mxu0
        %v8590 = vadd.f32 0.0, %v8589
        %v8591 = vpop.f32.mrb[0].mxu0
        %v8592 = vpop.f32.mrb[0].mxu0
        %v8593 = vadd.f32 0.0, %v8592
        %v8594 = vpop.f32.mrb[0].mxu0
        %8595 = vmatprep.mubr.bf16.mxu0 0
        %8596 = vmatmul.mubr.bf16.gmra.mrb[0].mxu0 %v8435
        %v8597 = vpop.f32.mrb[0].mxu0
        %v8598 = vadd.f32 0.0, %v8597
        %v8599 = vpop.f32.mrb[0].mxu0
        %v8600 = vpop.f32.mrb[0].mxu0
        %v8601 = vadd.f32 0.0, %v8600
        %v8602 = vpop.f32.mrb[0].mxu0
        %8603 = vmatprep.mubr.bf16.mxu0 0
        %8604 = vmatmul.mubr.bf16.gmra.mrb[0].mxu0 %v8438
        %v8605 = vpop.f32.mrb[0].mxu0
        %v8606 = vadd.f32 0.0, %v8605
        %v8607 = vpop.f32.mrb[0].mxu0
        %v8608 = vpop.f32.mrb[0].mxu0
        %v8609 = vadd.f32 0.0, %v8608
        %v8610 = vpop.f32.mrb[0].mxu0
        %8611 = vmatprep.mubr.bf16.mxu0 0
        %8612 = vmatmul.mubr.bf16.gmra.mrb[0].mxu0 %v8441
        %v8613 = vpop.f32.mrb[0].mxu0
        %v8614 = vadd.f32 0.0, %v8613
        %v8615 = vpop.f32.mrb[0].mxu0
        %v8616 = vpop.f32.mrb[0].mxu0
        %v8617 = vadd.f32 0.0, %v8616
        %v8618 = vpop.f32.mrb[0].mxu0
        %8619 = vdwg.mxu0
        %v8620 = vadd.f32 %v8162, %v8478
        %v8621 = vadd.f32 %v8163, %v8481
        %v8622 = vadd.f32 %v8164, %v8486
        %v8623 = vadd.f32 %v8165, %v8489
        %v8624 = vadd.f32 %v8166, %v8494
        %v8625 = vadd.f32 %v8167, %v8497
        %v8626 = vadd.f32 %v8168, %v8502
        %v8627 = vadd.f32 %v8169, %v8505
        %v8628 = vadd.f32 %v8170, %v8510
        %v8629 = vadd.f32 %v8171, %v8513
        %v8630 = vadd.f32 %v8172, %v8518
        %v8631 = vadd.f32 %v8173, %v8521
        %v8632 = vadd.f32 %v8174, %v8526
        %v8633 = vadd.f32 %v8175, %v8529
        %v8634 = vadd.f32 %v8176, %v8534
        %v8635 = vadd.f32 %v8177, %v8537
        %v8636 = vadd.f32 %v8178, %v8542
        %v8637 = vadd.f32 %v8179, %v8545
        %v8638 = vadd.f32 %v8180, %v8550
        %v8639 = vadd.f32 %v8181, %v8553
        %v8640 = vadd.f32 %v8182, %v8558
        %v8641 = vadd.f32 %v8183, %v8561
        %v8642 = vadd.f32 %v8184, %v8566
        %v8643 = vadd.f32 %v8185, %v8569
        %v8644 = vadd.f32 %v8186, %v8574
        %v8645 = vadd.f32 %v8187, %v8577
        %v8646 = vadd.f32 %v8188, %v8582
        %v8647 = vadd.f32 %v8189, %v8585
        %v8648 = vadd.f32 %v8190, %v8590
        %v8649 = vadd.f32 %v8191, %v8593
        %v8650 = vadd.f32 %v8192, %v8598
        %v8651 = vadd.f32 %v8193, %v8601
        %v8652 = vadd.f32 %v8194, %v8606
        %v8653 = vadd.f32 %v8195, %v8609
        %v8654 = vadd.f32 %v8196, %v8614
        %v8655 = vadd.f32 %v8197, %v8617
        %v8656 = vld [vmem:[#allocation2 + $0x10] sm:$0x8]
        %s8657 = scalar_lea.vmem %s8, 128
        %v8658 = vld [vmem:[%s8657] sm:$0xf]
        %v8659 = vld [vmem:[%s8657 + $0x4] sm:$0xf]
        %v8660 = vld [vmem:[%s8657 + $0x8] sm:$0xf]
        %v8661 = vld [vmem:[%s8657 + $0xc] sm:$0xf]
        %v8663 = vunpack.c.l.b16 %v8656
        %v8664 = vpack.c.b16 %v7827, %v8663
        %v8665 = vrot.slane %v8664, 3
        %v8666 = vrot.slane %v7864, 3
        %v8667 = vsel %vm3598, %v8665, %v8666
        %v8668 = vrot.slane %v7865, 3
        %v8669 = vsel %vm3598, %v8666, %v8668
        %v8670 = vrot.slane %v7866, 3
        %v8671 = vsel %vm3598, %v8668, %v8670
        %v8672 = vrot.slane %v7867, 3
        %v8673 = vsel %vm3598, %v8670, %v8672
        %v8674 = vrot.slane %v7868, 3
        %v8675 = vsel %vm3598, %v8672, %v8674
        %v8676 = vrot.slane %v7869, 3
        %v8677 = vsel %vm3598, %v8674, %v8676
        %v8678 = vrot.slane %v7870, 3
        %v8679 = vsel %vm3598, %v8676, %v8678
        %v8680 = vrot.slane %v7871, 3
        %v8681 = vsel %vm3598, %v8678, %v8680
        %v8682 = vrot.slane %v7872, 3
        %v8683 = vsel %vm3598, %v8680, %v8682
        %v8684 = vrot.slane %v7873, 3
        %v8685 = vsel %vm3598, %v8682, %v8684
        %v8686 = vrot.slane %v7874, 3
        %v8687 = vsel %vm3598, %v8684, %v8686
        %v8688 = vrot.slane %v7875, 3
        %v8689 = vsel %vm3598, %v8686, %v8688
        %v8690 = vrot.slane %v7876, 3
        %v8691 = vsel %vm3598, %v8688, %v8690
        %v8692 = vrot.slane %v7877, 3
        %v8693 = vsel %vm3598, %v8690, %v8692
        %v8694 = vrot.slane %v7878, 3
        %v8695 = vsel %vm3598, %v8692, %v8694
        %v8696 = vrot.slane %v7879, 3
        %v8697 = vsel %vm3598, %v8694, %v8696
        %v8698 = vrot.slane %v7880, 3
        %v8699 = vsel %vm3598, %v8696, %v8698
        %v8700 = vrot.slane %v8206, 3
        %v8701 = vsel %vm3598, %v8698, %v8700
        %v8706 = vunpack.c.l.b16 %v8658
        %v8707 = vunpack.c.l.b16 %v8659
        %v8708 = vunpack.c.l.b16 %v8660
        %v8709 = vunpack.c.l.b16 %v8661
        %v8710 = vpack.c.b16 %v8707, %v8706
        %v8711 = vpack.c.b16 %v8709, %v8708
        %v8715 = vsel %vm4204, %v8667, 0
        %v8718 = vsel %vm4204, %v8669, 0
        %v8721 = vsel %vm4204, %v8671, 0
        %v8724 = vsel %vm4204, %v8673, 0
        %v8727 = vsel %vm4204, %v8675, 0
        %v8730 = vsel %vm4204, %v8677, 0
        %v8733 = vsel %vm4204, %v8679, 0
        %v8736 = vsel %vm4204, %v8681, 0
        %v8739 = vsel %vm4204, %v8683, 0
        %v8742 = vsel %vm4204, %v8685, 0
        %v8745 = vsel %vm4204, %v8687, 0
        %v8748 = vsel %vm4204, %v8689, 0
        %v8751 = vsel %vm4204, %v8691, 0
        %v8754 = vsel %vm4204, %v8693, 0
        %v8757 = vsel %vm4204, %v8695, 0
        %v8760 = vsel %vm4204, %v8697, 0
        %v8763 = vsel %vm4204, %v8699, 0
        %v8766 = vsel %vm4204, %v8701, 0
        %8768 = vmatprep.subr.bf16.mxu0 0
        %8769 = vmatpush1.bf16.msra.mxu0 %v8710
        %8770 = vmatprep.subr.bf16.mxu0 0
        %8771 = vmatpush1.bf16.msra.mxu0 %v8711
        %8772 = vmatprep.subr.bf16.mxu0 0
        %8773 = vmatpush1.bf16.msra.mxu0 0
        %8774 = vmatprep.subr.bf16.mxu0 0
        %8775 = vmatpush1.bf16.msra.mxu0 0
        %8776 = vmatprep.subr.bf16.mxu0 0
        %8777 = vmatpush1.bf16.msra.mxu0 0
        %8778 = vmatprep.subr.bf16.mxu0 0
        %8779 = vmatpush1.bf16.msra.mxu0 0
        %8780 = vmatprep.subr.bf16.mxu0 0
        %8781 = vmatpush1.bf16.msra.mxu0 0
        %8782 = vmatprep.subr.bf16.mxu0 0
        %8783 = vmatpush1.bf16.msra.mxu0 0
        %8784 = vmatprep.subr.bf16.mxu0 0
        %8785 = vmatpush1.bf16.msra.mxu0 0
        %8786 = vmatprep.subr.bf16.mxu0 0
        %8787 = vmatpush1.bf16.msra.mxu0 0
        %8788 = vmatprep.subr.bf16.mxu0 0
        %8789 = vmatpush1.bf16.msra.mxu0 0
        %8790 = vmatprep.subr.bf16.mxu0 0
        %8791 = vmatpush1.bf16.msra.mxu0 0
        %8792 = vmatprep.subr.bf16.mxu0 0
        %8793 = vmatpush1.bf16.msra.mxu0 0
        %8794 = vmatprep.subr.bf16.mxu0 0
        %8795 = vmatpush1.bf16.msra.mxu0 0
        %8796 = vmatprep.subr.bf16.mxu0 0
        %8797 = vmatpush1.bf16.msra.mxu0 0
        %8798 = vmatprep.subr.bf16.mxu0 0
        %8799 = vmatpush1.bf16.msra.mxu0 0
        %8800 = vmatprep.mubr.bf16.mxu0 0
        %8801 = vmatmul.mubr.bf16.gmra.mrb[0].mxu0 %v8715
        %v8802 = vpop.f32.mrb[0].mxu0
        %v8803 = vadd.f32 0.0, %v8802
        %v8804 = vpop.f32.mrb[0].mxu0
        %v8805 = vpop.f32.mrb[0].mxu0
        %v8806 = vadd.f32 0.0, %v8805
        %v8807 = vpop.f32.mrb[0].mxu0
        %8808 = vmatprep.mubr.bf16.mxu0 0
        %8809 = vmatmul.mubr.bf16.gmra.mrb[0].mxu0 %v8718
        %v8810 = vpop.f32.mrb[0].mxu0
        %v8811 = vadd.f32 0.0, %v8810
        %v8812 = vpop.f32.mrb[0].mxu0
        %v8813 = vpop.f32.mrb[0].mxu0
        %v8814 = vadd.f32 0.0, %v8813
        %v8815 = vpop.f32.mrb[0].mxu0
        %8816 = vmatprep.mubr.bf16.mxu0 0
        %8817 = vmatmul.mubr.bf16.gmra.mrb[0].mxu0 %v8721
        %v8818 = vpop.f32.mrb[0].mxu0
        %v8819 = vadd.f32 0.0, %v8818
        %v8820 = vpop.f32.mrb[0].mxu0
        %v8821 = vpop.f32.mrb[0].mxu0
        %v8822 = vadd.f32 0.0, %v8821
        %v8823 = vpop.f32.mrb[0].mxu0
        %8824 = vmatprep.mubr.bf16.mxu0 0
        %8825 = vmatmul.mubr.bf16.gmra.mrb[0].mxu0 %v8724
        %v8826 = vpop.f32.mrb[0].mxu0
        %v8827 = vadd.f32 0.0, %v8826
        %v8828 = vpop.f32.mrb[0].mxu0
        %v8829 = vpop.f32.mrb[0].mxu0
        %v8830 = vadd.f32 0.0, %v8829
        %v8831 = vpop.f32.mrb[0].mxu0
        %8832 = vmatprep.mubr.bf16.mxu0 0
        %8833 = vmatmul.mubr.bf16.gmra.mrb[0].mxu0 %v8727
        %v8834 = vpop.f32.mrb[0].mxu0
        %v8835 = vadd.f32 0.0, %v8834
        %v8836 = vpop.f32.mrb[0].mxu0
        %v8837 = vpop.f32.mrb[0].mxu0
        %v8838 = vadd.f32 0.0, %v8837
        %v8839 = vpop.f32.mrb[0].mxu0
        %8840 = vmatprep.mubr.bf16.mxu0 0
        %8841 = vmatmul.mubr.bf16.gmra.mrb[0].mxu0 %v8730
        %v8842 = vpop.f32.mrb[0].mxu0
        %v8843 = vadd.f32 0.0, %v8842
        %v8844 = vpop.f32.mrb[0].mxu0
        %v8845 = vpop.f32.mrb[0].mxu0
        %v8846 = vadd.f32 0.0, %v8845
        %v8847 = vpop.f32.mrb[0].mxu0
        %8848 = vmatprep.mubr.bf16.mxu0 0
        %8849 = vmatmul.mubr.bf16.gmra.mrb[0].mxu0 %v8733
        %v8850 = vpop.f32.mrb[0].mxu0
        %v8851 = vadd.f32 0.0, %v8850
        %v8852 = vpop.f32.mrb[0].mxu0
        %v8853 = vpop.f32.mrb[0].mxu0
        %v8854 = vadd.f32 0.0, %v8853
        %v8855 = vpop.f32.mrb[0].mxu0
        %8856 = vmatprep.mubr.bf16.mxu0 0
        %8857 = vmatmul.mubr.bf16.gmra.mrb[0].mxu0 %v8736
        %v8858 = vpop.f32.mrb[0].mxu0
        %v8859 = vadd.f32 0.0, %v8858
        %v8860 = vpop.f32.mrb[0].mxu0
        %v8861 = vpop.f32.mrb[0].mxu0
        %v8862 = vadd.f32 0.0, %v8861
        %v8863 = vpop.f32.mrb[0].mxu0
        %8864 = vmatprep.mubr.bf16.mxu0 0
        %8865 = vmatmul.mubr.bf16.gmra.mrb[0].mxu0 %v8739
        %v8866 = vpop.f32.mrb[0].mxu0
        %v8867 = vadd.f32 0.0, %v8866
        %v8868 = vpop.f32.mrb[0].mxu0
        %v8869 = vpop.f32.mrb[0].mxu0
        %v8870 = vadd.f32 0.0, %v8869
        %v8871 = vpop.f32.mrb[0].mxu0
        %8872 = vmatprep.mubr.bf16.mxu0 0
        %8873 = vmatmul.mubr.bf16.gmra.mrb[0].mxu0 %v8742
        %v8874 = vpop.f32.mrb[0].mxu0
        %v8875 = vadd.f32 0.0, %v8874
        %v8876 = vpop.f32.mrb[0].mxu0
        %v8877 = vpop.f32.mrb[0].mxu0
        %v8878 = vadd.f32 0.0, %v8877
        %v8879 = vpop.f32.mrb[0].mxu0
        %8880 = vmatprep.mubr.bf16.mxu0 0
        %8881 = vmatmul.mubr.bf16.gmra.mrb[0].mxu0 %v8745
        %v8882 = vpop.f32.mrb[0].mxu0
        %v8883 = vadd.f32 0.0, %v8882
        %v8884 = vpop.f32.mrb[0].mxu0
        %v8885 = vpop.f32.mrb[0].mxu0
        %v8886 = vadd.f32 0.0, %v8885
        %v8887 = vpop.f32.mrb[0].mxu0
        %8888 = vmatprep.mubr.bf16.mxu0 0
        %8889 = vmatmul.mubr.bf16.gmra.mrb[0].mxu0 %v8748
        %v8890 = vpop.f32.mrb[0].mxu0
        %v8891 = vadd.f32 0.0, %v8890
        %v8892 = vpop.f32.mrb[0].mxu0
        %v8893 = vpop.f32.mrb[0].mxu0
        %v8894 = vadd.f32 0.0, %v8893
        %v8895 = vpop.f32.mrb[0].mxu0
        %8896 = vmatprep.mubr.bf16.mxu0 0
        %8897 = vmatmul.mubr.bf16.gmra.mrb[0].mxu0 %v8751
        %v8898 = vpop.f32.mrb[0].mxu0
        %v8899 = vadd.f32 0.0, %v8898
        %v8900 = vpop.f32.mrb[0].mxu0
        %v8901 = vpop.f32.mrb[0].mxu0
        %v8902 = vadd.f32 0.0, %v8901
        %v8903 = vpop.f32.mrb[0].mxu0
        %8904 = vmatprep.mubr.bf16.mxu0 0
        %8905 = vmatmul.mubr.bf16.gmra.mrb[0].mxu0 %v8754
        %v8906 = vpop.f32.mrb[0].mxu0
        %v8907 = vadd.f32 0.0, %v8906
        %v8908 = vpop.f32.mrb[0].mxu0
        %v8909 = vpop.f32.mrb[0].mxu0
        %v8910 = vadd.f32 0.0, %v8909
        %v8911 = vpop.f32.mrb[0].mxu0
        %8912 = vmatprep.mubr.bf16.mxu0 0
        %8913 = vmatmul.mubr.bf16.gmra.mrb[0].mxu0 %v8757
        %v8914 = vpop.f32.mrb[0].mxu0
        %v8915 = vadd.f32 0.0, %v8914
        %v8916 = vpop.f32.mrb[0].mxu0
        %v8917 = vpop.f32.mrb[0].mxu0
        %v8918 = vadd.f32 0.0, %v8917
        %v8919 = vpop.f32.mrb[0].mxu0
        %8920 = vmatprep.mubr.bf16.mxu0 0
        %8921 = vmatmul.mubr.bf16.gmra.mrb[0].mxu0 %v8760
        %v8922 = vpop.f32.mrb[0].mxu0
        %v8923 = vadd.f32 0.0, %v8922
        %v8924 = vpop.f32.mrb[0].mxu0
        %v8925 = vpop.f32.mrb[0].mxu0
        %v8926 = vadd.f32 0.0, %v8925
        %v8927 = vpop.f32.mrb[0].mxu0
        %8928 = vmatprep.mubr.bf16.mxu0 0
        %8929 = vmatmul.mubr.bf16.gmra.mrb[0].mxu0 %v8763
        %v8930 = vpop.f32.mrb[0].mxu0
        %v8931 = vadd.f32 0.0, %v8930
        %v8932 = vpop.f32.mrb[0].mxu0
        %v8933 = vpop.f32.mrb[0].mxu0
        %v8934 = vadd.f32 0.0, %v8933
        %v8935 = vpop.f32.mrb[0].mxu0
        %8936 = vmatprep.mubr.bf16.mxu0 0
        %8937 = vmatmul.mubr.bf16.gmra.mrb[0].mxu0 %v8766
        %v8938 = vpop.f32.mrb[0].mxu0
        %v8939 = vadd.f32 0.0, %v8938
        %v8940 = vpop.f32.mrb[0].mxu0
        %v8941 = vpop.f32.mrb[0].mxu0
        %v8942 = vadd.f32 0.0, %v8941
        %v8943 = vpop.f32.mrb[0].mxu0
        %8944 = vdwg.mxu0
        %v8945 = vadd.f32 %v8620, %v8803
        %v8946 = vadd.f32 %v8621, %v8806
        %v8947 = vadd.f32 %v8622, %v8811
        %v8948 = vadd.f32 %v8623, %v8814
        %v8949 = vadd.f32 %v8624, %v8819
        %v8950 = vadd.f32 %v8625, %v8822
        %v8951 = vadd.f32 %v8626, %v8827
        %v8952 = vadd.f32 %v8627, %v8830
        %v8953 = vadd.f32 %v8628, %v8835
        %v8954 = vadd.f32 %v8629, %v8838
        %v8955 = vadd.f32 %v8630, %v8843
        %v8956 = vadd.f32 %v8631, %v8846
        %v8957 = vadd.f32 %v8632, %v8851
        %v8958 = vadd.f32 %v8633, %v8854
        %v8959 = vadd.f32 %v8634, %v8859
        %v8960 = vadd.f32 %v8635, %v8862
        %v8961 = vadd.f32 %v8636, %v8867
        %v8962 = vadd.f32 %v8637, %v8870
        %v8963 = vadd.f32 %v8638, %v8875
        %v8964 = vadd.f32 %v8639, %v8878
        %v8965 = vadd.f32 %v8640, %v8883
        %v8966 = vadd.f32 %v8641, %v8886
        %v8967 = vadd.f32 %v8642, %v8891
        %v8968 = vadd.f32 %v8643, %v8894
        %v8969 = vadd.f32 %v8644, %v8899
        %v8970 = vadd.f32 %v8645, %v8902
        %v8971 = vadd.f32 %v8646, %v8907
        %v8972 = vadd.f32 %v8647, %v8910
        %v8973 = vadd.f32 %v8648, %v8915
        %v8974 = vadd.f32 %v8649, %v8918
        %v8975 = vadd.f32 %v8650, %v8923
        %v8976 = vadd.f32 %v8651, %v8926
        %v8977 = vadd.f32 %v8652, %v8931
        %v8978 = vadd.f32 %v8653, %v8934
        %v8979 = vadd.f32 %v8654, %v8939
        %v8980 = vadd.f32 %v8655, %v8942
        %v8982 = vlaneseq
        %v8983 = vshrl.u32 %v8982, 7
        %v8984 = vsub.s32 0, %v8983
        %v8985 = vrot.slane %v417, %v8984
        %v8987 = vadd.f32 %v8945, %v8985
        %v8988 = vadd.f32 %v8946, %v8985
        %v8989 = vadd.f32 %v8947, %v8985
        %v8990 = vadd.f32 %v8948, %v8985
        %v8991 = vadd.f32 %v8949, %v8985
        %v8992 = vadd.f32 %v8950, %v8985
        %v8993 = vadd.f32 %v8951, %v8985
        %v8994 = vadd.f32 %v8952, %v8985
        %v8995 = vadd.f32 %v8953, %v8985
        %v8996 = vadd.f32 %v8954, %v8985
        %v8997 = vadd.f32 %v8955, %v8985
        %v8998 = vadd.f32 %v8956, %v8985
        %v8999 = vadd.f32 %v8957, %v8985
        %v9000 = vadd.f32 %v8958, %v8985
        %v9001 = vadd.f32 %v8959, %v8985
        %v9002 = vadd.f32 %v8960, %v8985
        %v9003 = vadd.f32 %v8961, %v8985
        %v9004 = vadd.f32 %v8962, %v8985
        %v9005 = vadd.f32 %v8963, %v8985
        %v9006 = vadd.f32 %v8964, %v8985
        %v9007 = vadd.f32 %v8965, %v8985
        %v9008 = vadd.f32 %v8966, %v8985
        %v9009 = vadd.f32 %v8967, %v8985
        %v9010 = vadd.f32 %v8968, %v8985
        %v9011 = vadd.f32 %v8969, %v8985
        %v9012 = vadd.f32 %v8970, %v8985
        %v9013 = vadd.f32 %v8971, %v8985
        %v9014 = vadd.f32 %v8972, %v8985
        %v9015 = vadd.f32 %v8973, %v8985
        %v9016 = vadd.f32 %v8974, %v8985
        %v9017 = vadd.f32 %v8975, %v8985
        %v9018 = vadd.f32 %v8976, %v8985
        %v9019 = vadd.f32 %v8977, %v8985
        %v9020 = vadd.f32 %v8978, %v8985
        %v9021 = vadd.f32 %v8979, %v8985
        %v9022 = vadd.f32 %v8980, %v8985
        %9023 = vxpose.xlu0.b32.start [1/16] %v8987, 128
        %9024 = vxpose.xlu0.b32.cont [2/16] %v8988, 128
        %9025 = vxpose.xlu0.b32.cont [3/16] %v8989, 128
        %9026 = vxpose.xlu0.b32.cont [4/16] %v8990, 128
        %9027 = vxpose.xlu0.b32.cont [5/16] %v8991, 128
        %9028 = vxpose.xlu0.b32.cont [6/16] %v8992, 128
        %9029 = vxpose.xlu0.b32.cont [7/16] %v8993, 128
        %9030 = vxpose.xlu0.b32.cont [8/16] %v8994, 128
        %9031 = vxpose.xlu0.b32.cont [9/16] %v8995, 128
        %9032 = vxpose.xlu0.b32.cont [10/16] %v8996, 128
        %9033 = vxpose.xlu0.b32.cont [11/16] %v8997, 128
        %9034 = vxpose.xlu0.b32.cont [12/16] %v8998, 128
        %9035 = vxpose.xlu0.b32.cont [13/16] %v8999, 128
        %9036 = vxpose.xlu0.b32.cont [14/16] %v9000, 128
        %9037 = vxpose.xlu0.b32.cont [15/16] %v9001, 128
        %9038 = vxpose.xlu0.b32.end [16/16] %v9002, 128
        %v9039 = vpop.trf.xlu0
        %v9040 = vpop.trf.xlu0
        %v9041 = vpop.trf.xlu0
        %v9042 = vpop.trf.xlu0
        %v9043 = vpop.trf.xlu0
        %v9044 = vpop.trf.xlu0
        %v9045 = vpop.trf.xlu0
        %v9046 = vpop.trf.xlu0
        %v9047 = vpop.trf.xlu0
        %v9048 = vpop.trf.xlu0
        %v9049 = vpop.trf.xlu0
        %v9050 = vpop.trf.xlu0
        %v9051 = vpop.trf.xlu0
        %v9052 = vpop.trf.xlu0
        %v9053 = vpop.trf.xlu0
        %v9054 = vpop.trf.xlu0
        %9055 = vxpose.xlu0.b32.start [1/16] %v9003, 128
        %9056 = vxpose.xlu0.b32.cont [2/16] %v9004, 128
        %9057 = vxpose.xlu0.b32.cont [3/16] %v9005, 128
        %9058 = vxpose.xlu0.b32.cont [4/16] %v9006, 128
        %9059 = vxpose.xlu0.b32.cont [5/16] %v9007, 128
        %9060 = vxpose.xlu0.b32.cont [6/16] %v9008, 128
        %9061 = vxpose.xlu0.b32.cont [7/16] %v9009, 128
        %9062 = vxpose.xlu0.b32.cont [8/16] %v9010, 128
        %9063 = vxpose.xlu0.b32.cont [9/16] %v9011, 128
        %9064 = vxpose.xlu0.b32.cont [10/16] %v9012, 128
        %9065 = vxpose.xlu0.b32.cont [11/16] %v9013, 128
        %9066 = vxpose.xlu0.b32.cont [12/16] %v9014, 128
        %9067 = vxpose.xlu0.b32.cont [13/16] %v9015, 128
        %9068 = vxpose.xlu0.b32.cont [14/16] %v9016, 128
        %9069 = vxpose.xlu0.b32.cont [15/16] %v9017, 128
        %9070 = vxpose.xlu0.b32.end [16/16] %v9018, 128
        %v9071 = vpop.trf.xlu0
        %v9072 = vpop.trf.xlu0
        %v9073 = vpop.trf.xlu0
        %v9074 = vpop.trf.xlu0
        %v9075 = vpop.trf.xlu0
        %v9076 = vpop.trf.xlu0
        %v9077 = vpop.trf.xlu0
        %v9078 = vpop.trf.xlu0
        %v9079 = vpop.trf.xlu0
        %v9080 = vpop.trf.xlu0
        %v9081 = vpop.trf.xlu0
        %v9082 = vpop.trf.xlu0
        %v9083 = vpop.trf.xlu0
        %v9084 = vpop.trf.xlu0
        %v9085 = vpop.trf.xlu0
        %v9086 = vpop.trf.xlu0
        %9087 = vxpose.xlu0.b32.start [1/16] %v9019, 128
        %9088 = vxpose.xlu0.b32.cont [2/16] %v9020, 128
        %9089 = vxpose.xlu0.b32.cont [3/16] %v9021, 128
        %9090 = vxpose.xlu0.b32.cont [4/16] %v9022, 128
        %9091 = vxpose.xlu0.b32.cont [5/16] 0.0, 128
        %9092 = vxpose.xlu0.b32.cont [6/16] 0.0, 128
        %9093 = vxpose.xlu0.b32.cont [7/16] 0.0, 128
        %9094 = vxpose.xlu0.b32.cont [8/16] 0.0, 128
        %9095 = vxpose.xlu0.b32.cont [9/16] 0.0, 128
        %9096 = vxpose.xlu0.b32.cont [10/16] 0.0, 128
        %9097 = vxpose.xlu0.b32.cont [11/16] 0.0, 128
        %9098 = vxpose.xlu0.b32.cont [12/16] 0.0, 128
        %9099 = vxpose.xlu0.b32.cont [13/16] 0.0, 128
        %9100 = vxpose.xlu0.b32.cont [14/16] 0.0, 128
        %9101 = vxpose.xlu0.b32.cont [15/16] 0.0, 128
        %9102 = vxpose.xlu0.b32.end [16/16] 0.0, 128
        %v9103 = vpop.trf.xlu0
        %v9104 = vpop.trf.xlu0
        %v9105 = vpop.trf.xlu0
        %v9106 = vpop.trf.xlu0
        %v9107 = vpop.trf.xlu0
        %v9108 = vpop.trf.xlu0
        %v9109 = vpop.trf.xlu0
        %v9110 = vpop.trf.xlu0
        %v9111 = vpop.trf.xlu0
        %v9112 = vpop.trf.xlu0
        %v9113 = vpop.trf.xlu0
        %v9114 = vpop.trf.xlu0
        %v9115 = vpop.trf.xlu0
        %v9116 = vpop.trf.xlu0
        %v9117 = vpop.trf.xlu0
        %v9118 = vpop.trf.xlu0
        %v9119 = vadd.f32 %v9039, 2.0
        %v9120 = vadd.f32 %v9071, 2.0
        %v9121 = vadd.f32 %v9103, 2.0
        %v9122 = vmin.f32 %v9119, 0.0
        %v9123 = vmin.f32 %v9120, 0.0
        %v9124 = vmin.f32 %v9121, 0.0
        %v9125 = vand.u32 2147483647, %v9119
        %v9126 = vand.u32 2147483647, %v9120
        %v9127 = vand.u32 2147483647, %v9121
        %v9128 = vsub.f32 0.0, %v9125
        %v9129 = vsub.f32 0.0, %v9126
        %v9130 = vsub.f32 0.0, %v9127
        %v9131 = vmul.f32 %v9128, 1.442695
        %v9132 = vpow.pop %v9131
        %v9133 = vmul.f32 %v9129, 1.442695
        %v9134 = vpow.pop %v9133
        %v9135 = vmul.f32 %v9130, 1.442695
        %v9136 = vpow.pop %v9135
        %v9137 = vadd.f32 %v9132, 1.0
        %v9138 = vadd.f32 %v9134, 1.0
        %v9139 = vadd.f32 %v9136, 1.0
        %v9140 = vlog2.pop %v9137
        %v9141 = vmul.f32 %v9140, 0.6931472
        %v9142 = vlog2.pop %v9138
        %v9143 = vmul.f32 %v9142, 0.6931472
        %v9144 = vlog2.pop %v9139
        %v9145 = vmul.f32 %v9144, 0.6931472
        %v9146 = vsub.f32 %v9122, %v9141
        %v9147 = vsub.f32 %v9123, %v9143
        %v9148 = vsub.f32 %v9124, %v9145
        %v9149 = vmul.f32 %v9146, 1.442695
        %v9150 = vpow.pop %v9149
        %v9151 = vmul.f32 %v9147, 1.442695
        %v9152 = vpow.pop %v9151
        %v9153 = vmul.f32 %v9148, 1.442695
        %v9154 = vpow.pop %v9153
        %v9155 = vld [vmem:[%s410] sm:$0x3f]
        %v9159 = vcombine.low %v9150, %v9152
        %v9161 = vunpack.c.l.s4 1983009808
        %v9162 = vunpack.c.0.s8 %v9161
        %v9163 = vlaneseq
        %v9164 = vshrl.u32 %v9163, 7
        %v9165 = vsub.s32 %v9162, %v9164
        %v9166 = vrot.slane %v9159, %v9165
        %v9168 = vunpack.c.l.s4 1983009808
        %v9169 = vunpack.c.0.s8 %v9168
        %v9170 = vlaneseq
        %v9171 = vshrl.u32 %v9170, 7
        %v9172 = vsub.s32 %v9169, %v9171
        %v9173 = vrot.slane %v9154, %v9172
        %v9174 = vcombine.high %v9166, %v9173
        %v9176 = vmul.f32 %v9155, %v9174
        %v9180 = vcombine.low %v9039, %v9071
        %v9182 = vunpack.c.l.s4 1983009808
        %v9183 = vunpack.c.0.s8 %v9182
        %v9184 = vlaneseq
        %v9185 = vshrl.u32 %v9184, 7
        %v9186 = vsub.s32 %v9183, %v9185
        %v9187 = vrot.slane %v9180, %v9186
        %v9189 = vunpack.c.l.s4 1983009808
        %v9190 = vunpack.c.0.s8 %v9189
        %v9191 = vlaneseq
        %v9192 = vshrl.u32 %v9191, 7
        %v9193 = vsub.s32 %v9190, %v9192
        %v9194 = vrot.slane %v9103, %v9193
        %v9195 = vcombine.low %v9187, %v9194
        %v9197 = vadd.f32 %v9176, %v9195
        %vm9198 = vcmask 1043458
        %vm9199 = vmor %vm9198, %vm792
        %vm9200 = vcmask 259076
        %vm9201 = vmor %vm9200, %vm9199
        %9202 = vst.msk [vmem:[%s395] sm:$0x3f] %vm9201, %v9197
        %v9204 = vlaneseq
        %v9205 = vshrl.u32 %v9204, 7
        %v9206 = vsub.s32 0, %v9205
        %v9207 = vrot.slane %v454, %v9206
        %v9208 = vlaneseq
        %v9209 = vshrl.u32 %v9208, 7
        %v9210 = vsub.s32 1, %v9209
        %v9211 = vrot.slane %v454, %v9210
        %v9212 = vlaneseq
        %v9213 = vshrl.u32 %v9212, 7
        %v9214 = vsub.s32 2, %v9213
        %v9215 = vrot.slane %v454, %v9214
        %v9219 = vmul.f32 %v9146, %v9207
        %v9220 = vmul.f32 %v9147, %v9211
        %v9221 = vmul.f32 %v9148, %v9215
        %v9225 = vrot.slane %v9219, 2
        %v9226 = vrot.slane %v9220, 2
        %v9227 = vrot.slane %v9221, 2
        %v9231 = vsel %vm792, %v9225, 0.0
        %v9232 = vsel %vm792, %v9226, 0.0
        %v9233 = vadd.f32 %v9231, %v9232
        %vm9234 = vcmask 254976
        %v9235 = vsel %vm9234, %v9227, 0.0
        %v9236 = vadd.f32 %v9233, %v9235
        %9237 = vadd.xlane.f32.xlu0 %v9236
        %v9238 = vpop.xlane.xlu0 %9237
        %v9239 = vrot.slane %v9238, 4
        %v9240 = vadd.f32 %v9238, %v9239
        %v9241 = vrot.slane %v9240, 2
        %v9242 = vadd.f32 %v9240, %v9241
        %v9243 = vrot.slane %v9242, 1
        %v9244 = vadd.f32 %v9242, %v9243
        %s9245 = vtos %v9244
        %v9246 = vstv %s9245
        %vm9247 = vcmask 0
        %9248 = vst.msk [vmem:[%s413] sm:$0x1] %vm9247, %v9246
        %s9249 = sand.u32 %s254, 1
        %s9250 = scalar_lea.sflag [#allocation4], %s9249
        %s9251 = sand.u32 %s254, 1
        %s9252 = smul.addr %s9251, 6
        %s9253 = scalar_lea.vmem [#allocation3], %s9252
        %p9254 = scmp.lt.s32.totalorder %s26, 1
        %s9255 = scalar_select %p9254, %s26, 1
        %s9256 = scalar_lea.vmem %s11, %s9255
        // Predicated region
        $region61: #{tpu_custom_call.1} parent=59 // pred_check
          %p9257 = pneg %p264
        $region62: #{tpu_custom_call.1} parent=59 // pred_check_branch
          %9259 = sbr.rel (%p9257) target = $region64
        $region63: #{tpu_custom_call.1} parent=59 // pred_region
          %s9261 = ssub.s32 96, 96
          %9262 = vsyncadd %s9250, %s9261
          %s9263 = smul.addr %s26, 3
          %s9264 = smul.addr %s9263, 32
          %s9265 = scalar_lea.hbm %s10, %s9264
          %s9267 = sshll.u32 %s9253, 4
          %s9268 = int_to_ptr.vmem [resolvable:$true] %s9267
          %9270 = dma.vmem_to_hbm [thread:$0]  %s9268, 96, %s9265, %s9250
        $region64: #{tpu_custom_call.1} parent=59 // pred_fallthru
          _
        // Predicated region
        $region65: #{tpu_custom_call.1} parent=59 // pred_check
          %p9271 = pneg %p290
        $region66: #{tpu_custom_call.1} parent=59 // pred_check_branch
          %9273 = sbr.rel (%p9271) target = $region68
        $region67: #{tpu_custom_call.1} parent=59 // pred_region
          _
        $region68: #{tpu_custom_call.1} parent=59 // pred_fallthru
          _
      $region60: #{tpu_custom_call.1} parent=5 // pred_fallthru
        _
      %p9274 = scmp.le.s32.totalorder 2, %s21
      // Predicated region
      $region69: #{tpu_custom_call.1} parent=5 // pred_check
        %p9275 = pneg %p9274
      $region70: #{tpu_custom_call.1} parent=5 // pred_check_branch
        %9277 = sbr.rel (%p9275) target = $region72
      $region71: #{tpu_custom_call.1} parent=5 // pred_region
        %s9278 = ssub.s32 %s21, 2
        // Predicated region
        $region73: #{tpu_custom_call.1} parent=71 // pred_check
          %p9279 = pneg %p270
        $region74: #{tpu_custom_call.1} parent=71 // pred_check_branch
          %9281 = sbr.rel (%p9279) target = $region76
        $region75: #{tpu_custom_call.1} parent=71 // pred_region
          %s9282 = sand.u32 %s255, 1
          %s9283 = scalar_lea.sflag [#allocation4], %s9282
          %s9284 = sand.u32 %s255, 1
          %s9285 = smul.addr %s9284, 6
          %s9286 = scalar_lea.vmem [#allocation3], %s9285
          %9287 = dma.done %s9283, 96
        $region76: #{tpu_custom_call.1} parent=71 // pred_fallthru
          _
        // Predicated region
        $region77: #{tpu_custom_call.1} parent=71 // pred_check
          %p9288 = pneg %p296
        $region78: #{tpu_custom_call.1} parent=71 // pred_check_branch
          %9290 = sbr.rel (%p9288) target = $region80
        $region79: #{tpu_custom_call.1} parent=71 // pred_region
          %p9291 = scmp.lt.s32.totalorder %s27, 1
          %s9292 = scalar_select %p9291, %s27, 1
          %s9293 = scalar_lea.vmem %s11, %s9292
        $region80: #{tpu_custom_call.1} parent=71 // pred_fallthru
          _
      $region72: #{tpu_custom_call.1} parent=5 // pred_fallthru
        _
    $region6: #{tpu_custom_call.1} parent=1 // loop_footer
      %s25 = sadd.s32 1, %s21
    $region7: #{tpu_custom_call.1} parent=1 // loop_footer_branch
      %20 = sbr.rel target = $region3
    $region8: #{tpu_custom_call.1} parent=1 // loop_exit
      _
    %9294 = vsyncpa [#allocation4], 1
    %s9295 = scalar_lea.sflag [#allocation4], 1
    %9296 = vsyncpa %s9295, 1

</llo_original>
